<compile_context>
chip_gen: v7x
topology: tpu7x:2x2x1
jax: 0.10.0
libtpu: 0.0.40
codegen_flags: <defaults>
</compile_context>

<pallas_src>
import functools

import jax
import jax.numpy as jnp
from jax.experimental import pallas as pl
from jax.experimental.pallas import tpu as pltpu

_EPS = 1e-5
_VMEM = pl.BlockSpec(memory_space=pltpu.MemorySpace.VMEM)


def _bn_rows(y):
    """Training-mode BatchNorm2d(affine=False): per-row stats over the lanes."""
    mean = jnp.mean(y, axis=1, keepdims=True)
    var = jnp.mean(jnp.square(y - mean), axis=1, keepdims=True)
    return (y - mean) * jax.lax.rsqrt(var + _EPS)


# ----------------------------- Pallas kernels -----------------------------
# All kernels are single-invocation, whole-array-in-VMEM kernels: at the
# shapes this Cell runs at (C <= 16, M = N*Ho*Wo <= 512) every operand is a
# few KiB, so grid pipelining would only add overhead.


def _relu_conv_bn_kernel(w_ref, x_ref, o_ref):
    """ReLUConvBN(1x1, affine=False): o = BN(W @ relu(X))."""
    x = jnp.maximum(x_ref[...], 0.0).astype(jnp.bfloat16)
    y = jnp.dot(w_ref[...], x, preferred_element_type=jnp.float32)
    o_ref[...] = _bn_rows(y)


def _fact_reduce_kernel(w1p_ref, w2p_ref, xe_ref, xo_ref, o_ref):
    """FactorizedReduce(affine=False): two stride-2 1x1 convs (even/odd grid),
    channel-concat, BN.  w1p/w2p are zero-row-padded so the two dots add."""
    xe = jnp.maximum(xe_ref[...], 0.0).astype(jnp.bfloat16)
    xo = jnp.maximum(xo_ref[...], 0.0).astype(jnp.bfloat16)
    y = (jnp.dot(w1p_ref[...], xe, preferred_element_type=jnp.float32)
         + jnp.dot(w2p_ref[...], xo, preferred_element_type=jnp.float32))
    o_ref[...] = _bn_rows(y)


def _edge_group_a_kernel(p3_ref, m3_ref, r3_ref, r5_ref, d3_ref, d5_ref,
                         wsep3_ref, wsep5_ref, wdil3_ref, wdil5_ref,
                         wfre_ref, wfro_ref, wcol_ref,
                         part_ref, pmax_ref, pavg_ref, h3_ref, h5_ref,
                         *, stride):
    """Fused per-group stage A.

    Computes, for the E edges that share this source activation:
      * BN(max_pool_3x3(x)) and BN(avg_pool_3x3(x))   -> pmax / pavg (shared)
      * skip_connect for stride 2 (FactorizedReduce + BN), arch-weighted
      * dil_conv_3x3 / dil_conv_5x5 (dw+pw folded matmul + BN), arch-weighted
      * first half of sep_conv_3x3 / 5x5 (dw+pw matmul + BN + ReLU) -> h3/h5
    part = weighted sum of the matmul-based primitives (E*C, M)."""
    wcol = wcol_ref[...]                                  # (E*C, 8) f32

    # ---- 3x3 pooling over the 9 zero-padded taps of x (shared by edges) ----
    big = jnp.float32(1e30)
    mx = sm = cnt = None
    for k in range(9):                                    # static unroll
        tap = p3_ref[k]                                   # (C, M) f32
        msk = m3_ref[k]                                   # (1, M) f32, 1=valid
        cand = tap + (msk - 1.0) * big                    # -inf padding emul.
        mx = cand if mx is None else jnp.maximum(mx, cand)
        sm = tap if sm is None else sm + tap
        cnt = msk if cnt is None else cnt + msk
    pmax_ref[...] = _bn_rows(mx)
    pavg_ref[...] = _bn_rows(sm / cnt)                    # count_include_pad=False

    # ---- sep_conv first halves: (E*C, KK*C) @ (KK*C, M) -> BN -> ReLU ----
    y = jnp.dot(wsep3_ref[...], r3_ref[...], preferred_element_type=jnp.float32)
    h3_ref[...] = jnp.maximum(_bn_rows(y), 0.0).astype(h3_ref.dtype)
    y = jnp.dot(wsep5_ref[...], r5_ref[...], preferred_element_type=jnp.float32)
    h5_ref[...] = jnp.maximum(_bn_rows(y), 0.0).astype(h5_ref.dtype)

    # ---- dilated convs -> BN -> arch-weighted accumulation ----
    yd3 = jnp.dot(wdil3_ref[...], d3_ref[...], preferred_element_type=jnp.float32)
    yd5 = jnp.dot(wdil5_ref[...], d5_ref[...], preferred_element_type=jnp.float32)
    acc = wcol[:, 6:7] * _bn_rows(yd3) + wcol[:, 7:8] * _bn_rows(yd5)

    if stride == 2:
        # skip_connect == FactorizedReduce.  The even / odd spatial subsamples
        # of x are exactly taps 4 and 8 of the stride-2, k=3, pad=1 tap tensor
        # (H, W even).  ReLU here == ReLU before subsampling.
        xe = jnp.maximum(p3_ref[4], 0.0).astype(jnp.bfloat16)
        xo = jnp.maximum(p3_ref[8], 0.0).astype(jnp.bfloat16)
        yfr = (jnp.dot(wfre_ref[...], xe, preferred_element_type=jnp.float32)
               + jnp.dot(wfro_ref[...], xo, preferred_element_type=jnp.float32))
        acc = acc + wcol[:, 3:4] * _bn_rows(yfr)

    part_ref[...] = acc


def _edge_group_b_kernel(part_ref, th3_ref, th5_ref, w2sep3_ref, w2sep5_ref,
                         wcol_ref, out_ref):
    """Fused per-group stage B: second halves of sep_conv_3x3 / 5x5
    (block-diagonal dw+pw matmul) + BN + arch weighting, added to partial."""
    wcol = wcol_ref[...]
    y3 = jnp.dot(w2sep3_ref[...], th3_ref[...], preferred_element_type=jnp.float32)
    y5 = jnp.dot(w2sep5_ref[...], th5_ref[...], preferred_element_type=jnp.float32)
    out_ref[...] = (part_ref[...]
                    + wcol[:, 4:5] * _bn_rows(y3)
                    + wcol[:, 5:6] * _bn_rows(y5))


# ----------------------------- wrappers (jnp glue) -----------------------------


def _taps(x, k, stride, padding, dilation=1):
    """x: (C, N, H, W) -> ((k*k, C, N*Ho*Wo), Ho, Wo), taps in row-major order."""
    C, N, H, W = x.shape
    xp = jnp.pad(x, ((0, 0), (0, 0), (padding, padding), (padding, padding)))
    Ho = (H + 2 * padding - dilation * (k - 1) - 1) // stride + 1
    Wo = (W + 2 * padding - dilation * (k - 1) - 1) // stride + 1
    cols = []
    for i in range(k):
        for j in range(k):
            h0, w0 = i * dilation, j * dilation
            cols.append(jax.lax.slice(
                xp, (0, 0, h0, w0),
                (C, N, h0 + (Ho - 1) * stride + 1, w0 + (Wo - 1) * stride + 1),
                (1, 1, stride, stride)))
    taps = jnp.stack(cols, axis=0).reshape(k * k, C, N * Ho * Wo)
    return taps, Ho, Wo


def _fold_dw_pw(dw, pw, k):
    """Fold depthwise (C,1,k,k) + pointwise (Cout,C) into W_full (Cout, k*k*C)
    with W_full[co, kk*C + c] = pw[co, c] * dw[c, kk] (matches tap rows)."""
    C_in = dw.shape[0]
    dwf = dw.reshape(C_in, k * k)
    return jnp.einsum('oc,ck->okc', pw, dwf).reshape(pw.shape[0], k * k * C_in)


def _fold_blockdiag(dws, pws, k, C):
    """Per-edge folded weights assembled into a block-diagonal (E*C, k*k*E*C)
    matrix matching taps laid out as row = kk*(E*C) + e*C + c."""
    E = len(dws)
    W = jnp.stack([_fold_dw_pw(dw, pw, k) for dw, pw in zip(dws, pws)], axis=0)
    W = W.reshape(E, C, k * k, C)
    eye = jnp.eye(E, dtype=W.dtype)
    return jnp.einsum('eokc,ef->eokfc', W, eye).reshape(E * C, k * k * E * C)


def relu_conv_bn(x, w):
    """ReLUConvBN(1x1, affine=False), one fused kernel.  w: (Cout, Cin) f32."""
    C_in, N, H, W = x.shape
    Cout = w.shape[0]
    out = pl.pallas_call(
        _relu_conv_bn_kernel,
        out_shape=jax.ShapeDtypeStruct((Cout, N * H * W), jnp.float32),
        in_specs=[_VMEM, _VMEM],
        out_specs=_VMEM,
    )(w.astype(jnp.bfloat16), x.reshape(C_in, N * H * W))
    return out.reshape(Cout, N, H, W)


def fact_reduce(x, w1, w2):
    """FactorizedReduce(affine=False) preprocess, one fused kernel."""
    C_in, N, H, W = x.shape
    assert H % 2 == 0 and W % 2 == 0
    half = w1.shape[0]
    z = jnp.zeros((half, C_in), jnp.float32)
    w1p = jnp.concatenate([w1, z], axis=0).astype(jnp.bfloat16)
    w2p = jnp.concatenate([z, w2], axis=0).astype(jnp.bfloat16)
    xe = x[:, :, 0::2, 0::2].reshape(C_in, -1)
    xo = x[:, :, 1::2, 1::2].reshape(C_in, -1)
    Ho, Wo = H // 2, W // 2
    out = pl.pallas_call(
        _fact_reduce_kernel,
        out_shape=jax.ShapeDtypeStruct((2 * half, N * Ho * Wo), jnp.float32),
        in_specs=[_VMEM] * 4,
        out_specs=_VMEM,
    )(w1p, w2p, xe, xo)
    return out.reshape(2 * half, N, Ho, Wo)


def _run_edge_group(x, eps, w8, stride):
    """Run the E MixedOps that share source activation x in two fused kernels.

    x: (C, N, H, W); eps: list of E per-edge op-parameter dicts;
    w8: (E, 8) architecture weights.  Returns a list of E (C, N, Ho, Wo)."""
    C, N, H, W = x.shape
    E = len(eps)
    if stride == 2:
        assert H % 2 == 0 and W % 2 == 0, "FactorizedReduce needs even H, W"
    bf = jnp.bfloat16

    # --- im2col tap tensors: built once per source, shared by all E edges.
    #     Pool taps stay f32 / un-ReLU'd; conv taps are ReLU'd once, bf16. ---
    p3, Ho, Wo = _taps(x, 3, stride, 1)                                  # (9,C,M)
    m3, _, _ = _taps(jnp.ones((1, N, H, W), jnp.float32), 3, stride, 1)  # (9,1,M)
    xr = jnp.maximum(x, 0.0).astype(bf)
    r3 = _taps(xr, 3, stride, 1)[0].reshape(9 * C, -1)
    r5 = _taps(xr, 5, stride, 2)[0].reshape(25 * C, -1)
    d3 = _taps(xr, 3, stride, 2, dilation=2)[0].reshape(9 * C, -1)
    d5 = _taps(xr, 5, stride, 4, dilation=2)[0].reshape(25 * C, -1)
    Ms = N * Ho * Wo

    # --- per-edge dw+pw folded weights, stacked over edges (bf16, built once) ---
    Wsep3 = jnp.concatenate([_fold_dw_pw(p['sep3']['dw1'], p['sep3']['pw1'], 3)
                             for p in eps], axis=0).astype(bf)
    Wsep5 = jnp.concatenate([_fold_dw_pw(p['sep5']['dw1'], p['sep5']['pw1'], 5)
                             for p in eps], axis=0).astype(bf)
    Wdil3 = jnp.concatenate([_fold_dw_pw(p['dil3']['dw'], p['dil3']['pw'], 3)
                             for p in eps], axis=0).astype(bf)
    Wdil5 = jnp.concatenate([_fold_dw_pw(p['dil5']['dw'], p['dil5']['pw'], 5)
                             for p in eps], axis=0).astype(bf)
    if stride == 2:
        zh = jnp.zeros((C // 2, C), jnp.float32)
        WfrE = jnp.concatenate(
            [jnp.concatenate([p['fr_w1'], zh], axis=0) for p in eps], axis=0).astype(bf)
        WfrO = jnp.concatenate(
            [jnp.concatenate([zh, p['fr_w2']], axis=0) for p in eps], axis=0).astype(bf)
    else:
        WfrE = jnp.zeros((E * C, C), bf)
        WfrO = jnp.zeros((E * C, C), bf)
    w8f = w8.astype(jnp.float32)                       # (E, 8)
    wcol = jnp.repeat(w8f, C, axis=0)                  # (E*C, 8) per-row weights

    kern_a = functools.partial(_edge_group_a_kernel, stride=stride)
    part_mm, bn_max, bn_avg, h3, h5 = pl.pallas_call(
        kern_a,
        out_shape=(jax.ShapeDtypeStruct((E * C, Ms), jnp.float32),
                   jax.ShapeDtypeStruct((C, Ms), jnp.float32),
                   jax.ShapeDtypeStruct((C, Ms), jnp.float32),
                   jax.ShapeDtypeStruct((E * C, Ms), bf),
                   jax.ShapeDtypeStruct((E * C, Ms), bf)),
        in_specs=[_VMEM] * 13,
        out_specs=(_VMEM,) * 5,
    )(p3, m3, r3, r5, d3, d5, Wsep3, Wsep5, Wdil3, Wdil5, WfrE, WfrO, wcol)

    # Pool (and stride-1 identity skip) results are identical for every edge
    # of the group; replicate + arch-weight them here on KB-sized tensors.
    part = part_mm.reshape(E, C, Ms)
    part = part + w8f[:, 1][:, None, None] * bn_max[None]
    part = part + w8f[:, 2][:, None, None] * bn_avg[None]
    if stride == 1:
        part = part + w8f[:, 3][:, None, None] * x.reshape(1, C, Ms)
    part = part.reshape(E * C, Ms)

    # --- second halves of the sep_convs: taps of the stage-1 intermediates ---
    th3 = _taps(h3.reshape(E * C, N, Ho, Wo), 3, 1, 1)[0].reshape(9 * E * C, Ms)
    th5 = _taps(h5.reshape(E * C, N, Ho, Wo), 5, 1, 2)[0].reshape(25 * E * C, Ms)
    W2sep3 = _fold_blockdiag([p['sep3']['dw2'] for p in eps],
                             [p['sep3']['pw2'] for p in eps], 3, C).astype(bf)
    W2sep5 = _fold_blockdiag([p['sep5']['dw2'] for p in eps],
                             [p['sep5']['pw2'] for p in eps], 5, C).astype(bf)
    out = pl.pallas_call(
        _edge_group_b_kernel,
        out_shape=jax.ShapeDtypeStruct((E * C, Ms), jnp.float32),
        in_specs=[_VMEM] * 6,
        out_specs=_VMEM,
        input_output_aliases={0: 0},                   # accumulate in place
    )(part, th3, th5, W2sep3, W2sep5, wcol)

    out = out.reshape(E, C, N, Ho, Wo)
    return [out[e] for e in range(E)]


def build_cell_forward(reduction, reduction_prev, multiplier=4, steps=4):
    """Jitted fn(params, s0, s1, w1, w2, w3, w4) matching Cell.forward (NCHW)."""
    assert steps == 4, "reference Cell.forward is hand-unrolled for 4 steps"

    def fwd(params, s0_nchw, s1_nchw, w1, w2, w3, w4):
        s0 = jnp.transpose(s0_nchw, (1, 0, 2, 3))      # NCHW -> (C, N, H, W)
        s1 = jnp.transpose(s1_nchw, (1, 0, 2, 3))
        if reduction_prev:
            s0 = fact_reduce(s0, params['pre0_w1'], params['pre0_w2'])
        else:
            s0 = relu_conv_bn(s0, params['pre0_w'])
        s1 = relu_conv_bn(s1, params['pre1_w'])

        w_all = jnp.concatenate([w1, w2, w3, w4]).reshape(14, 8)
        ops = params['ops']
        stride_in = 2 if reduction else 1

        def group(x, edge_ids, stride):
            eps = [ops[i] for i in edge_ids]
            w8 = jnp.stack([w_all[i] for i in edge_ids], axis=0)
            return _run_edge_group(x, eps, w8, stride)

        g0 = group(s0, [0, 2, 5, 9], stride_in)        # s0 -> a, b, c, d
        g1 = group(s1, [1, 3, 6, 10], stride_in)       # s1 -> a, b, c, d
        sa = g0[0] + g1[0]
        ga = group(sa, [4, 7, 11], 1)                  # sa -> b, c, d
        sb = g0[1] + g1[1] + ga[0]
        gb = group(sb, [8, 12], 1)                     # sb -> c, d
        sc = g0[2] + g1[2] + ga[1] + gb[0]
        gc = group(sc, [13], 1)                        # sc -> d
        sd = g0[3] + g1[3] + ga[2] + gb[1] + gc[0]

        out = jnp.concatenate([sa, sb, sc, sd][-multiplier:], axis=0)
        return jnp.transpose(out, (1, 0, 2, 3))        # back to NCHW

    return jax.jit(fwd)


# ----------------------------- parameter init -----------------------------

def init_cell_params(key, C_prev_prev, C_prev, C, reduction, reduction_prev,
                     steps=4):
    keys = iter(jax.random.split(key, 1024))

    def w(shape, scale=0.1):
        return scale * jax.random.normal(next(keys), shape, jnp.float32)

    p = {}
    if reduction_prev:
        p['pre0_w1'] = w((C // 2, C_prev_prev))        # FactorizedReduce 1x1 convs
        p['pre0_w2'] = w((C // 2, C_prev_prev))
    else:
        p['pre0_w'] = w((C, C_prev_prev))              # ReLUConvBN 1x1 (Cout, Cin)
    p['pre1_w'] = w((C, C_prev))
    ops = []
    for i in range(steps):
        for j in range(2 + i):
            stride = 2 if (reduction and j < 2) else 1
            op = {}
            if stride == 2:                            # skip_connect -> FactorizedReduce
                op['fr_w1'] = w((C // 2, C))
                op['fr_w2'] = w((C // 2, C))
            op['sep3'] = {'dw1': w((C, 1, 3, 3)), 'pw1': w((C, C)),
                          'dw2': w((C, 1, 3, 3)), 'pw2': w((C, C))}
            op['sep5'] = {'dw1': w((C, 1, 5, 5)), 'pw1': w((C, C)),
                          'dw2': w((C, 1, 5, 5)), 'pw2': w((C, C))}
            op['dil3'] = {'dw': w((C, 1, 3, 3)), 'pw': w((C, C))}
            op['dil5'] = {'dw': w((C, 1, 5, 5)), 'pw': w((C, C))}
            ops.append(op)
    p['ops'] = ops
    return p


if __name__ == "__main__":
    key = jax.random.PRNGKey(0)
    k_param, k_s0, k_s1, k_alpha = jax.random.split(key, 4)

    # Reduction cell: steps=4, multiplier=4, C_prev_prev=C_prev=8, C=4,
    # batch 2, spatial 16x16  ->  output (2, 16, 8, 8).
    steps, multiplier, C_pp, C_p, C = 4, 4, 8, 8, 4
    reduction, reduction_prev = True, False

    params = init_cell_params(k_param, C_pp, C_p, C, reduction, reduction_prev,
                              steps=steps)
    cell_fwd = build_cell_forward(reduction, reduction_prev,
                                  multiplier=multiplier, steps=steps)

    s0 = jax.random.normal(k_s0, (2, C_pp, 16, 16), jnp.float32)
    s1 = jax.random.normal(k_s1, (2, C_p, 16, 16), jnp.float32)

    # Architecture weights: softmax PER EDGE over the 8 primitives (as the
    # DARTS Network does before calling the Cell), flattened per step.
    n_edges = sum(2 + i for i in range(steps))         # 14
    alphas = 0.001 * jax.random.normal(k_alpha, (n_edges, 8), jnp.float32)
    wmat = jax.nn.softmax(alphas, axis=-1)
    w1 = wmat[0:2].reshape(-1)                         # 16
    w2 = wmat[2:5].reshape(-1)                         # 24
    w3 = wmat[5:9].reshape(-1)                         # 32
    w4 = wmat[9:14].reshape(-1)                        # 40

    out = cell_fwd(params, s0, s1, w1, w2, w3, w4)
    out = jax.block_until_ready(out)
    assert out.shape == (2, multiplier * C, 8, 8), out.shape
    assert bool(jnp.all(jnp.isfinite(out)))
    print("KERNEL_OK")
</pallas_src>

<mosaic_0001>
module attributes {stable_mosaic.version = 11 : i64} {
  func.func @_relu_conv_bn_kernel(%arg0: memref<4x8xbf16, #tpu.memory_space<vmem>>, %arg1: memref<8x512xf32, #tpu.memory_space<vmem>>, %arg2: memref<4x512xf32, #tpu.memory_space<vmem>>) attributes {dimension_semantics = [], scalar_prefetch = 0 : i64, scratch_operands = 0 : i64, tpu.core_type = #tpu.core_type<tc>} {
    %c0 = arith.constant 0 : index
    %c0_0 = arith.constant 0 : index
    %0 = vector.load %arg1[%c0, %c0_0] : memref<8x512xf32, #tpu.memory_space<vmem>>, vector<8x512xf32>
    %cst = arith.constant 0.000000e+00 : f32
    %1 = vector.broadcast %cst : f32 to vector<8x512xf32>
    %2 = arith.maximumf %0, %1 : vector<8x512xf32>
    %3 = arith.truncf %2 : vector<8x512xf32> to vector<8x512xbf16>
    %c0_1 = arith.constant 0 : index
    %c0_2 = arith.constant 0 : index
    %4 = vector.load %arg0[%c0_1, %c0_2] : memref<4x8xbf16, #tpu.memory_space<vmem>>, vector<4x8xbf16>
    %cst_3 = arith.constant dense<0.000000e+00> : vector<4x512xf32>
    %5 = tpu.matmul %4, %3, %cst_3 {dimension_numbers = #tpu.dot_dimension_numbers<[1], [0], [0], [1], [0, 0, 1, 1], [], []>} : vector<4x8xbf16>, vector<8x512xbf16>, vector<4x512xf32> -> vector<4x512xf32>
    %cst_4 = arith.constant dense<0.000000e+00> : vector<4xf32>
    %6 = vector.multi_reduction <add>, %5, %cst_4 [1] : vector<4x512xf32> to vector<4xf32>
    %7 = vector.shape_cast %6 : vector<4xf32> to vector<4x1xf32>
    %cst_5 = arith.constant 5.120000e+02 : f32
    %8 = vector.broadcast %cst_5 : f32 to vector<4x1xf32>
    %9 = arith.divf %7, %8 : vector<4x1xf32>
    %10 = vector.broadcast %9 : vector<4x1xf32> to vector<4x512xf32>
    %11 = arith.subf %5, %10 : vector<4x512xf32>
    %12 = arith.mulf %11, %11 : vector<4x512xf32>
    %cst_6 = arith.constant dense<0.000000e+00> : vector<4xf32>
    %13 = vector.multi_reduction <add>, %12, %cst_6 [1] : vector<4x512xf32> to vector<4xf32>
    %14 = vector.shape_cast %13 : vector<4xf32> to vector<4x1xf32>
    %cst_7 = arith.constant 5.120000e+02 : f32
    %15 = vector.broadcast %cst_7 : f32 to vector<4x1xf32>
    %16 = arith.divf %14, %15 : vector<4x1xf32>
    %17 = vector.broadcast %9 : vector<4x1xf32> to vector<4x512xf32>
    %18 = arith.subf %5, %17 : vector<4x512xf32>
    %cst_8 = arith.constant 9.99999974E-6 : f32
    %19 = vector.broadcast %cst_8 : f32 to vector<4x1xf32>
    %20 = arith.addf %16, %19 : vector<4x1xf32>
    %21 = math.rsqrt %20 : vector<4x1xf32>
    %22 = vector.broadcast %21 : vector<4x1xf32> to vector<4x512xf32>
    %23 = arith.mulf %18, %22 : vector<4x512xf32>
    %c0_9 = arith.constant 0 : index
    %c0_10 = arith.constant 0 : index
    %24 = vector.load %arg2[%c0_9, %c0_10] : memref<4x512xf32, #tpu.memory_space<vmem>>, vector<4x512xf32>
    tpu.vector_store %arg2[%c0_9, %c0_10], %23 {strides = array<i32>} : memref<4x512xf32, #tpu.memory_space<vmem>>, vector<4x512xf32>,
    return
  }
}

module attributes {stable_mosaic.version = 11 : i64} {
  func.func @_edge_group_a_kernel(%arg0: memref<9x4x128xf32, #tpu.memory_space<vmem>>, %arg1: memref<9x1x128xf32, #tpu.memory_space<vmem>>, %arg2: memref<36x128xbf16, #tpu.memory_space<vmem>>, %arg3: memref<100x128xbf16, #tpu.memory_space<vmem>>, %arg4: memref<36x128xbf16, #tpu.memory_space<vmem>>, %arg5: memref<100x128xbf16, #tpu.memory_space<vmem>>, %arg6: memref<16x36xbf16, #tpu.memory_space<vmem>>, %arg7: memref<16x100xbf16, #tpu.memory_space<vmem>>, %arg8: memref<16x36xbf16, #tpu.memory_space<vmem>>, %arg9: memref<16x100xbf16, #tpu.memory_space<vmem>>, %arg10: memref<16x4xbf16, #tpu.memory_space<vmem>>, %arg11: memref<16x4xbf16, #tpu.memory_space<vmem>>, %arg12: memref<16x8xf32, #tpu.memory_space<vmem>>, %arg13: memref<16x128xf32, #tpu.memory_space<vmem>>, %arg14: memref<4x128xf32, #tpu.memory_space<vmem>>, %arg15: memref<4x128xf32, #tpu.memory_space<vmem>>, %arg16: memref<16x128xbf16, #tpu.memory_space<vmem>>, %arg17: memref<16x128xbf16, #tpu.memory_space<vmem>>) attributes {dimension_semantics = [], scalar_prefetch = 0 : i64, scratch_operands = 0 : i64, tpu.core_type = #tpu.core_type<tc>} {
    %c0 = arith.constant 0 : index
    %c0_0 = arith.constant 0 : index
    %0 = vector.load %arg12[%c0, %c0_0] : memref<16x8xf32, #tpu.memory_space<vmem>>, vector<16x8xf32>
    %c0_1 = arith.constant 0 : index
    %c0_2 = arith.constant 0 : index
    %c0_3 = arith.constant 0 : index
    %1 = vector.load %arg0[%c0_1, %c0_2, %c0_3] : memref<9x4x128xf32, #tpu.memory_space<vmem>>, vector<1x4x128xf32>
    %2 = vector.shape_cast %1 : vector<1x4x128xf32> to vector<4x128xf32>
    %c0_4 = arith.constant 0 : index
    %c0_5 = arith.constant 0 : index
    %c0_6 = arith.constant 0 : index
    %3 = vector.load %arg1[%c0_4, %c0_5, %c0_6] : memref<9x1x128xf32, #tpu.memory_space<vmem>>, vector<1x1x128xf32>
    %4 = vector.shape_cast %3 : vector<1x1x128xf32> to vector<1x128xf32>
    %cst = arith.constant 1.000000e+00 : f32
    %5 = vector.broadcast %cst : f32 to vector<1x128xf32>
    %6 = arith.subf %4, %5 : vector<1x128xf32>
    %cst_7 = arith.constant 1.000000e+30 : f32
    %7 = vector.broadcast %cst_7 : f32 to vector<1x128xf32>
    %8 = arith.mulf %6, %7 : vector<1x128xf32>
    %9 = vector.broadcast %8 : vector<1x128xf32> to vector<4x128xf32>
    %10 = arith.addf %2, %9 : vector<4x128xf32>
    %c1 = arith.constant 1 : index
    %c0_8 = arith.constant 0 : index
    %c0_9 = arith.constant 0 : index
    %11 = vector.load %arg0[%c1, %c0_8, %c0_9] : memref<9x4x128xf32, #tpu.memory_space<vmem>>, vector<1x4x128xf32>
    %12 = vector.shape_cast %11 : vector<1x4x128xf32> to vector<4x128xf32>
    %c1_10 = arith.constant 1 : index
    %c0_11 = arith.constant 0 : index
    %c0_12 = arith.constant 0 : index
    %13 = vector.load %arg1[%c1_10, %c0_11, %c0_12] : memref<9x1x128xf32, #tpu.memory_space<vmem>>, vector<1x1x128xf32>
    %14 = vector.shape_cast %13 : vector<1x1x128xf32> to vector<1x128xf32>
    %cst_13 = arith.constant 1.000000e+00 : f32
    %15 = vector.broadcast %cst_13 : f32 to vector<1x128xf32>
    %16 = arith.subf %14, %15 : vector<1x128xf32>
    %cst_14 = arith.constant 1.000000e+30 : f32
    %17 = vector.broadcast %cst_14 : f32 to vector<1x128xf32>
    %18 = arith.mulf %16, %17 : vector<1x128xf32>
    %19 = vector.broadcast %18 : vector<1x128xf32> to vector<4x128xf32>
    %20 = arith.addf %12, %19 : vector<4x128xf32>
    %21 = arith.maximumf %10, %20 : vector<4x128xf32>
    %22 = arith.addf %2, %12 : vector<4x128xf32>
    %23 = arith.addf %4, %14 : vector<1x128xf32>
    %c2 = arith.constant 2 : index
    %c0_15 = arith.constant 0 : index
    %c0_16 = arith.constant 0 : index
    %24 = vector.load %arg0[%c2, %c0_15, %c0_16] : memref<9x4x128xf32, #tpu.memory_space<vmem>>, vector<1x4x128xf32>
    %25 = vector.shape_cast %24 : vector<1x4x128xf32> to vector<4x128xf32>
    %c2_17 = arith.constant 2 : index
    %c0_18 = arith.constant 0 : index
    %c0_19 = arith.constant 0 : index
    %26 = vector.load %arg1[%c2_17, %c0_18, %c0_19] : memref<9x1x128xf32, #tpu.memory_space<vmem>>, vector<1x1x128xf32>
    %27 = vector.shape_cast %26 : vector<1x1x128xf32> to vector<1x128xf32>
    %cst_20 = arith.constant 1.000000e+00 : f32
    %28 = vector.broadcast %cst_20 : f32 to vector<1x128xf32>
    %29 = arith.subf %27, %28 : vector<1x128xf32>
    %cst_21 = arith.constant 1.000000e+30 : f32
    %30 = vector.broadcast %cst_21 : f32 to vector<1x128xf32>
    %31 = arith.mulf %29, %30 : vector<1x128xf32>
    %32 = vector.broadcast %31 : vector<1x128xf32> to vector<4x128xf32>
    %33 = arith.addf %25, %32 : vector<4x128xf32>
    %34 = arith.maximumf %21, %33 : vector<4x128xf32>
    %35 = arith.addf %22, %25 : vector<4x128xf32>
    %36 = arith.addf %23, %27 : vector<1x128xf32>
    %c3 = arith.constant 3 : index
    %c0_22 = arith.constant 0 : index
    %c0_23 = arith.constant 0 : index
    %37 = vector.load %arg0[%c3, %c0_22, %c0_23] : memref<9x4x128xf32, #tpu.memory_space<vmem>>, vector<1x4x128xf32>
    %38 = vector.shape_cast %37 : vector<1x4x128xf32> to vector<4x128xf32>
    %c3_24 = arith.constant 3 : index
    %c0_25 = arith.constant 0 : index
    %c0_26 = arith.constant 0 : index
    %39 = vector.load %arg1[%c3_24, %c0_25, %c0_26] : memref<9x1x128xf32, #tpu.memory_space<vmem>>, vector<1x1x128xf32>
    %40 = vector.shape_cast %39 : vector<1x1x128xf32> to vector<1x128xf32>
    %cst_27 = arith.constant 1.000000e+00 : f32
    %41 = vector.broadcast %cst_27 : f32 to vector<1x128xf32>
    %42 = arith.subf %40, %41 : vector<1x128xf32>
    %cst_28 = arith.constant 1.000000e+30 : f32
    %43 = vector.broadcast %cst_28 : f32 to vector<1x128xf32>
    %44 = arith.mulf %42, %43 : vector<1x128xf32>
    %45 = vector.broadcast %44 : vector<1x128xf32> to vector<4x128xf32>
    %46 = arith.addf %38, %45 : vector<4x128xf32>
    %47 = arith.maximumf %34, %46 : vector<4x128xf32>
    %48 = arith.addf %35, %38 : vector<4x128xf32>
    %49 = arith.addf %36, %40 : vector<1x128xf32>
    %c4 = arith.constant 4 : index
    %c0_29 = arith.constant 0 : index
    %c0_30 = arith.constant 0 : index
    %50 = vector.load %arg0[%c4, %c0_29, %c0_30] : memref<9x4x128xf32, #tpu.memory_space<vmem>>, vector<1x4x128xf32>
    %51 = vector.shape_cast %50 : vector<1x4x128xf32> to vector<4x128xf32>
    %c4_31 = arith.constant 4 : index
    %c0_32 = arith.constant 0 : index
    %c0_33 = arith.constant 0 : index
    %52 = vector.load %arg1[%c4_31, %c0_32, %c0_33] : memref<9x1x128xf32, #tpu.memory_space<vmem>>, vector<1x1x128xf32>
    %53 = vector.shape_cast %52 : vector<1x1x128xf32> to vector<1x128xf32>
    %cst_34 = arith.constant 1.000000e+00 : f32
    %54 = vector.broadcast %cst_34 : f32 to vector<1x128xf32>
    %55 = arith.subf %53, %54 : vector<1x128xf32>
    %cst_35 = arith.constant 1.000000e+30 : f32
    %56 = vector.broadcast %cst_35 : f32 to vector<1x128xf32>
    %57 = arith.mulf %55, %56 : vector<1x128xf32>
    %58 = vector.broadcast %57 : vector<1x128xf32> to vector<4x128xf32>
    %59 = arith.addf %51, %58 : vector<4x128xf32>
    %60 = arith.maximumf %47, %59 : vector<4x128xf32>
    %61 = arith.addf %48, %51 : vector<4x128xf32>
    %62 = arith.addf %49, %53 : vector<1x128xf32>
    %c5 = arith.constant 5 : index
    %c0_36 = arith.constant 0 : index
    %c0_37 = arith.constant 0 : index
    %63 = vector.load %arg0[%c5, %c0_36, %c0_37] : memref<9x4x128xf32, #tpu.memory_space<vmem>>, vector<1x4x128xf32>
    %64 = vector.shape_cast %63 : vector<1x4x128xf32> to vector<4x128xf32>
    %c5_38 = arith.constant 5 : index
    %c0_39 = arith.constant 0 : index
    %c0_40 = arith.constant 0 : index
    %65 = vector.load %arg1[%c5_38, %c0_39, %c0_40] : memref<9x1x128xf32, #tpu.memory_space<vmem>>, vector<1x1x128xf32>
    %66 = vector.shape_cast %65 : vector<1x1x128xf32> to vector<1x128xf32>
    %cst_41 = arith.constant 1.000000e+00 : f32
    %67 = vector.broadcast %cst_41 : f32 to vector<1x128xf32>
    %68 = arith.subf %66, %67 : vector<1x128xf32>
    %cst_42 = arith.constant 1.000000e+30 : f32
    %69 = vector.broadcast %cst_42 : f32 to vector<1x128xf32>
    %70 = arith.mulf %68, %69 : vector<1x128xf32>
    %71 = vector.broadcast %70 : vector<1x128xf32> to vector<4x128xf32>
    %72 = arith.addf %64, %71 : vector<4x128xf32>
    %73 = arith.maximumf %60, %72 : vector<4x128xf32>
    %74 = arith.addf %61, %64 : vector<4x128xf32>
    %75 = arith.addf %62, %66 : vector<1x128xf32>
    %c6 = arith.constant 6 : index
    %c0_43 = arith.constant 0 : index
    %c0_44 = arith.constant 0 : index
    %76 = vector.load %arg0[%c6, %c0_43, %c0_44] : memref<9x4x128xf32, #tpu.memory_space<vmem>>, vector<1x4x128xf32>
    %77 = vector.shape_cast %76 : vector<1x4x128xf32> to vector<4x128xf32>
    %c6_45 = arith.constant 6 : index
    %c0_46 = arith.constant 0 : index
    %c0_47 = arith.constant 0 : index
    %78 = vector.load %arg1[%c6_45, %c0_46, %c0_47] : memref<9x1x128xf32, #tpu.memory_space<vmem>>, vector<1x1x128xf32>
    %79 = vector.shape_cast %78 : vector<1x1x128xf32> to vector<1x128xf32>
    %cst_48 = arith.constant 1.000000e+00 : f32
    %80 = vector.broadcast %cst_48 : f32 to vector<1x128xf32>
    %81 = arith.subf %79, %80 : vector<1x128xf32>
    %cst_49 = arith.constant 1.000000e+30 : f32
    %82 = vector.broadcast %cst_49 : f32 to vector<1x128xf32>
    %83 = arith.mulf %81, %82 : vector<1x128xf32>
    %84 = vector.broadcast %83 : vector<1x128xf32> to vector<4x128xf32>
    %85 = arith.addf %77, %84 : vector<4x128xf32>
    %86 = arith.maximumf %73, %85 : vector<4x128xf32>
    %87 = arith.addf %74, %77 : vector<4x128xf32>
    %88 = arith.addf %75, %79 : vector<1x128xf32>
    %c7 = arith.constant 7 : index
    %c0_50 = arith.constant 0 : index
    %c0_51 = arith.constant 0 : index
    %89 = vector.load %arg0[%c7, %c0_50, %c0_51] : memref<9x4x128xf32, #tpu.memory_space<vmem>>, vector<1x4x128xf32>
    %90 = vector.shape_cast %89 : vector<1x4x128xf32> to vector<4x128xf32>
    %c7_52 = arith.constant 7 : index
    %c0_53 = arith.constant 0 : index
    %c0_54 = arith.constant 0 : index
    %91 = vector.load %arg1[%c7_52, %c0_53, %c0_54] : memref<9x1x128xf32, #tpu.memory_space<vmem>>, vector<1x1x128xf32>
    %92 = vector.shape_cast %91 : vector<1x1x128xf32> to vector<1x128xf32>
    %cst_55 = arith.constant 1.000000e+00 : f32
    %93 = vector.broadcast %cst_55 : f32 to vector<1x128xf32>
    %94 = arith.subf %92, %93 : vector<1x128xf32>
    %cst_56 = arith.constant 1.000000e+30 : f32
    %95 = vector.broadcast %cst_56 : f32 to vector<1x128xf32>
    %96 = arith.mulf %94, %95 : vector<1x128xf32>
    %97 = vector.broadcast %96 : vector<1x128xf32> to vector<4x128xf32>
    %98 = arith.addf %90, %97 : vector<4x128xf32>
    %99 = arith.maximumf %86, %98 : vector<4x128xf32>
    %100 = arith.addf %87, %90 : vector<4x128xf32>
    %101 = arith.addf %88, %92 : vector<1x128xf32>
    %c8 = arith.constant 8 : index
    %c0_57 = arith.constant 0 : index
    %c0_58 = arith.constant 0 : index
    %102 = vector.load %arg0[%c8, %c0_57, %c0_58] : memref<9x4x128xf32, #tpu.memory_space<vmem>>, vector<1x4x128xf32>
    %103 = vector.shape_cast %102 : vector<1x4x128xf32> to vector<4x128xf32>
    %c8_59 = arith.constant 8 : index
    %c0_60 = arith.constant 0 : index
    %c0_61 = arith.constant 0 : index
    %104 = vector.load %arg1[%c8_59, %c0_60, %c0_61] : memref<9x1x128xf32, #tpu.memory_space<vmem>>, vector<1x1x128xf32>
    %105 = vector.shape_cast %104 : vector<1x1x128xf32> to vector<1x128xf32>
    %cst_62 = arith.constant 1.000000e+00 : f32
    %106 = vector.broadcast %cst_62 : f32 to vector<1x128xf32>
    %107 = arith.subf %105, %106 : vector<1x128xf32>
    %cst_63 = arith.constant 1.000000e+30 : f32
    %108 = vector.broadcast %cst_63 : f32 to vector<1x128xf32>
    %109 = arith.mulf %107, %108 : vector<1x128xf32>
    %110 = vector.broadcast %109 : vector<1x128xf32> to vector<4x128xf32>
    %111 = arith.addf %103, %110 : vector<4x128xf32>
    %112 = arith.maximumf %99, %111 : vector<4x128xf32>
    %113 = arith.addf %100, %103 : vector<4x128xf32>
    %114 = arith.addf %101, %105 : vector<1x128xf32>
    %cst_64 = arith.constant dense<0.000000e+00> : vector<4xf32>
    %115 = vector.multi_reduction <add>, %112, %cst_64 [1] : vector<4x128xf32> to vector<4xf32>
    %116 = vector.shape_cast %115 : vector<4xf32> to vector<4x1xf32>
    %cst_65 = arith.constant 1.280000e+02 : f32
    %117 = vector.broadcast %cst_65 : f32 to vector<4x1xf32>
    %118 = arith.divf %116, %117 : vector<4x1xf32>
    %119 = vector.broadcast %118 : vector<4x1xf32> to vector<4x128xf32>
    %120 = arith.subf %112, %119 : vector<4x128xf32>
    %121 = arith.mulf %120, %120 : vector<4x128xf32>
    %cst_66 = arith.constant dense<0.000000e+00> : vector<4xf32>
    %122 = vector.multi_reduction <add>, %121, %cst_66 [1] : vector<4x128xf32> to vector<4xf32>
    %123 = vector.shape_cast %122 : vector<4xf32> to vector<4x1xf32>
    %cst_67 = arith.constant 1.280000e+02 : f32
    %124 = vector.broadcast %cst_67 : f32 to vector<4x1xf32>
    %125 = arith.divf %123, %124 : vector<4x1xf32>
    %126 = vector.broadcast %118 : vector<4x1xf32> to vector<4x128xf32>
    %127 = arith.subf %112, %126 : vector<4x128xf32>
    %cst_68 = arith.constant 9.99999974E-6 : f32
    %128 = vector.broadcast %cst_68 : f32 to vector<4x1xf32>
    %129 = arith.addf %125, %128 : vector<4x1xf32>
    %130 = math.rsqrt %129 : vector<4x1xf32>
    %131 = vector.broadcast %130 : vector<4x1xf32> to vector<4x128xf32>
    %132 = arith.mulf %127, %131 : vector<4x128xf32>
    %c0_69 = arith.constant 0 : index
    %c0_70 = arith.constant 0 : index
    %133 = vector.load %arg14[%c0_69, %c0_70] : memref<4x128xf32, #tpu.memory_space<vmem>>, vector<4x128xf32>
    tpu.vector_store %arg14[%c0_69, %c0_70], %132 {strides = array<i32>} : memref<4x128xf32, #tpu.memory_space<vmem>>, vector<4x128xf32>,
    %134 = vector.broadcast %114 : vector<1x128xf32> to vector<4x128xf32>
    %135 = arith.divf %113, %134 : vector<4x128xf32>
    %cst_71 = arith.constant dense<0.000000e+00> : vector<4xf32>
    %136 = vector.multi_reduction <add>, %135, %cst_71 [1] : vector<4x128xf32> to vector<4xf32>
    %137 = vector.shape_cast %136 : vector<4xf32> to vector<4x1xf32>
    %cst_72 = arith.constant 1.280000e+02 : f32
    %138 = vector.broadcast %cst_72 : f32 to vector<4x1xf32>
    %139 = arith.divf %137, %138 : vector<4x1xf32>
    %140 = vector.broadcast %139 : vector<4x1xf32> to vector<4x128xf32>
    %141 = arith.subf %135, %140 : vector<4x128xf32>
    %142 = arith.mulf %141, %141 : vector<4x128xf32>
    %cst_73 = arith.constant dense<0.000000e+00> : vector<4xf32>
    %143 = vector.multi_reduction <add>, %142, %cst_73 [1] : vector<4x128xf32> to vector<4xf32>
    %144 = vector.shape_cast %143 : vector<4xf32> to vector<4x1xf32>
    %cst_74 = arith.constant 1.280000e+02 : f32
    %145 = vector.broadcast %cst_74 : f32 to vector<4x1xf32>
    %146 = arith.divf %144, %145 : vector<4x1xf32>
    %147 = vector.broadcast %139 : vector<4x1xf32> to vector<4x128xf32>
    %148 = arith.subf %135, %147 : vector<4x128xf32>
    %cst_75 = arith.constant 9.99999974E-6 : f32
    %149 = vector.broadcast %cst_75 : f32 to vector<4x1xf32>
    %150 = arith.addf %146, %149 : vector<4x1xf32>
    %151 = math.rsqrt %150 : vector<4x1xf32>
    %152 = vector.broadcast %151 : vector<4x1xf32> to vector<4x128xf32>
    %153 = arith.mulf %148, %152 : vector<4x128xf32>
    %c0_76 = arith.constant 0 : index
    %c0_77 = arith.constant 0 : index
    %154 = vector.load %arg15[%c0_76, %c0_77] : memref<4x128xf32, #tpu.memory_space<vmem>>, vector<4x128xf32>
    tpu.vector_store %arg15[%c0_76, %c0_77], %153 {strides = array<i32>} : memref<4x128xf32, #tpu.memory_space<vmem>>, vector<4x128xf32>,
    %c0_78 = arith.constant 0 : index
    %c0_79 = arith.constant 0 : index
    %155 = vector.load %arg6[%c0_78, %c0_79] : memref<16x36xbf16, #tpu.memory_space<vmem>>, vector<16x36xbf16>
    %c0_80 = arith.constant 0 : index
    %c0_81 = arith.constant 0 : index
    %156 = vector.load %arg2[%c0_80, %c0_81] : memref<36x128xbf16, #tpu.memory_space<vmem>>, vector<36x128xbf16>
    %cst_82 = arith.constant dense<0.000000e+00> : vector<16x128xf32>
    %157 = tpu.matmul %155, %156, %cst_82 {dimension_numbers = #tpu.dot_dimension_numbers<[1], [0], [0], [1], [0, 0, 1, 1], [], []>} : vector<16x36xbf16>, vector<36x128xbf16>, vector<16x128xf32> -> vector<16x128xf32>
    %cst_83 = arith.constant dense<0.000000e+00> : vector<16xf32>
    %158 = vector.multi_reduction <add>, %157, %cst_83 [1] : vector<16x128xf32> to vector<16xf32>
    %159 = vector.shape_cast %158 : vector<16xf32> to vector<16x1xf32>
    %cst_84 = arith.constant 1.280000e+02 : f32
    %160 = vector.broadcast %cst_84 : f32 to vector<16x1xf32>
    %161 = arith.divf %159, %160 : vector<16x1xf32>
    %162 = vector.broadcast %161 : vector<16x1xf32> to vector<16x128xf32>
    %163 = arith.subf %157, %162 : vector<16x128xf32>
    %164 = arith.mulf %163, %163 : vector<16x128xf32>
    %cst_85 = arith.constant dense<0.000000e+00> : vector<16xf32>
    %165 = vector.multi_reduction <add>, %164, %cst_85 [1] : vector<16x128xf32> to vector<16xf32>
    %166 = vector.shape_cast %165 : vector<16xf32> to vector<16x1xf32>
    %cst_86 = arith.constant 1.280000e+02 : f32
    %167 = vector.broadcast %cst_86 : f32 to vector<16x1xf32>
    %168 = arith.divf %166, %167 : vector<16x1xf32>
    %169 = vector.broadcast %161 : vector<16x1xf32> to vector<16x128xf32>
    %170 = arith.subf %157, %169 : vector<16x128xf32>
    %cst_87 = arith.constant 9.99999974E-6 : f32
    %171 = vector.broadcast %cst_87 : f32 to vector<16x1xf32>
    %172 = arith.addf %168, %171 : vector<16x1xf32>
    %173 = math.rsqrt %172 : vector<16x1xf32>
    %174 = vector.broadcast %173 : vector<16x1xf32> to vector<16x128xf32>
    %175 = arith.mulf %170, %174 : vector<16x128xf32>
    %cst_88 = arith.constant 0.000000e+00 : f32
    %176 = vector.broadcast %cst_88 : f32 to vector<16x128xf32>
    %177 = arith.maximumf %175, %176 : vector<16x128xf32>
    %178 = arith.truncf %177 : vector<16x128xf32> to vector<16x128xbf16>
    %c0_89 = arith.constant 0 : index
    %c0_90 = arith.constant 0 : index
    %179 = vector.load %arg16[%c0_89, %c0_90] : memref<16x128xbf16, #tpu.memory_space<vmem>>, vector<16x128xbf16>
    tpu.vector_store %arg16[%c0_89, %c0_90], %178 {strides = array<i32>} : memref<16x128xbf16, #tpu.memory_space<vmem>>, vector<16x128xbf16>,
    %c0_91 = arith.constant 0 : index
    %c0_92 = arith.constant 0 : index
    %180 = vector.load %arg7[%c0_91, %c0_92] : memref<16x100xbf16, #tpu.memory_space<vmem>>, vector<16x100xbf16>
    %c0_93 = arith.constant 0 : index
    %c0_94 = arith.constant 0 : index
    %181 = vector.load %arg3[%c0_93, %c0_94] : memref<100x128xbf16, #tpu.memory_space<vmem>>, vector<100x128xbf16>
    %cst_95 = arith.constant dense<0.000000e+00> : vector<16x128xf32>
    %182 = tpu.matmul %180, %181, %cst_95 {dimension_numbers = #tpu.dot_dimension_numbers<[1], [0], [0], [1], [0, 0, 1, 1], [], []>} : vector<16x100xbf16>, vector<100x128xbf16>, vector<16x128xf32> -> vector<16x128xf32>
    %cst_96 = arith.constant dense<0.000000e+00> : vector<16xf32>
    %183 = vector.multi_reduction <add>, %182, %cst_96 [1] : vector<16x128xf32> to vector<16xf32>
    %184 = vector.shape_cast %183 : vector<16xf32> to vector<16x1xf32>
    %cst_97 = arith.constant 1.280000e+02 : f32
    %185 = vector.broadcast %cst_97 : f32 to vector<16x1xf32>
    %186 = arith.divf %184, %185 : vector<16x1xf32>
    %187 = vector.broadcast %186 : vector<16x1xf32> to vector<16x128xf32>
    %188 = arith.subf %182, %187 : vector<16x128xf32>
    %189 = arith.mulf %188, %188 : vector<16x128xf32>
    %cst_98 = arith.constant dense<0.000000e+00> : vector<16xf32>
    %190 = vector.multi_reduction <add>, %189, %cst_98 [1] : vector<16x128xf32> to vector<16xf32>
    %191 = vector.shape_cast %190 : vector<16xf32> to vector<16x1xf32>
    %cst_99 = arith.constant 1.280000e+02 : f32
    %192 = vector.broadcast %cst_99 : f32 to vector<16x1xf32>
    %193 = arith.divf %191, %192 : vector<16x1xf32>
    %194 = vector.broadcast %186 : vector<16x1xf32> to vector<16x128xf32>
    %195 = arith.subf %182, %194 : vector<16x128xf32>
    %cst_100 = arith.constant 9.99999974E-6 : f32
    %196 = vector.broadcast %cst_100 : f32 to vector<16x1xf32>
    %197 = arith.addf %193, %196 : vector<16x1xf32>
    %198 = math.rsqrt %197 : vector<16x1xf32>
    %199 = vector.broadcast %198 : vector<16x1xf32> to vector<16x128xf32>
    %200 = arith.mulf %195, %199 : vector<16x128xf32>
    %cst_101 = arith.constant 0.000000e+00 : f32
    %201 = vector.broadcast %cst_101 : f32 to vector<16x128xf32>
    %202 = arith.maximumf %200, %201 : vector<16x128xf32>
    %203 = arith.truncf %202 : vector<16x128xf32> to vector<16x128xbf16>
    %c0_102 = arith.constant 0 : index
    %c0_103 = arith.constant 0 : index
    %204 = vector.load %arg17[%c0_102, %c0_103] : memref<16x128xbf16, #tpu.memory_space<vmem>>, vector<16x128xbf16>
    tpu.vector_store %arg17[%c0_102, %c0_103], %203 {strides = array<i32>} : memref<16x128xbf16, #tpu.memory_space<vmem>>, vector<16x128xbf16>,
    %c0_104 = arith.constant 0 : index
    %c0_105 = arith.constant 0 : index
    %205 = vector.load %arg8[%c0_104, %c0_105] : memref<16x36xbf16, #tpu.memory_space<vmem>>, vector<16x36xbf16>
    %c0_106 = arith.constant 0 : index
    %c0_107 = arith.constant 0 : index
    %206 = vector.load %arg4[%c0_106, %c0_107] : memref<36x128xbf16, #tpu.memory_space<vmem>>, vector<36x128xbf16>
    %cst_108 = arith.constant dense<0.000000e+00> : vector<16x128xf32>
    %207 = tpu.matmul %205, %206, %cst_108 {dimension_numbers = #tpu.dot_dimension_numbers<[1], [0], [0], [1], [0, 0, 1, 1], [], []>} : vector<16x36xbf16>, vector<36x128xbf16>, vector<16x128xf32> -> vector<16x128xf32>
    %c0_109 = arith.constant 0 : index
    %c0_110 = arith.constant 0 : index
    %208 = vector.load %arg9[%c0_109, %c0_110] : memref<16x100xbf16, #tpu.memory_space<vmem>>, vector<16x100xbf16>
    %c0_111 = arith.constant 0 : index
    %c0_112 = arith.constant 0 : index
    %209 = vector.load %arg5[%c0_111, %c0_112] : memref<100x128xbf16, #tpu.memory_space<vmem>>, vector<100x128xbf16>
    %cst_113 = arith.constant dense<0.000000e+00> : vector<16x128xf32>
    %210 = tpu.matmul %208, %209, %cst_113 {dimension_numbers = #tpu.dot_dimension_numbers<[1], [0], [0], [1], [0, 0, 1, 1], [], []>} : vector<16x100xbf16>, vector<100x128xbf16>, vector<16x128xf32> -> vector<16x128xf32>
    %211 = vector.extract_strided_slice %0 {offsets = [0, 6], sizes = [16, 1], strides = [1, 1]} : vector<16x8xf32> to vector<16x1xf32>
    %cst_114 = arith.constant dense<0.000000e+00> : vector<16xf32>
    %212 = vector.multi_reduction <add>, %207, %cst_114 [1] : vector<16x128xf32> to vector<16xf32>
    %213 = vector.shape_cast %212 : vector<16xf32> to vector<16x1xf32>
    %cst_115 = arith.constant 1.280000e+02 : f32
    %214 = vector.broadcast %cst_115 : f32 to vector<16x1xf32>
    %215 = arith.divf %213, %214 : vector<16x1xf32>
    %216 = vector.broadcast %215 : vector<16x1xf32> to vector<16x128xf32>
    %217 = arith.subf %207, %216 : vector<16x128xf32>
    %218 = arith.mulf %217, %217 : vector<16x128xf32>
    %cst_116 = arith.constant dense<0.000000e+00> : vector<16xf32>
    %219 = vector.multi_reduction <add>, %218, %cst_116 [1] : vector<16x128xf32> to vector<16xf32>
    %220 = vector.shape_cast %219 : vector<16xf32> to vector<16x1xf32>
    %cst_117 = arith.constant 1.280000e+02 : f32
    %221 = vector.broadcast %cst_117 : f32 to vector<16x1xf32>
    %222 = arith.divf %220, %221 : vector<16x1xf32>
    %223 = vector.broadcast %215 : vector<16x1xf32> to vector<16x128xf32>
    %224 = arith.subf %207, %223 : vector<16x128xf32>
    %cst_118 = arith.constant 9.99999974E-6 : f32
    %225 = vector.broadcast %cst_118 : f32 to vector<16x1xf32>
    %226 = arith.addf %222, %225 : vector<16x1xf32>
    %227 = math.rsqrt %226 : vector<16x1xf32>
    %228 = vector.broadcast %227 : vector<16x1xf32> to vector<16x128xf32>
    %229 = arith.mulf %224, %228 : vector<16x128xf32>
    %230 = vector.broadcast %211 : vector<16x1xf32> to vector<16x128xf32>
    %231 = arith.mulf %230, %229 : vector<16x128xf32>
    %232 = vector.extract_strided_slice %0 {offsets = [0, 7], sizes = [16, 1], strides = [1, 1]} : vector<16x8xf32> to vector<16x1xf32>
    %cst_119 = arith.constant dense<0.000000e+00> : vector<16xf32>
    %233 = vector.multi_reduction <add>, %210, %cst_119 [1] : vector<16x128xf32> to vector<16xf32>
    %234 = vector.shape_cast %233 : vector<16xf32> to vector<16x1xf32>
    %cst_120 = arith.constant 1.280000e+02 : f32
    %235 = vector.broadcast %cst_120 : f32 to vector<16x1xf32>
    %236 = arith.divf %234, %235 : vector<16x1xf32>
    %237 = vector.broadcast %236 : vector<16x1xf32> to vector<16x128xf32>
    %238 = arith.subf %210, %237 : vector<16x128xf32>
    %239 = arith.mulf %238, %238 : vector<16x128xf32>
    %cst_121 = arith.constant dense<0.000000e+00> : vector<16xf32>
    %240 = vector.multi_reduction <add>, %239, %cst_121 [1] : vector<16x128xf32> to vector<16xf32>
    %241 = vector.shape_cast %240 : vector<16xf32> to vector<16x1xf32>
    %cst_122 = arith.constant 1.280000e+02 : f32
    %242 = vector.broadcast %cst_122 : f32 to vector<16x1xf32>
    %243 = arith.divf %241, %242 : vector<16x1xf32>
    %244 = vector.broadcast %236 : vector<16x1xf32> to vector<16x128xf32>
    %245 = arith.subf %210, %244 : vector<16x128xf32>
    %cst_123 = arith.constant 9.99999974E-6 : f32
    %246 = vector.broadcast %cst_123 : f32 to vector<16x1xf32>
    %247 = arith.addf %243, %246 : vector<16x1xf32>
    %248 = math.rsqrt %247 : vector<16x1xf32>
    %249 = vector.broadcast %248 : vector<16x1xf32> to vector<16x128xf32>
    %250 = arith.mulf %245, %249 : vector<16x128xf32>
    %251 = vector.broadcast %232 : vector<16x1xf32> to vector<16x128xf32>
    %252 = arith.mulf %251, %250 : vector<16x128xf32>
    %253 = arith.addf %231, %252 : vector<16x128xf32>
    %c4_124 = arith.constant 4 : index
    %c0_125 = arith.constant 0 : index
    %c0_126 = arith.constant 0 : index
    %254 = vector.load %arg0[%c4_124, %c0_125, %c0_126] : memref<9x4x128xf32, #tpu.memory_space<vmem>>, vector<1x4x128xf32>
    %255 = vector.shape_cast %254 : vector<1x4x128xf32> to vector<4x128xf32>
    %cst_127 = arith.constant 0.000000e+00 : f32
    %256 = vector.broadcast %cst_127 : f32 to vector<4x128xf32>
    %257 = arith.maximumf %255, %256 : vector<4x128xf32>
    %258 = arith.truncf %257 : vector<4x128xf32> to vector<4x128xbf16>
    %c8_128 = arith.constant 8 : index
    %c0_129 = arith.constant 0 : index
    %c0_130 = arith.constant 0 : index
    %259 = vector.load %arg0[%c8_128, %c0_129, %c0_130] : memref<9x4x128xf32, #tpu.memory_space<vmem>>, vector<1x4x128xf32>
    %260 = vector.shape_cast %259 : vector<1x4x128xf32> to vector<4x128xf32>
    %cst_131 = arith.constant 0.000000e+00 : f32
    %261 = vector.broadcast %cst_131 : f32 to vector<4x128xf32>
    %262 = arith.maximumf %260, %261 : vector<4x128xf32>
    %263 = arith.truncf %262 : vector<4x128xf32> to vector<4x128xbf16>
    %c0_132 = arith.constant 0 : index
    %c0_133 = arith.constant 0 : index
    %264 = vector.load %arg10[%c0_132, %c0_133] : memref<16x4xbf16, #tpu.memory_space<vmem>>, vector<16x4xbf16>
    %cst_134 = arith.constant dense<0.000000e+00> : vector<16x128xf32>
    %265 = tpu.matmul %264, %258, %cst_134 {dimension_numbers = #tpu.dot_dimension_numbers<[1], [0], [0], [1], [0, 0, 1, 1], [], []>} : vector<16x4xbf16>, vector<4x128xbf16>, vector<16x128xf32> -> vector<16x128xf32>
    %c0_135 = arith.constant 0 : index
    %c0_136 = arith.constant 0 : index
    %266 = vector.load %arg11[%c0_135, %c0_136] : memref<16x4xbf16, #tpu.memory_space<vmem>>, vector<16x4xbf16>
    %cst_137 = arith.constant dense<0.000000e+00> : vector<16x128xf32>
    %267 = tpu.matmul %266, %263, %cst_137 {dimension_numbers = #tpu.dot_dimension_numbers<[1], [0], [0], [1], [0, 0, 1, 1], [], []>} : vector<16x4xbf16>, vector<4x128xbf16>, vector<16x128xf32> -> vector<16x128xf32>
    %268 = arith.addf %265, %267 : vector<16x128xf32>
    %269 = vector.extract_strided_slice %0 {offsets = [0, 3], sizes = [16, 1], strides = [1, 1]} : vector<16x8xf32> to vector<16x1xf32>
    %cst_138 = arith.constant dense<0.000000e+00> : vector<16xf32>
    %270 = vector.multi_reduction <add>, %268, %cst_138 [1] : vector<16x128xf32> to vector<16xf32>
    %271 = vector.shape_cast %270 : vector<16xf32> to vector<16x1xf32>
    %cst_139 = arith.constant 1.280000e+02 : f32
    %272 = vector.broadcast %cst_139 : f32 to vector<16x1xf32>
    %273 = arith.divf %271, %272 : vector<16x1xf32>
    %274 = vector.broadcast %273 : vector<16x1xf32> to vector<16x128xf32>
    %275 = arith.subf %268, %274 : vector<16x128xf32>
    %276 = arith.mulf %275, %275 : vector<16x128xf32>
    %cst_140 = arith.constant dense<0.000000e+00> : vector<16xf32>
    %277 = vector.multi_reduction <add>, %276, %cst_140 [1] : vector<16x128xf32> to vector<16xf32>
    %278 = vector.shape_cast %277 : vector<16xf32> to vector<16x1xf32>
    %cst_141 = arith.constant 1.280000e+02 : f32
    %279 = vector.broadcast %cst_141 : f32 to vector<16x1xf32>
    %280 = arith.divf %278, %279 : vector<16x1xf32>
    %281 = vector.broadcast %273 : vector<16x1xf32> to vector<16x128xf32>
    %282 = arith.subf %268, %281 : vector<16x128xf32>
    %cst_142 = arith.constant 9.99999974E-6 : f32
    %283 = vector.broadcast %cst_142 : f32 to vector<16x1xf32>
    %284 = arith.addf %280, %283 : vector<16x1xf32>
    %285 = math.rsqrt %284 : vector<16x1xf32>
    %286 = vector.broadcast %285 : vector<16x1xf32> to vector<16x128xf32>
    %287 = arith.mulf %282, %286 : vector<16x128xf32>
    %288 = vector.broadcast %269 : vector<16x1xf32> to vector<16x128xf32>
    %289 = arith.mulf %288, %287 : vector<16x128xf32>
    %290 = arith.addf %253, %289 : vector<16x128xf32>
    %c0_143 = arith.constant 0 : index
    %c0_144 = arith.constant 0 : index
    %291 = vector.load %arg13[%c0_143, %c0_144] : memref<16x128xf32, #tpu.memory_space<vmem>>, vector<16x128xf32>
    tpu.vector_store %arg13[%c0_143, %c0_144], %290 {strides = array<i32>} : memref<16x128xf32, #tpu.memory_space<vmem>>, vector<16x128xf32>,
    return
  }
}

module attributes {stable_mosaic.version = 11 : i64} {
  func.func @_edge_group_b_kernel(%arg0: memref<16x128xf32, #tpu.memory_space<vmem>>, %arg1: memref<144x128xbf16, #tpu.memory_space<vmem>>, %arg2: memref<400x128xbf16, #tpu.memory_space<vmem>>, %arg3: memref<16x144xbf16, #tpu.memory_space<vmem>>, %arg4: memref<16x400xbf16, #tpu.memory_space<vmem>>, %arg5: memref<16x8xf32, #tpu.memory_space<vmem>>, %arg6: memref<16x128xf32, #tpu.memory_space<vmem>>) attributes {dimension_semantics = [], scalar_prefetch = 0 : i64, scratch_operands = 0 : i64, tpu.core_type = #tpu.core_type<tc>} {
    %c0 = arith.constant 0 : index
    %c0_0 = arith.constant 0 : index
    %0 = vector.load %arg5[%c0, %c0_0] : memref<16x8xf32, #tpu.memory_space<vmem>>, vector<16x8xf32>
    %c0_1 = arith.constant 0 : index
    %c0_2 = arith.constant 0 : index
    %1 = vector.load %arg3[%c0_1, %c0_2] : memref<16x144xbf16, #tpu.memory_space<vmem>>, vector<16x144xbf16>
    %c0_3 = arith.constant 0 : index
    %c0_4 = arith.constant 0 : index
    %2 = vector.load %arg1[%c0_3, %c0_4] : memref<144x128xbf16, #tpu.memory_space<vmem>>, vector<144x128xbf16>
    %cst = arith.constant dense<0.000000e+00> : vector<16x128xf32>
    %3 = tpu.matmul %1, %2, %cst {dimension_numbers = #tpu.dot_dimension_numbers<[1], [0], [0], [1], [0, 0, 1, 1], [], []>} : vector<16x144xbf16>, vector<144x128xbf16>, vector<16x128xf32> -> vector<16x128xf32>
    %c0_5 = arith.constant 0 : index
    %c0_6 = arith.constant 0 : index
    %4 = vector.load %arg4[%c0_5, %c0_6] : memref<16x400xbf16, #tpu.memory_space<vmem>>, vector<16x400xbf16>
    %c0_7 = arith.constant 0 : index
    %c0_8 = arith.constant 0 : index
    %5 = vector.load %arg2[%c0_7, %c0_8] : memref<400x128xbf16, #tpu.memory_space<vmem>>, vector<400x128xbf16>
    %cst_9 = arith.constant dense<0.000000e+00> : vector<16x128xf32>
    %6 = tpu.matmul %4, %5, %cst_9 {dimension_numbers = #tpu.dot_dimension_numbers<[1], [0], [0], [1], [0, 0, 1, 1], [], []>} : vector<16x400xbf16>, vector<400x128xbf16>, vector<16x128xf32> -> vector<16x128xf32>
    %c0_10 = arith.constant 0 : index
    %c0_11 = arith.constant 0 : index
    %7 = vector.load %arg0[%c0_10, %c0_11] : memref<16x128xf32, #tpu.memory_space<vmem>>, vector<16x128xf32>
    %8 = vector.extract_strided_slice %0 {offsets = [0, 4], sizes = [16, 1], strides = [1, 1]} : vector<16x8xf32> to vector<16x1xf32>
    %cst_12 = arith.constant dense<0.000000e+00> : vector<16xf32>
    %9 = vector.multi_reduction <add>, %3, %cst_12 [1] : vector<16x128xf32> to vector<16xf32>
    %10 = vector.shape_cast %9 : vector<16xf32> to vector<16x1xf32>
    %cst_13 = arith.constant 1.280000e+02 : f32
    %11 = vector.broadcast %cst_13 : f32 to vector<16x1xf32>
    %12 = arith.divf %10, %11 : vector<16x1xf32>
    %13 = vector.broadcast %12 : vector<16x1xf32> to vector<16x128xf32>
    %14 = arith.subf %3, %13 : vector<16x128xf32>
    %15 = arith.mulf %14, %14 : vector<16x128xf32>
    %cst_14 = arith.constant dense<0.000000e+00> : vector<16xf32>
    %16 = vector.multi_reduction <add>, %15, %cst_14 [1] : vector<16x128xf32> to vector<16xf32>
    %17 = vector.shape_cast %16 : vector<16xf32> to vector<16x1xf32>
    %cst_15 = arith.constant 1.280000e+02 : f32
    %18 = vector.broadcast %cst_15 : f32 to vector<16x1xf32>
    %19 = arith.divf %17, %18 : vector<16x1xf32>
    %20 = vector.broadcast %12 : vector<16x1xf32> to vector<16x128xf32>
    %21 = arith.subf %3, %20 : vector<16x128xf32>
    %cst_16 = arith.constant 9.99999974E-6 : f32
    %22 = vector.broadcast %cst_16 : f32 to vector<16x1xf32>
    %23 = arith.addf %19, %22 : vector<16x1xf32>
    %24 = math.rsqrt %23 : vector<16x1xf32>
    %25 = vector.broadcast %24 : vector<16x1xf32> to vector<16x128xf32>
    %26 = arith.mulf %21, %25 : vector<16x128xf32>
    %27 = vector.broadcast %8 : vector<16x1xf32> to vector<16x128xf32>
    %28 = arith.mulf %27, %26 : vector<16x128xf32>
    %29 = arith.addf %7, %28 : vector<16x128xf32>
    %30 = vector.extract_strided_slice %0 {offsets = [0, 5], sizes = [16, 1], strides = [1, 1]} : vector<16x8xf32> to vector<16x1xf32>
    %cst_17 = arith.constant dense<0.000000e+00> : vector<16xf32>
    %31 = vector.multi_reduction <add>, %6, %cst_17 [1] : vector<16x128xf32> to vector<16xf32>
    %32 = vector.shape_cast %31 : vector<16xf32> to vector<16x1xf32>
    %cst_18 = arith.constant 1.280000e+02 : f32
    %33 = vector.broadcast %cst_18 : f32 to vector<16x1xf32>
    %34 = arith.divf %32, %33 : vector<16x1xf32>
    %35 = vector.broadcast %34 : vector<16x1xf32> to vector<16x128xf32>
    %36 = arith.subf %6, %35 : vector<16x128xf32>
    %37 = arith.mulf %36, %36 : vector<16x128xf32>
    %cst_19 = arith.constant dense<0.000000e+00> : vector<16xf32>
    %38 = vector.multi_reduction <add>, %37, %cst_19 [1] : vector<16x128xf32> to vector<16xf32>
    %39 = vector.shape_cast %38 : vector<16xf32> to vector<16x1xf32>
    %cst_20 = arith.constant 1.280000e+02 : f32
    %40 = vector.broadcast %cst_20 : f32 to vector<16x1xf32>
    %41 = arith.divf %39, %40 : vector<16x1xf32>
    %42 = vector.broadcast %34 : vector<16x1xf32> to vector<16x128xf32>
    %43 = arith.subf %6, %42 : vector<16x128xf32>
    %cst_21 = arith.constant 9.99999974E-6 : f32
    %44 = vector.broadcast %cst_21 : f32 to vector<16x1xf32>
    %45 = arith.addf %41, %44 : vector<16x1xf32>
    %46 = math.rsqrt %45 : vector<16x1xf32>
    %47 = vector.broadcast %46 : vector<16x1xf32> to vector<16x128xf32>
    %48 = arith.mulf %43, %47 : vector<16x128xf32>
    %49 = vector.broadcast %30 : vector<16x1xf32> to vector<16x128xf32>
    %50 = arith.mulf %49, %48 : vector<16x128xf32>
    %51 = arith.addf %29, %50 : vector<16x128xf32>
    %c0_22 = arith.constant 0 : index
    %c0_23 = arith.constant 0 : index
    %52 = vector.load %arg6[%c0_22, %c0_23] : memref<16x128xf32, #tpu.memory_space<vmem>>, vector<16x128xf32>
    tpu.vector_store %arg6[%c0_22, %c0_23], %51 {strides = array<i32>} : memref<16x128xf32, #tpu.memory_space<vmem>>, vector<16x128xf32>,
    return
  }
}

module attributes {stable_mosaic.version = 11 : i64} {
  func.func @_edge_group_a_kernel(%arg0: memref<9x4x128xf32, #tpu.memory_space<vmem>>, %arg1: memref<9x1x128xf32, #tpu.memory_space<vmem>>, %arg2: memref<36x128xbf16, #tpu.memory_space<vmem>>, %arg3: memref<100x128xbf16, #tpu.memory_space<vmem>>, %arg4: memref<36x128xbf16, #tpu.memory_space<vmem>>, %arg5: memref<100x128xbf16, #tpu.memory_space<vmem>>, %arg6: memref<12x36xbf16, #tpu.memory_space<vmem>>, %arg7: memref<12x100xbf16, #tpu.memory_space<vmem>>, %arg8: memref<12x36xbf16, #tpu.memory_space<vmem>>, %arg9: memref<12x100xbf16, #tpu.memory_space<vmem>>, %arg10: memref<12x4xbf16, #tpu.memory_space<vmem>>, %arg11: memref<12x4xbf16, #tpu.memory_space<vmem>>, %arg12: memref<12x8xf32, #tpu.memory_space<vmem>>, %arg13: memref<12x128xf32, #tpu.memory_space<vmem>>, %arg14: memref<4x128xf32, #tpu.memory_space<vmem>>, %arg15: memref<4x128xf32, #tpu.memory_space<vmem>>, %arg16: memref<12x128xbf16, #tpu.memory_space<vmem>>, %arg17: memref<12x128xbf16, #tpu.memory_space<vmem>>) attributes {dimension_semantics = [], scalar_prefetch = 0 : i64, scratch_operands = 0 : i64, tpu.core_type = #tpu.core_type<tc>} {
    %c0 = arith.constant 0 : index
    %c0_0 = arith.constant 0 : index
    %0 = vector.load %arg12[%c0, %c0_0] : memref<12x8xf32, #tpu.memory_space<vmem>>, vector<12x8xf32>
    %c0_1 = arith.constant 0 : index
    %c0_2 = arith.constant 0 : index
    %c0_3 = arith.constant 0 : index
    %1 = vector.load %arg0[%c0_1, %c0_2, %c0_3] : memref<9x4x128xf32, #tpu.memory_space<vmem>>, vector<1x4x128xf32>
    %2 = vector.shape_cast %1 : vector<1x4x128xf32> to vector<4x128xf32>
    %c0_4 = arith.constant 0 : index
    %c0_5 = arith.constant 0 : index
    %c0_6 = arith.constant 0 : index
    %3 = vector.load %arg1[%c0_4, %c0_5, %c0_6] : memref<9x1x128xf32, #tpu.memory_space<vmem>>, vector<1x1x128xf32>
    %4 = vector.shape_cast %3 : vector<1x1x128xf32> to vector<1x128xf32>
    %cst = arith.constant 1.000000e+00 : f32
    %5 = vector.broadcast %cst : f32 to vector<1x128xf32>
    %6 = arith.subf %4, %5 : vector<1x128xf32>
    %cst_7 = arith.constant 1.000000e+30 : f32
    %7 = vector.broadcast %cst_7 : f32 to vector<1x128xf32>
    %8 = arith.mulf %6, %7 : vector<1x128xf32>
    %9 = vector.broadcast %8 : vector<1x128xf32> to vector<4x128xf32>
    %10 = arith.addf %2, %9 : vector<4x128xf32>
    %c1 = arith.constant 1 : index
    %c0_8 = arith.constant 0 : index
    %c0_9 = arith.constant 0 : index
    %11 = vector.load %arg0[%c1, %c0_8, %c0_9] : memref<9x4x128xf32, #tpu.memory_space<vmem>>, vector<1x4x128xf32>
    %12 = vector.shape_cast %11 : vector<1x4x128xf32> to vector<4x128xf32>
    %c1_10 = arith.constant 1 : index
    %c0_11 = arith.constant 0 : index
    %c0_12 = arith.constant 0 : index
    %13 = vector.load %arg1[%c1_10, %c0_11, %c0_12] : memref<9x1x128xf32, #tpu.memory_space<vmem>>, vector<1x1x128xf32>
    %14 = vector.shape_cast %13 : vector<1x1x128xf32> to vector<1x128xf32>
    %cst_13 = arith.constant 1.000000e+00 : f32
    %15 = vector.broadcast %cst_13 : f32 to vector<1x128xf32>
    %16 = arith.subf %14, %15 : vector<1x128xf32>
    %cst_14 = arith.constant 1.000000e+30 : f32
    %17 = vector.broadcast %cst_14 : f32 to vector<1x128xf32>
    %18 = arith.mulf %16, %17 : vector<1x128xf32>
    %19 = vector.broadcast %18 : vector<1x128xf32> to vector<4x128xf32>
    %20 = arith.addf %12, %19 : vector<4x128xf32>
    %21 = arith.maximumf %10, %20 : vector<4x128xf32>
    %22 = arith.addf %2, %12 : vector<4x128xf32>
    %23 = arith.addf %4, %14 : vector<1x128xf32>
    %c2 = arith.constant 2 : index
    %c0_15 = arith.constant 0 : index
    %c0_16 = arith.constant 0 : index
    %24 = vector.load %arg0[%c2, %c0_15, %c0_16] : memref<9x4x128xf32, #tpu.memory_space<vmem>>, vector<1x4x128xf32>
    %25 = vector.shape_cast %24 : vector<1x4x128xf32> to vector<4x128xf32>
    %c2_17 = arith.constant 2 : index
    %c0_18 = arith.constant 0 : index
    %c0_19 = arith.constant 0 : index
    %26 = vector.load %arg1[%c2_17, %c0_18, %c0_19] : memref<9x1x128xf32, #tpu.memory_space<vmem>>, vector<1x1x128xf32>
    %27 = vector.shape_cast %26 : vector<1x1x128xf32> to vector<1x128xf32>
    %cst_20 = arith.constant 1.000000e+00 : f32
    %28 = vector.broadcast %cst_20 : f32 to vector<1x128xf32>
    %29 = arith.subf %27, %28 : vector<1x128xf32>
    %cst_21 = arith.constant 1.000000e+30 : f32
    %30 = vector.broadcast %cst_21 : f32 to vector<1x128xf32>
    %31 = arith.mulf %29, %30 : vector<1x128xf32>
    %32 = vector.broadcast %31 : vector<1x128xf32> to vector<4x128xf32>
    %33 = arith.addf %25, %32 : vector<4x128xf32>
    %34 = arith.maximumf %21, %33 : vector<4x128xf32>
    %35 = arith.addf %22, %25 : vector<4x128xf32>
    %36 = arith.addf %23, %27 : vector<1x128xf32>
    %c3 = arith.constant 3 : index
    %c0_22 = arith.constant 0 : index
    %c0_23 = arith.constant 0 : index
    %37 = vector.load %arg0[%c3, %c0_22, %c0_23] : memref<9x4x128xf32, #tpu.memory_space<vmem>>, vector<1x4x128xf32>
    %38 = vector.shape_cast %37 : vector<1x4x128xf32> to vector<4x128xf32>
    %c3_24 = arith.constant 3 : index
    %c0_25 = arith.constant 0 : index
    %c0_26 = arith.constant 0 : index
    %39 = vector.load %arg1[%c3_24, %c0_25, %c0_26] : memref<9x1x128xf32, #tpu.memory_space<vmem>>, vector<1x1x128xf32>
    %40 = vector.shape_cast %39 : vector<1x1x128xf32> to vector<1x128xf32>
    %cst_27 = arith.constant 1.000000e+00 : f32
    %41 = vector.broadcast %cst_27 : f32 to vector<1x128xf32>
    %42 = arith.subf %40, %41 : vector<1x128xf32>
    %cst_28 = arith.constant 1.000000e+30 : f32
    %43 = vector.broadcast %cst_28 : f32 to vector<1x128xf32>
    %44 = arith.mulf %42, %43 : vector<1x128xf32>
    %45 = vector.broadcast %44 : vector<1x128xf32> to vector<4x128xf32>
    %46 = arith.addf %38, %45 : vector<4x128xf32>
    %47 = arith.maximumf %34, %46 : vector<4x128xf32>
    %48 = arith.addf %35, %38 : vector<4x128xf32>
    %49 = arith.addf %36, %40 : vector<1x128xf32>
    %c4 = arith.constant 4 : index
    %c0_29 = arith.constant 0 : index
    %c0_30 = arith.constant 0 : index
    %50 = vector.load %arg0[%c4, %c0_29, %c0_30] : memref<9x4x128xf32, #tpu.memory_space<vmem>>, vector<1x4x128xf32>
    %51 = vector.shape_cast %50 : vector<1x4x128xf32> to vector<4x128xf32>
    %c4_31 = arith.constant 4 : index
    %c0_32 = arith.constant 0 : index
    %c0_33 = arith.constant 0 : index
    %52 = vector.load %arg1[%c4_31, %c0_32, %c0_33] : memref<9x1x128xf32, #tpu.memory_space<vmem>>, vector<1x1x128xf32>
    %53 = vector.shape_cast %52 : vector<1x1x128xf32> to vector<1x128xf32>
    %cst_34 = arith.constant 1.000000e+00 : f32
    %54 = vector.broadcast %cst_34 : f32 to vector<1x128xf32>
    %55 = arith.subf %53, %54 : vector<1x128xf32>
    %cst_35 = arith.constant 1.000000e+30 : f32
    %56 = vector.broadcast %cst_35 : f32 to vector<1x128xf32>
    %57 = arith.mulf %55, %56 : vector<1x128xf32>
    %58 = vector.broadcast %57 : vector<1x128xf32> to vector<4x128xf32>
    %59 = arith.addf %51, %58 : vector<4x128xf32>
    %60 = arith.maximumf %47, %59 : vector<4x128xf32>
    %61 = arith.addf %48, %51 : vector<4x128xf32>
    %62 = arith.addf %49, %53 : vector<1x128xf32>
    %c5 = arith.constant 5 : index
    %c0_36 = arith.constant 0 : index
    %c0_37 = arith.constant 0 : index
    %63 = vector.load %arg0[%c5, %c0_36, %c0_37] : memref<9x4x128xf32, #tpu.memory_space<vmem>>, vector<1x4x128xf32>
    %64 = vector.shape_cast %63 : vector<1x4x128xf32> to vector<4x128xf32>
    %c5_38 = arith.constant 5 : index
    %c0_39 = arith.constant 0 : index
    %c0_40 = arith.constant 0 : index
    %65 = vector.load %arg1[%c5_38, %c0_39, %c0_40] : memref<9x1x128xf32, #tpu.memory_space<vmem>>, vector<1x1x128xf32>
    %66 = vector.shape_cast %65 : vector<1x1x128xf32> to vector<1x128xf32>
    %cst_41 = arith.constant 1.000000e+00 : f32
    %67 = vector.broadcast %cst_41 : f32 to vector<1x128xf32>
    %68 = arith.subf %66, %67 : vector<1x128xf32>
    %cst_42 = arith.constant 1.000000e+30 : f32
    %69 = vector.broadcast %cst_42 : f32 to vector<1x128xf32>
    %70 = arith.mulf %68, %69 : vector<1x128xf32>
    %71 = vector.broadcast %70 : vector<1x128xf32> to vector<4x128xf32>
    %72 = arith.addf %64, %71 : vector<4x128xf32>
    %73 = arith.maximumf %60, %72 : vector<4x128xf32>
    %74 = arith.addf %61, %64 : vector<4x128xf32>
    %75 = arith.addf %62, %66 : vector<1x128xf32>
    %c6 = arith.constant 6 : index
    %c0_43 = arith.constant 0 : index
    %c0_44 = arith.constant 0 : index
    %76 = vector.load %arg0[%c6, %c0_43, %c0_44] : memref<9x4x128xf32, #tpu.memory_space<vmem>>, vector<1x4x128xf32>
    %77 = vector.shape_cast %76 : vector<1x4x128xf32> to vector<4x128xf32>
    %c6_45 = arith.constant 6 : index
    %c0_46 = arith.constant 0 : index
    %c0_47 = arith.constant 0 : index
    %78 = vector.load %arg1[%c6_45, %c0_46, %c0_47] : memref<9x1x128xf32, #tpu.memory_space<vmem>>, vector<1x1x128xf32>
    %79 = vector.shape_cast %78 : vector<1x1x128xf32> to vector<1x128xf32>
    %cst_48 = arith.constant 1.000000e+00 : f32
    %80 = vector.broadcast %cst_48 : f32 to vector<1x128xf32>
    %81 = arith.subf %79, %80 : vector<1x128xf32>
    %cst_49 = arith.constant 1.000000e+30 : f32
    %82 = vector.broadcast %cst_49 : f32 to vector<1x128xf32>
    %83 = arith.mulf %81, %82 : vector<1x128xf32>
    %84 = vector.broadcast %83 : vector<1x128xf32> to vector<4x128xf32>
    %85 = arith.addf %77, %84 : vector<4x128xf32>
    %86 = arith.maximumf %73, %85 : vector<4x128xf32>
    %87 = arith.addf %74, %77 : vector<4x128xf32>
    %88 = arith.addf %75, %79 : vector<1x128xf32>
    %c7 = arith.constant 7 : index
    %c0_50 = arith.constant 0 : index
    %c0_51 = arith.constant 0 : index
    %89 = vector.load %arg0[%c7, %c0_50, %c0_51] : memref<9x4x128xf32, #tpu.memory_space<vmem>>, vector<1x4x128xf32>
    %90 = vector.shape_cast %89 : vector<1x4x128xf32> to vector<4x128xf32>
    %c7_52 = arith.constant 7 : index
    %c0_53 = arith.constant 0 : index
    %c0_54 = arith.constant 0 : index
    %91 = vector.load %arg1[%c7_52, %c0_53, %c0_54] : memref<9x1x128xf32, #tpu.memory_space<vmem>>, vector<1x1x128xf32>
    %92 = vector.shape_cast %91 : vector<1x1x128xf32> to vector<1x128xf32>
    %cst_55 = arith.constant 1.000000e+00 : f32
    %93 = vector.broadcast %cst_55 : f32 to vector<1x128xf32>
    %94 = arith.subf %92, %93 : vector<1x128xf32>
    %cst_56 = arith.constant 1.000000e+30 : f32
    %95 = vector.broadcast %cst_56 : f32 to vector<1x128xf32>
    %96 = arith.mulf %94, %95 : vector<1x128xf32>
    %97 = vector.broadcast %96 : vector<1x128xf32> to vector<4x128xf32>
    %98 = arith.addf %90, %97 : vector<4x128xf32>
    %99 = arith.maximumf %86, %98 : vector<4x128xf32>
    %100 = arith.addf %87, %90 : vector<4x128xf32>
    %101 = arith.addf %88, %92 : vector<1x128xf32>
    %c8 = arith.constant 8 : index
    %c0_57 = arith.constant 0 : index
    %c0_58 = arith.constant 0 : index
    %102 = vector.load %arg0[%c8, %c0_57, %c0_58] : memref<9x4x128xf32, #tpu.memory_space<vmem>>, vector<1x4x128xf32>
    %103 = vector.shape_cast %102 : vector<1x4x128xf32> to vector<4x128xf32>
    %c8_59 = arith.constant 8 : index
    %c0_60 = arith.constant 0 : index
    %c0_61 = arith.constant 0 : index
    %104 = vector.load %arg1[%c8_59, %c0_60, %c0_61] : memref<9x1x128xf32, #tpu.memory_space<vmem>>, vector<1x1x128xf32>
    %105 = vector.shape_cast %104 : vector<1x1x128xf32> to vector<1x128xf32>
    %cst_62 = arith.constant 1.000000e+00 : f32
    %106 = vector.broadcast %cst_62 : f32 to vector<1x128xf32>
    %107 = arith.subf %105, %106 : vector<1x128xf32>
    %cst_63 = arith.constant 1.000000e+30 : f32
    %108 = vector.broadcast %cst_63 : f32 to vector<1x128xf32>
    %109 = arith.mulf %107, %108 : vector<1x128xf32>
    %110 = vector.broadcast %109 : vector<1x128xf32> to vector<4x128xf32>
    %111 = arith.addf %103, %110 : vector<4x128xf32>
    %112 = arith.maximumf %99, %111 : vector<4x128xf32>
    %113 = arith.addf %100, %103 : vector<4x128xf32>
    %114 = arith.addf %101, %105 : vector<1x128xf32>
    %cst_64 = arith.constant dense<0.000000e+00> : vector<4xf32>
    %115 = vector.multi_reduction <add>, %112, %cst_64 [1] : vector<4x128xf32> to vector<4xf32>
    %116 = vector.shape_cast %115 : vector<4xf32> to vector<4x1xf32>
    %cst_65 = arith.constant 1.280000e+02 : f32
    %117 = vector.broadcast %cst_65 : f32 to vector<4x1xf32>
    %118 = arith.divf %116, %117 : vector<4x1xf32>
    %119 = vector.broadcast %118 : vector<4x1xf32> to vector<4x128xf32>
    %120 = arith.subf %112, %119 : vector<4x128xf32>
    %121 = arith.mulf %120, %120 : vector<4x128xf32>
    %cst_66 = arith.constant dense<0.000000e+00> : vector<4xf32>
    %122 = vector.multi_reduction <add>, %121, %cst_66 [1] : vector<4x128xf32> to vector<4xf32>
    %123 = vector.shape_cast %122 : vector<4xf32> to vector<4x1xf32>
    %cst_67 = arith.constant 1.280000e+02 : f32
    %124 = vector.broadcast %cst_67 : f32 to vector<4x1xf32>
    %125 = arith.divf %123, %124 : vector<4x1xf32>
    %126 = vector.broadcast %118 : vector<4x1xf32> to vector<4x128xf32>
    %127 = arith.subf %112, %126 : vector<4x128xf32>
    %cst_68 = arith.constant 9.99999974E-6 : f32
    %128 = vector.broadcast %cst_68 : f32 to vector<4x1xf32>
    %129 = arith.addf %125, %128 : vector<4x1xf32>
    %130 = math.rsqrt %129 : vector<4x1xf32>
    %131 = vector.broadcast %130 : vector<4x1xf32> to vector<4x128xf32>
    %132 = arith.mulf %127, %131 : vector<4x128xf32>
    %c0_69 = arith.constant 0 : index
    %c0_70 = arith.constant 0 : index
    %133 = vector.load %arg14[%c0_69, %c0_70] : memref<4x128xf32, #tpu.memory_space<vmem>>, vector<4x128xf32>
    tpu.vector_store %arg14[%c0_69, %c0_70], %132 {strides = array<i32>} : memref<4x128xf32, #tpu.memory_space<vmem>>, vector<4x128xf32>,
    %134 = vector.broadcast %114 : vector<1x128xf32> to vector<4x128xf32>
    %135 = arith.divf %113, %134 : vector<4x128xf32>
    %cst_71 = arith.constant dense<0.000000e+00> : vector<4xf32>
    %136 = vector.multi_reduction <add>, %135, %cst_71 [1] : vector<4x128xf32> to vector<4xf32>
    %137 = vector.shape_cast %136 : vector<4xf32> to vector<4x1xf32>
    %cst_72 = arith.constant 1.280000e+02 : f32
    %138 = vector.broadcast %cst_72 : f32 to vector<4x1xf32>
    %139 = arith.divf %137, %138 : vector<4x1xf32>
    %140 = vector.broadcast %139 : vector<4x1xf32> to vector<4x128xf32>
    %141 = arith.subf %135, %140 : vector<4x128xf32>
    %142 = arith.mulf %141, %141 : vector<4x128xf32>
    %cst_73 = arith.constant dense<0.000000e+00> : vector<4xf32>
    %143 = vector.multi_reduction <add>, %142, %cst_73 [1] : vector<4x128xf32> to vector<4xf32>
    %144 = vector.shape_cast %143 : vector<4xf32> to vector<4x1xf32>
    %cst_74 = arith.constant 1.280000e+02 : f32
    %145 = vector.broadcast %cst_74 : f32 to vector<4x1xf32>
    %146 = arith.divf %144, %145 : vector<4x1xf32>
    %147 = vector.broadcast %139 : vector<4x1xf32> to vector<4x128xf32>
    %148 = arith.subf %135, %147 : vector<4x128xf32>
    %cst_75 = arith.constant 9.99999974E-6 : f32
    %149 = vector.broadcast %cst_75 : f32 to vector<4x1xf32>
    %150 = arith.addf %146, %149 : vector<4x1xf32>
    %151 = math.rsqrt %150 : vector<4x1xf32>
    %152 = vector.broadcast %151 : vector<4x1xf32> to vector<4x128xf32>
    %153 = arith.mulf %148, %152 : vector<4x128xf32>
    %c0_76 = arith.constant 0 : index
    %c0_77 = arith.constant 0 : index
    %154 = vector.load %arg15[%c0_76, %c0_77] : memref<4x128xf32, #tpu.memory_space<vmem>>, vector<4x128xf32>
    tpu.vector_store %arg15[%c0_76, %c0_77], %153 {strides = array<i32>} : memref<4x128xf32, #tpu.memory_space<vmem>>, vector<4x128xf32>,
    %c0_78 = arith.constant 0 : index
    %c0_79 = arith.constant 0 : index
    %155 = vector.load %arg6[%c0_78, %c0_79] : memref<12x36xbf16, #tpu.memory_space<vmem>>, vector<12x36xbf16>
    %c0_80 = arith.constant 0 : index
    %c0_81 = arith.constant 0 : index
    %156 = vector.load %arg2[%c0_80, %c0_81] : memref<36x128xbf16, #tpu.memory_space<vmem>>, vector<36x128xbf16>
    %cst_82 = arith.constant dense<0.000000e+00> : vector<12x128xf32>
    %157 = tpu.matmul %155, %156, %cst_82 {dimension_numbers = #tpu.dot_dimension_numbers<[1], [0], [0], [1], [0, 0, 1, 1], [], []>} : vector<12x36xbf16>, vector<36x128xbf16>, vector<12x128xf32> -> vector<12x128xf32>
    %cst_83 = arith.constant dense<0.000000e+00> : vector<12xf32>
    %158 = vector.multi_reduction <add>, %157, %cst_83 [1] : vector<12x128xf32> to vector<12xf32>
    %159 = vector.shape_cast %158 : vector<12xf32> to vector<12x1xf32>
    %cst_84 = arith.constant 1.280000e+02 : f32
    %160 = vector.broadcast %cst_84 : f32 to vector<12x1xf32>
    %161 = arith.divf %159, %160 : vector<12x1xf32>
    %162 = vector.broadcast %161 : vector<12x1xf32> to vector<12x128xf32>
    %163 = arith.subf %157, %162 : vector<12x128xf32>
    %164 = arith.mulf %163, %163 : vector<12x128xf32>
    %cst_85 = arith.constant dense<0.000000e+00> : vector<12xf32>
    %165 = vector.multi_reduction <add>, %164, %cst_85 [1] : vector<12x128xf32> to vector<12xf32>
    %166 = vector.shape_cast %165 : vector<12xf32> to vector<12x1xf32>
    %cst_86 = arith.constant 1.280000e+02 : f32
    %167 = vector.broadcast %cst_86 : f32 to vector<12x1xf32>
    %168 = arith.divf %166, %167 : vector<12x1xf32>
    %169 = vector.broadcast %161 : vector<12x1xf32> to vector<12x128xf32>
    %170 = arith.subf %157, %169 : vector<12x128xf32>
    %cst_87 = arith.constant 9.99999974E-6 : f32
    %171 = vector.broadcast %cst_87 : f32 to vector<12x1xf32>
    %172 = arith.addf %168, %171 : vector<12x1xf32>
    %173 = math.rsqrt %172 : vector<12x1xf32>
    %174 = vector.broadcast %173 : vector<12x1xf32> to vector<12x128xf32>
    %175 = arith.mulf %170, %174 : vector<12x128xf32>
    %cst_88 = arith.constant 0.000000e+00 : f32
    %176 = vector.broadcast %cst_88 : f32 to vector<12x128xf32>
    %177 = arith.maximumf %175, %176 : vector<12x128xf32>
    %178 = arith.truncf %177 : vector<12x128xf32> to vector<12x128xbf16>
    %c0_89 = arith.constant 0 : index
    %c0_90 = arith.constant 0 : index
    %179 = vector.load %arg16[%c0_89, %c0_90] : memref<12x128xbf16, #tpu.memory_space<vmem>>, vector<12x128xbf16>
    tpu.vector_store %arg16[%c0_89, %c0_90], %178 {strides = array<i32>} : memref<12x128xbf16, #tpu.memory_space<vmem>>, vector<12x128xbf16>,
    %c0_91 = arith.constant 0 : index
    %c0_92 = arith.constant 0 : index
    %180 = vector.load %arg7[%c0_91, %c0_92] : memref<12x100xbf16, #tpu.memory_space<vmem>>, vector<12x100xbf16>
    %c0_93 = arith.constant 0 : index
    %c0_94 = arith.constant 0 : index
    %181 = vector.load %arg3[%c0_93, %c0_94] : memref<100x128xbf16, #tpu.memory_space<vmem>>, vector<100x128xbf16>
    %cst_95 = arith.constant dense<0.000000e+00> : vector<12x128xf32>
    %182 = tpu.matmul %180, %181, %cst_95 {dimension_numbers = #tpu.dot_dimension_numbers<[1], [0], [0], [1], [0, 0, 1, 1], [], []>} : vector<12x100xbf16>, vector<100x128xbf16>, vector<12x128xf32> -> vector<12x128xf32>
    %cst_96 = arith.constant dense<0.000000e+00> : vector<12xf32>
    %183 = vector.multi_reduction <add>, %182, %cst_96 [1] : vector<12x128xf32> to vector<12xf32>
    %184 = vector.shape_cast %183 : vector<12xf32> to vector<12x1xf32>
    %cst_97 = arith.constant 1.280000e+02 : f32
    %185 = vector.broadcast %cst_97 : f32 to vector<12x1xf32>
    %186 = arith.divf %184, %185 : vector<12x1xf32>
    %187 = vector.broadcast %186 : vector<12x1xf32> to vector<12x128xf32>
    %188 = arith.subf %182, %187 : vector<12x128xf32>
    %189 = arith.mulf %188, %188 : vector<12x128xf32>
    %cst_98 = arith.constant dense<0.000000e+00> : vector<12xf32>
    %190 = vector.multi_reduction <add>, %189, %cst_98 [1] : vector<12x128xf32> to vector<12xf32>
    %191 = vector.shape_cast %190 : vector<12xf32> to vector<12x1xf32>
    %cst_99 = arith.constant 1.280000e+02 : f32
    %192 = vector.broadcast %cst_99 : f32 to vector<12x1xf32>
    %193 = arith.divf %191, %192 : vector<12x1xf32>
    %194 = vector.broadcast %186 : vector<12x1xf32> to vector<12x128xf32>
    %195 = arith.subf %182, %194 : vector<12x128xf32>
    %cst_100 = arith.constant 9.99999974E-6 : f32
    %196 = vector.broadcast %cst_100 : f32 to vector<12x1xf32>
    %197 = arith.addf %193, %196 : vector<12x1xf32>
    %198 = math.rsqrt %197 : vector<12x1xf32>
    %199 = vector.broadcast %198 : vector<12x1xf32> to vector<12x128xf32>
    %200 = arith.mulf %195, %199 : vector<12x128xf32>
    %cst_101 = arith.constant 0.000000e+00 : f32
    %201 = vector.broadcast %cst_101 : f32 to vector<12x128xf32>
    %202 = arith.maximumf %200, %201 : vector<12x128xf32>
    %203 = arith.truncf %202 : vector<12x128xf32> to vector<12x128xbf16>
    %c0_102 = arith.constant 0 : index
    %c0_103 = arith.constant 0 : index
    %204 = vector.load %arg17[%c0_102, %c0_103] : memref<12x128xbf16, #tpu.memory_space<vmem>>, vector<12x128xbf16>
    tpu.vector_store %arg17[%c0_102, %c0_103], %203 {strides = array<i32>} : memref<12x128xbf16, #tpu.memory_space<vmem>>, vector<12x128xbf16>,
    %c0_104 = arith.constant 0 : index
    %c0_105 = arith.constant 0 : index
    %205 = vector.load %arg8[%c0_104, %c0_105] : memref<12x36xbf16, #tpu.memory_space<vmem>>, vector<12x36xbf16>
    %c0_106 = arith.constant 0 : index
    %c0_107 = arith.constant 0 : index
    %206 = vector.load %arg4[%c0_106, %c0_107] : memref<36x128xbf16, #tpu.memory_space<vmem>>, vector<36x128xbf16>
    %cst_108 = arith.constant dense<0.000000e+00> : vector<12x128xf32>
    %207 = tpu.matmul %205, %206, %cst_108 {dimension_numbers = #tpu.dot_dimension_numbers<[1], [0], [0], [1], [0, 0, 1, 1], [], []>} : vector<12x36xbf16>, vector<36x128xbf16>, vector<12x128xf32> -> vector<12x128xf32>
    %c0_109 = arith.constant 0 : index
    %c0_110 = arith.constant 0 : index
    %208 = vector.load %arg9[%c0_109, %c0_110] : memref<12x100xbf16, #tpu.memory_space<vmem>>, vector<12x100xbf16>
    %c0_111 = arith.constant 0 : index
    %c0_112 = arith.constant 0 : index
    %209 = vector.load %arg5[%c0_111, %c0_112] : memref<100x128xbf16, #tpu.memory_space<vmem>>, vector<100x128xbf16>
    %cst_113 = arith.constant dense<0.000000e+00> : vector<12x128xf32>
    %210 = tpu.matmul %208, %209, %cst_113 {dimension_numbers = #tpu.dot_dimension_numbers<[1], [0], [0], [1], [0, 0, 1, 1], [], []>} : vector<12x100xbf16>, vector<100x128xbf16>, vector<12x128xf32> -> vector<12x128xf32>
    %211 = vector.extract_strided_slice %0 {offsets = [0, 6], sizes = [12, 1], strides = [1, 1]} : vector<12x8xf32> to vector<12x1xf32>
    %cst_114 = arith.constant dense<0.000000e+00> : vector<12xf32>
    %212 = vector.multi_reduction <add>, %207, %cst_114 [1] : vector<12x128xf32> to vector<12xf32>
    %213 = vector.shape_cast %212 : vector<12xf32> to vector<12x1xf32>
    %cst_115 = arith.constant 1.280000e+02 : f32
    %214 = vector.broadcast %cst_115 : f32 to vector<12x1xf32>
    %215 = arith.divf %213, %214 : vector<12x1xf32>
    %216 = vector.broadcast %215 : vector<12x1xf32> to vector<12x128xf32>
    %217 = arith.subf %207, %216 : vector<12x128xf32>
    %218 = arith.mulf %217, %217 : vector<12x128xf32>
    %cst_116 = arith.constant dense<0.000000e+00> : vector<12xf32>
    %219 = vector.multi_reduction <add>, %218, %cst_116 [1] : vector<12x128xf32> to vector<12xf32>
    %220 = vector.shape_cast %219 : vector<12xf32> to vector<12x1xf32>
    %cst_117 = arith.constant 1.280000e+02 : f32
    %221 = vector.broadcast %cst_117 : f32 to vector<12x1xf32>
    %222 = arith.divf %220, %221 : vector<12x1xf32>
    %223 = vector.broadcast %215 : vector<12x1xf32> to vector<12x128xf32>
    %224 = arith.subf %207, %223 : vector<12x128xf32>
    %cst_118 = arith.constant 9.99999974E-6 : f32
    %225 = vector.broadcast %cst_118 : f32 to vector<12x1xf32>
    %226 = arith.addf %222, %225 : vector<12x1xf32>
    %227 = math.rsqrt %226 : vector<12x1xf32>
    %228 = vector.broadcast %227 : vector<12x1xf32> to vector<12x128xf32>
    %229 = arith.mulf %224, %228 : vector<12x128xf32>
    %230 = vector.broadcast %211 : vector<12x1xf32> to vector<12x128xf32>
    %231 = arith.mulf %230, %229 : vector<12x128xf32>
    %232 = vector.extract_strided_slice %0 {offsets = [0, 7], sizes = [12, 1], strides = [1, 1]} : vector<12x8xf32> to vector<12x1xf32>
    %cst_119 = arith.constant dense<0.000000e+00> : vector<12xf32>
    %233 = vector.multi_reduction <add>, %210, %cst_119 [1] : vector<12x128xf32> to vector<12xf32>
    %234 = vector.shape_cast %233 : vector<12xf32> to vector<12x1xf32>
    %cst_120 = arith.constant 1.280000e+02 : f32
    %235 = vector.broadcast %cst_120 : f32 to vector<12x1xf32>
    %236 = arith.divf %234, %235 : vector<12x1xf32>
    %237 = vector.broadcast %236 : vector<12x1xf32> to vector<12x128xf32>
    %238 = arith.subf %210, %237 : vector<12x128xf32>
    %239 = arith.mulf %238, %238 : vector<12x128xf32>
    %cst_121 = arith.constant dense<0.000000e+00> : vector<12xf32>
    %240 = vector.multi_reduction <add>, %239, %cst_121 [1] : vector<12x128xf32> to vector<12xf32>
    %241 = vector.shape_cast %240 : vector<12xf32> to vector<12x1xf32>
    %cst_122 = arith.constant 1.280000e+02 : f32
    %242 = vector.broadcast %cst_122 : f32 to vector<12x1xf32>
    %243 = arith.divf %241, %242 : vector<12x1xf32>
    %244 = vector.broadcast %236 : vector<12x1xf32> to vector<12x128xf32>
    %245 = arith.subf %210, %244 : vector<12x128xf32>
    %cst_123 = arith.constant 9.99999974E-6 : f32
    %246 = vector.broadcast %cst_123 : f32 to vector<12x1xf32>
    %247 = arith.addf %243, %246 : vector<12x1xf32>
    %248 = math.rsqrt %247 : vector<12x1xf32>
    %249 = vector.broadcast %248 : vector<12x1xf32> to vector<12x128xf32>
    %250 = arith.mulf %245, %249 : vector<12x128xf32>
    %251 = vector.broadcast %232 : vector<12x1xf32> to vector<12x128xf32>
    %252 = arith.mulf %251, %250 : vector<12x128xf32>
    %253 = arith.addf %231, %252 : vector<12x128xf32>
    %c0_124 = arith.constant 0 : index
    %c0_125 = arith.constant 0 : index
    %254 = vector.load %arg13[%c0_124, %c0_125] : memref<12x128xf32, #tpu.memory_space<vmem>>, vector<12x128xf32>
    tpu.vector_store %arg13[%c0_124, %c0_125], %253 {strides = array<i32>} : memref<12x128xf32, #tpu.memory_space<vmem>>, vector<12x128xf32>,
    return
  }
}

module attributes {stable_mosaic.version = 11 : i64} {
  func.func @_edge_group_b_kernel(%arg0: memref<12x128xf32, #tpu.memory_space<vmem>>, %arg1: memref<108x128xbf16, #tpu.memory_space<vmem>>, %arg2: memref<300x128xbf16, #tpu.memory_space<vmem>>, %arg3: memref<12x108xbf16, #tpu.memory_space<vmem>>, %arg4: memref<12x300xbf16, #tpu.memory_space<vmem>>, %arg5: memref<12x8xf32, #tpu.memory_space<vmem>>, %arg6: memref<12x128xf32, #tpu.memory_space<vmem>>) attributes {dimension_semantics = [], scalar_prefetch = 0 : i64, scratch_operands = 0 : i64, tpu.core_type = #tpu.core_type<tc>} {
    %c0 = arith.constant 0 : index
    %c0_0 = arith.constant 0 : index
    %0 = vector.load %arg5[%c0, %c0_0] : memref<12x8xf32, #tpu.memory_space<vmem>>, vector<12x8xf32>
    %c0_1 = arith.constant 0 : index
    %c0_2 = arith.constant 0 : index
    %1 = vector.load %arg3[%c0_1, %c0_2] : memref<12x108xbf16, #tpu.memory_space<vmem>>, vector<12x108xbf16>
    %c0_3 = arith.constant 0 : index
    %c0_4 = arith.constant 0 : index
    %2 = vector.load %arg1[%c0_3, %c0_4] : memref<108x128xbf16, #tpu.memory_space<vmem>>, vector<108x128xbf16>
    %cst = arith.constant dense<0.000000e+00> : vector<12x128xf32>
    %3 = tpu.matmul %1, %2, %cst {dimension_numbers = #tpu.dot_dimension_numbers<[1], [0], [0], [1], [0, 0, 1, 1], [], []>} : vector<12x108xbf16>, vector<108x128xbf16>, vector<12x128xf32> -> vector<12x128xf32>
    %c0_5 = arith.constant 0 : index
    %c0_6 = arith.constant 0 : index
    %4 = vector.load %arg4[%c0_5, %c0_6] : memref<12x300xbf16, #tpu.memory_space<vmem>>, vector<12x300xbf16>
    %c0_7 = arith.constant 0 : index
    %c0_8 = arith.constant 0 : index
    %5 = vector.load %arg2[%c0_7, %c0_8] : memref<300x128xbf16, #tpu.memory_space<vmem>>, vector<300x128xbf16>
    %cst_9 = arith.constant dense<0.000000e+00> : vector<12x128xf32>
    %6 = tpu.matmul %4, %5, %cst_9 {dimension_numbers = #tpu.dot_dimension_numbers<[1], [0], [0], [1], [0, 0, 1, 1], [], []>} : vector<12x300xbf16>, vector<300x128xbf16>, vector<12x128xf32> -> vector<12x128xf32>
    %c0_10 = arith.constant 0 : index
    %c0_11 = arith.constant 0 : index
    %7 = vector.load %arg0[%c0_10, %c0_11] : memref<12x128xf32, #tpu.memory_space<vmem>>, vector<12x128xf32>
    %8 = vector.extract_strided_slice %0 {offsets = [0, 4], sizes = [12, 1], strides = [1, 1]} : vector<12x8xf32> to vector<12x1xf32>
    %cst_12 = arith.constant dense<0.000000e+00> : vector<12xf32>
    %9 = vector.multi_reduction <add>, %3, %cst_12 [1] : vector<12x128xf32> to vector<12xf32>
    %10 = vector.shape_cast %9 : vector<12xf32> to vector<12x1xf32>
    %cst_13 = arith.constant 1.280000e+02 : f32
    %11 = vector.broadcast %cst_13 : f32 to vector<12x1xf32>
    %12 = arith.divf %10, %11 : vector<12x1xf32>
    %13 = vector.broadcast %12 : vector<12x1xf32> to vector<12x128xf32>
    %14 = arith.subf %3, %13 : vector<12x128xf32>
    %15 = arith.mulf %14, %14 : vector<12x128xf32>
    %cst_14 = arith.constant dense<0.000000e+00> : vector<12xf32>
    %16 = vector.multi_reduction <add>, %15, %cst_14 [1] : vector<12x128xf32> to vector<12xf32>
    %17 = vector.shape_cast %16 : vector<12xf32> to vector<12x1xf32>
    %cst_15 = arith.constant 1.280000e+02 : f32
    %18 = vector.broadcast %cst_15 : f32 to vector<12x1xf32>
    %19 = arith.divf %17, %18 : vector<12x1xf32>
    %20 = vector.broadcast %12 : vector<12x1xf32> to vector<12x128xf32>
    %21 = arith.subf %3, %20 : vector<12x128xf32>
    %cst_16 = arith.constant 9.99999974E-6 : f32
    %22 = vector.broadcast %cst_16 : f32 to vector<12x1xf32>
    %23 = arith.addf %19, %22 : vector<12x1xf32>
    %24 = math.rsqrt %23 : vector<12x1xf32>
    %25 = vector.broadcast %24 : vector<12x1xf32> to vector<12x128xf32>
    %26 = arith.mulf %21, %25 : vector<12x128xf32>
    %27 = vector.broadcast %8 : vector<12x1xf32> to vector<12x128xf32>
    %28 = arith.mulf %27, %26 : vector<12x128xf32>
    %29 = arith.addf %7, %28 : vector<12x128xf32>
    %30 = vector.extract_strided_slice %0 {offsets = [0, 5], sizes = [12, 1], strides = [1, 1]} : vector<12x8xf32> to vector<12x1xf32>
    %cst_17 = arith.constant dense<0.000000e+00> : vector<12xf32>
    %31 = vector.multi_reduction <add>, %6, %cst_17 [1] : vector<12x128xf32> to vector<12xf32>
    %32 = vector.shape_cast %31 : vector<12xf32> to vector<12x1xf32>
    %cst_18 = arith.constant 1.280000e+02 : f32
    %33 = vector.broadcast %cst_18 : f32 to vector<12x1xf32>
    %34 = arith.divf %32, %33 : vector<12x1xf32>
    %35 = vector.broadcast %34 : vector<12x1xf32> to vector<12x128xf32>
    %36 = arith.subf %6, %35 : vector<12x128xf32>
    %37 = arith.mulf %36, %36 : vector<12x128xf32>
    %cst_19 = arith.constant dense<0.000000e+00> : vector<12xf32>
    %38 = vector.multi_reduction <add>, %37, %cst_19 [1] : vector<12x128xf32> to vector<12xf32>
    %39 = vector.shape_cast %38 : vector<12xf32> to vector<12x1xf32>
    %cst_20 = arith.constant 1.280000e+02 : f32
    %40 = vector.broadcast %cst_20 : f32 to vector<12x1xf32>
    %41 = arith.divf %39, %40 : vector<12x1xf32>
    %42 = vector.broadcast %34 : vector<12x1xf32> to vector<12x128xf32>
    %43 = arith.subf %6, %42 : vector<12x128xf32>
    %cst_21 = arith.constant 9.99999974E-6 : f32
    %44 = vector.broadcast %cst_21 : f32 to vector<12x1xf32>
    %45 = arith.addf %41, %44 : vector<12x1xf32>
    %46 = math.rsqrt %45 : vector<12x1xf32>
    %47 = vector.broadcast %46 : vector<12x1xf32> to vector<12x128xf32>
    %48 = arith.mulf %43, %47 : vector<12x128xf32>
    %49 = vector.broadcast %30 : vector<12x1xf32> to vector<12x128xf32>
    %50 = arith.mulf %49, %48 : vector<12x128xf32>
    %51 = arith.addf %29, %50 : vector<12x128xf32>
    %c0_22 = arith.constant 0 : index
    %c0_23 = arith.constant 0 : index
    %52 = vector.load %arg6[%c0_22, %c0_23] : memref<12x128xf32, #tpu.memory_space<vmem>>, vector<12x128xf32>
    tpu.vector_store %arg6[%c0_22, %c0_23], %51 {strides = array<i32>} : memref<12x128xf32, #tpu.memory_space<vmem>>, vector<12x128xf32>,
    return
  }
}

module attributes {stable_mosaic.version = 11 : i64} {
  func.func @_edge_group_a_kernel(%arg0: memref<9x4x128xf32, #tpu.memory_space<vmem>>, %arg1: memref<9x1x128xf32, #tpu.memory_space<vmem>>, %arg2: memref<36x128xbf16, #tpu.memory_space<vmem>>, %arg3: memref<100x128xbf16, #tpu.memory_space<vmem>>, %arg4: memref<36x128xbf16, #tpu.memory_space<vmem>>, %arg5: memref<100x128xbf16, #tpu.memory_space<vmem>>, %arg6: memref<8x36xbf16, #tpu.memory_space<vmem>>, %arg7: memref<8x100xbf16, #tpu.memory_space<vmem>>, %arg8: memref<8x36xbf16, #tpu.memory_space<vmem>>, %arg9: memref<8x100xbf16, #tpu.memory_space<vmem>>, %arg10: memref<8x4xbf16, #tpu.memory_space<vmem>>, %arg11: memref<8x4xbf16, #tpu.memory_space<vmem>>, %arg12: memref<8x8xf32, #tpu.memory_space<vmem>>, %arg13: memref<8x128xf32, #tpu.memory_space<vmem>>, %arg14: memref<4x128xf32, #tpu.memory_space<vmem>>, %arg15: memref<4x128xf32, #tpu.memory_space<vmem>>, %arg16: memref<8x128xbf16, #tpu.memory_space<vmem>>, %arg17: memref<8x128xbf16, #tpu.memory_space<vmem>>) attributes {dimension_semantics = [], scalar_prefetch = 0 : i64, scratch_operands = 0 : i64, tpu.core_type = #tpu.core_type<tc>} {
    %c0 = arith.constant 0 : index
    %c0_0 = arith.constant 0 : index
    %0 = vector.load %arg12[%c0, %c0_0] : memref<8x8xf32, #tpu.memory_space<vmem>>, vector<8x8xf32>
    %c0_1 = arith.constant 0 : index
    %c0_2 = arith.constant 0 : index
    %c0_3 = arith.constant 0 : index
    %1 = vector.load %arg0[%c0_1, %c0_2, %c0_3] : memref<9x4x128xf32, #tpu.memory_space<vmem>>, vector<1x4x128xf32>
    %2 = vector.shape_cast %1 : vector<1x4x128xf32> to vector<4x128xf32>
    %c0_4 = arith.constant 0 : index
    %c0_5 = arith.constant 0 : index
    %c0_6 = arith.constant 0 : index
    %3 = vector.load %arg1[%c0_4, %c0_5, %c0_6] : memref<9x1x128xf32, #tpu.memory_space<vmem>>, vector<1x1x128xf32>
    %4 = vector.shape_cast %3 : vector<1x1x128xf32> to vector<1x128xf32>
    %cst = arith.constant 1.000000e+00 : f32
    %5 = vector.broadcast %cst : f32 to vector<1x128xf32>
    %6 = arith.subf %4, %5 : vector<1x128xf32>
    %cst_7 = arith.constant 1.000000e+30 : f32
    %7 = vector.broadcast %cst_7 : f32 to vector<1x128xf32>
    %8 = arith.mulf %6, %7 : vector<1x128xf32>
    %9 = vector.broadcast %8 : vector<1x128xf32> to vector<4x128xf32>
    %10 = arith.addf %2, %9 : vector<4x128xf32>
    %c1 = arith.constant 1 : index
    %c0_8 = arith.constant 0 : index
    %c0_9 = arith.constant 0 : index
    %11 = vector.load %arg0[%c1, %c0_8, %c0_9] : memref<9x4x128xf32, #tpu.memory_space<vmem>>, vector<1x4x128xf32>
    %12 = vector.shape_cast %11 : vector<1x4x128xf32> to vector<4x128xf32>
    %c1_10 = arith.constant 1 : index
    %c0_11 = arith.constant 0 : index
    %c0_12 = arith.constant 0 : index
    %13 = vector.load %arg1[%c1_10, %c0_11, %c0_12] : memref<9x1x128xf32, #tpu.memory_space<vmem>>, vector<1x1x128xf32>
    %14 = vector.shape_cast %13 : vector<1x1x128xf32> to vector<1x128xf32>
    %cst_13 = arith.constant 1.000000e+00 : f32
    %15 = vector.broadcast %cst_13 : f32 to vector<1x128xf32>
    %16 = arith.subf %14, %15 : vector<1x128xf32>
    %cst_14 = arith.constant 1.000000e+30 : f32
    %17 = vector.broadcast %cst_14 : f32 to vector<1x128xf32>
    %18 = arith.mulf %16, %17 : vector<1x128xf32>
    %19 = vector.broadcast %18 : vector<1x128xf32> to vector<4x128xf32>
    %20 = arith.addf %12, %19 : vector<4x128xf32>
    %21 = arith.maximumf %10, %20 : vector<4x128xf32>
    %22 = arith.addf %2, %12 : vector<4x128xf32>
    %23 = arith.addf %4, %14 : vector<1x128xf32>
    %c2 = arith.constant 2 : index
    %c0_15 = arith.constant 0 : index
    %c0_16 = arith.constant 0 : index
    %24 = vector.load %arg0[%c2, %c0_15, %c0_16] : memref<9x4x128xf32, #tpu.memory_space<vmem>>, vector<1x4x128xf32>
    %25 = vector.shape_cast %24 : vector<1x4x128xf32> to vector<4x128xf32>
    %c2_17 = arith.constant 2 : index
    %c0_18 = arith.constant 0 : index
    %c0_19 = arith.constant 0 : index
    %26 = vector.load %arg1[%c2_17, %c0_18, %c0_19] : memref<9x1x128xf32, #tpu.memory_space<vmem>>, vector<1x1x128xf32>
    %27 = vector.shape_cast %26 : vector<1x1x128xf32> to vector<1x128xf32>
    %cst_20 = arith.constant 1.000000e+00 : f32
    %28 = vector.broadcast %cst_20 : f32 to vector<1x128xf32>
    %29 = arith.subf %27, %28 : vector<1x128xf32>
    %cst_21 = arith.constant 1.000000e+30 : f32
    %30 = vector.broadcast %cst_21 : f32 to vector<1x128xf32>
    %31 = arith.mulf %29, %30 : vector<1x128xf32>
    %32 = vector.broadcast %31 : vector<1x128xf32> to vector<4x128xf32>
    %33 = arith.addf %25, %32 : vector<4x128xf32>
    %34 = arith.maximumf %21, %33 : vector<4x128xf32>
    %35 = arith.addf %22, %25 : vector<4x128xf32>
    %36 = arith.addf %23, %27 : vector<1x128xf32>
    %c3 = arith.constant 3 : index
    %c0_22 = arith.constant 0 : index
    %c0_23 = arith.constant 0 : index
    %37 = vector.load %arg0[%c3, %c0_22, %c0_23] : memref<9x4x128xf32, #tpu.memory_space<vmem>>, vector<1x4x128xf32>
    %38 = vector.shape_cast %37 : vector<1x4x128xf32> to vector<4x128xf32>
    %c3_24 = arith.constant 3 : index
    %c0_25 = arith.constant 0 : index
    %c0_26 = arith.constant 0 : index
    %39 = vector.load %arg1[%c3_24, %c0_25, %c0_26] : memref<9x1x128xf32, #tpu.memory_space<vmem>>, vector<1x1x128xf32>
    %40 = vector.shape_cast %39 : vector<1x1x128xf32> to vector<1x128xf32>
    %cst_27 = arith.constant 1.000000e+00 : f32
    %41 = vector.broadcast %cst_27 : f32 to vector<1x128xf32>
    %42 = arith.subf %40, %41 : vector<1x128xf32>
    %cst_28 = arith.constant 1.000000e+30 : f32
    %43 = vector.broadcast %cst_28 : f32 to vector<1x128xf32>
    %44 = arith.mulf %42, %43 : vector<1x128xf32>
    %45 = vector.broadcast %44 : vector<1x128xf32> to vector<4x128xf32>
    %46 = arith.addf %38, %45 : vector<4x128xf32>
    %47 = arith.maximumf %34, %46 : vector<4x128xf32>
    %48 = arith.addf %35, %38 : vector<4x128xf32>
    %49 = arith.addf %36, %40 : vector<1x128xf32>
    %c4 = arith.constant 4 : index
    %c0_29 = arith.constant 0 : index
    %c0_30 = arith.constant 0 : index
    %50 = vector.load %arg0[%c4, %c0_29, %c0_30] : memref<9x4x128xf32, #tpu.memory_space<vmem>>, vector<1x4x128xf32>
    %51 = vector.shape_cast %50 : vector<1x4x128xf32> to vector<4x128xf32>
    %c4_31 = arith.constant 4 : index
    %c0_32 = arith.constant 0 : index
    %c0_33 = arith.constant 0 : index
    %52 = vector.load %arg1[%c4_31, %c0_32, %c0_33] : memref<9x1x128xf32, #tpu.memory_space<vmem>>, vector<1x1x128xf32>
    %53 = vector.shape_cast %52 : vector<1x1x128xf32> to vector<1x128xf32>
    %cst_34 = arith.constant 1.000000e+00 : f32
    %54 = vector.broadcast %cst_34 : f32 to vector<1x128xf32>
    %55 = arith.subf %53, %54 : vector<1x128xf32>
    %cst_35 = arith.constant 1.000000e+30 : f32
    %56 = vector.broadcast %cst_35 : f32 to vector<1x128xf32>
    %57 = arith.mulf %55, %56 : vector<1x128xf32>
    %58 = vector.broadcast %57 : vector<1x128xf32> to vector<4x128xf32>
    %59 = arith.addf %51, %58 : vector<4x128xf32>
    %60 = arith.maximumf %47, %59 : vector<4x128xf32>
    %61 = arith.addf %48, %51 : vector<4x128xf32>
    %62 = arith.addf %49, %53 : vector<1x128xf32>
    %c5 = arith.constant 5 : index
    %c0_36 = arith.constant 0 : index
    %c0_37 = arith.constant 0 : index
    %63 = vector.load %arg0[%c5, %c0_36, %c0_37] : memref<9x4x128xf32, #tpu.memory_space<vmem>>, vector<1x4x128xf32>
    %64 = vector.shape_cast %63 : vector<1x4x128xf32> to vector<4x128xf32>
    %c5_38 = arith.constant 5 : index
    %c0_39 = arith.constant 0 : index
    %c0_40 = arith.constant 0 : index
    %65 = vector.load %arg1[%c5_38, %c0_39, %c0_40] : memref<9x1x128xf32, #tpu.memory_space<vmem>>, vector<1x1x128xf32>
    %66 = vector.shape_cast %65 : vector<1x1x128xf32> to vector<1x128xf32>
    %cst_41 = arith.constant 1.000000e+00 : f32
    %67 = vector.broadcast %cst_41 : f32 to vector<1x128xf32>
    %68 = arith.subf %66, %67 : vector<1x128xf32>
    %cst_42 = arith.constant 1.000000e+30 : f32
    %69 = vector.broadcast %cst_42 : f32 to vector<1x128xf32>
    %70 = arith.mulf %68, %69 : vector<1x128xf32>
    %71 = vector.broadcast %70 : vector<1x128xf32> to vector<4x128xf32>
    %72 = arith.addf %64, %71 : vector<4x128xf32>
    %73 = arith.maximumf %60, %72 : vector<4x128xf32>
    %74 = arith.addf %61, %64 : vector<4x128xf32>
    %75 = arith.addf %62, %66 : vector<1x128xf32>
    %c6 = arith.constant 6 : index
    %c0_43 = arith.constant 0 : index
    %c0_44 = arith.constant 0 : index
    %76 = vector.load %arg0[%c6, %c0_43, %c0_44] : memref<9x4x128xf32, #tpu.memory_space<vmem>>, vector<1x4x128xf32>
    %77 = vector.shape_cast %76 : vector<1x4x128xf32> to vector<4x128xf32>
    %c6_45 = arith.constant 6 : index
    %c0_46 = arith.constant 0 : index
    %c0_47 = arith.constant 0 : index
    %78 = vector.load %arg1[%c6_45, %c0_46, %c0_47] : memref<9x1x128xf32, #tpu.memory_space<vmem>>, vector<1x1x128xf32>
    %79 = vector.shape_cast %78 : vector<1x1x128xf32> to vector<1x128xf32>
    %cst_48 = arith.constant 1.000000e+00 : f32
    %80 = vector.broadcast %cst_48 : f32 to vector<1x128xf32>
    %81 = arith.subf %79, %80 : vector<1x128xf32>
    %cst_49 = arith.constant 1.000000e+30 : f32
    %82 = vector.broadcast %cst_49 : f32 to vector<1x128xf32>
    %83 = arith.mulf %81, %82 : vector<1x128xf32>
    %84 = vector.broadcast %83 : vector<1x128xf32> to vector<4x128xf32>
    %85 = arith.addf %77, %84 : vector<4x128xf32>
    %86 = arith.maximumf %73, %85 : vector<4x128xf32>
    %87 = arith.addf %74, %77 : vector<4x128xf32>
    %88 = arith.addf %75, %79 : vector<1x128xf32>
    %c7 = arith.constant 7 : index
    %c0_50 = arith.constant 0 : index
    %c0_51 = arith.constant 0 : index
    %89 = vector.load %arg0[%c7, %c0_50, %c0_51] : memref<9x4x128xf32, #tpu.memory_space<vmem>>, vector<1x4x128xf32>
    %90 = vector.shape_cast %89 : vector<1x4x128xf32> to vector<4x128xf32>
    %c7_52 = arith.constant 7 : index
    %c0_53 = arith.constant 0 : index
    %c0_54 = arith.constant 0 : index
    %91 = vector.load %arg1[%c7_52, %c0_53, %c0_54] : memref<9x1x128xf32, #tpu.memory_space<vmem>>, vector<1x1x128xf32>
    %92 = vector.shape_cast %91 : vector<1x1x128xf32> to vector<1x128xf32>
    %cst_55 = arith.constant 1.000000e+00 : f32
    %93 = vector.broadcast %cst_55 : f32 to vector<1x128xf32>
    %94 = arith.subf %92, %93 : vector<1x128xf32>
    %cst_56 = arith.constant 1.000000e+30 : f32
    %95 = vector.broadcast %cst_56 : f32 to vector<1x128xf32>
    %96 = arith.mulf %94, %95 : vector<1x128xf32>
    %97 = vector.broadcast %96 : vector<1x128xf32> to vector<4x128xf32>
    %98 = arith.addf %90, %97 : vector<4x128xf32>
    %99 = arith.maximumf %86, %98 : vector<4x128xf32>
    %100 = arith.addf %87, %90 : vector<4x128xf32>
    %101 = arith.addf %88, %92 : vector<1x128xf32>
    %c8 = arith.constant 8 : index
    %c0_57 = arith.constant 0 : index
    %c0_58 = arith.constant 0 : index
    %102 = vector.load %arg0[%c8, %c0_57, %c0_58] : memref<9x4x128xf32, #tpu.memory_space<vmem>>, vector<1x4x128xf32>
    %103 = vector.shape_cast %102 : vector<1x4x128xf32> to vector<4x128xf32>
    %c8_59 = arith.constant 8 : index
    %c0_60 = arith.constant 0 : index
    %c0_61 = arith.constant 0 : index
    %104 = vector.load %arg1[%c8_59, %c0_60, %c0_61] : memref<9x1x128xf32, #tpu.memory_space<vmem>>, vector<1x1x128xf32>
    %105 = vector.shape_cast %104 : vector<1x1x128xf32> to vector<1x128xf32>
    %cst_62 = arith.constant 1.000000e+00 : f32
    %106 = vector.broadcast %cst_62 : f32 to vector<1x128xf32>
    %107 = arith.subf %105, %106 : vector<1x128xf32>
    %cst_63 = arith.constant 1.000000e+30 : f32
    %108 = vector.broadcast %cst_63 : f32 to vector<1x128xf32>
    %109 = arith.mulf %107, %108 : vector<1x128xf32>
    %110 = vector.broadcast %109 : vector<1x128xf32> to vector<4x128xf32>
    %111 = arith.addf %103, %110 : vector<4x128xf32>
    %112 = arith.maximumf %99, %111 : vector<4x128xf32>
    %113 = arith.addf %100, %103 : vector<4x128xf32>
    %114 = arith.addf %101, %105 : vector<1x128xf32>
    %cst_64 = arith.constant dense<0.000000e+00> : vector<4xf32>
    %115 = vector.multi_reduction <add>, %112, %cst_64 [1] : vector<4x128xf32> to vector<4xf32>
    %116 = vector.shape_cast %115 : vector<4xf32> to vector<4x1xf32>
    %cst_65 = arith.constant 1.280000e+02 : f32
    %117 = vector.broadcast %cst_65 : f32 to vector<4x1xf32>
    %118 = arith.divf %116, %117 : vector<4x1xf32>
    %119 = vector.broadcast %118 : vector<4x1xf32> to vector<4x128xf32>
    %120 = arith.subf %112, %119 : vector<4x128xf32>
    %121 = arith.mulf %120, %120 : vector<4x128xf32>
    %cst_66 = arith.constant dense<0.000000e+00> : vector<4xf32>
    %122 = vector.multi_reduction <add>, %121, %cst_66 [1] : vector<4x128xf32> to vector<4xf32>
    %123 = vector.shape_cast %122 : vector<4xf32> to vector<4x1xf32>
    %cst_67 = arith.constant 1.280000e+02 : f32
    %124 = vector.broadcast %cst_67 : f32 to vector<4x1xf32>
    %125 = arith.divf %123, %124 : vector<4x1xf32>
    %126 = vector.broadcast %118 : vector<4x1xf32> to vector<4x128xf32>
    %127 = arith.subf %112, %126 : vector<4x128xf32>
    %cst_68 = arith.constant 9.99999974E-6 : f32
    %128 = vector.broadcast %cst_68 : f32 to vector<4x1xf32>
    %129 = arith.addf %125, %128 : vector<4x1xf32>
    %130 = math.rsqrt %129 : vector<4x1xf32>
    %131 = vector.broadcast %130 : vector<4x1xf32> to vector<4x128xf32>
    %132 = arith.mulf %127, %131 : vector<4x128xf32>
    %c0_69 = arith.constant 0 : index
    %c0_70 = arith.constant 0 : index
    %133 = vector.load %arg14[%c0_69, %c0_70] : memref<4x128xf32, #tpu.memory_space<vmem>>, vector<4x128xf32>
    tpu.vector_store %arg14[%c0_69, %c0_70], %132 {strides = array<i32>} : memref<4x128xf32, #tpu.memory_space<vmem>>, vector<4x128xf32>,
    %134 = vector.broadcast %114 : vector<1x128xf32> to vector<4x128xf32>
    %135 = arith.divf %113, %134 : vector<4x128xf32>
    %cst_71 = arith.constant dense<0.000000e+00> : vector<4xf32>
    %136 = vector.multi_reduction <add>, %135, %cst_71 [1] : vector<4x128xf32> to vector<4xf32>
    %137 = vector.shape_cast %136 : vector<4xf32> to vector<4x1xf32>
    %cst_72 = arith.constant 1.280000e+02 : f32
    %138 = vector.broadcast %cst_72 : f32 to vector<4x1xf32>
    %139 = arith.divf %137, %138 : vector<4x1xf32>
    %140 = vector.broadcast %139 : vector<4x1xf32> to vector<4x128xf32>
    %141 = arith.subf %135, %140 : vector<4x128xf32>
    %142 = arith.mulf %141, %141 : vector<4x128xf32>
    %cst_73 = arith.constant dense<0.000000e+00> : vector<4xf32>
    %143 = vector.multi_reduction <add>, %142, %cst_73 [1] : vector<4x128xf32> to vector<4xf32>
    %144 = vector.shape_cast %143 : vector<4xf32> to vector<4x1xf32>
    %cst_74 = arith.constant 1.280000e+02 : f32
    %145 = vector.broadcast %cst_74 : f32 to vector<4x1xf32>
    %146 = arith.divf %144, %145 : vector<4x1xf32>
    %147 = vector.broadcast %139 : vector<4x1xf32> to vector<4x128xf32>
    %148 = arith.subf %135, %147 : vector<4x128xf32>
    %cst_75 = arith.constant 9.99999974E-6 : f32
    %149 = vector.broadcast %cst_75 : f32 to vector<4x1xf32>
    %150 = arith.addf %146, %149 : vector<4x1xf32>
    %151 = math.rsqrt %150 : vector<4x1xf32>
    %152 = vector.broadcast %151 : vector<4x1xf32> to vector<4x128xf32>
    %153 = arith.mulf %148, %152 : vector<4x128xf32>
    %c0_76 = arith.constant 0 : index
    %c0_77 = arith.constant 0 : index
    %154 = vector.load %arg15[%c0_76, %c0_77] : memref<4x128xf32, #tpu.memory_space<vmem>>, vector<4x128xf32>
    tpu.vector_store %arg15[%c0_76, %c0_77], %153 {strides = array<i32>} : memref<4x128xf32, #tpu.memory_space<vmem>>, vector<4x128xf32>,
    %c0_78 = arith.constant 0 : index
    %c0_79 = arith.constant 0 : index
    %155 = vector.load %arg6[%c0_78, %c0_79] : memref<8x36xbf16, #tpu.memory_space<vmem>>, vector<8x36xbf16>
    %c0_80 = arith.constant 0 : index
    %c0_81 = arith.constant 0 : index
    %156 = vector.load %arg2[%c0_80, %c0_81] : memref<36x128xbf16, #tpu.memory_space<vmem>>, vector<36x128xbf16>
    %cst_82 = arith.constant dense<0.000000e+00> : vector<8x128xf32>
    %157 = tpu.matmul %155, %156, %cst_82 {dimension_numbers = #tpu.dot_dimension_numbers<[1], [0], [0], [1], [0, 0, 1, 1], [], []>} : vector<8x36xbf16>, vector<36x128xbf16>, vector<8x128xf32> -> vector<8x128xf32>
    %cst_83 = arith.constant dense<0.000000e+00> : vector<8xf32>
    %158 = vector.multi_reduction <add>, %157, %cst_83 [1] : vector<8x128xf32> to vector<8xf32>
    %159 = vector.shape_cast %158 : vector<8xf32> to vector<8x1xf32>
    %cst_84 = arith.constant 1.280000e+02 : f32
    %160 = vector.broadcast %cst_84 : f32 to vector<8x1xf32>
    %161 = arith.divf %159, %160 : vector<8x1xf32>
    %162 = vector.broadcast %161 : vector<8x1xf32> to vector<8x128xf32>
    %163 = arith.subf %157, %162 : vector<8x128xf32>
    %164 = arith.mulf %163, %163 : vector<8x128xf32>
    %cst_85 = arith.constant dense<0.000000e+00> : vector<8xf32>
    %165 = vector.multi_reduction <add>, %164, %cst_85 [1] : vector<8x128xf32> to vector<8xf32>
    %166 = vector.shape_cast %165 : vector<8xf32> to vector<8x1xf32>
    %cst_86 = arith.constant 1.280000e+02 : f32
    %167 = vector.broadcast %cst_86 : f32 to vector<8x1xf32>
    %168 = arith.divf %166, %167 : vector<8x1xf32>
    %169 = vector.broadcast %161 : vector<8x1xf32> to vector<8x128xf32>
    %170 = arith.subf %157, %169 : vector<8x128xf32>
    %cst_87 = arith.constant 9.99999974E-6 : f32
    %171 = vector.broadcast %cst_87 : f32 to vector<8x1xf32>
    %172 = arith.addf %168, %171 : vector<8x1xf32>
    %173 = math.rsqrt %172 : vector<8x1xf32>
    %174 = vector.broadcast %173 : vector<8x1xf32> to vector<8x128xf32>
    %175 = arith.mulf %170, %174 : vector<8x128xf32>
    %cst_88 = arith.constant 0.000000e+00 : f32
    %176 = vector.broadcast %cst_88 : f32 to vector<8x128xf32>
    %177 = arith.maximumf %175, %176 : vector<8x128xf32>
    %178 = arith.truncf %177 : vector<8x128xf32> to vector<8x128xbf16>
    %c0_89 = arith.constant 0 : index
    %c0_90 = arith.constant 0 : index
    %179 = vector.load %arg16[%c0_89, %c0_90] : memref<8x128xbf16, #tpu.memory_space<vmem>>, vector<8x128xbf16>
    tpu.vector_store %arg16[%c0_89, %c0_90], %178 {strides = array<i32>} : memref<8x128xbf16, #tpu.memory_space<vmem>>, vector<8x128xbf16>,
    %c0_91 = arith.constant 0 : index
    %c0_92 = arith.constant 0 : index
    %180 = vector.load %arg7[%c0_91, %c0_92] : memref<8x100xbf16, #tpu.memory_space<vmem>>, vector<8x100xbf16>
    %c0_93 = arith.constant 0 : index
    %c0_94 = arith.constant 0 : index
    %181 = vector.load %arg3[%c0_93, %c0_94] : memref<100x128xbf16, #tpu.memory_space<vmem>>, vector<100x128xbf16>
    %cst_95 = arith.constant dense<0.000000e+00> : vector<8x128xf32>
    %182 = tpu.matmul %180, %181, %cst_95 {dimension_numbers = #tpu.dot_dimension_numbers<[1], [0], [0], [1], [0, 0, 1, 1], [], []>} : vector<8x100xbf16>, vector<100x128xbf16>, vector<8x128xf32> -> vector<8x128xf32>
    %cst_96 = arith.constant dense<0.000000e+00> : vector<8xf32>
    %183 = vector.multi_reduction <add>, %182, %cst_96 [1] : vector<8x128xf32> to vector<8xf32>
    %184 = vector.shape_cast %183 : vector<8xf32> to vector<8x1xf32>
    %cst_97 = arith.constant 1.280000e+02 : f32
    %185 = vector.broadcast %cst_97 : f32 to vector<8x1xf32>
    %186 = arith.divf %184, %185 : vector<8x1xf32>
    %187 = vector.broadcast %186 : vector<8x1xf32> to vector<8x128xf32>
    %188 = arith.subf %182, %187 : vector<8x128xf32>
    %189 = arith.mulf %188, %188 : vector<8x128xf32>
    %cst_98 = arith.constant dense<0.000000e+00> : vector<8xf32>
    %190 = vector.multi_reduction <add>, %189, %cst_98 [1] : vector<8x128xf32> to vector<8xf32>
    %191 = vector.shape_cast %190 : vector<8xf32> to vector<8x1xf32>
    %cst_99 = arith.constant 1.280000e+02 : f32
    %192 = vector.broadcast %cst_99 : f32 to vector<8x1xf32>
    %193 = arith.divf %191, %192 : vector<8x1xf32>
    %194 = vector.broadcast %186 : vector<8x1xf32> to vector<8x128xf32>
    %195 = arith.subf %182, %194 : vector<8x128xf32>
    %cst_100 = arith.constant 9.99999974E-6 : f32
    %196 = vector.broadcast %cst_100 : f32 to vector<8x1xf32>
    %197 = arith.addf %193, %196 : vector<8x1xf32>
    %198 = math.rsqrt %197 : vector<8x1xf32>
    %199 = vector.broadcast %198 : vector<8x1xf32> to vector<8x128xf32>
    %200 = arith.mulf %195, %199 : vector<8x128xf32>
    %cst_101 = arith.constant 0.000000e+00 : f32
    %201 = vector.broadcast %cst_101 : f32 to vector<8x128xf32>
    %202 = arith.maximumf %200, %201 : vector<8x128xf32>
    %203 = arith.truncf %202 : vector<8x128xf32> to vector<8x128xbf16>
    %c0_102 = arith.constant 0 : index
    %c0_103 = arith.constant 0 : index
    %204 = vector.load %arg17[%c0_102, %c0_103] : memref<8x128xbf16, #tpu.memory_space<vmem>>, vector<8x128xbf16>
    tpu.vector_store %arg17[%c0_102, %c0_103], %203 {strides = array<i32>} : memref<8x128xbf16, #tpu.memory_space<vmem>>, vector<8x128xbf16>,
    %c0_104 = arith.constant 0 : index
    %c0_105 = arith.constant 0 : index
    %205 = vector.load %arg8[%c0_104, %c0_105] : memref<8x36xbf16, #tpu.memory_space<vmem>>, vector<8x36xbf16>
    %c0_106 = arith.constant 0 : index
    %c0_107 = arith.constant 0 : index
    %206 = vector.load %arg4[%c0_106, %c0_107] : memref<36x128xbf16, #tpu.memory_space<vmem>>, vector<36x128xbf16>
    %cst_108 = arith.constant dense<0.000000e+00> : vector<8x128xf32>
    %207 = tpu.matmul %205, %206, %cst_108 {dimension_numbers = #tpu.dot_dimension_numbers<[1], [0], [0], [1], [0, 0, 1, 1], [], []>} : vector<8x36xbf16>, vector<36x128xbf16>, vector<8x128xf32> -> vector<8x128xf32>
    %c0_109 = arith.constant 0 : index
    %c0_110 = arith.constant 0 : index
    %208 = vector.load %arg9[%c0_109, %c0_110] : memref<8x100xbf16, #tpu.memory_space<vmem>>, vector<8x100xbf16>
    %c0_111 = arith.constant 0 : index
    %c0_112 = arith.constant 0 : index
    %209 = vector.load %arg5[%c0_111, %c0_112] : memref<100x128xbf16, #tpu.memory_space<vmem>>, vector<100x128xbf16>
    %cst_113 = arith.constant dense<0.000000e+00> : vector<8x128xf32>
    %210 = tpu.matmul %208, %209, %cst_113 {dimension_numbers = #tpu.dot_dimension_numbers<[1], [0], [0], [1], [0, 0, 1, 1], [], []>} : vector<8x100xbf16>, vector<100x128xbf16>, vector<8x128xf32> -> vector<8x128xf32>
    %211 = vector.extract_strided_slice %0 {offsets = [0, 6], sizes = [8, 1], strides = [1, 1]} : vector<8x8xf32> to vector<8x1xf32>
    %cst_114 = arith.constant dense<0.000000e+00> : vector<8xf32>
    %212 = vector.multi_reduction <add>, %207, %cst_114 [1] : vector<8x128xf32> to vector<8xf32>
    %213 = vector.shape_cast %212 : vector<8xf32> to vector<8x1xf32>
    %cst_115 = arith.constant 1.280000e+02 : f32
    %214 = vector.broadcast %cst_115 : f32 to vector<8x1xf32>
    %215 = arith.divf %213, %214 : vector<8x1xf32>
    %216 = vector.broadcast %215 : vector<8x1xf32> to vector<8x128xf32>
    %217 = arith.subf %207, %216 : vector<8x128xf32>
    %218 = arith.mulf %217, %217 : vector<8x128xf32>
    %cst_116 = arith.constant dense<0.000000e+00> : vector<8xf32>
    %219 = vector.multi_reduction <add>, %218, %cst_116 [1] : vector<8x128xf32> to vector<8xf32>
    %220 = vector.shape_cast %219 : vector<8xf32> to vector<8x1xf32>
    %cst_117 = arith.constant 1.280000e+02 : f32
    %221 = vector.broadcast %cst_117 : f32 to vector<8x1xf32>
    %222 = arith.divf %220, %221 : vector<8x1xf32>
    %223 = vector.broadcast %215 : vector<8x1xf32> to vector<8x128xf32>
    %224 = arith.subf %207, %223 : vector<8x128xf32>
    %cst_118 = arith.constant 9.99999974E-6 : f32
    %225 = vector.broadcast %cst_118 : f32 to vector<8x1xf32>
    %226 = arith.addf %222, %225 : vector<8x1xf32>
    %227 = math.rsqrt %226 : vector<8x1xf32>
    %228 = vector.broadcast %227 : vector<8x1xf32> to vector<8x128xf32>
    %229 = arith.mulf %224, %228 : vector<8x128xf32>
    %230 = vector.broadcast %211 : vector<8x1xf32> to vector<8x128xf32>
    %231 = arith.mulf %230, %229 : vector<8x128xf32>
    %232 = vector.extract_strided_slice %0 {offsets = [0, 7], sizes = [8, 1], strides = [1, 1]} : vector<8x8xf32> to vector<8x1xf32>
    %cst_119 = arith.constant dense<0.000000e+00> : vector<8xf32>
    %233 = vector.multi_reduction <add>, %210, %cst_119 [1] : vector<8x128xf32> to vector<8xf32>
    %234 = vector.shape_cast %233 : vector<8xf32> to vector<8x1xf32>
    %cst_120 = arith.constant 1.280000e+02 : f32
    %235 = vector.broadcast %cst_120 : f32 to vector<8x1xf32>
    %236 = arith.divf %234, %235 : vector<8x1xf32>
    %237 = vector.broadcast %236 : vector<8x1xf32> to vector<8x128xf32>
    %238 = arith.subf %210, %237 : vector<8x128xf32>
    %239 = arith.mulf %238, %238 : vector<8x128xf32>
    %cst_121 = arith.constant dense<0.000000e+00> : vector<8xf32>
    %240 = vector.multi_reduction <add>, %239, %cst_121 [1] : vector<8x128xf32> to vector<8xf32>
    %241 = vector.shape_cast %240 : vector<8xf32> to vector<8x1xf32>
    %cst_122 = arith.constant 1.280000e+02 : f32
    %242 = vector.broadcast %cst_122 : f32 to vector<8x1xf32>
    %243 = arith.divf %241, %242 : vector<8x1xf32>
    %244 = vector.broadcast %236 : vector<8x1xf32> to vector<8x128xf32>
    %245 = arith.subf %210, %244 : vector<8x128xf32>
    %cst_123 = arith.constant 9.99999974E-6 : f32
    %246 = vector.broadcast %cst_123 : f32 to vector<8x1xf32>
    %247 = arith.addf %243, %246 : vector<8x1xf32>
    %248 = math.rsqrt %247 : vector<8x1xf32>
    %249 = vector.broadcast %248 : vector<8x1xf32> to vector<8x128xf32>
    %250 = arith.mulf %245, %249 : vector<8x128xf32>
    %251 = vector.broadcast %232 : vector<8x1xf32> to vector<8x128xf32>
    %252 = arith.mulf %251, %250 : vector<8x128xf32>
    %253 = arith.addf %231, %252 : vector<8x128xf32>
    %c0_124 = arith.constant 0 : index
    %c0_125 = arith.constant 0 : index
    %254 = vector.load %arg13[%c0_124, %c0_125] : memref<8x128xf32, #tpu.memory_space<vmem>>, vector<8x128xf32>
    tpu.vector_store %arg13[%c0_124, %c0_125], %253 {strides = array<i32>} : memref<8x128xf32, #tpu.memory_space<vmem>>, vector<8x128xf32>,
    return
  }
}

module attributes {stable_mosaic.version = 11 : i64} {
  func.func @_edge_group_b_kernel(%arg0: memref<8x128xf32, #tpu.memory_space<vmem>>, %arg1: memref<72x128xbf16, #tpu.memory_space<vmem>>, %arg2: memref<200x128xbf16, #tpu.memory_space<vmem>>, %arg3: memref<8x72xbf16, #tpu.memory_space<vmem>>, %arg4: memref<8x200xbf16, #tpu.memory_space<vmem>>, %arg5: memref<8x8xf32, #tpu.memory_space<vmem>>, %arg6: memref<8x128xf32, #tpu.memory_space<vmem>>) attributes {dimension_semantics = [], scalar_prefetch = 0 : i64, scratch_operands = 0 : i64, tpu.core_type = #tpu.core_type<tc>} {
    %c0 = arith.constant 0 : index
    %c0_0 = arith.constant 0 : index
    %0 = vector.load %arg5[%c0, %c0_0] : memref<8x8xf32, #tpu.memory_space<vmem>>, vector<8x8xf32>
    %c0_1 = arith.constant 0 : index
    %c0_2 = arith.constant 0 : index
    %1 = vector.load %arg3[%c0_1, %c0_2] : memref<8x72xbf16, #tpu.memory_space<vmem>>, vector<8x72xbf16>
    %c0_3 = arith.constant 0 : index
    %c0_4 = arith.constant 0 : index
    %2 = vector.load %arg1[%c0_3, %c0_4] : memref<72x128xbf16, #tpu.memory_space<vmem>>, vector<72x128xbf16>
    %cst = arith.constant dense<0.000000e+00> : vector<8x128xf32>
    %3 = tpu.matmul %1, %2, %cst {dimension_numbers = #tpu.dot_dimension_numbers<[1], [0], [0], [1], [0, 0, 1, 1], [], []>} : vector<8x72xbf16>, vector<72x128xbf16>, vector<8x128xf32> -> vector<8x128xf32>
    %c0_5 = arith.constant 0 : index
    %c0_6 = arith.constant 0 : index
    %4 = vector.load %arg4[%c0_5, %c0_6] : memref<8x200xbf16, #tpu.memory_space<vmem>>, vector<8x200xbf16>
    %c0_7 = arith.constant 0 : index
    %c0_8 = arith.constant 0 : index
    %5 = vector.load %arg2[%c0_7, %c0_8] : memref<200x128xbf16, #tpu.memory_space<vmem>>, vector<200x128xbf16>
    %cst_9 = arith.constant dense<0.000000e+00> : vector<8x128xf32>
    %6 = tpu.matmul %4, %5, %cst_9 {dimension_numbers = #tpu.dot_dimension_numbers<[1], [0], [0], [1], [0, 0, 1, 1], [], []>} : vector<8x200xbf16>, vector<200x128xbf16>, vector<8x128xf32> -> vector<8x128xf32>
    %c0_10 = arith.constant 0 : index
    %c0_11 = arith.constant 0 : index
    %7 = vector.load %arg0[%c0_10, %c0_11] : memref<8x128xf32, #tpu.memory_space<vmem>>, vector<8x128xf32>
    %8 = vector.extract_strided_slice %0 {offsets = [0, 4], sizes = [8, 1], strides = [1, 1]} : vector<8x8xf32> to vector<8x1xf32>
    %cst_12 = arith.constant dense<0.000000e+00> : vector<8xf32>
    %9 = vector.multi_reduction <add>, %3, %cst_12 [1] : vector<8x128xf32> to vector<8xf32>
    %10 = vector.shape_cast %9 : vector<8xf32> to vector<8x1xf32>
    %cst_13 = arith.constant 1.280000e+02 : f32
    %11 = vector.broadcast %cst_13 : f32 to vector<8x1xf32>
    %12 = arith.divf %10, %11 : vector<8x1xf32>
    %13 = vector.broadcast %12 : vector<8x1xf32> to vector<8x128xf32>
    %14 = arith.subf %3, %13 : vector<8x128xf32>
    %15 = arith.mulf %14, %14 : vector<8x128xf32>
    %cst_14 = arith.constant dense<0.000000e+00> : vector<8xf32>
    %16 = vector.multi_reduction <add>, %15, %cst_14 [1] : vector<8x128xf32> to vector<8xf32>
    %17 = vector.shape_cast %16 : vector<8xf32> to vector<8x1xf32>
    %cst_15 = arith.constant 1.280000e+02 : f32
    %18 = vector.broadcast %cst_15 : f32 to vector<8x1xf32>
    %19 = arith.divf %17, %18 : vector<8x1xf32>
    %20 = vector.broadcast %12 : vector<8x1xf32> to vector<8x128xf32>
    %21 = arith.subf %3, %20 : vector<8x128xf32>
    %cst_16 = arith.constant 9.99999974E-6 : f32
    %22 = vector.broadcast %cst_16 : f32 to vector<8x1xf32>
    %23 = arith.addf %19, %22 : vector<8x1xf32>
    %24 = math.rsqrt %23 : vector<8x1xf32>
    %25 = vector.broadcast %24 : vector<8x1xf32> to vector<8x128xf32>
    %26 = arith.mulf %21, %25 : vector<8x128xf32>
    %27 = vector.broadcast %8 : vector<8x1xf32> to vector<8x128xf32>
    %28 = arith.mulf %27, %26 : vector<8x128xf32>
    %29 = arith.addf %7, %28 : vector<8x128xf32>
    %30 = vector.extract_strided_slice %0 {offsets = [0, 5], sizes = [8, 1], strides = [1, 1]} : vector<8x8xf32> to vector<8x1xf32>
    %cst_17 = arith.constant dense<0.000000e+00> : vector<8xf32>
    %31 = vector.multi_reduction <add>, %6, %cst_17 [1] : vector<8x128xf32> to vector<8xf32>
    %32 = vector.shape_cast %31 : vector<8xf32> to vector<8x1xf32>
    %cst_18 = arith.constant 1.280000e+02 : f32
    %33 = vector.broadcast %cst_18 : f32 to vector<8x1xf32>
    %34 = arith.divf %32, %33 : vector<8x1xf32>
    %35 = vector.broadcast %34 : vector<8x1xf32> to vector<8x128xf32>
    %36 = arith.subf %6, %35 : vector<8x128xf32>
    %37 = arith.mulf %36, %36 : vector<8x128xf32>
    %cst_19 = arith.constant dense<0.000000e+00> : vector<8xf32>
    %38 = vector.multi_reduction <add>, %37, %cst_19 [1] : vector<8x128xf32> to vector<8xf32>
    %39 = vector.shape_cast %38 : vector<8xf32> to vector<8x1xf32>
    %cst_20 = arith.constant 1.280000e+02 : f32
    %40 = vector.broadcast %cst_20 : f32 to vector<8x1xf32>
    %41 = arith.divf %39, %40 : vector<8x1xf32>
    %42 = vector.broadcast %34 : vector<8x1xf32> to vector<8x128xf32>
    %43 = arith.subf %6, %42 : vector<8x128xf32>
    %cst_21 = arith.constant 9.99999974E-6 : f32
    %44 = vector.broadcast %cst_21 : f32 to vector<8x1xf32>
    %45 = arith.addf %41, %44 : vector<8x1xf32>
    %46 = math.rsqrt %45 : vector<8x1xf32>
    %47 = vector.broadcast %46 : vector<8x1xf32> to vector<8x128xf32>
    %48 = arith.mulf %43, %47 : vector<8x128xf32>
    %49 = vector.broadcast %30 : vector<8x1xf32> to vector<8x128xf32>
    %50 = arith.mulf %49, %48 : vector<8x128xf32>
    %51 = arith.addf %29, %50 : vector<8x128xf32>
    %c0_22 = arith.constant 0 : index
    %c0_23 = arith.constant 0 : index
    %52 = vector.load %arg6[%c0_22, %c0_23] : memref<8x128xf32, #tpu.memory_space<vmem>>, vector<8x128xf32>
    tpu.vector_store %arg6[%c0_22, %c0_23], %51 {strides = array<i32>} : memref<8x128xf32, #tpu.memory_space<vmem>>, vector<8x128xf32>,
    return
  }
}

module attributes {stable_mosaic.version = 11 : i64} {
  func.func @_edge_group_a_kernel(%arg0: memref<9x4x128xf32, #tpu.memory_space<vmem>>, %arg1: memref<9x1x128xf32, #tpu.memory_space<vmem>>, %arg2: memref<36x128xbf16, #tpu.memory_space<vmem>>, %arg3: memref<100x128xbf16, #tpu.memory_space<vmem>>, %arg4: memref<36x128xbf16, #tpu.memory_space<vmem>>, %arg5: memref<100x128xbf16, #tpu.memory_space<vmem>>, %arg6: memref<4x36xbf16, #tpu.memory_space<vmem>>, %arg7: memref<4x100xbf16, #tpu.memory_space<vmem>>, %arg8: memref<4x36xbf16, #tpu.memory_space<vmem>>, %arg9: memref<4x100xbf16, #tpu.memory_space<vmem>>, %arg10: memref<4x4xbf16, #tpu.memory_space<vmem>>, %arg11: memref<4x4xbf16, #tpu.memory_space<vmem>>, %arg12: memref<4x8xf32, #tpu.memory_space<vmem>>, %arg13: memref<4x128xf32, #tpu.memory_space<vmem>>, %arg14: memref<4x128xf32, #tpu.memory_space<vmem>>, %arg15: memref<4x128xf32, #tpu.memory_space<vmem>>, %arg16: memref<4x128xbf16, #tpu.memory_space<vmem>>, %arg17: memref<4x128xbf16, #tpu.memory_space<vmem>>) attributes {dimension_semantics = [], scalar_prefetch = 0 : i64, scratch_operands = 0 : i64, tpu.core_type = #tpu.core_type<tc>} {
    %c0 = arith.constant 0 : index
    %c0_0 = arith.constant 0 : index
    %0 = vector.load %arg12[%c0, %c0_0] : memref<4x8xf32, #tpu.memory_space<vmem>>, vector<4x8xf32>
    %c0_1 = arith.constant 0 : index
    %c0_2 = arith.constant 0 : index
    %c0_3 = arith.constant 0 : index
    %1 = vector.load %arg0[%c0_1, %c0_2, %c0_3] : memref<9x4x128xf32, #tpu.memory_space<vmem>>, vector<1x4x128xf32>
    %2 = vector.shape_cast %1 : vector<1x4x128xf32> to vector<4x128xf32>
    %c0_4 = arith.constant 0 : index
    %c0_5 = arith.constant 0 : index
    %c0_6 = arith.constant 0 : index
    %3 = vector.load %arg1[%c0_4, %c0_5, %c0_6] : memref<9x1x128xf32, #tpu.memory_space<vmem>>, vector<1x1x128xf32>
    %4 = vector.shape_cast %3 : vector<1x1x128xf32> to vector<1x128xf32>
    %cst = arith.constant 1.000000e+00 : f32
    %5 = vector.broadcast %cst : f32 to vector<1x128xf32>
    %6 = arith.subf %4, %5 : vector<1x128xf32>
    %cst_7 = arith.constant 1.000000e+30 : f32
    %7 = vector.broadcast %cst_7 : f32 to vector<1x128xf32>
    %8 = arith.mulf %6, %7 : vector<1x128xf32>
    %9 = vector.broadcast %8 : vector<1x128xf32> to vector<4x128xf32>
    %10 = arith.addf %2, %9 : vector<4x128xf32>
    %c1 = arith.constant 1 : index
    %c0_8 = arith.constant 0 : index
    %c0_9 = arith.constant 0 : index
    %11 = vector.load %arg0[%c1, %c0_8, %c0_9] : memref<9x4x128xf32, #tpu.memory_space<vmem>>, vector<1x4x128xf32>
    %12 = vector.shape_cast %11 : vector<1x4x128xf32> to vector<4x128xf32>
    %c1_10 = arith.constant 1 : index
    %c0_11 = arith.constant 0 : index
    %c0_12 = arith.constant 0 : index
    %13 = vector.load %arg1[%c1_10, %c0_11, %c0_12] : memref<9x1x128xf32, #tpu.memory_space<vmem>>, vector<1x1x128xf32>
    %14 = vector.shape_cast %13 : vector<1x1x128xf32> to vector<1x128xf32>
    %cst_13 = arith.constant 1.000000e+00 : f32
    %15 = vector.broadcast %cst_13 : f32 to vector<1x128xf32>
    %16 = arith.subf %14, %15 : vector<1x128xf32>
    %cst_14 = arith.constant 1.000000e+30 : f32
    %17 = vector.broadcast %cst_14 : f32 to vector<1x128xf32>
    %18 = arith.mulf %16, %17 : vector<1x128xf32>
    %19 = vector.broadcast %18 : vector<1x128xf32> to vector<4x128xf32>
    %20 = arith.addf %12, %19 : vector<4x128xf32>
    %21 = arith.maximumf %10, %20 : vector<4x128xf32>
    %22 = arith.addf %2, %12 : vector<4x128xf32>
    %23 = arith.addf %4, %14 : vector<1x128xf32>
    %c2 = arith.constant 2 : index
    %c0_15 = arith.constant 0 : index
    %c0_16 = arith.constant 0 : index
    %24 = vector.load %arg0[%c2, %c0_15, %c0_16] : memref<9x4x128xf32, #tpu.memory_space<vmem>>, vector<1x4x128xf32>
    %25 = vector.shape_cast %24 : vector<1x4x128xf32> to vector<4x128xf32>
    %c2_17 = arith.constant 2 : index
    %c0_18 = arith.constant 0 : index
    %c0_19 = arith.constant 0 : index
    %26 = vector.load %arg1[%c2_17, %c0_18, %c0_19] : memref<9x1x128xf32, #tpu.memory_space<vmem>>, vector<1x1x128xf32>
    %27 = vector.shape_cast %26 : vector<1x1x128xf32> to vector<1x128xf32>
    %cst_20 = arith.constant 1.000000e+00 : f32
    %28 = vector.broadcast %cst_20 : f32 to vector<1x128xf32>
    %29 = arith.subf %27, %28 : vector<1x128xf32>
    %cst_21 = arith.constant 1.000000e+30 : f32
    %30 = vector.broadcast %cst_21 : f32 to vector<1x128xf32>
    %31 = arith.mulf %29, %30 : vector<1x128xf32>
    %32 = vector.broadcast %31 : vector<1x128xf32> to vector<4x128xf32>
    %33 = arith.addf %25, %32 : vector<4x128xf32>
    %34 = arith.maximumf %21, %33 : vector<4x128xf32>
    %35 = arith.addf %22, %25 : vector<4x128xf32>
    %36 = arith.addf %23, %27 : vector<1x128xf32>
    %c3 = arith.constant 3 : index
    %c0_22 = arith.constant 0 : index
    %c0_23 = arith.constant 0 : index
    %37 = vector.load %arg0[%c3, %c0_22, %c0_23] : memref<9x4x128xf32, #tpu.memory_space<vmem>>, vector<1x4x128xf32>
    %38 = vector.shape_cast %37 : vector<1x4x128xf32> to vector<4x128xf32>
    %c3_24 = arith.constant 3 : index
    %c0_25 = arith.constant 0 : index
    %c0_26 = arith.constant 0 : index
    %39 = vector.load %arg1[%c3_24, %c0_25, %c0_26] : memref<9x1x128xf32, #tpu.memory_space<vmem>>, vector<1x1x128xf32>
    %40 = vector.shape_cast %39 : vector<1x1x128xf32> to vector<1x128xf32>
    %cst_27 = arith.constant 1.000000e+00 : f32
    %41 = vector.broadcast %cst_27 : f32 to vector<1x128xf32>
    %42 = arith.subf %40, %41 : vector<1x128xf32>
    %cst_28 = arith.constant 1.000000e+30 : f32
    %43 = vector.broadcast %cst_28 : f32 to vector<1x128xf32>
    %44 = arith.mulf %42, %43 : vector<1x128xf32>
    %45 = vector.broadcast %44 : vector<1x128xf32> to vector<4x128xf32>
    %46 = arith.addf %38, %45 : vector<4x128xf32>
    %47 = arith.maximumf %34, %46 : vector<4x128xf32>
    %48 = arith.addf %35, %38 : vector<4x128xf32>
    %49 = arith.addf %36, %40 : vector<1x128xf32>
    %c4 = arith.constant 4 : index
    %c0_29 = arith.constant 0 : index
    %c0_30 = arith.constant 0 : index
    %50 = vector.load %arg0[%c4, %c0_29, %c0_30] : memref<9x4x128xf32, #tpu.memory_space<vmem>>, vector<1x4x128xf32>
    %51 = vector.shape_cast %50 : vector<1x4x128xf32> to vector<4x128xf32>
    %c4_31 = arith.constant 4 : index
    %c0_32 = arith.constant 0 : index
    %c0_33 = arith.constant 0 : index
    %52 = vector.load %arg1[%c4_31, %c0_32, %c0_33] : memref<9x1x128xf32, #tpu.memory_space<vmem>>, vector<1x1x128xf32>
    %53 = vector.shape_cast %52 : vector<1x1x128xf32> to vector<1x128xf32>
    %cst_34 = arith.constant 1.000000e+00 : f32
    %54 = vector.broadcast %cst_34 : f32 to vector<1x128xf32>
    %55 = arith.subf %53, %54 : vector<1x128xf32>
    %cst_35 = arith.constant 1.000000e+30 : f32
    %56 = vector.broadcast %cst_35 : f32 to vector<1x128xf32>
    %57 = arith.mulf %55, %56 : vector<1x128xf32>
    %58 = vector.broadcast %57 : vector<1x128xf32> to vector<4x128xf32>
    %59 = arith.addf %51, %58 : vector<4x128xf32>
    %60 = arith.maximumf %47, %59 : vector<4x128xf32>
    %61 = arith.addf %48, %51 : vector<4x128xf32>
    %62 = arith.addf %49, %53 : vector<1x128xf32>
    %c5 = arith.constant 5 : index
    %c0_36 = arith.constant 0 : index
    %c0_37 = arith.constant 0 : index
    %63 = vector.load %arg0[%c5, %c0_36, %c0_37] : memref<9x4x128xf32, #tpu.memory_space<vmem>>, vector<1x4x128xf32>
    %64 = vector.shape_cast %63 : vector<1x4x128xf32> to vector<4x128xf32>
    %c5_38 = arith.constant 5 : index
    %c0_39 = arith.constant 0 : index
    %c0_40 = arith.constant 0 : index
    %65 = vector.load %arg1[%c5_38, %c0_39, %c0_40] : memref<9x1x128xf32, #tpu.memory_space<vmem>>, vector<1x1x128xf32>
    %66 = vector.shape_cast %65 : vector<1x1x128xf32> to vector<1x128xf32>
    %cst_41 = arith.constant 1.000000e+00 : f32
    %67 = vector.broadcast %cst_41 : f32 to vector<1x128xf32>
    %68 = arith.subf %66, %67 : vector<1x128xf32>
    %cst_42 = arith.constant 1.000000e+30 : f32
    %69 = vector.broadcast %cst_42 : f32 to vector<1x128xf32>
    %70 = arith.mulf %68, %69 : vector<1x128xf32>
    %71 = vector.broadcast %70 : vector<1x128xf32> to vector<4x128xf32>
    %72 = arith.addf %64, %71 : vector<4x128xf32>
    %73 = arith.maximumf %60, %72 : vector<4x128xf32>
    %74 = arith.addf %61, %64 : vector<4x128xf32>
    %75 = arith.addf %62, %66 : vector<1x128xf32>
    %c6 = arith.constant 6 : index
    %c0_43 = arith.constant 0 : index
    %c0_44 = arith.constant 0 : index
    %76 = vector.load %arg0[%c6, %c0_43, %c0_44] : memref<9x4x128xf32, #tpu.memory_space<vmem>>, vector<1x4x128xf32>
    %77 = vector.shape_cast %76 : vector<1x4x128xf32> to vector<4x128xf32>
    %c6_45 = arith.constant 6 : index
    %c0_46 = arith.constant 0 : index
    %c0_47 = arith.constant 0 : index
    %78 = vector.load %arg1[%c6_45, %c0_46, %c0_47] : memref<9x1x128xf32, #tpu.memory_space<vmem>>, vector<1x1x128xf32>
    %79 = vector.shape_cast %78 : vector<1x1x128xf32> to vector<1x128xf32>
    %cst_48 = arith.constant 1.000000e+00 : f32
    %80 = vector.broadcast %cst_48 : f32 to vector<1x128xf32>
    %81 = arith.subf %79, %80 : vector<1x128xf32>
    %cst_49 = arith.constant 1.000000e+30 : f32
    %82 = vector.broadcast %cst_49 : f32 to vector<1x128xf32>
    %83 = arith.mulf %81, %82 : vector<1x128xf32>
    %84 = vector.broadcast %83 : vector<1x128xf32> to vector<4x128xf32>
    %85 = arith.addf %77, %84 : vector<4x128xf32>
    %86 = arith.maximumf %73, %85 : vector<4x128xf32>
    %87 = arith.addf %74, %77 : vector<4x128xf32>
    %88 = arith.addf %75, %79 : vector<1x128xf32>
    %c7 = arith.constant 7 : index
    %c0_50 = arith.constant 0 : index
    %c0_51 = arith.constant 0 : index
    %89 = vector.load %arg0[%c7, %c0_50, %c0_51] : memref<9x4x128xf32, #tpu.memory_space<vmem>>, vector<1x4x128xf32>
    %90 = vector.shape_cast %89 : vector<1x4x128xf32> to vector<4x128xf32>
    %c7_52 = arith.constant 7 : index
    %c0_53 = arith.constant 0 : index
    %c0_54 = arith.constant 0 : index
    %91 = vector.load %arg1[%c7_52, %c0_53, %c0_54] : memref<9x1x128xf32, #tpu.memory_space<vmem>>, vector<1x1x128xf32>
    %92 = vector.shape_cast %91 : vector<1x1x128xf32> to vector<1x128xf32>
    %cst_55 = arith.constant 1.000000e+00 : f32
    %93 = vector.broadcast %cst_55 : f32 to vector<1x128xf32>
    %94 = arith.subf %92, %93 : vector<1x128xf32>
    %cst_56 = arith.constant 1.000000e+30 : f32
    %95 = vector.broadcast %cst_56 : f32 to vector<1x128xf32>
    %96 = arith.mulf %94, %95 : vector<1x128xf32>
    %97 = vector.broadcast %96 : vector<1x128xf32> to vector<4x128xf32>
    %98 = arith.addf %90, %97 : vector<4x128xf32>
    %99 = arith.maximumf %86, %98 : vector<4x128xf32>
    %100 = arith.addf %87, %90 : vector<4x128xf32>
    %101 = arith.addf %88, %92 : vector<1x128xf32>
    %c8 = arith.constant 8 : index
    %c0_57 = arith.constant 0 : index
    %c0_58 = arith.constant 0 : index
    %102 = vector.load %arg0[%c8, %c0_57, %c0_58] : memref<9x4x128xf32, #tpu.memory_space<vmem>>, vector<1x4x128xf32>
    %103 = vector.shape_cast %102 : vector<1x4x128xf32> to vector<4x128xf32>
    %c8_59 = arith.constant 8 : index
    %c0_60 = arith.constant 0 : index
    %c0_61 = arith.constant 0 : index
    %104 = vector.load %arg1[%c8_59, %c0_60, %c0_61] : memref<9x1x128xf32, #tpu.memory_space<vmem>>, vector<1x1x128xf32>
    %105 = vector.shape_cast %104 : vector<1x1x128xf32> to vector<1x128xf32>
    %cst_62 = arith.constant 1.000000e+00 : f32
    %106 = vector.broadcast %cst_62 : f32 to vector<1x128xf32>
    %107 = arith.subf %105, %106 : vector<1x128xf32>
    %cst_63 = arith.constant 1.000000e+30 : f32
    %108 = vector.broadcast %cst_63 : f32 to vector<1x128xf32>
    %109 = arith.mulf %107, %108 : vector<1x128xf32>
    %110 = vector.broadcast %109 : vector<1x128xf32> to vector<4x128xf32>
    %111 = arith.addf %103, %110 : vector<4x128xf32>
    %112 = arith.maximumf %99, %111 : vector<4x128xf32>
    %113 = arith.addf %100, %103 : vector<4x128xf32>
    %114 = arith.addf %101, %105 : vector<1x128xf32>
    %cst_64 = arith.constant dense<0.000000e+00> : vector<4xf32>
    %115 = vector.multi_reduction <add>, %112, %cst_64 [1] : vector<4x128xf32> to vector<4xf32>
    %116 = vector.shape_cast %115 : vector<4xf32> to vector<4x1xf32>
    %cst_65 = arith.constant 1.280000e+02 : f32
    %117 = vector.broadcast %cst_65 : f32 to vector<4x1xf32>
    %118 = arith.divf %116, %117 : vector<4x1xf32>
    %119 = vector.broadcast %118 : vector<4x1xf32> to vector<4x128xf32>
    %120 = arith.subf %112, %119 : vector<4x128xf32>
    %121 = arith.mulf %120, %120 : vector<4x128xf32>
    %cst_66 = arith.constant dense<0.000000e+00> : vector<4xf32>
    %122 = vector.multi_reduction <add>, %121, %cst_66 [1] : vector<4x128xf32> to vector<4xf32>
    %123 = vector.shape_cast %122 : vector<4xf32> to vector<4x1xf32>
    %cst_67 = arith.constant 1.280000e+02 : f32
    %124 = vector.broadcast %cst_67 : f32 to vector<4x1xf32>
    %125 = arith.divf %123, %124 : vector<4x1xf32>
    %126 = vector.broadcast %118 : vector<4x1xf32> to vector<4x128xf32>
    %127 = arith.subf %112, %126 : vector<4x128xf32>
    %cst_68 = arith.constant 9.99999974E-6 : f32
    %128 = vector.broadcast %cst_68 : f32 to vector<4x1xf32>
    %129 = arith.addf %125, %128 : vector<4x1xf32>
    %130 = math.rsqrt %129 : vector<4x1xf32>
    %131 = vector.broadcast %130 : vector<4x1xf32> to vector<4x128xf32>
    %132 = arith.mulf %127, %131 : vector<4x128xf32>
    %c0_69 = arith.constant 0 : index
    %c0_70 = arith.constant 0 : index
    %133 = vector.load %arg14[%c0_69, %c0_70] : memref<4x128xf32, #tpu.memory_space<vmem>>, vector<4x128xf32>
    tpu.vector_store %arg14[%c0_69, %c0_70], %132 {strides = array<i32>} : memref<4x128xf32, #tpu.memory_space<vmem>>, vector<4x128xf32>,
    %134 = vector.broadcast %114 : vector<1x128xf32> to vector<4x128xf32>
    %135 = arith.divf %113, %134 : vector<4x128xf32>
    %cst_71 = arith.constant dense<0.000000e+00> : vector<4xf32>
    %136 = vector.multi_reduction <add>, %135, %cst_71 [1] : vector<4x128xf32> to vector<4xf32>
    %137 = vector.shape_cast %136 : vector<4xf32> to vector<4x1xf32>
    %cst_72 = arith.constant 1.280000e+02 : f32
    %138 = vector.broadcast %cst_72 : f32 to vector<4x1xf32>
    %139 = arith.divf %137, %138 : vector<4x1xf32>
    %140 = vector.broadcast %139 : vector<4x1xf32> to vector<4x128xf32>
    %141 = arith.subf %135, %140 : vector<4x128xf32>
    %142 = arith.mulf %141, %141 : vector<4x128xf32>
    %cst_73 = arith.constant dense<0.000000e+00> : vector<4xf32>
    %143 = vector.multi_reduction <add>, %142, %cst_73 [1] : vector<4x128xf32> to vector<4xf32>
    %144 = vector.shape_cast %143 : vector<4xf32> to vector<4x1xf32>
    %cst_74 = arith.constant 1.280000e+02 : f32
    %145 = vector.broadcast %cst_74 : f32 to vector<4x1xf32>
    %146 = arith.divf %144, %145 : vector<4x1xf32>
    %147 = vector.broadcast %139 : vector<4x1xf32> to vector<4x128xf32>
    %148 = arith.subf %135, %147 : vector<4x128xf32>
    %cst_75 = arith.constant 9.99999974E-6 : f32
    %149 = vector.broadcast %cst_75 : f32 to vector<4x1xf32>
    %150 = arith.addf %146, %149 : vector<4x1xf32>
    %151 = math.rsqrt %150 : vector<4x1xf32>
    %152 = vector.broadcast %151 : vector<4x1xf32> to vector<4x128xf32>
    %153 = arith.mulf %148, %152 : vector<4x128xf32>
    %c0_76 = arith.constant 0 : index
    %c0_77 = arith.constant 0 : index
    %154 = vector.load %arg15[%c0_76, %c0_77] : memref<4x128xf32, #tpu.memory_space<vmem>>, vector<4x128xf32>
    tpu.vector_store %arg15[%c0_76, %c0_77], %153 {strides = array<i32>} : memref<4x128xf32, #tpu.memory_space<vmem>>, vector<4x128xf32>,
    %c0_78 = arith.constant 0 : index
    %c0_79 = arith.constant 0 : index
    %155 = vector.load %arg6[%c0_78, %c0_79] : memref<4x36xbf16, #tpu.memory_space<vmem>>, vector<4x36xbf16>
    %c0_80 = arith.constant 0 : index
    %c0_81 = arith.constant 0 : index
    %156 = vector.load %arg2[%c0_80, %c0_81] : memref<36x128xbf16, #tpu.memory_space<vmem>>, vector<36x128xbf16>
    %cst_82 = arith.constant dense<0.000000e+00> : vector<4x128xf32>
    %157 = tpu.matmul %155, %156, %cst_82 {dimension_numbers = #tpu.dot_dimension_numbers<[1], [0], [0], [1], [0, 0, 1, 1], [], []>} : vector<4x36xbf16>, vector<36x128xbf16>, vector<4x128xf32> -> vector<4x128xf32>
    %cst_83 = arith.constant dense<0.000000e+00> : vector<4xf32>
    %158 = vector.multi_reduction <add>, %157, %cst_83 [1] : vector<4x128xf32> to vector<4xf32>
    %159 = vector.shape_cast %158 : vector<4xf32> to vector<4x1xf32>
    %cst_84 = arith.constant 1.280000e+02 : f32
    %160 = vector.broadcast %cst_84 : f32 to vector<4x1xf32>
    %161 = arith.divf %159, %160 : vector<4x1xf32>
    %162 = vector.broadcast %161 : vector<4x1xf32> to vector<4x128xf32>
    %163 = arith.subf %157, %162 : vector<4x128xf32>
    %164 = arith.mulf %163, %163 : vector<4x128xf32>
    %cst_85 = arith.constant dense<0.000000e+00> : vector<4xf32>
    %165 = vector.multi_reduction <add>, %164, %cst_85 [1] : vector<4x128xf32> to vector<4xf32>
    %166 = vector.shape_cast %165 : vector<4xf32> to vector<4x1xf32>
    %cst_86 = arith.constant 1.280000e+02 : f32
    %167 = vector.broadcast %cst_86 : f32 to vector<4x1xf32>
    %168 = arith.divf %166, %167 : vector<4x1xf32>
    %169 = vector.broadcast %161 : vector<4x1xf32> to vector<4x128xf32>
    %170 = arith.subf %157, %169 : vector<4x128xf32>
    %cst_87 = arith.constant 9.99999974E-6 : f32
    %171 = vector.broadcast %cst_87 : f32 to vector<4x1xf32>
    %172 = arith.addf %168, %171 : vector<4x1xf32>
    %173 = math.rsqrt %172 : vector<4x1xf32>
    %174 = vector.broadcast %173 : vector<4x1xf32> to vector<4x128xf32>
    %175 = arith.mulf %170, %174 : vector<4x128xf32>
    %cst_88 = arith.constant 0.000000e+00 : f32
    %176 = vector.broadcast %cst_88 : f32 to vector<4x128xf32>
    %177 = arith.maximumf %175, %176 : vector<4x128xf32>
    %178 = arith.truncf %177 : vector<4x128xf32> to vector<4x128xbf16>
    %c0_89 = arith.constant 0 : index
    %c0_90 = arith.constant 0 : index
    %179 = vector.load %arg16[%c0_89, %c0_90] : memref<4x128xbf16, #tpu.memory_space<vmem>>, vector<4x128xbf16>
    tpu.vector_store %arg16[%c0_89, %c0_90], %178 {strides = array<i32>} : memref<4x128xbf16, #tpu.memory_space<vmem>>, vector<4x128xbf16>,
    %c0_91 = arith.constant 0 : index
    %c0_92 = arith.constant 0 : index
    %180 = vector.load %arg7[%c0_91, %c0_92] : memref<4x100xbf16, #tpu.memory_space<vmem>>, vector<4x100xbf16>
    %c0_93 = arith.constant 0 : index
    %c0_94 = arith.constant 0 : index
    %181 = vector.load %arg3[%c0_93, %c0_94] : memref<100x128xbf16, #tpu.memory_space<vmem>>, vector<100x128xbf16>
    %cst_95 = arith.constant dense<0.000000e+00> : vector<4x128xf32>
    %182 = tpu.matmul %180, %181, %cst_95 {dimension_numbers = #tpu.dot_dimension_numbers<[1], [0], [0], [1], [0, 0, 1, 1], [], []>} : vector<4x100xbf16>, vector<100x128xbf16>, vector<4x128xf32> -> vector<4x128xf32>
    %cst_96 = arith.constant dense<0.000000e+00> : vector<4xf32>
    %183 = vector.multi_reduction <add>, %182, %cst_96 [1] : vector<4x128xf32> to vector<4xf32>
    %184 = vector.shape_cast %183 : vector<4xf32> to vector<4x1xf32>
    %cst_97 = arith.constant 1.280000e+02 : f32
    %185 = vector.broadcast %cst_97 : f32 to vector<4x1xf32>
    %186 = arith.divf %184, %185 : vector<4x1xf32>
    %187 = vector.broadcast %186 : vector<4x1xf32> to vector<4x128xf32>
    %188 = arith.subf %182, %187 : vector<4x128xf32>
    %189 = arith.mulf %188, %188 : vector<4x128xf32>
    %cst_98 = arith.constant dense<0.000000e+00> : vector<4xf32>
    %190 = vector.multi_reduction <add>, %189, %cst_98 [1] : vector<4x128xf32> to vector<4xf32>
    %191 = vector.shape_cast %190 : vector<4xf32> to vector<4x1xf32>
    %cst_99 = arith.constant 1.280000e+02 : f32
    %192 = vector.broadcast %cst_99 : f32 to vector<4x1xf32>
    %193 = arith.divf %191, %192 : vector<4x1xf32>
    %194 = vector.broadcast %186 : vector<4x1xf32> to vector<4x128xf32>
    %195 = arith.subf %182, %194 : vector<4x128xf32>
    %cst_100 = arith.constant 9.99999974E-6 : f32
    %196 = vector.broadcast %cst_100 : f32 to vector<4x1xf32>
    %197 = arith.addf %193, %196 : vector<4x1xf32>
    %198 = math.rsqrt %197 : vector<4x1xf32>
    %199 = vector.broadcast %198 : vector<4x1xf32> to vector<4x128xf32>
    %200 = arith.mulf %195, %199 : vector<4x128xf32>
    %cst_101 = arith.constant 0.000000e+00 : f32
    %201 = vector.broadcast %cst_101 : f32 to vector<4x128xf32>
    %202 = arith.maximumf %200, %201 : vector<4x128xf32>
    %203 = arith.truncf %202 : vector<4x128xf32> to vector<4x128xbf16>
    %c0_102 = arith.constant 0 : index
    %c0_103 = arith.constant 0 : index
    %204 = vector.load %arg17[%c0_102, %c0_103] : memref<4x128xbf16, #tpu.memory_space<vmem>>, vector<4x128xbf16>
    tpu.vector_store %arg17[%c0_102, %c0_103], %203 {strides = array<i32>} : memref<4x128xbf16, #tpu.memory_space<vmem>>, vector<4x128xbf16>,
    %c0_104 = arith.constant 0 : index
    %c0_105 = arith.constant 0 : index
    %205 = vector.load %arg8[%c0_104, %c0_105] : memref<4x36xbf16, #tpu.memory_space<vmem>>, vector<4x36xbf16>
    %c0_106 = arith.constant 0 : index
    %c0_107 = arith.constant 0 : index
    %206 = vector.load %arg4[%c0_106, %c0_107] : memref<36x128xbf16, #tpu.memory_space<vmem>>, vector<36x128xbf16>
    %cst_108 = arith.constant dense<0.000000e+00> : vector<4x128xf32>
    %207 = tpu.matmul %205, %206, %cst_108 {dimension_numbers = #tpu.dot_dimension_numbers<[1], [0], [0], [1], [0, 0, 1, 1], [], []>} : vector<4x36xbf16>, vector<36x128xbf16>, vector<4x128xf32> -> vector<4x128xf32>
    %c0_109 = arith.constant 0 : index
    %c0_110 = arith.constant 0 : index
    %208 = vector.load %arg9[%c0_109, %c0_110] : memref<4x100xbf16, #tpu.memory_space<vmem>>, vector<4x100xbf16>
    %c0_111 = arith.constant 0 : index
    %c0_112 = arith.constant 0 : index
    %209 = vector.load %arg5[%c0_111, %c0_112] : memref<100x128xbf16, #tpu.memory_space<vmem>>, vector<100x128xbf16>
    %cst_113 = arith.constant dense<0.000000e+00> : vector<4x128xf32>
    %210 = tpu.matmul %208, %209, %cst_113 {dimension_numbers = #tpu.dot_dimension_numbers<[1], [0], [0], [1], [0, 0, 1, 1], [], []>} : vector<4x100xbf16>, vector<100x128xbf16>, vector<4x128xf32> -> vector<4x128xf32>
    %211 = vector.extract_strided_slice %0 {offsets = [0, 6], sizes = [4, 1], strides = [1, 1]} : vector<4x8xf32> to vector<4x1xf32>
    %cst_114 = arith.constant dense<0.000000e+00> : vector<4xf32>
    %212 = vector.multi_reduction <add>, %207, %cst_114 [1] : vector<4x128xf32> to vector<4xf32>
    %213 = vector.shape_cast %212 : vector<4xf32> to vector<4x1xf32>
    %cst_115 = arith.constant 1.280000e+02 : f32
    %214 = vector.broadcast %cst_115 : f32 to vector<4x1xf32>
    %215 = arith.divf %213, %214 : vector<4x1xf32>
    %216 = vector.broadcast %215 : vector<4x1xf32> to vector<4x128xf32>
    %217 = arith.subf %207, %216 : vector<4x128xf32>
    %218 = arith.mulf %217, %217 : vector<4x128xf32>
    %cst_116 = arith.constant dense<0.000000e+00> : vector<4xf32>
    %219 = vector.multi_reduction <add>, %218, %cst_116 [1] : vector<4x128xf32> to vector<4xf32>
    %220 = vector.shape_cast %219 : vector<4xf32> to vector<4x1xf32>
    %cst_117 = arith.constant 1.280000e+02 : f32
    %221 = vector.broadcast %cst_117 : f32 to vector<4x1xf32>
    %222 = arith.divf %220, %221 : vector<4x1xf32>
    %223 = vector.broadcast %215 : vector<4x1xf32> to vector<4x128xf32>
    %224 = arith.subf %207, %223 : vector<4x128xf32>
    %cst_118 = arith.constant 9.99999974E-6 : f32
    %225 = vector.broadcast %cst_118 : f32 to vector<4x1xf32>
    %226 = arith.addf %222, %225 : vector<4x1xf32>
    %227 = math.rsqrt %226 : vector<4x1xf32>
    %228 = vector.broadcast %227 : vector<4x1xf32> to vector<4x128xf32>
    %229 = arith.mulf %224, %228 : vector<4x128xf32>
    %230 = vector.broadcast %211 : vector<4x1xf32> to vector<4x128xf32>
    %231 = arith.mulf %230, %229 : vector<4x128xf32>
    %232 = vector.extract_strided_slice %0 {offsets = [0, 7], sizes = [4, 1], strides = [1, 1]} : vector<4x8xf32> to vector<4x1xf32>
    %cst_119 = arith.constant dense<0.000000e+00> : vector<4xf32>
    %233 = vector.multi_reduction <add>, %210, %cst_119 [1] : vector<4x128xf32> to vector<4xf32>
    %234 = vector.shape_cast %233 : vector<4xf32> to vector<4x1xf32>
    %cst_120 = arith.constant 1.280000e+02 : f32
    %235 = vector.broadcast %cst_120 : f32 to vector<4x1xf32>
    %236 = arith.divf %234, %235 : vector<4x1xf32>
    %237 = vector.broadcast %236 : vector<4x1xf32> to vector<4x128xf32>
    %238 = arith.subf %210, %237 : vector<4x128xf32>
    %239 = arith.mulf %238, %238 : vector<4x128xf32>
    %cst_121 = arith.constant dense<0.000000e+00> : vector<4xf32>
    %240 = vector.multi_reduction <add>, %239, %cst_121 [1] : vector<4x128xf32> to vector<4xf32>
    %241 = vector.shape_cast %240 : vector<4xf32> to vector<4x1xf32>
    %cst_122 = arith.constant 1.280000e+02 : f32
    %242 = vector.broadcast %cst_122 : f32 to vector<4x1xf32>
    %243 = arith.divf %241, %242 : vector<4x1xf32>
    %244 = vector.broadcast %236 : vector<4x1xf32> to vector<4x128xf32>
    %245 = arith.subf %210, %244 : vector<4x128xf32>
    %cst_123 = arith.constant 9.99999974E-6 : f32
    %246 = vector.broadcast %cst_123 : f32 to vector<4x1xf32>
    %247 = arith.addf %243, %246 : vector<4x1xf32>
    %248 = math.rsqrt %247 : vector<4x1xf32>
    %249 = vector.broadcast %248 : vector<4x1xf32> to vector<4x128xf32>
    %250 = arith.mulf %245, %249 : vector<4x128xf32>
    %251 = vector.broadcast %232 : vector<4x1xf32> to vector<4x128xf32>
    %252 = arith.mulf %251, %250 : vector<4x128xf32>
    %253 = arith.addf %231, %252 : vector<4x128xf32>
    %c0_124 = arith.constant 0 : index
    %c0_125 = arith.constant 0 : index
    %254 = vector.load %arg13[%c0_124, %c0_125] : memref<4x128xf32, #tpu.memory_space<vmem>>, vector<4x128xf32>
    tpu.vector_store %arg13[%c0_124, %c0_125], %253 {strides = array<i32>} : memref<4x128xf32, #tpu.memory_space<vmem>>, vector<4x128xf32>,
    return
  }
}

module attributes {stable_mosaic.version = 11 : i64} {
  func.func @_edge_group_b_kernel(%arg0: memref<4x128xf32, #tpu.memory_space<vmem>>, %arg1: memref<36x128xbf16, #tpu.memory_space<vmem>>, %arg2: memref<100x128xbf16, #tpu.memory_space<vmem>>, %arg3: memref<4x36xbf16, #tpu.memory_space<vmem>>, %arg4: memref<4x100xbf16, #tpu.memory_space<vmem>>, %arg5: memref<4x8xf32, #tpu.memory_space<vmem>>, %arg6: memref<4x128xf32, #tpu.memory_space<vmem>>) attributes {dimension_semantics = [], scalar_prefetch = 0 : i64, scratch_operands = 0 : i64, tpu.core_type = #tpu.core_type<tc>} {
    %c0 = arith.constant 0 : index
    %c0_0 = arith.constant 0 : index
    %0 = vector.load %arg5[%c0, %c0_0] : memref<4x8xf32, #tpu.memory_space<vmem>>, vector<4x8xf32>
    %c0_1 = arith.constant 0 : index
    %c0_2 = arith.constant 0 : index
    %1 = vector.load %arg3[%c0_1, %c0_2] : memref<4x36xbf16, #tpu.memory_space<vmem>>, vector<4x36xbf16>
    %c0_3 = arith.constant 0 : index
    %c0_4 = arith.constant 0 : index
    %2 = vector.load %arg1[%c0_3, %c0_4] : memref<36x128xbf16, #tpu.memory_space<vmem>>, vector<36x128xbf16>
    %cst = arith.constant dense<0.000000e+00> : vector<4x128xf32>
    %3 = tpu.matmul %1, %2, %cst {dimension_numbers = #tpu.dot_dimension_numbers<[1], [0], [0], [1], [0, 0, 1, 1], [], []>} : vector<4x36xbf16>, vector<36x128xbf16>, vector<4x128xf32> -> vector<4x128xf32>
    %c0_5 = arith.constant 0 : index
    %c0_6 = arith.constant 0 : index
    %4 = vector.load %arg4[%c0_5, %c0_6] : memref<4x100xbf16, #tpu.memory_space<vmem>>, vector<4x100xbf16>
    %c0_7 = arith.constant 0 : index
    %c0_8 = arith.constant 0 : index
    %5 = vector.load %arg2[%c0_7, %c0_8] : memref<100x128xbf16, #tpu.memory_space<vmem>>, vector<100x128xbf16>
    %cst_9 = arith.constant dense<0.000000e+00> : vector<4x128xf32>
    %6 = tpu.matmul %4, %5, %cst_9 {dimension_numbers = #tpu.dot_dimension_numbers<[1], [0], [0], [1], [0, 0, 1, 1], [], []>} : vector<4x100xbf16>, vector<100x128xbf16>, vector<4x128xf32> -> vector<4x128xf32>
    %c0_10 = arith.constant 0 : index
    %c0_11 = arith.constant 0 : index
    %7 = vector.load %arg0[%c0_10, %c0_11] : memref<4x128xf32, #tpu.memory_space<vmem>>, vector<4x128xf32>
    %8 = vector.extract_strided_slice %0 {offsets = [0, 4], sizes = [4, 1], strides = [1, 1]} : vector<4x8xf32> to vector<4x1xf32>
    %cst_12 = arith.constant dense<0.000000e+00> : vector<4xf32>
    %9 = vector.multi_reduction <add>, %3, %cst_12 [1] : vector<4x128xf32> to vector<4xf32>
    %10 = vector.shape_cast %9 : vector<4xf32> to vector<4x1xf32>
    %cst_13 = arith.constant 1.280000e+02 : f32
    %11 = vector.broadcast %cst_13 : f32 to vector<4x1xf32>
    %12 = arith.divf %10, %11 : vector<4x1xf32>
    %13 = vector.broadcast %12 : vector<4x1xf32> to vector<4x128xf32>
    %14 = arith.subf %3, %13 : vector<4x128xf32>
    %15 = arith.mulf %14, %14 : vector<4x128xf32>
    %cst_14 = arith.constant dense<0.000000e+00> : vector<4xf32>
    %16 = vector.multi_reduction <add>, %15, %cst_14 [1] : vector<4x128xf32> to vector<4xf32>
    %17 = vector.shape_cast %16 : vector<4xf32> to vector<4x1xf32>
    %cst_15 = arith.constant 1.280000e+02 : f32
    %18 = vector.broadcast %cst_15 : f32 to vector<4x1xf32>
    %19 = arith.divf %17, %18 : vector<4x1xf32>
    %20 = vector.broadcast %12 : vector<4x1xf32> to vector<4x128xf32>
    %21 = arith.subf %3, %20 : vector<4x128xf32>
    %cst_16 = arith.constant 9.99999974E-6 : f32
    %22 = vector.broadcast %cst_16 : f32 to vector<4x1xf32>
    %23 = arith.addf %19, %22 : vector<4x1xf32>
    %24 = math.rsqrt %23 : vector<4x1xf32>
    %25 = vector.broadcast %24 : vector<4x1xf32> to vector<4x128xf32>
    %26 = arith.mulf %21, %25 : vector<4x128xf32>
    %27 = vector.broadcast %8 : vector<4x1xf32> to vector<4x128xf32>
    %28 = arith.mulf %27, %26 : vector<4x128xf32>
    %29 = arith.addf %7, %28 : vector<4x128xf32>
    %30 = vector.extract_strided_slice %0 {offsets = [0, 5], sizes = [4, 1], strides = [1, 1]} : vector<4x8xf32> to vector<4x1xf32>
    %cst_17 = arith.constant dense<0.000000e+00> : vector<4xf32>
    %31 = vector.multi_reduction <add>, %6, %cst_17 [1] : vector<4x128xf32> to vector<4xf32>
    %32 = vector.shape_cast %31 : vector<4xf32> to vector<4x1xf32>
    %cst_18 = arith.constant 1.280000e+02 : f32
    %33 = vector.broadcast %cst_18 : f32 to vector<4x1xf32>
    %34 = arith.divf %32, %33 : vector<4x1xf32>
    %35 = vector.broadcast %34 : vector<4x1xf32> to vector<4x128xf32>
    %36 = arith.subf %6, %35 : vector<4x128xf32>
    %37 = arith.mulf %36, %36 : vector<4x128xf32>
    %cst_19 = arith.constant dense<0.000000e+00> : vector<4xf32>
    %38 = vector.multi_reduction <add>, %37, %cst_19 [1] : vector<4x128xf32> to vector<4xf32>
    %39 = vector.shape_cast %38 : vector<4xf32> to vector<4x1xf32>
    %cst_20 = arith.constant 1.280000e+02 : f32
    %40 = vector.broadcast %cst_20 : f32 to vector<4x1xf32>
    %41 = arith.divf %39, %40 : vector<4x1xf32>
    %42 = vector.broadcast %34 : vector<4x1xf32> to vector<4x128xf32>
    %43 = arith.subf %6, %42 : vector<4x128xf32>
    %cst_21 = arith.constant 9.99999974E-6 : f32
    %44 = vector.broadcast %cst_21 : f32 to vector<4x1xf32>
    %45 = arith.addf %41, %44 : vector<4x1xf32>
    %46 = math.rsqrt %45 : vector<4x1xf32>
    %47 = vector.broadcast %46 : vector<4x1xf32> to vector<4x128xf32>
    %48 = arith.mulf %43, %47 : vector<4x128xf32>
    %49 = vector.broadcast %30 : vector<4x1xf32> to vector<4x128xf32>
    %50 = arith.mulf %49, %48 : vector<4x128xf32>
    %51 = arith.addf %29, %50 : vector<4x128xf32>
    %c0_22 = arith.constant 0 : index
    %c0_23 = arith.constant 0 : index
    %52 = vector.load %arg6[%c0_22, %c0_23] : memref<4x128xf32, #tpu.memory_space<vmem>>, vector<4x128xf32>
    tpu.vector_store %arg6[%c0_22, %c0_23], %51 {strides = array<i32>} : memref<4x128xf32, #tpu.memory_space<vmem>>, vector<4x128xf32>,
    return
  }
}

</mosaic_0001>

<llo_original>
// kernel: fwd.12
$region0: #{fwd.12}
  #allocation0 [shape = 'u32[]', space=smem, size = 0x4, offset = 0x4, fixed_abs, tag = 'smem constant byte address 0x4 - core index']
  #allocation1 [shape = 'u32[144,128]{1,0:T(1,128)}', space=vmem, size = 0x12000, scoped, tag = 'internal scratch']
  %s0 = inlined_call_operand.vmem [shape: bf16[4,8], index: 0, kind: input, shape index: {}]
  %s1 = inlined_call_operand.vmem [shape: f32[8,512], index: 1, kind: input, shape index: {}]
  %s2 = inlined_call_operand.vmem [shape: f32[4,512], index: 2, kind: output, shape index: {}]
  %s3 = sld [smem:[#allocation0]]
  $region18: #{fwd.12} parent=0
    _
  %s5 = ssub.s32 1, %s3
  %s6 = scalar_select 0, %s5, %s3
  // Predicated region
  $region2: #{fwd.12} parent=0 // pred_check
    _
  $region3: #{fwd.12} parent=0 // pred_check_branch
    %8 = sbr.rel (0) target = $region5
  $region4: #{fwd.12} parent=0 // pred_region
    _
  $region5: #{fwd.12} parent=0 // pred_fallthru
    _
  // Predicated region
  $region6: #{fwd.12} parent=0 // pred_check
    _
  $region7: #{fwd.12} parent=0 // pred_check_branch
    %10 = sbr.rel (0) target = $region9
  $region8: #{fwd.12} parent=0 // pred_region
    _
  $region9: #{fwd.12} parent=0 // pred_fallthru
    _
  %v12 = vld [vmem:[%s1] sm:$0xff]
  %v13 = vld [vmem:[%s1 + $0x8] sm:$0xff]
  %v14 = vld [vmem:[%s1 + $0x10] sm:$0xff]
  %v15 = vld [vmem:[%s1 + $0x18] sm:$0xff]
  %v16 = vmax.f32 %v12, 0.0
  %v17 = vmax.f32 %v13, 0.0
  %v18 = vmax.f32 %v14, 0.0
  %v19 = vmax.f32 %v15, 0.0
  %v20 = vpack.c.bf16 %v16, %v16
  %v21 = vpack.c.bf16 %v17, %v17
  %v22 = vpack.c.bf16 %v18, %v18
  %v23 = vpack.c.bf16 %v19, %v19
  %v24 = vld [vmem:[%s0] sm:$0x3]
  %vm25 = vcmask 64512
  %v27 = vsel %vm25, %v24, 0
  %vm29 = vcmask 1043456
  %v31 = vsel %vm29, %v20, 0
  %v34 = vsel %vm29, %v21, 0
  %v37 = vsel %vm29, %v22, 0
  %v40 = vsel %vm29, %v23, 0
  %42 = vmatprep.subr.bf16.mxu0 %v34
  %43 = vmatpush1.bf16.msra.mxu0 %v31
  %44 = vmatprep.subr.bf16.mxu0 0
  %45 = vmatpush1.bf16.msra.mxu0 0
  %46 = vmatprep.subr.bf16.mxu0 0
  %47 = vmatpush1.bf16.msra.mxu0 0
  %48 = vmatprep.subr.bf16.mxu0 0
  %49 = vmatpush1.bf16.msra.mxu0 0
  %50 = vmatprep.subr.bf16.mxu0 0
  %51 = vmatpush1.bf16.msra.mxu0 0
  %52 = vmatprep.subr.bf16.mxu0 0
  %53 = vmatpush1.bf16.msra.mxu0 0
  %54 = vmatprep.subr.bf16.mxu0 0
  %55 = vmatpush1.bf16.msra.mxu0 0
  %56 = vmatprep.subr.bf16.mxu0 0
  %57 = vmatpush1.bf16.msra.mxu0 0
  %58 = vmatprep.subr.bf16.mxu0 0
  %59 = vmatpush1.bf16.msra.mxu0 0
  %60 = vmatprep.subr.bf16.mxu0 0
  %61 = vmatpush1.bf16.msra.mxu0 0
  %62 = vmatprep.subr.bf16.mxu0 0
  %63 = vmatpush1.bf16.msra.mxu0 0
  %64 = vmatprep.subr.bf16.mxu0 0
  %65 = vmatpush1.bf16.msra.mxu0 0
  %66 = vmatprep.subr.bf16.mxu0 0
  %67 = vmatpush1.bf16.msra.mxu0 0
  %68 = vmatprep.subr.bf16.mxu0 0
  %69 = vmatpush1.bf16.msra.mxu0 0
  %70 = vmatprep.subr.bf16.mxu0 0
  %71 = vmatpush1.bf16.msra.mxu0 0
  %72 = vmatprep.subr.bf16.mxu0 0
  %73 = vmatpush1.bf16.msra.mxu0 0
  %74 = vmatprep.mubr.bf16.mxu0 0
  %75 = vmatmul.mubr.bf16.gmra.mrb[0].mxu0 %v27
  %v76 = vpop.f32.mrb[0].mxu0
  %v77 = vadd.f32 0.0, %v76
  %v78 = vpop.f32.mrb[0].mxu0
  %v79 = vadd.f32 0.0, %v78
  %v80 = vpop.f32.mrb[0].mxu0
  %v81 = vpop.f32.mrb[0].mxu0
  %82 = vdwg.mxu0
  %83 = vmatprep.subr.bf16.mxu0 %v40
  %84 = vmatpush1.bf16.msra.mxu0 %v37
  %85 = vmatprep.subr.bf16.mxu0 0
  %86 = vmatpush1.bf16.msra.mxu0 0
  %87 = vmatprep.subr.bf16.mxu0 0
  %88 = vmatpush1.bf16.msra.mxu0 0
  %89 = vmatprep.subr.bf16.mxu0 0
  %90 = vmatpush1.bf16.msra.mxu0 0
  %91 = vmatprep.subr.bf16.mxu0 0
  %92 = vmatpush1.bf16.msra.mxu0 0
  %93 = vmatprep.subr.bf16.mxu0 0
  %94 = vmatpush1.bf16.msra.mxu0 0
  %95 = vmatprep.subr.bf16.mxu0 0
  %96 = vmatpush1.bf16.msra.mxu0 0
  %97 = vmatprep.subr.bf16.mxu0 0
  %98 = vmatpush1.bf16.msra.mxu0 0
  %99 = vmatprep.subr.bf16.mxu0 0
  %100 = vmatpush1.bf16.msra.mxu0 0
  %101 = vmatprep.subr.bf16.mxu0 0
  %102 = vmatpush1.bf16.msra.mxu0 0
  %103 = vmatprep.subr.bf16.mxu0 0
  %104 = vmatpush1.bf16.msra.mxu0 0
  %105 = vmatprep.subr.bf16.mxu0 0
  %106 = vmatpush1.bf16.msra.mxu0 0
  %107 = vmatprep.subr.bf16.mxu0 0
  %108 = vmatpush1.bf16.msra.mxu0 0
  %109 = vmatprep.subr.bf16.mxu0 0
  %110 = vmatpush1.bf16.msra.mxu0 0
  %111 = vmatprep.subr.bf16.mxu0 0
  %112 = vmatpush1.bf16.msra.mxu0 0
  %113 = vmatprep.subr.bf16.mxu0 0
  %114 = vmatpush1.bf16.msra.mxu0 0
  %115 = vmatprep.mubr.bf16.mxu0 0
  %116 = vmatmul.mubr.bf16.gmra.mrb[0].mxu0 %v27
  %v117 = vpop.f32.mrb[0].mxu0
  %v118 = vadd.f32 0.0, %v117
  %v119 = vpop.f32.mrb[0].mxu0
  %v120 = vadd.f32 0.0, %v119
  %v121 = vpop.f32.mrb[0].mxu0
  %v122 = vpop.f32.mrb[0].mxu0
  %123 = vdwg.mxu0
  %v124 = vsel %vm29, %v77, 0.0
  %v125 = vsel %vm29, %v79, 0.0
  %v126 = vadd.f32 %v124, %v125
  %v127 = vsel %vm29, %v118, 0.0
  %v128 = vadd.f32 %v126, %v127
  %v129 = vsel %vm29, %v120, 0.0
  %v130 = vadd.f32 %v128, %v129
  %131 = vadd.xlane.f32.xlu0 %v130
  %v132 = vpop.xlane.xlu0 %131
  %v133 = vrcp.pop 512.0
  %v134 = vmul.f32 %v132, %v133
  %v135 = vsub.f32 %v77, %v134
  %v136 = vsub.f32 %v79, %v134
  %v137 = vsub.f32 %v118, %v134
  %v138 = vsub.f32 %v120, %v134
  %v139 = vmul.f32 %v135, %v135
  %v140 = vmul.f32 %v136, %v136
  %v141 = vmul.f32 %v137, %v137
  %v142 = vmul.f32 %v138, %v138
  %v143 = vsel %vm29, %v139, 0.0
  %v144 = vsel %vm29, %v140, 0.0
  %v145 = vadd.f32 %v143, %v144
  %v146 = vsel %vm29, %v141, 0.0
  %v147 = vadd.f32 %v145, %v146
  %v148 = vsel %vm29, %v142, 0.0
  %v149 = vadd.f32 %v147, %v148
  %150 = vadd.xlane.f32.xlu0 %v149
  %v151 = vpop.xlane.xlu0 %150
  %v152 = vmul.f32 %v151, %v133
  %v153 = vadd.f32 %v152, 1e-05
  %v154 = vrsqrt.pop %v153
  %v155 = vmul.f32 %v135, %v154
  %v156 = vmul.f32 %v136, %v154
  %v157 = vmul.f32 %v137, %v154
  %v158 = vmul.f32 %v138, %v154
  %v163 = vcombine.low %v155, %v156
  %v164 = vcombine.low %v157, %v158
  %167 = vst [vmem:[%s2] sm:$0xff] %v163
  %168 = vst [vmem:[%s2 + $0x8] sm:$0xff] %v164
  // Predicated region
  $region10: #{fwd.12} parent=0 // pred_check
    _
  $region11: #{fwd.12} parent=0 // pred_check_branch
    %170 = sbr.rel (0) target = $region13
  $region12: #{fwd.12} parent=0 // pred_region
    _
  $region13: #{fwd.12} parent=0 // pred_fallthru
    _
  // Predicated region
  $region14: #{fwd.12} parent=0 // pred_check
    _
  $region15: #{fwd.12} parent=0 // pred_check_branch
    %172 = sbr.rel (0) target = $region17
  $region16: #{fwd.12} parent=0 // pred_region
    _
  $region17: #{fwd.12} parent=0 // pred_fallthru
    _

// kernel: fwd.14
$region0: #{fwd.14}
  #allocation0 [shape = 'u32[]', space=smem, size = 0x4, offset = 0x4, fixed_abs, tag = 'smem constant byte address 0x4 - core index']
  #allocation1 [shape = 'u32[144,128]{1,0:T(1,128)}', space=vmem, size = 0x12000, scoped, tag = 'internal scratch']
  %s0 = inlined_call_operand.vmem [shape: f32[9,4,128], index: 0, kind: input, shape index: {}]
  %s1 = inlined_call_operand.vmem [shape: f32[9,1,128], index: 1, kind: input, shape index: {}]
  %s2 = inlined_call_operand.vmem [shape: bf16[36,128], index: 2, kind: input, shape index: {}]
  %s3 = inlined_call_operand.vmem [shape: bf16[100,128], index: 3, kind: input, shape index: {}]
  %s4 = inlined_call_operand.vmem [shape: bf16[36,128], index: 4, kind: input, shape index: {}]
  %s5 = inlined_call_operand.vmem [shape: bf16[100,128], index: 5, kind: input, shape index: {}]
  %s6 = inlined_call_operand.vmem [shape: bf16[16,36], index: 6, kind: input, shape index: {}]
  %s7 = inlined_call_operand.vmem [shape: bf16[16,100], index: 7, kind: input, shape index: {}]
  %s8 = inlined_call_operand.vmem [shape: bf16[16,36], index: 8, kind: input, shape index: {}]
  %s9 = inlined_call_operand.vmem [shape: bf16[16,100], index: 9, kind: input, shape index: {}]
  %s10 = inlined_call_operand.vmem [shape: bf16[16,4], index: 10, kind: input, shape index: {}]
  %s11 = inlined_call_operand.vmem [shape: bf16[16,4], index: 11, kind: input, shape index: {}]
  %s12 = inlined_call_operand.vmem [shape: f32[16,8], index: 12, kind: input, shape index: {}]
  %s13 = inlined_call_operand.vmem [shape: f32[16,128], index: 13, kind: output, shape index: {0}]
  %s14 = inlined_call_operand.vmem [shape: f32[4,128], index: 14, kind: output, shape index: {1}]
  %s15 = inlined_call_operand.vmem [shape: f32[4,128], index: 15, kind: output, shape index: {2}]
  %s16 = inlined_call_operand.vmem [shape: bf16[16,128], index: 16, kind: output, shape index: {3}]
  %s17 = inlined_call_operand.vmem [shape: bf16[16,128], index: 17, kind: output, shape index: {4}]
  %18 = xla_tuple %s13, %s14, %s15, %s16, %s17
  %s19 = sld [smem:[#allocation0]]
  $region94: #{fwd.14} parent=0
    _
  %s21 = ssub.s32 1, %s19
  %s22 = scalar_select 0, %s21, %s19
  // Predicated region
  $region2: #{fwd.14} parent=0 // pred_check
    _
  $region3: #{fwd.14} parent=0 // pred_check_branch
    %24 = sbr.rel (0) target = $region5
  $region4: #{fwd.14} parent=0 // pred_region
    _
  $region5: #{fwd.14} parent=0 // pred_fallthru
    _
  // Predicated region
  $region6: #{fwd.14} parent=0 // pred_check
    _
  $region7: #{fwd.14} parent=0 // pred_check_branch
    %26 = sbr.rel (0) target = $region9
  $region8: #{fwd.14} parent=0 // pred_region
    _
  $region9: #{fwd.14} parent=0 // pred_fallthru
    _
  // Predicated region
  $region10: #{fwd.14} parent=0 // pred_check
    _
  $region11: #{fwd.14} parent=0 // pred_check_branch
    %28 = sbr.rel (0) target = $region13
  $region12: #{fwd.14} parent=0 // pred_region
    _
  $region13: #{fwd.14} parent=0 // pred_fallthru
    _
  // Predicated region
  $region14: #{fwd.14} parent=0 // pred_check
    _
  $region15: #{fwd.14} parent=0 // pred_check_branch
    %30 = sbr.rel (0) target = $region17
  $region16: #{fwd.14} parent=0 // pred_region
    _
  $region17: #{fwd.14} parent=0 // pred_fallthru
    _
  // Predicated region
  $region18: #{fwd.14} parent=0 // pred_check
    _
  $region19: #{fwd.14} parent=0 // pred_check_branch
    %32 = sbr.rel (0) target = $region21
  $region20: #{fwd.14} parent=0 // pred_region
    _
  $region21: #{fwd.14} parent=0 // pred_fallthru
    _
  // Predicated region
  $region22: #{fwd.14} parent=0 // pred_check
    _
  $region23: #{fwd.14} parent=0 // pred_check_branch
    %34 = sbr.rel (0) target = $region25
  $region24: #{fwd.14} parent=0 // pred_region
    _
  $region25: #{fwd.14} parent=0 // pred_fallthru
    _
  // Predicated region
  $region26: #{fwd.14} parent=0 // pred_check
    _
  $region27: #{fwd.14} parent=0 // pred_check_branch
    %36 = sbr.rel (0) target = $region29
  $region28: #{fwd.14} parent=0 // pred_region
    _
  $region29: #{fwd.14} parent=0 // pred_fallthru
    _
  // Predicated region
  $region30: #{fwd.14} parent=0 // pred_check
    _
  $region31: #{fwd.14} parent=0 // pred_check_branch
    %38 = sbr.rel (0) target = $region33
  $region32: #{fwd.14} parent=0 // pred_region
    _
  $region33: #{fwd.14} parent=0 // pred_fallthru
    _
  // Predicated region
  $region34: #{fwd.14} parent=0 // pred_check
    _
  $region35: #{fwd.14} parent=0 // pred_check_branch
    %40 = sbr.rel (0) target = $region37
  $region36: #{fwd.14} parent=0 // pred_region
    _
  $region37: #{fwd.14} parent=0 // pred_fallthru
    _
  // Predicated region
  $region38: #{fwd.14} parent=0 // pred_check
    _
  $region39: #{fwd.14} parent=0 // pred_check_branch
    %42 = sbr.rel (0) target = $region41
  $region40: #{fwd.14} parent=0 // pred_region
    _
  $region41: #{fwd.14} parent=0 // pred_fallthru
    _
  // Predicated region
  $region42: #{fwd.14} parent=0 // pred_check
    _
  $region43: #{fwd.14} parent=0 // pred_check_branch
    %44 = sbr.rel (0) target = $region45
  $region44: #{fwd.14} parent=0 // pred_region
    _
  $region45: #{fwd.14} parent=0 // pred_fallthru
    _
  // Predicated region
  $region46: #{fwd.14} parent=0 // pred_check
    _
  $region47: #{fwd.14} parent=0 // pred_check_branch
    %46 = sbr.rel (0) target = $region49
  $region48: #{fwd.14} parent=0 // pred_region
    _
  $region49: #{fwd.14} parent=0 // pred_fallthru
    _
  // Predicated region
  $region50: #{fwd.14} parent=0 // pred_check
    _
  $region51: #{fwd.14} parent=0 // pred_check_branch
    %48 = sbr.rel (0) target = $region53
  $region52: #{fwd.14} parent=0 // pred_region
    _
  $region53: #{fwd.14} parent=0 // pred_fallthru
    _
  %v50 = vld [vmem:[%s12] sm:$0xff]
  %v51 = vld [vmem:[%s12 + $0x8] sm:$0xff]
  %v52 = vld [vmem:[%s0] sm:$0xf]
  %v53 = vld [vmem:[%s1] sm:$0x1]
  %v54 = vsub.f32 %v53, 1.0
  %v55 = vmul.f32 %v54, 1e+30
  %v57 = vlaneseq
  %v58 = vshrl.u32 %v57, 7
  %v59 = vsub.s32 0, %v58
  %v60 = vrot.slane %v55, %v59
  %v62 = vadd.f32 %v52, %v60
  %s63 = scalar_lea.vmem %s0, 4
  %v64 = vld [vmem:[%s63] sm:$0xf]
  %s65 = scalar_lea.vmem %s1, 1
  %v66 = vld [vmem:[%s65] sm:$0x1]
  %v67 = vsub.f32 %v66, 1.0
  %v68 = vmul.f32 %v67, 1e+30
  %v70 = vlaneseq
  %v71 = vshrl.u32 %v70, 7
  %v72 = vsub.s32 0, %v71
  %v73 = vrot.slane %v68, %v72
  %v75 = vadd.f32 %v64, %v73
  %v76 = vmax.f32 %v62, %v75
  %v77 = vadd.f32 %v52, %v64
  %v78 = vadd.f32 %v53, %v66
  %s79 = scalar_lea.vmem %s0, 8
  %v80 = vld [vmem:[%s79] sm:$0xf]
  %s81 = scalar_lea.vmem %s1, 2
  %v82 = vld [vmem:[%s81] sm:$0x1]
  %v83 = vsub.f32 %v82, 1.0
  %v84 = vmul.f32 %v83, 1e+30
  %v86 = vlaneseq
  %v87 = vshrl.u32 %v86, 7
  %v88 = vsub.s32 0, %v87
  %v89 = vrot.slane %v84, %v88
  %v91 = vadd.f32 %v80, %v89
  %v92 = vmax.f32 %v76, %v91
  %v93 = vadd.f32 %v77, %v80
  %v94 = vadd.f32 %v78, %v82
  %s95 = scalar_lea.vmem %s0, 12
  %v96 = vld [vmem:[%s95] sm:$0xf]
  %s97 = scalar_lea.vmem %s1, 3
  %v98 = vld [vmem:[%s97] sm:$0x1]
  %v99 = vsub.f32 %v98, 1.0
  %v100 = vmul.f32 %v99, 1e+30
  %v102 = vlaneseq
  %v103 = vshrl.u32 %v102, 7
  %v104 = vsub.s32 0, %v103
  %v105 = vrot.slane %v100, %v104
  %v107 = vadd.f32 %v96, %v105
  %v108 = vmax.f32 %v92, %v107
  %v109 = vadd.f32 %v93, %v96
  %v110 = vadd.f32 %v94, %v98
  %s111 = scalar_lea.vmem %s0, 16
  %v112 = vld [vmem:[%s111] sm:$0xf]
  %s113 = scalar_lea.vmem %s1, 4
  %v114 = vld [vmem:[%s113] sm:$0x1]
  %v115 = vsub.f32 %v114, 1.0
  %v116 = vmul.f32 %v115, 1e+30
  %v118 = vlaneseq
  %v119 = vshrl.u32 %v118, 7
  %v120 = vsub.s32 0, %v119
  %v121 = vrot.slane %v116, %v120
  %v123 = vadd.f32 %v112, %v121
  %v124 = vmax.f32 %v108, %v123
  %v125 = vadd.f32 %v109, %v112
  %v126 = vadd.f32 %v110, %v114
  %s127 = scalar_lea.vmem %s0, 20
  %v128 = vld [vmem:[%s127] sm:$0xf]
  %s129 = scalar_lea.vmem %s1, 5
  %v130 = vld [vmem:[%s129] sm:$0x1]
  %v131 = vsub.f32 %v130, 1.0
  %v132 = vmul.f32 %v131, 1e+30
  %v134 = vlaneseq
  %v135 = vshrl.u32 %v134, 7
  %v136 = vsub.s32 0, %v135
  %v137 = vrot.slane %v132, %v136
  %v139 = vadd.f32 %v128, %v137
  %v140 = vmax.f32 %v124, %v139
  %v141 = vadd.f32 %v125, %v128
  %v142 = vadd.f32 %v126, %v130
  %s143 = scalar_lea.vmem %s0, 24
  %v144 = vld [vmem:[%s143] sm:$0xf]
  %s145 = scalar_lea.vmem %s1, 6
  %v146 = vld [vmem:[%s145] sm:$0x1]
  %v147 = vsub.f32 %v146, 1.0
  %v148 = vmul.f32 %v147, 1e+30
  %v150 = vlaneseq
  %v151 = vshrl.u32 %v150, 7
  %v152 = vsub.s32 0, %v151
  %v153 = vrot.slane %v148, %v152
  %v155 = vadd.f32 %v144, %v153
  %v156 = vmax.f32 %v140, %v155
  %v157 = vadd.f32 %v141, %v144
  %v158 = vadd.f32 %v142, %v146
  %s159 = scalar_lea.vmem %s0, 28
  %v160 = vld [vmem:[%s159] sm:$0xf]
  %s161 = scalar_lea.vmem %s1, 7
  %v162 = vld [vmem:[%s161] sm:$0x1]
  %v163 = vsub.f32 %v162, 1.0
  %v164 = vmul.f32 %v163, 1e+30
  %v166 = vlaneseq
  %v167 = vshrl.u32 %v166, 7
  %v168 = vsub.s32 0, %v167
  %v169 = vrot.slane %v164, %v168
  %v171 = vadd.f32 %v160, %v169
  %v172 = vmax.f32 %v156, %v171
  %v173 = vadd.f32 %v157, %v160
  %v174 = vadd.f32 %v158, %v162
  %s175 = scalar_lea.vmem %s0, 32
  %v176 = vld [vmem:[%s175] sm:$0xf]
  %s177 = scalar_lea.vmem %s1, 8
  %v178 = vld [vmem:[%s177] sm:$0x1]
  %v179 = vsub.f32 %v178, 1.0
  %v180 = vmul.f32 %v179, 1e+30
  %v182 = vlaneseq
  %v183 = vshrl.u32 %v182, 7
  %v184 = vsub.s32 0, %v183
  %v185 = vrot.slane %v180, %v184
  %v187 = vadd.f32 %v176, %v185
  %v188 = vmax.f32 %v172, %v187
  %v189 = vadd.f32 %v173, %v176
  %v190 = vadd.f32 %v174, %v178
  %vm191 = vcmask 1043456
  %v192 = vsel %vm191, %v188, 0.0
  %193 = vadd.xlane.f32.xlu0 %v192
  %v194 = vpop.xlane.xlu0 %193
  %v195 = vrcp.pop 128.0
  %v196 = vmul.f32 %v194, %v195
  %v197 = vsub.f32 %v188, %v196
  %v198 = vmul.f32 %v197, %v197
  %v199 = vsel %vm191, %v198, 0.0
  %200 = vadd.xlane.f32.xlu0 %v199
  %v201 = vpop.xlane.xlu0 %200
  %v202 = vmul.f32 %v201, %v195
  %v203 = vadd.f32 %v202, 1e-05
  %v204 = vrsqrt.pop %v203
  %v205 = vmul.f32 %v197, %v204
  %206 = vst [vmem:[%s14] sm:$0xf] %v205
  %v208 = vlaneseq
  %v209 = vshrl.u32 %v208, 7
  %v210 = vsub.s32 0, %v209
  %v211 = vrot.slane %v190, %v210
  %v213 = vrcp.pop %v211
  %v214 = vmul.f32 %v189, %v213
  %v215 = vsel %vm191, %v214, 0.0
  %216 = vadd.xlane.f32.xlu0 %v215
  %v217 = vpop.xlane.xlu0 %216
  %v218 = vmul.f32 %v217, %v195
  %v219 = vsub.f32 %v214, %v218
  %v220 = vmul.f32 %v219, %v219
  %v221 = vsel %vm191, %v220, 0.0
  %222 = vadd.xlane.f32.xlu0 %v221
  %v223 = vpop.xlane.xlu0 %222
  %v224 = vmul.f32 %v223, %v195
  %v225 = vadd.f32 %v224, 1e-05
  %v226 = vrsqrt.pop %v225
  %v227 = vmul.f32 %v219, %v226
  %228 = vst [vmem:[%s15] sm:$0xf] %v227
  %v229 = vld [vmem:[%s6] sm:$0xf]
  %v230 = vld [vmem:[%s6 + $0x4] sm:$0xf]
  %v231 = vld [vmem:[%s2] sm:$0xf]
  %v232 = vld [vmem:[%s2 + $0x4] sm:$0xf]
  %v233 = vld [vmem:[%s2 + $0x8] sm:$0xf]
  %v234 = vld [vmem:[%s2 + $0xc] sm:$0xf]
  %v235 = vld [vmem:[%s2 + $0x10] sm:$0x3]
  %v238 = vunpack.c.l.b16 %v229
  %v239 = vunpack.c.l.b16 %v230
  %v240 = vpack.c.b16 %v239, %v238
  %v246 = vunpack.c.l.b16 %v231
  %v247 = vunpack.c.l.b16 %v232
  %v248 = vunpack.c.l.b16 %v233
  %v249 = vunpack.c.l.b16 %v234
  %v250 = vunpack.c.l.b16 %v235
  %v251 = vpack.c.b16 %v247, %v246
  %v252 = vpack.c.b16 %v249, %v248
  %v253 = vpack.c.b16 %v250, %v250
  %vm256 = vcmask 293888
  %v258 = vsel %vm256, %v240, 0
  %vm260 = vcmask 1041408
  %v262 = vsel %vm260, %v253, 0
  %264 = vmatprep.subr.bf16.mxu0 0
  %265 = vmatpush1.bf16.msra.mxu0 %v251
  %266 = vmatprep.subr.bf16.mxu0 0
  %267 = vmatpush1.bf16.msra.mxu0 %v252
  %268 = vmatprep.subr.bf16.mxu0 0
  %269 = vmatpush1.bf16.msra.mxu0 %v262
  %270 = vmatprep.subr.bf16.mxu0 0
  %271 = vmatpush1.bf16.msra.mxu0 0
  %272 = vmatprep.subr.bf16.mxu0 0
  %273 = vmatpush1.bf16.msra.mxu0 0
  %274 = vmatprep.subr.bf16.mxu0 0
  %275 = vmatpush1.bf16.msra.mxu0 0
  %276 = vmatprep.subr.bf16.mxu0 0
  %277 = vmatpush1.bf16.msra.mxu0 0
  %278 = vmatprep.subr.bf16.mxu0 0
  %279 = vmatpush1.bf16.msra.mxu0 0
  %280 = vmatprep.subr.bf16.mxu0 0
  %281 = vmatpush1.bf16.msra.mxu0 0
  %282 = vmatprep.subr.bf16.mxu0 0
  %283 = vmatpush1.bf16.msra.mxu0 0
  %284 = vmatprep.subr.bf16.mxu0 0
  %285 = vmatpush1.bf16.msra.mxu0 0
  %286 = vmatprep.subr.bf16.mxu0 0
  %287 = vmatpush1.bf16.msra.mxu0 0
  %288 = vmatprep.subr.bf16.mxu0 0
  %289 = vmatpush1.bf16.msra.mxu0 0
  %290 = vmatprep.subr.bf16.mxu0 0
  %291 = vmatpush1.bf16.msra.mxu0 0
  %292 = vmatprep.subr.bf16.mxu0 0
  %293 = vmatpush1.bf16.msra.mxu0 0
  %294 = vmatprep.subr.bf16.mxu0 0
  %295 = vmatpush1.bf16.msra.mxu0 0
  %296 = vmatprep.mubr.bf16.mxu0 0
  %297 = vmatmul.mubr.bf16.gmra.mrb[0].mxu0 %v258
  %v298 = vpop.f32.mrb[0].mxu0
  %v299 = vadd.f32 0.0, %v298
  %v300 = vpop.f32.mrb[0].mxu0
  %v301 = vpop.f32.mrb[0].mxu0
  %v302 = vadd.f32 0.0, %v301
  %v303 = vpop.f32.mrb[0].mxu0
  %304 = vdwg.mxu0
  %305 = vadd.xlane.f32.xlu0 %v299
  %v306 = vpop.xlane.xlu0 %305
  %307 = vadd.xlane.f32.xlu0 %v302
  %v308 = vpop.xlane.xlu0 %307
  %v309 = vmul.f32 %v306, %v195
  %v310 = vmul.f32 %v308, %v195
  %v311 = vsub.f32 %v299, %v309
  %v312 = vsub.f32 %v302, %v310
  %v313 = vmul.f32 %v311, %v311
  %v314 = vmul.f32 %v312, %v312
  %315 = vadd.xlane.f32.xlu0 %v313
  %v316 = vpop.xlane.xlu0 %315
  %317 = vadd.xlane.f32.xlu0 %v314
  %v318 = vpop.xlane.xlu0 %317
  %v319 = vmul.f32 %v316, %v195
  %v320 = vmul.f32 %v318, %v195
  %v321 = vadd.f32 %v319, 1e-05
  %v322 = vadd.f32 %v320, 1e-05
  %v323 = vrsqrt.pop %v321
  %v324 = vrsqrt.pop %v322
  %v325 = vmul.f32 %v311, %v323
  %v326 = vmul.f32 %v312, %v324
  %v327 = vmax.f32 %v325, 0.0
  %v328 = vmax.f32 %v326, 0.0
  %v329 = vpack.c.bf16 %v328, %v327
  %v331 = vunpack.c.l.b16 %v329
  %v332 = vunpack.c.h.b16 %v329
  %v333 = vpack.c.b16 %v331, %v331
  %v334 = vpack.c.b16 %v332, %v332
  %337 = vst [vmem:[%s16] sm:$0xf] %v333
  %338 = vst [vmem:[%s16 + $0x4] sm:$0xf] %v334
  %v339 = vld [vmem:[%s7] sm:$0xf]
  %v340 = vld [vmem:[%s7 + $0x4] sm:$0xf]
  %v341 = vld [vmem:[%s3] sm:$0xf]
  %v342 = vld [vmem:[%s3 + $0x4] sm:$0xf]
  %v343 = vld [vmem:[%s3 + $0x8] sm:$0xf]
  %v344 = vld [vmem:[%s3 + $0xc] sm:$0xf]
  %v345 = vld [vmem:[%s3 + $0x10] sm:$0xf]
  %v346 = vld [vmem:[%s3 + $0x14] sm:$0xf]
  %v347 = vld [vmem:[%s3 + $0x18] sm:$0xf]
  %v348 = vld [vmem:[%s3 + $0x1c] sm:$0xf]
  %v349 = vld [vmem:[%s3 + $0x20] sm:$0xf]
  %v350 = vld [vmem:[%s3 + $0x24] sm:$0xf]
  %v351 = vld [vmem:[%s3 + $0x28] sm:$0xf]
  %v352 = vld [vmem:[%s3 + $0x2c] sm:$0xf]
  %v353 = vld [vmem:[%s3 + $0x30] sm:$0x3]
  %v356 = vunpack.c.l.b16 %v339
  %v357 = vunpack.c.l.b16 %v340
  %v358 = vpack.c.b16 %v357, %v356
  %v372 = vunpack.c.l.b16 %v341
  %v373 = vunpack.c.l.b16 %v342
  %v374 = vunpack.c.l.b16 %v343
  %v375 = vunpack.c.l.b16 %v344
  %v376 = vunpack.c.l.b16 %v345
  %v377 = vunpack.c.l.b16 %v346
  %v378 = vunpack.c.l.b16 %v347
  %v379 = vunpack.c.l.b16 %v348
  %v380 = vunpack.c.l.b16 %v349
  %v381 = vunpack.c.l.b16 %v350
  %v382 = vunpack.c.l.b16 %v351
  %v383 = vunpack.c.l.b16 %v352
  %v384 = vunpack.c.l.b16 %v353
  %v385 = vpack.c.b16 %v373, %v372
  %v386 = vpack.c.b16 %v375, %v374
  %v387 = vpack.c.b16 %v377, %v376
  %v388 = vpack.c.b16 %v379, %v378
  %v389 = vpack.c.b16 %v381, %v380
  %v390 = vpack.c.b16 %v383, %v382
  %v391 = vpack.c.b16 %v384, %v384
  %vm398 = vcmask 818176
  %v400 = vsel %vm398, %v358, 0
  %v403 = vsel %vm260, %v391, 0
  %405 = vmatprep.subr.bf16.mxu0 0
  %406 = vmatpush1.bf16.msra.mxu0 %v385
  %407 = vmatprep.subr.bf16.mxu0 0
  %408 = vmatpush1.bf16.msra.mxu0 %v386
  %409 = vmatprep.subr.bf16.mxu0 0
  %410 = vmatpush1.bf16.msra.mxu0 %v387
  %411 = vmatprep.subr.bf16.mxu0 0
  %412 = vmatpush1.bf16.msra.mxu0 %v388
  %413 = vmatprep.subr.bf16.mxu0 0
  %414 = vmatpush1.bf16.msra.mxu0 %v389
  %415 = vmatprep.subr.bf16.mxu0 0
  %416 = vmatpush1.bf16.msra.mxu0 %v390
  %417 = vmatprep.subr.bf16.mxu0 0
  %418 = vmatpush1.bf16.msra.mxu0 %v403
  %419 = vmatprep.subr.bf16.mxu0 0
  %420 = vmatpush1.bf16.msra.mxu0 0
  %421 = vmatprep.subr.bf16.mxu0 0
  %422 = vmatpush1.bf16.msra.mxu0 0
  %423 = vmatprep.subr.bf16.mxu0 0
  %424 = vmatpush1.bf16.msra.mxu0 0
  %425 = vmatprep.subr.bf16.mxu0 0
  %426 = vmatpush1.bf16.msra.mxu0 0
  %427 = vmatprep.subr.bf16.mxu0 0
  %428 = vmatpush1.bf16.msra.mxu0 0
  %429 = vmatprep.subr.bf16.mxu0 0
  %430 = vmatpush1.bf16.msra.mxu0 0
  %431 = vmatprep.subr.bf16.mxu0 0
  %432 = vmatpush1.bf16.msra.mxu0 0
  %433 = vmatprep.subr.bf16.mxu0 0
  %434 = vmatpush1.bf16.msra.mxu0 0
  %435 = vmatprep.subr.bf16.mxu0 0
  %436 = vmatpush1.bf16.msra.mxu0 0
  %437 = vmatprep.mubr.bf16.mxu0 0
  %438 = vmatmul.mubr.bf16.gmra.mrb[0].mxu0 %v400
  %v439 = vpop.f32.mrb[0].mxu0
  %v440 = vadd.f32 0.0, %v439
  %v441 = vpop.f32.mrb[0].mxu0
  %v442 = vpop.f32.mrb[0].mxu0
  %v443 = vadd.f32 0.0, %v442
  %v444 = vpop.f32.mrb[0].mxu0
  %445 = vdwg.mxu0
  %446 = vadd.xlane.f32.xlu0 %v440
  %v447 = vpop.xlane.xlu0 %446
  %448 = vadd.xlane.f32.xlu0 %v443
  %v449 = vpop.xlane.xlu0 %448
  %v450 = vmul.f32 %v447, %v195
  %v451 = vmul.f32 %v449, %v195
  %v452 = vsub.f32 %v440, %v450
  %v453 = vsub.f32 %v443, %v451
  %v454 = vmul.f32 %v452, %v452
  %v455 = vmul.f32 %v453, %v453
  %456 = vadd.xlane.f32.xlu0 %v454
  %v457 = vpop.xlane.xlu0 %456
  %458 = vadd.xlane.f32.xlu0 %v455
  %v459 = vpop.xlane.xlu0 %458
  %v460 = vmul.f32 %v457, %v195
  %v461 = vmul.f32 %v459, %v195
  %v462 = vadd.f32 %v460, 1e-05
  %v463 = vadd.f32 %v461, 1e-05
  %v464 = vrsqrt.pop %v462
  %v465 = vrsqrt.pop %v463
  %v466 = vmul.f32 %v452, %v464
  %v467 = vmul.f32 %v453, %v465
  %v468 = vmax.f32 %v466, 0.0
  %v469 = vmax.f32 %v467, 0.0
  %v470 = vpack.c.bf16 %v469, %v468
  %v472 = vunpack.c.l.b16 %v470
  %v473 = vunpack.c.h.b16 %v470
  %v474 = vpack.c.b16 %v472, %v472
  %v475 = vpack.c.b16 %v473, %v473
  %478 = vst [vmem:[%s17] sm:$0xf] %v474
  %479 = vst [vmem:[%s17 + $0x4] sm:$0xf] %v475
  %v480 = vld [vmem:[%s8] sm:$0xf]
  %v481 = vld [vmem:[%s8 + $0x4] sm:$0xf]
  %v482 = vld [vmem:[%s4] sm:$0xf]
  %v483 = vld [vmem:[%s4 + $0x4] sm:$0xf]
  %v484 = vld [vmem:[%s4 + $0x8] sm:$0xf]
  %v485 = vld [vmem:[%s4 + $0xc] sm:$0xf]
  %v486 = vld [vmem:[%s4 + $0x10] sm:$0x3]
  %v489 = vunpack.c.l.b16 %v480
  %v490 = vunpack.c.l.b16 %v481
  %v491 = vpack.c.b16 %v490, %v489
  %v497 = vunpack.c.l.b16 %v482
  %v498 = vunpack.c.l.b16 %v483
  %v499 = vunpack.c.l.b16 %v484
  %v500 = vunpack.c.l.b16 %v485
  %v501 = vunpack.c.l.b16 %v486
  %v502 = vpack.c.b16 %v498, %v497
  %v503 = vpack.c.b16 %v500, %v499
  %v504 = vpack.c.b16 %v501, %v501
  %v508 = vsel %vm256, %v491, 0
  %v511 = vsel %vm260, %v504, 0
  %513 = vmatprep.subr.bf16.mxu0 0
  %514 = vmatpush1.bf16.msra.mxu0 %v502
  %515 = vmatprep.subr.bf16.mxu0 0
  %516 = vmatpush1.bf16.msra.mxu0 %v503
  %517 = vmatprep.subr.bf16.mxu0 0
  %518 = vmatpush1.bf16.msra.mxu0 %v511
  %519 = vmatprep.subr.bf16.mxu0 0
  %520 = vmatpush1.bf16.msra.mxu0 0
  %521 = vmatprep.subr.bf16.mxu0 0
  %522 = vmatpush1.bf16.msra.mxu0 0
  %523 = vmatprep.subr.bf16.mxu0 0
  %524 = vmatpush1.bf16.msra.mxu0 0
  %525 = vmatprep.subr.bf16.mxu0 0
  %526 = vmatpush1.bf16.msra.mxu0 0
  %527 = vmatprep.subr.bf16.mxu0 0
  %528 = vmatpush1.bf16.msra.mxu0 0
  %529 = vmatprep.subr.bf16.mxu0 0
  %530 = vmatpush1.bf16.msra.mxu0 0
  %531 = vmatprep.subr.bf16.mxu0 0
  %532 = vmatpush1.bf16.msra.mxu0 0
  %533 = vmatprep.subr.bf16.mxu0 0
  %534 = vmatpush1.bf16.msra.mxu0 0
  %535 = vmatprep.subr.bf16.mxu0 0
  %536 = vmatpush1.bf16.msra.mxu0 0
  %537 = vmatprep.subr.bf16.mxu0 0
  %538 = vmatpush1.bf16.msra.mxu0 0
  %539 = vmatprep.subr.bf16.mxu0 0
  %540 = vmatpush1.bf16.msra.mxu0 0
  %541 = vmatprep.subr.bf16.mxu0 0
  %542 = vmatpush1.bf16.msra.mxu0 0
  %543 = vmatprep.subr.bf16.mxu0 0
  %544 = vmatpush1.bf16.msra.mxu0 0
  %545 = vmatprep.mubr.bf16.mxu0 0
  %546 = vmatmul.mubr.bf16.gmra.mrb[0].mxu0 %v508
  %v547 = vpop.f32.mrb[0].mxu0
  %v548 = vadd.f32 0.0, %v547
  %v549 = vpop.f32.mrb[0].mxu0
  %v550 = vpop.f32.mrb[0].mxu0
  %v551 = vadd.f32 0.0, %v550
  %v552 = vpop.f32.mrb[0].mxu0
  %553 = vdwg.mxu0
  %v554 = vld [vmem:[%s9] sm:$0xf]
  %v555 = vld [vmem:[%s9 + $0x4] sm:$0xf]
  %v556 = vld [vmem:[%s5] sm:$0xf]
  %v557 = vld [vmem:[%s5 + $0x4] sm:$0xf]
  %v558 = vld [vmem:[%s5 + $0x8] sm:$0xf]
  %v559 = vld [vmem:[%s5 + $0xc] sm:$0xf]
  %v560 = vld [vmem:[%s5 + $0x10] sm:$0xf]
  %v561 = vld [vmem:[%s5 + $0x14] sm:$0xf]
  %v562 = vld [vmem:[%s5 + $0x18] sm:$0xf]
  %v563 = vld [vmem:[%s5 + $0x1c] sm:$0xf]
  %v564 = vld [vmem:[%s5 + $0x20] sm:$0xf]
  %v565 = vld [vmem:[%s5 + $0x24] sm:$0xf]
  %v566 = vld [vmem:[%s5 + $0x28] sm:$0xf]
  %v567 = vld [vmem:[%s5 + $0x2c] sm:$0xf]
  %v568 = vld [vmem:[%s5 + $0x30] sm:$0x3]
  %v571 = vunpack.c.l.b16 %v554
  %v572 = vunpack.c.l.b16 %v555
  %v573 = vpack.c.b16 %v572, %v571
  %v587 = vunpack.c.l.b16 %v556
  %v588 = vunpack.c.l.b16 %v557
  %v589 = vunpack.c.l.b16 %v558
  %v590 = vunpack.c.l.b16 %v559
  %v591 = vunpack.c.l.b16 %v560
  %v592 = vunpack.c.l.b16 %v561
  %v593 = vunpack.c.l.b16 %v562
  %v594 = vunpack.c.l.b16 %v563
  %v595 = vunpack.c.l.b16 %v564
  %v596 = vunpack.c.l.b16 %v565
  %v597 = vunpack.c.l.b16 %v566
  %v598 = vunpack.c.l.b16 %v567
  %v599 = vunpack.c.l.b16 %v568
  %v600 = vpack.c.b16 %v588, %v587
  %v601 = vpack.c.b16 %v590, %v589
  %v602 = vpack.c.b16 %v592, %v591
  %v603 = vpack.c.b16 %v594, %v593
  %v604 = vpack.c.b16 %v596, %v595
  %v605 = vpack.c.b16 %v598, %v597
  %v606 = vpack.c.b16 %v599, %v599
  %v614 = vsel %vm398, %v573, 0
  %v617 = vsel %vm260, %v606, 0
  %619 = vmatprep.subr.bf16.mxu0 0
  %620 = vmatpush1.bf16.msra.mxu0 %v600
  %621 = vmatprep.subr.bf16.mxu0 0
  %622 = vmatpush1.bf16.msra.mxu0 %v601
  %623 = vmatprep.subr.bf16.mxu0 0
  %624 = vmatpush1.bf16.msra.mxu0 %v602
  %625 = vmatprep.subr.bf16.mxu0 0
  %626 = vmatpush1.bf16.msra.mxu0 %v603
  %627 = vmatprep.subr.bf16.mxu0 0
  %628 = vmatpush1.bf16.msra.mxu0 %v604
  %629 = vmatprep.subr.bf16.mxu0 0
  %630 = vmatpush1.bf16.msra.mxu0 %v605
  %631 = vmatprep.subr.bf16.mxu0 0
  %632 = vmatpush1.bf16.msra.mxu0 %v617
  %633 = vmatprep.subr.bf16.mxu0 0
  %634 = vmatpush1.bf16.msra.mxu0 0
  %635 = vmatprep.subr.bf16.mxu0 0
  %636 = vmatpush1.bf16.msra.mxu0 0
  %637 = vmatprep.subr.bf16.mxu0 0
  %638 = vmatpush1.bf16.msra.mxu0 0
  %639 = vmatprep.subr.bf16.mxu0 0
  %640 = vmatpush1.bf16.msra.mxu0 0
  %641 = vmatprep.subr.bf16.mxu0 0
  %642 = vmatpush1.bf16.msra.mxu0 0
  %643 = vmatprep.subr.bf16.mxu0 0
  %644 = vmatpush1.bf16.msra.mxu0 0
  %645 = vmatprep.subr.bf16.mxu0 0
  %646 = vmatpush1.bf16.msra.mxu0 0
  %647 = vmatprep.subr.bf16.mxu0 0
  %648 = vmatpush1.bf16.msra.mxu0 0
  %649 = vmatprep.subr.bf16.mxu0 0
  %650 = vmatpush1.bf16.msra.mxu0 0
  %651 = vmatprep.mubr.bf16.mxu0 0
  %652 = vmatmul.mubr.bf16.gmra.mrb[0].mxu0 %v614
  %v653 = vpop.f32.mrb[0].mxu0
  %v654 = vadd.f32 0.0, %v653
  %v655 = vpop.f32.mrb[0].mxu0
  %v656 = vpop.f32.mrb[0].mxu0
  %v657 = vadd.f32 0.0, %v656
  %v658 = vpop.f32.mrb[0].mxu0
  %659 = vdwg.mxu0
  %660 = vadd.xlane.f32.xlu0 %v548
  %v661 = vpop.xlane.xlu0 %660
  %662 = vadd.xlane.f32.xlu0 %v551
  %v663 = vpop.xlane.xlu0 %662
  %v664 = vmul.f32 %v661, %v195
  %v665 = vmul.f32 %v663, %v195
  %v666 = vsub.f32 %v548, %v664
  %v667 = vsub.f32 %v551, %v665
  %v668 = vmul.f32 %v666, %v666
  %v669 = vmul.f32 %v667, %v667
  %670 = vadd.xlane.f32.xlu0 %v668
  %v671 = vpop.xlane.xlu0 %670
  %672 = vadd.xlane.f32.xlu0 %v669
  %v673 = vpop.xlane.xlu0 %672
  %v674 = vmul.f32 %v671, %v195
  %v675 = vmul.f32 %v673, %v195
  %v676 = vadd.f32 %v674, 1e-05
  %v677 = vadd.f32 %v675, 1e-05
  %v678 = vrsqrt.pop %v676
  %v679 = vrsqrt.pop %v677
  %v680 = vmul.f32 %v666, %v678
  %v681 = vmul.f32 %v667, %v679
  %683 = vset.pattern.permute.xlu0 6
  %684 = vperm.xlu0 %683, %v50
  %v685 = vpop.permute.xlu0 %684
  %688 = vset.pattern.permute.xlu0 6
  %689 = vperm.xlu0 %688, %v51
  %v690 = vpop.permute.xlu0 %689
  %v692 = vmul.f32 %v685, %v680
  %v693 = vmul.f32 %v690, %v681
  %694 = vadd.xlane.f32.xlu0 %v654
  %v695 = vpop.xlane.xlu0 %694
  %696 = vadd.xlane.f32.xlu0 %v657
  %v697 = vpop.xlane.xlu0 %696
  %v698 = vmul.f32 %v695, %v195
  %v699 = vmul.f32 %v697, %v195
  %v700 = vsub.f32 %v654, %v698
  %v701 = vsub.f32 %v657, %v699
  %v702 = vmul.f32 %v700, %v700
  %v703 = vmul.f32 %v701, %v701
  %704 = vadd.xlane.f32.xlu0 %v702
  %v705 = vpop.xlane.xlu0 %704
  %706 = vadd.xlane.f32.xlu0 %v703
  %v707 = vpop.xlane.xlu0 %706
  %v708 = vmul.f32 %v705, %v195
  %v709 = vmul.f32 %v707, %v195
  %v710 = vadd.f32 %v708, 1e-05
  %v711 = vadd.f32 %v709, 1e-05
  %v712 = vrsqrt.pop %v710
  %v713 = vrsqrt.pop %v711
  %v714 = vmul.f32 %v700, %v712
  %v715 = vmul.f32 %v701, %v713
  %716 = vset.pattern.permute.xlu0 7
  %717 = vperm.xlu0 %716, %v50
  %v718 = vpop.permute.xlu0 %717
  %720 = vset.pattern.permute.xlu0 7
  %721 = vperm.xlu0 %720, %v51
  %v722 = vpop.permute.xlu0 %721
  %v724 = vmul.f32 %v718, %v714
  %v725 = vmul.f32 %v722, %v715
  %v726 = vadd.f32 %v692, %v724
  %v727 = vadd.f32 %v693, %v725
  %v728 = vld [vmem:[%s111] sm:$0xf]
  %v729 = vmax.f32 %v728, 0.0
  %v730 = vpack.c.bf16 %v729, %v729
  %v731 = vld [vmem:[%s175] sm:$0xf]
  %v732 = vmax.f32 %v731, 0.0
  %v733 = vpack.c.bf16 %v732, %v732
  %v734 = vld [vmem:[%s10] sm:$0xf]
  %v735 = vld [vmem:[%s10 + $0x4] sm:$0xf]
  %v736 = vld [vmem:[%s11] sm:$0xf]
  %v737 = vld [vmem:[%s11 + $0x4] sm:$0xf]
  %v740 = vunpack.c.l.b16 %v736
  %v741 = vunpack.c.l.b16 %v737
  %v742 = vpack.c.b16 %v741, %v740
  %vm743 = vcmask 31744
  %v745 = vsel %vm743, %v742, 0
  %v748 = vsel %vm260, %v733, 0
  %750 = vmatprep.subr.bf16.mxu0 0
  %751 = vmatpush1.bf16.msra.mxu0 %v748
  %752 = vmatprep.subr.bf16.mxu0 0
  %753 = vmatpush1.bf16.msra.mxu0 0
  %754 = vmatprep.subr.bf16.mxu0 0
  %755 = vmatpush1.bf16.msra.mxu0 0
  %756 = vmatprep.subr.bf16.mxu0 0
  %757 = vmatpush1.bf16.msra.mxu0 0
  %758 = vmatprep.subr.bf16.mxu0 0
  %759 = vmatpush1.bf16.msra.mxu0 0
  %760 = vmatprep.subr.bf16.mxu0 0
  %761 = vmatpush1.bf16.msra.mxu0 0
  %762 = vmatprep.subr.bf16.mxu0 0
  %763 = vmatpush1.bf16.msra.mxu0 0
  %764 = vmatprep.subr.bf16.mxu0 0
  %765 = vmatpush1.bf16.msra.mxu0 0
  %766 = vmatprep.subr.bf16.mxu0 0
  %767 = vmatpush1.bf16.msra.mxu0 0
  %768 = vmatprep.subr.bf16.mxu0 0
  %769 = vmatpush1.bf16.msra.mxu0 0
  %770 = vmatprep.subr.bf16.mxu0 0
  %771 = vmatpush1.bf16.msra.mxu0 0
  %772 = vmatprep.subr.bf16.mxu0 0
  %773 = vmatpush1.bf16.msra.mxu0 0
  %774 = vmatprep.subr.bf16.mxu0 0
  %775 = vmatpush1.bf16.msra.mxu0 0
  %776 = vmatprep.subr.bf16.mxu0 0
  %777 = vmatpush1.bf16.msra.mxu0 0
  %778 = vmatprep.subr.bf16.mxu0 0
  %779 = vmatpush1.bf16.msra.mxu0 0
  %780 = vmatprep.subr.bf16.mxu0 0
  %781 = vmatpush1.bf16.msra.mxu0 0
  %782 = vmatprep.mubr.bf16.mxu0 0
  %783 = vmatmul.mubr.bf16.gmra.mrb[0].mxu0 %v745
  %v784 = vpop.f32.mrb[0].mxu0
  %v785 = vadd.f32 0.0, %v784
  %v786 = vpop.f32.mrb[0].mxu0
  %v787 = vpop.f32.mrb[0].mxu0
  %v788 = vadd.f32 0.0, %v787
  %v789 = vpop.f32.mrb[0].mxu0
  %790 = vdwg.mxu0
  %v793 = vunpack.c.l.b16 %v734
  %v794 = vunpack.c.l.b16 %v735
  %v795 = vpack.c.b16 %v794, %v793
  %v797 = vsel %vm743, %v795, 0
  %v800 = vsel %vm260, %v730, 0
  %802 = vmatprep.subr.bf16.mxu0 0
  %803 = vmatpush1.bf16.msra.mxu0 %v800
  %804 = vmatprep.subr.bf16.mxu0 0
  %805 = vmatpush1.bf16.msra.mxu0 0
  %806 = vmatprep.subr.bf16.mxu0 0
  %807 = vmatpush1.bf16.msra.mxu0 0
  %808 = vmatprep.subr.bf16.mxu0 0
  %809 = vmatpush1.bf16.msra.mxu0 0
  %810 = vmatprep.subr.bf16.mxu0 0
  %811 = vmatpush1.bf16.msra.mxu0 0
  %812 = vmatprep.subr.bf16.mxu0 0
  %813 = vmatpush1.bf16.msra.mxu0 0
  %814 = vmatprep.subr.bf16.mxu0 0
  %815 = vmatpush1.bf16.msra.mxu0 0
  %816 = vmatprep.subr.bf16.mxu0 0
  %817 = vmatpush1.bf16.msra.mxu0 0
  %818 = vmatprep.subr.bf16.mxu0 0
  %819 = vmatpush1.bf16.msra.mxu0 0
  %820 = vmatprep.subr.bf16.mxu0 0
  %821 = vmatpush1.bf16.msra.mxu0 0
  %822 = vmatprep.subr.bf16.mxu0 0
  %823 = vmatpush1.bf16.msra.mxu0 0
  %824 = vmatprep.subr.bf16.mxu0 0
  %825 = vmatpush1.bf16.msra.mxu0 0
  %826 = vmatprep.subr.bf16.mxu0 0
  %827 = vmatpush1.bf16.msra.mxu0 0
  %828 = vmatprep.subr.bf16.mxu0 0
  %829 = vmatpush1.bf16.msra.mxu0 0
  %830 = vmatprep.subr.bf16.mxu0 0
  %831 = vmatpush1.bf16.msra.mxu0 0
  %832 = vmatprep.subr.bf16.mxu0 0
  %833 = vmatpush1.bf16.msra.mxu0 0
  %834 = vmatprep.mubr.bf16.mxu0 0
  %835 = vmatmul.mubr.bf16.gmra.mrb[0].mxu0 %v797
  %v836 = vpop.f32.mrb[0].mxu0
  %v837 = vadd.f32 %v785, %v836
  %v838 = vpop.f32.mrb[0].mxu0
  %v839 = vpop.f32.mrb[0].mxu0
  %v840 = vadd.f32 %v788, %v839
  %v841 = vpop.f32.mrb[0].mxu0
  %842 = vdwg.mxu0
  %843 = vadd.xlane.f32.xlu0 %v837
  %v844 = vpop.xlane.xlu0 %843
  %845 = vadd.xlane.f32.xlu0 %v840
  %v846 = vpop.xlane.xlu0 %845
  %v847 = vmul.f32 %v844, %v195
  %v848 = vmul.f32 %v846, %v195
  %v849 = vsub.f32 %v837, %v847
  %v850 = vsub.f32 %v840, %v848
  %v851 = vmul.f32 %v849, %v849
  %v852 = vmul.f32 %v850, %v850
  %853 = vadd.xlane.f32.xlu0 %v851
  %v854 = vpop.xlane.xlu0 %853
  %855 = vadd.xlane.f32.xlu0 %v852
  %v856 = vpop.xlane.xlu0 %855
  %v857 = vmul.f32 %v854, %v195
  %v858 = vmul.f32 %v856, %v195
  %v859 = vadd.f32 %v857, 1e-05
  %v860 = vadd.f32 %v858, 1e-05
  %v861 = vrsqrt.pop %v859
  %v862 = vrsqrt.pop %v860
  %v863 = vmul.f32 %v849, %v861
  %v864 = vmul.f32 %v850, %v862
  %865 = vset.pattern.permute.xlu0 3
  %866 = vperm.xlu0 %865, %v50
  %v867 = vpop.permute.xlu0 %866
  %869 = vset.pattern.permute.xlu0 3
  %870 = vperm.xlu0 %869, %v51
  %v871 = vpop.permute.xlu0 %870
  %v873 = vmul.f32 %v867, %v863
  %v874 = vmul.f32 %v871, %v864
  %v875 = vadd.f32 %v726, %v873
  %v876 = vadd.f32 %v727, %v874
  %877 = vst [vmem:[%s13] sm:$0xff] %v875
  %878 = vst [vmem:[%s13 + $0x8] sm:$0xff] %v876
  // Predicated region
  $region54: #{fwd.14} parent=0 // pred_check
    _
  $region55: #{fwd.14} parent=0 // pred_check_branch
    %880 = sbr.rel (0) target = $region57
  $region56: #{fwd.14} parent=0 // pred_region
    _
  $region57: #{fwd.14} parent=0 // pred_fallthru
    _
  // Predicated region
  $region58: #{fwd.14} parent=0 // pred_check
    _
  $region59: #{fwd.14} parent=0 // pred_check_branch
    %882 = sbr.rel (0) target = $region61
  $region60: #{fwd.14} parent=0 // pred_region
    _
  $region61: #{fwd.14} parent=0 // pred_fallthru
    _
  // Predicated region
  $region62: #{fwd.14} parent=0 // pred_check
    _
  $region63: #{fwd.14} parent=0 // pred_check_branch
    %884 = sbr.rel (0) target = $region65
  $region64: #{fwd.14} parent=0 // pred_region
    _
  $region65: #{fwd.14} parent=0 // pred_fallthru
    _
  // Predicated region
  $region66: #{fwd.14} parent=0 // pred_check
    _
  $region67: #{fwd.14} parent=0 // pred_check_branch
    %886 = sbr.rel (0) target = $region69
  $region68: #{fwd.14} parent=0 // pred_region
    _
  $region69: #{fwd.14} parent=0 // pred_fallthru
    _
  // Predicated region
  $region70: #{fwd.14} parent=0 // pred_check
    _
  $region71: #{fwd.14} parent=0 // pred_check_branch
    %888 = sbr.rel (0) target = $region73
  $region72: #{fwd.14} parent=0 // pred_region
    _
  $region73: #{fwd.14} parent=0 // pred_fallthru
    _
  // Predicated region
  $region74: #{fwd.14} parent=0 // pred_check
    _
  $region75: #{fwd.14} parent=0 // pred_check_branch
    %890 = sbr.rel (0) target = $region77
  $region76: #{fwd.14} parent=0 // pred_region
    _
  $region77: #{fwd.14} parent=0 // pred_fallthru
    _
  // Predicated region
  $region78: #{fwd.14} parent=0 // pred_check
    _
  $region79: #{fwd.14} parent=0 // pred_check_branch
    %892 = sbr.rel (0) target = $region81
  $region80: #{fwd.14} parent=0 // pred_region
    _
  $region81: #{fwd.14} parent=0 // pred_fallthru
    _
  // Predicated region
  $region82: #{fwd.14} parent=0 // pred_check
    _
  $region83: #{fwd.14} parent=0 // pred_check_branch
    %894 = sbr.rel (0) target = $region85
  $region84: #{fwd.14} parent=0 // pred_region
    _
  $region85: #{fwd.14} parent=0 // pred_fallthru
    _
  // Predicated region
  $region86: #{fwd.14} parent=0 // pred_check
    _
  $region87: #{fwd.14} parent=0 // pred_check_branch
    %896 = sbr.rel (0) target = $region89
  $region88: #{fwd.14} parent=0 // pred_region
    _
  $region89: #{fwd.14} parent=0 // pred_fallthru
    _
  // Predicated region
  $region90: #{fwd.14} parent=0 // pred_check
    _
  $region91: #{fwd.14} parent=0 // pred_check_branch
    %898 = sbr.rel (0) target = $region93
  $region92: #{fwd.14} parent=0 // pred_region
    _
  $region93: #{fwd.14} parent=0 // pred_fallthru
    _

// kernel: fwd.15
$region0: #{fwd.15}
  #allocation0 [shape = 'u32[]', space=smem, size = 0x4, offset = 0x4, fixed_abs, tag = 'smem constant byte address 0x4 - core index']
  #allocation1 [shape = 'u32[144,128]{1,0:T(1,128)}', space=vmem, size = 0x12000, scoped, tag = 'internal scratch']
  %s0 = inlined_call_operand.vmem [shape: f32[16,128], index: 0, kind: input, shape index: {}, may-alias: {0,6}]
  %s1 = inlined_call_operand.vmem [shape: bf16[144,128], index: 1, kind: input, shape index: {}]
  %s2 = inlined_call_operand.vmem [shape: bf16[400,128], index: 2, kind: input, shape index: {}]
  %s3 = inlined_call_operand.vmem [shape: bf16[16,144], index: 3, kind: input, shape index: {}]
  %s4 = inlined_call_operand.vmem [shape: bf16[16,400], index: 4, kind: input, shape index: {}]
  %s5 = inlined_call_operand.vmem [shape: f32[16,8], index: 5, kind: input, shape index: {}]
  %s6 = inlined_call_operand.vmem [shape: f32[16,128], index: 6, kind: output, shape index: {}, may-alias: {0,6}]
  %s7 = sld [smem:[#allocation0]]
  $region34: #{fwd.15} parent=0
    _
  %s9 = ssub.s32 1, %s7
  %s10 = scalar_select 0, %s9, %s7
  // Predicated region
  $region2: #{fwd.15} parent=0 // pred_check
    _
  $region3: #{fwd.15} parent=0 // pred_check_branch
    %12 = sbr.rel (0) target = $region5
  $region4: #{fwd.15} parent=0 // pred_region
    _
  $region5: #{fwd.15} parent=0 // pred_fallthru
    _
  // Predicated region
  $region6: #{fwd.15} parent=0 // pred_check
    _
  $region7: #{fwd.15} parent=0 // pred_check_branch
    %14 = sbr.rel (0) target = $region9
  $region8: #{fwd.15} parent=0 // pred_region
    _
  $region9: #{fwd.15} parent=0 // pred_fallthru
    _
  // Predicated region
  $region10: #{fwd.15} parent=0 // pred_check
    _
  $region11: #{fwd.15} parent=0 // pred_check_branch
    %16 = sbr.rel (0) target = $region13
  $region12: #{fwd.15} parent=0 // pred_region
    _
  $region13: #{fwd.15} parent=0 // pred_fallthru
    _
  // Predicated region
  $region14: #{fwd.15} parent=0 // pred_check
    _
  $region15: #{fwd.15} parent=0 // pred_check_branch
    %18 = sbr.rel (0) target = $region17
  $region16: #{fwd.15} parent=0 // pred_region
    _
  $region17: #{fwd.15} parent=0 // pred_fallthru
    _
  // Predicated region
  $region18: #{fwd.15} parent=0 // pred_check
    _
  $region19: #{fwd.15} parent=0 // pred_check_branch
    %20 = sbr.rel (0) target = $region21
  $region20: #{fwd.15} parent=0 // pred_region
    _
  $region21: #{fwd.15} parent=0 // pred_fallthru
    _
  // Predicated region
  $region22: #{fwd.15} parent=0 // pred_check
    _
  $region23: #{fwd.15} parent=0 // pred_check_branch
    %22 = sbr.rel (0) target = $region25
  $region24: #{fwd.15} parent=0 // pred_region
    _
  $region25: #{fwd.15} parent=0 // pred_fallthru
    _
  %v24 = vld [vmem:[%s5] sm:$0xff]
  %v25 = vld [vmem:[%s5 + $0x8] sm:$0xff]
  %v26 = vld [vmem:[%s3] sm:$0xff]
  %v27 = vld [vmem:[%s3 + $0x8] sm:$0xff]
  %v28 = vld [vmem:[%s1] sm:$0xf]
  %v29 = vld [vmem:[%s1 + $0x4] sm:$0xf]
  %v30 = vld [vmem:[%s1 + $0x8] sm:$0xf]
  %v31 = vld [vmem:[%s1 + $0xc] sm:$0xf]
  %v32 = vld [vmem:[%s1 + $0x10] sm:$0xf]
  %v33 = vld [vmem:[%s1 + $0x14] sm:$0xf]
  %v34 = vld [vmem:[%s1 + $0x18] sm:$0xf]
  %v35 = vld [vmem:[%s1 + $0x1c] sm:$0xf]
  %v36 = vld [vmem:[%s1 + $0x20] sm:$0xf]
  %v37 = vld [vmem:[%s1 + $0x24] sm:$0xf]
  %v38 = vld [vmem:[%s1 + $0x28] sm:$0xf]
  %v39 = vld [vmem:[%s1 + $0x2c] sm:$0xf]
  %v40 = vld [vmem:[%s1 + $0x30] sm:$0xf]
  %v41 = vld [vmem:[%s1 + $0x34] sm:$0xf]
  %v42 = vld [vmem:[%s1 + $0x38] sm:$0xf]
  %v43 = vld [vmem:[%s1 + $0x3c] sm:$0xf]
  %v44 = vld [vmem:[%s1 + $0x40] sm:$0xf]
  %v45 = vld [vmem:[%s1 + $0x44] sm:$0xf]
  %v48 = vunpack.c.l.b16 %v26
  %v49 = vunpack.c.h.b16 %v26
  %v50 = vunpack.c.l.b16 %v27
  %v51 = vunpack.c.h.b16 %v27
  %v52 = vpack.c.b16 %v50, %v48
  %v53 = vpack.c.b16 %v51, %v49
  %v73 = vunpack.c.l.b16 %v28
  %v74 = vunpack.c.l.b16 %v29
  %v75 = vunpack.c.l.b16 %v30
  %v76 = vunpack.c.l.b16 %v31
  %v77 = vunpack.c.l.b16 %v32
  %v78 = vunpack.c.l.b16 %v33
  %v79 = vunpack.c.l.b16 %v34
  %v80 = vunpack.c.l.b16 %v35
  %v81 = vunpack.c.l.b16 %v36
  %v82 = vunpack.c.l.b16 %v37
  %v83 = vunpack.c.l.b16 %v38
  %v84 = vunpack.c.l.b16 %v39
  %v85 = vunpack.c.l.b16 %v40
  %v86 = vunpack.c.l.b16 %v41
  %v87 = vunpack.c.l.b16 %v42
  %v88 = vunpack.c.l.b16 %v43
  %v89 = vunpack.c.l.b16 %v44
  %v90 = vunpack.c.l.b16 %v45
  %v91 = vpack.c.b16 %v74, %v73
  %v92 = vpack.c.b16 %v76, %v75
  %v93 = vpack.c.b16 %v78, %v77
  %v94 = vpack.c.b16 %v80, %v79
  %v95 = vpack.c.b16 %v82, %v81
  %v96 = vpack.c.b16 %v84, %v83
  %v97 = vpack.c.b16 %v86, %v85
  %v98 = vpack.c.b16 %v88, %v87
  %v99 = vpack.c.b16 %v90, %v89
  %vm109 = vcmask 130048
  %v111 = vsel %vm109, %v53, 0
  %113 = vmatprep.subr.bf16.mxu0 0
  %114 = vmatpush1.bf16.msra.mxu0 %v91
  %115 = vmatprep.subr.bf16.mxu0 0
  %116 = vmatpush1.bf16.msra.mxu0 %v92
  %117 = vmatprep.subr.bf16.mxu0 0
  %118 = vmatpush1.bf16.msra.mxu0 %v93
  %119 = vmatprep.subr.bf16.mxu0 0
  %120 = vmatpush1.bf16.msra.mxu0 %v94
  %121 = vmatprep.subr.bf16.mxu0 0
  %122 = vmatpush1.bf16.msra.mxu0 %v95
  %123 = vmatprep.subr.bf16.mxu0 0
  %124 = vmatpush1.bf16.msra.mxu0 %v96
  %125 = vmatprep.subr.bf16.mxu0 0
  %126 = vmatpush1.bf16.msra.mxu0 %v97
  %127 = vmatprep.subr.bf16.mxu0 0
  %128 = vmatpush1.bf16.msra.mxu0 %v98
  %129 = vmatprep.subr.bf16.mxu0 0
  %130 = vmatpush1.bf16.msra.mxu0 %v99
  %131 = vmatprep.subr.bf16.mxu0 0
  %132 = vmatpush1.bf16.msra.mxu0 0
  %133 = vmatprep.subr.bf16.mxu0 0
  %134 = vmatpush1.bf16.msra.mxu0 0
  %135 = vmatprep.subr.bf16.mxu0 0
  %136 = vmatpush1.bf16.msra.mxu0 0
  %137 = vmatprep.subr.bf16.mxu0 0
  %138 = vmatpush1.bf16.msra.mxu0 0
  %139 = vmatprep.subr.bf16.mxu0 0
  %140 = vmatpush1.bf16.msra.mxu0 0
  %141 = vmatprep.subr.bf16.mxu0 0
  %142 = vmatpush1.bf16.msra.mxu0 0
  %143 = vmatprep.subr.bf16.mxu0 0
  %144 = vmatpush1.bf16.msra.mxu0 0
  %145 = vmatprep.mubr.bf16.mxu0 %v111
  %146 = vmatmul.mubr.bf16.gmra.mrb[0].mxu0 %v52
  %v147 = vpop.f32.mrb[0].mxu0
  %v148 = vadd.f32 0.0, %v147
  %v149 = vpop.f32.mrb[0].mxu0
  %v150 = vpop.f32.mrb[0].mxu0
  %v151 = vadd.f32 0.0, %v150
  %v152 = vpop.f32.mrb[0].mxu0
  %153 = vdwg.mxu0
  %v154 = vld [vmem:[%s4] sm:$0xff]
  %v155 = vld [vmem:[%s4 + $0x8] sm:$0xff]
  %v156 = vld [vmem:[%s4 + $0x10] sm:$0xff]
  %v157 = vld [vmem:[%s4 + $0x18] sm:$0xff]
  %v158 = vld [vmem:[%s2] sm:$0xf]
  %v159 = vld [vmem:[%s2 + $0x4] sm:$0xf]
  %v160 = vld [vmem:[%s2 + $0x8] sm:$0xf]
  %v161 = vld [vmem:[%s2 + $0xc] sm:$0xf]
  %v162 = vld [vmem:[%s2 + $0x10] sm:$0xf]
  %v163 = vld [vmem:[%s2 + $0x14] sm:$0xf]
  %v164 = vld [vmem:[%s2 + $0x18] sm:$0xf]
  %v165 = vld [vmem:[%s2 + $0x1c] sm:$0xf]
  %v166 = vld [vmem:[%s2 + $0x20] sm:$0xf]
  %v167 = vld [vmem:[%s2 + $0x24] sm:$0xf]
  %v168 = vld [vmem:[%s2 + $0x28] sm:$0xf]
  %v169 = vld [vmem:[%s2 + $0x2c] sm:$0xf]
  %v170 = vld [vmem:[%s2 + $0x30] sm:$0xf]
  %v171 = vld [vmem:[%s2 + $0x34] sm:$0xf]
  %v172 = vld [vmem:[%s2 + $0x38] sm:$0xf]
  %v173 = vld [vmem:[%s2 + $0x3c] sm:$0xf]
  %v174 = vld [vmem:[%s2 + $0x40] sm:$0xf]
  %v175 = vld [vmem:[%s2 + $0x44] sm:$0xf]
  %v176 = vld [vmem:[%s2 + $0x48] sm:$0xf]
  %v177 = vld [vmem:[%s2 + $0x4c] sm:$0xf]
  %v178 = vld [vmem:[%s2 + $0x50] sm:$0xf]
  %v179 = vld [vmem:[%s2 + $0x54] sm:$0xf]
  %v180 = vld [vmem:[%s2 + $0x58] sm:$0xf]
  %v181 = vld [vmem:[%s2 + $0x5c] sm:$0xf]
  %v182 = vld [vmem:[%s2 + $0x60] sm:$0xf]
  %v183 = vld [vmem:[%s2 + $0x64] sm:$0xf]
  %v184 = vld [vmem:[%s2 + $0x68] sm:$0xf]
  %v185 = vld [vmem:[%s2 + $0x6c] sm:$0xf]
  %v186 = vld [vmem:[%s2 + $0x70] sm:$0xf]
  %v187 = vld [vmem:[%s2 + $0x74] sm:$0xf]
  %v188 = vld [vmem:[%s2 + $0x78] sm:$0xf]
  %v189 = vld [vmem:[%s2 + $0x7c] sm:$0xf]
  %v190 = vld [vmem:[%s2 + $0x80] sm:$0xf]
  %v191 = vld [vmem:[%s2 + $0x84] sm:$0xf]
  %v192 = vld [vmem:[%s2 + $0x88] sm:$0xf]
  %v193 = vld [vmem:[%s2 + $0x8c] sm:$0xf]
  %v194 = vld [vmem:[%s2 + $0x90] sm:$0xf]
  %v195 = vld [vmem:[%s2 + $0x94] sm:$0xf]
  %v196 = vld [vmem:[%s2 + $0x98] sm:$0xf]
  %v197 = vld [vmem:[%s2 + $0x9c] sm:$0xf]
  %v198 = vld [vmem:[%s2 + $0xa0] sm:$0xf]
  %v199 = vld [vmem:[%s2 + $0xa4] sm:$0xf]
  %v200 = vld [vmem:[%s2 + $0xa8] sm:$0xf]
  %v201 = vld [vmem:[%s2 + $0xac] sm:$0xf]
  %v202 = vld [vmem:[%s2 + $0xb0] sm:$0xf]
  %v203 = vld [vmem:[%s2 + $0xb4] sm:$0xf]
  %v204 = vld [vmem:[%s2 + $0xb8] sm:$0xf]
  %v205 = vld [vmem:[%s2 + $0xbc] sm:$0xf]
  %v206 = vld [vmem:[%s2 + $0xc0] sm:$0xf]
  %v207 = vld [vmem:[%s2 + $0xc4] sm:$0xf]
  %v212 = vunpack.c.l.b16 %v154
  %v213 = vunpack.c.h.b16 %v154
  %v214 = vunpack.c.l.b16 %v155
  %v215 = vunpack.c.h.b16 %v155
  %v216 = vunpack.c.l.b16 %v156
  %v217 = vunpack.c.h.b16 %v156
  %v218 = vunpack.c.l.b16 %v157
  %v219 = vunpack.c.h.b16 %v157
  %v220 = vpack.c.b16 %v216, %v212
  %v221 = vpack.c.b16 %v217, %v213
  %v222 = vpack.c.b16 %v218, %v214
  %v223 = vpack.c.b16 %v219, %v215
  %v277 = vunpack.c.l.b16 %v158
  %v278 = vunpack.c.l.b16 %v159
  %v279 = vunpack.c.l.b16 %v160
  %v280 = vunpack.c.l.b16 %v161
  %v281 = vunpack.c.l.b16 %v162
  %v282 = vunpack.c.l.b16 %v163
  %v283 = vunpack.c.l.b16 %v164
  %v284 = vunpack.c.l.b16 %v165
  %v285 = vunpack.c.l.b16 %v166
  %v286 = vunpack.c.l.b16 %v167
  %v287 = vunpack.c.l.b16 %v168
  %v288 = vunpack.c.l.b16 %v169
  %v289 = vunpack.c.l.b16 %v170
  %v290 = vunpack.c.l.b16 %v171
  %v291 = vunpack.c.l.b16 %v172
  %v292 = vunpack.c.l.b16 %v173
  %v293 = vunpack.c.l.b16 %v174
  %v294 = vunpack.c.l.b16 %v175
  %v295 = vunpack.c.l.b16 %v176
  %v296 = vunpack.c.l.b16 %v177
  %v297 = vunpack.c.l.b16 %v178
  %v298 = vunpack.c.l.b16 %v179
  %v299 = vunpack.c.l.b16 %v180
  %v300 = vunpack.c.l.b16 %v181
  %v301 = vunpack.c.l.b16 %v182
  %v302 = vunpack.c.l.b16 %v183
  %v303 = vunpack.c.l.b16 %v184
  %v304 = vunpack.c.l.b16 %v185
  %v305 = vunpack.c.l.b16 %v186
  %v306 = vunpack.c.l.b16 %v187
  %v307 = vunpack.c.l.b16 %v188
  %v308 = vunpack.c.l.b16 %v189
  %v309 = vunpack.c.l.b16 %v190
  %v310 = vunpack.c.l.b16 %v191
  %v311 = vunpack.c.l.b16 %v192
  %v312 = vunpack.c.l.b16 %v193
  %v313 = vunpack.c.l.b16 %v194
  %v314 = vunpack.c.l.b16 %v195
  %v315 = vunpack.c.l.b16 %v196
  %v316 = vunpack.c.l.b16 %v197
  %v317 = vunpack.c.l.b16 %v198
  %v318 = vunpack.c.l.b16 %v199
  %v319 = vunpack.c.l.b16 %v200
  %v320 = vunpack.c.l.b16 %v201
  %v321 = vunpack.c.l.b16 %v202
  %v322 = vunpack.c.l.b16 %v203
  %v323 = vunpack.c.l.b16 %v204
  %v324 = vunpack.c.l.b16 %v205
  %v325 = vunpack.c.l.b16 %v206
  %v326 = vunpack.c.l.b16 %v207
  %v327 = vpack.c.b16 %v278, %v277
  %v328 = vpack.c.b16 %v280, %v279
  %v329 = vpack.c.b16 %v282, %v281
  %v330 = vpack.c.b16 %v284, %v283
  %v331 = vpack.c.b16 %v286, %v285
  %v332 = vpack.c.b16 %v288, %v287
  %v333 = vpack.c.b16 %v290, %v289
  %v334 = vpack.c.b16 %v292, %v291
  %v335 = vpack.c.b16 %v294, %v293
  %v336 = vpack.c.b16 %v296, %v295
  %v337 = vpack.c.b16 %v298, %v297
  %v338 = vpack.c.b16 %v300, %v299
  %v339 = vpack.c.b16 %v302, %v301
  %v340 = vpack.c.b16 %v304, %v303
  %v341 = vpack.c.b16 %v306, %v305
  %v342 = vpack.c.b16 %v308, %v307
  %v343 = vpack.c.b16 %v310, %v309
  %v344 = vpack.c.b16 %v312, %v311
  %v345 = vpack.c.b16 %v314, %v313
  %v346 = vpack.c.b16 %v316, %v315
  %v347 = vpack.c.b16 %v318, %v317
  %v348 = vpack.c.b16 %v320, %v319
  %v349 = vpack.c.b16 %v322, %v321
  %v350 = vpack.c.b16 %v324, %v323
  %v351 = vpack.c.b16 %v326, %v325
  %v378 = vsel %vm109, %v223, 0
  %380 = vmatprep.subr.bf16.mxu0 0
  %381 = vmatpush1.bf16.msra.mxu0 %v327
  %382 = vmatprep.subr.bf16.mxu0 0
  %383 = vmatpush1.bf16.msra.mxu0 %v328
  %384 = vmatprep.subr.bf16.mxu0 0
  %385 = vmatpush1.bf16.msra.mxu0 %v329
  %386 = vmatprep.subr.bf16.mxu0 0
  %387 = vmatpush1.bf16.msra.mxu0 %v330
  %388 = vmatprep.subr.bf16.mxu0 0
  %389 = vmatpush1.bf16.msra.mxu0 %v331
  %390 = vmatprep.subr.bf16.mxu0 0
  %391 = vmatpush1.bf16.msra.mxu0 %v332
  %392 = vmatprep.subr.bf16.mxu0 0
  %393 = vmatpush1.bf16.msra.mxu0 %v333
  %394 = vmatprep.subr.bf16.mxu0 0
  %395 = vmatpush1.bf16.msra.mxu0 %v334
  %396 = vmatprep.subr.bf16.mxu0 0
  %397 = vmatpush1.bf16.msra.mxu0 %v335
  %398 = vmatprep.subr.bf16.mxu0 0
  %399 = vmatpush1.bf16.msra.mxu0 %v336
  %400 = vmatprep.subr.bf16.mxu0 0
  %401 = vmatpush1.bf16.msra.mxu0 %v337
  %402 = vmatprep.subr.bf16.mxu0 0
  %403 = vmatpush1.bf16.msra.mxu0 %v338
  %404 = vmatprep.subr.bf16.mxu0 0
  %405 = vmatpush1.bf16.msra.mxu0 %v339
  %406 = vmatprep.subr.bf16.mxu0 0
  %407 = vmatpush1.bf16.msra.mxu0 %v340
  %408 = vmatprep.subr.bf16.mxu0 0
  %409 = vmatpush1.bf16.msra.mxu0 %v341
  %410 = vmatprep.subr.bf16.mxu0 0
  %411 = vmatpush1.bf16.msra.mxu0 %v342
  %412 = vmatprep.mubr.bf16.mxu0 %v221
  %413 = vmatmul.mubr.bf16.gmra.mrb[0].mxu0 %v220
  %v414 = vpop.f32.mrb[0].mxu0
  %v415 = vadd.f32 0.0, %v414
  %v416 = vpop.f32.mrb[0].mxu0
  %v417 = vpop.f32.mrb[0].mxu0
  %v418 = vadd.f32 0.0, %v417
  %v419 = vpop.f32.mrb[0].mxu0
  %420 = vdwg.mxu0
  %421 = vmatprep.subr.bf16.mxu0 0
  %422 = vmatpush1.bf16.msra.mxu0 %v343
  %423 = vmatprep.subr.bf16.mxu0 0
  %424 = vmatpush1.bf16.msra.mxu0 %v344
  %425 = vmatprep.subr.bf16.mxu0 0
  %426 = vmatpush1.bf16.msra.mxu0 %v345
  %427 = vmatprep.subr.bf16.mxu0 0
  %428 = vmatpush1.bf16.msra.mxu0 %v346
  %429 = vmatprep.subr.bf16.mxu0 0
  %430 = vmatpush1.bf16.msra.mxu0 %v347
  %431 = vmatprep.subr.bf16.mxu0 0
  %432 = vmatpush1.bf16.msra.mxu0 %v348
  %433 = vmatprep.subr.bf16.mxu0 0
  %434 = vmatpush1.bf16.msra.mxu0 %v349
  %435 = vmatprep.subr.bf16.mxu0 0
  %436 = vmatpush1.bf16.msra.mxu0 %v350
  %437 = vmatprep.subr.bf16.mxu0 0
  %438 = vmatpush1.bf16.msra.mxu0 %v351
  %439 = vmatprep.subr.bf16.mxu0 0
  %440 = vmatpush1.bf16.msra.mxu0 0
  %441 = vmatprep.subr.bf16.mxu0 0
  %442 = vmatpush1.bf16.msra.mxu0 0
  %443 = vmatprep.subr.bf16.mxu0 0
  %444 = vmatpush1.bf16.msra.mxu0 0
  %445 = vmatprep.subr.bf16.mxu0 0
  %446 = vmatpush1.bf16.msra.mxu0 0
  %447 = vmatprep.subr.bf16.mxu0 0
  %448 = vmatpush1.bf16.msra.mxu0 0
  %449 = vmatprep.subr.bf16.mxu0 0
  %450 = vmatpush1.bf16.msra.mxu0 0
  %451 = vmatprep.subr.bf16.mxu0 0
  %452 = vmatpush1.bf16.msra.mxu0 0
  %453 = vmatprep.mubr.bf16.mxu0 %v378
  %454 = vmatmul.mubr.bf16.gmra.mrb[0].mxu0 %v222
  %v455 = vpop.f32.mrb[0].mxu0
  %v456 = vadd.f32 %v415, %v455
  %v457 = vpop.f32.mrb[0].mxu0
  %v458 = vpop.f32.mrb[0].mxu0
  %v459 = vadd.f32 %v418, %v458
  %v460 = vpop.f32.mrb[0].mxu0
  %461 = vdwg.mxu0
  %v462 = vld [vmem:[%s0] sm:$0xff]
  %v463 = vld [vmem:[%s0 + $0x8] sm:$0xff]
  %464 = vadd.xlane.f32.xlu0 %v148
  %v465 = vpop.xlane.xlu0 %464
  %466 = vadd.xlane.f32.xlu0 %v151
  %v467 = vpop.xlane.xlu0 %466
  %v468 = vrcp.pop 128.0
  %v469 = vmul.f32 %v465, %v468
  %v470 = vmul.f32 %v467, %v468
  %v471 = vsub.f32 %v148, %v469
  %v472 = vsub.f32 %v151, %v470
  %v473 = vmul.f32 %v471, %v471
  %v474 = vmul.f32 %v472, %v472
  %475 = vadd.xlane.f32.xlu0 %v473
  %v476 = vpop.xlane.xlu0 %475
  %477 = vadd.xlane.f32.xlu0 %v474
  %v478 = vpop.xlane.xlu0 %477
  %v479 = vmul.f32 %v476, %v468
  %v480 = vmul.f32 %v478, %v468
  %v481 = vadd.f32 %v479, 1e-05
  %v482 = vadd.f32 %v480, 1e-05
  %v483 = vrsqrt.pop %v481
  %v484 = vrsqrt.pop %v482
  %v485 = vmul.f32 %v471, %v483
  %v486 = vmul.f32 %v472, %v484
  %488 = vset.pattern.permute.xlu0 4
  %489 = vperm.xlu0 %488, %v24
  %v490 = vpop.permute.xlu0 %489
  %493 = vset.pattern.permute.xlu0 4
  %494 = vperm.xlu0 %493, %v25
  %v495 = vpop.permute.xlu0 %494
  %v497 = vmul.f32 %v490, %v485
  %v498 = vmul.f32 %v495, %v486
  %v499 = vadd.f32 %v462, %v497
  %v500 = vadd.f32 %v463, %v498
  %501 = vadd.xlane.f32.xlu0 %v456
  %v502 = vpop.xlane.xlu0 %501
  %503 = vadd.xlane.f32.xlu0 %v459
  %v504 = vpop.xlane.xlu0 %503
  %v505 = vmul.f32 %v502, %v468
  %v506 = vmul.f32 %v504, %v468
  %v507 = vsub.f32 %v456, %v505
  %v508 = vsub.f32 %v459, %v506
  %v509 = vmul.f32 %v507, %v507
  %v510 = vmul.f32 %v508, %v508
  %511 = vadd.xlane.f32.xlu0 %v509
  %v512 = vpop.xlane.xlu0 %511
  %513 = vadd.xlane.f32.xlu0 %v510
  %v514 = vpop.xlane.xlu0 %513
  %v515 = vmul.f32 %v512, %v468
  %v516 = vmul.f32 %v514, %v468
  %v517 = vadd.f32 %v515, 1e-05
  %v518 = vadd.f32 %v516, 1e-05
  %v519 = vrsqrt.pop %v517
  %v520 = vrsqrt.pop %v518
  %v521 = vmul.f32 %v507, %v519
  %v522 = vmul.f32 %v508, %v520
  %523 = vset.pattern.permute.xlu0 5
  %524 = vperm.xlu0 %523, %v24
  %v525 = vpop.permute.xlu0 %524
  %527 = vset.pattern.permute.xlu0 5
  %528 = vperm.xlu0 %527, %v25
  %v529 = vpop.permute.xlu0 %528
  %v531 = vmul.f32 %v525, %v521
  %v532 = vmul.f32 %v529, %v522
  %v533 = vadd.f32 %v499, %v531
  %v534 = vadd.f32 %v500, %v532
  %535 = vst [vmem:[%s6] sm:$0xff] %v533
  %536 = vst [vmem:[%s6 + $0x8] sm:$0xff] %v534
  // Predicated region
  $region26: #{fwd.15} parent=0 // pred_check
    _
  $region27: #{fwd.15} parent=0 // pred_check_branch
    %538 = sbr.rel (0) target = $region29
  $region28: #{fwd.15} parent=0 // pred_region
    _
  $region29: #{fwd.15} parent=0 // pred_fallthru
    _
  // Predicated region
  $region30: #{fwd.15} parent=0 // pred_check
    _
  $region31: #{fwd.15} parent=0 // pred_check_branch
    %540 = sbr.rel (0) target = $region33
  $region32: #{fwd.15} parent=0 // pred_region
    _
  $region33: #{fwd.15} parent=0 // pred_fallthru
    _

// kernel: fwd.18
$region0: #{fwd.18}
  #allocation0 [shape = 'u32[]', space=smem, size = 0x4, offset = 0x4, fixed_abs, tag = 'smem constant byte address 0x4 - core index']
  #allocation1 [shape = 'u32[144,128]{1,0:T(1,128)}', space=vmem, size = 0x12000, scoped, tag = 'internal scratch']
  %s0 = inlined_call_operand.vmem [shape: f32[9,4,128], index: 0, kind: input, shape index: {}]
  %s1 = inlined_call_operand.vmem [shape: f32[9,1,128], index: 1, kind: input, shape index: {}]
  %s2 = inlined_call_operand.vmem [shape: bf16[36,128], index: 2, kind: input, shape index: {}]
  %s3 = inlined_call_operand.vmem [shape: bf16[100,128], index: 3, kind: input, shape index: {}]
  %s4 = inlined_call_operand.vmem [shape: bf16[36,128], index: 4, kind: input, shape index: {}]
  %s5 = inlined_call_operand.vmem [shape: bf16[100,128], index: 5, kind: input, shape index: {}]
  %s6 = inlined_call_operand.vmem [shape: bf16[12,36], index: 6, kind: input, shape index: {}]
  %s7 = inlined_call_operand.vmem [shape: bf16[12,100], index: 7, kind: input, shape index: {}]
  %s8 = inlined_call_operand.vmem [shape: bf16[12,36], index: 8, kind: input, shape index: {}]
  %s9 = inlined_call_operand.vmem [shape: bf16[12,100], index: 9, kind: input, shape index: {}]
  %s10 = inlined_call_operand.vmem [shape: bf16[12,4], index: 10, kind: input, shape index: {}, may-alias: {10,11}]
  %s11 = inlined_call_operand.vmem [shape: bf16[12,4], index: 11, kind: input, shape index: {}, may-alias: {10,11}]
  %s12 = inlined_call_operand.vmem [shape: f32[12,8], index: 12, kind: input, shape index: {}]
  %s13 = inlined_call_operand.vmem [shape: f32[12,128], index: 13, kind: output, shape index: {0}]
  %s14 = inlined_call_operand.vmem [shape: f32[4,128], index: 14, kind: output, shape index: {1}]
  %s15 = inlined_call_operand.vmem [shape: f32[4,128], index: 15, kind: output, shape index: {2}]
  %s16 = inlined_call_operand.vmem [shape: bf16[12,128], index: 16, kind: output, shape index: {3}]
  %s17 = inlined_call_operand.vmem [shape: bf16[12,128], index: 17, kind: output, shape index: {4}]
  %18 = xla_tuple %s13, %s14, %s15, %s16, %s17
  %s19 = sld [smem:[#allocation0]]
  $region94: #{fwd.18} parent=0
    _
  %s21 = ssub.s32 1, %s19
  %s22 = scalar_select 0, %s21, %s19
  // Predicated region
  $region2: #{fwd.18} parent=0 // pred_check
    _
  $region3: #{fwd.18} parent=0 // pred_check_branch
    %24 = sbr.rel (0) target = $region5
  $region4: #{fwd.18} parent=0 // pred_region
    _
  $region5: #{fwd.18} parent=0 // pred_fallthru
    _
  // Predicated region
  $region6: #{fwd.18} parent=0 // pred_check
    _
  $region7: #{fwd.18} parent=0 // pred_check_branch
    %26 = sbr.rel (0) target = $region9
  $region8: #{fwd.18} parent=0 // pred_region
    _
  $region9: #{fwd.18} parent=0 // pred_fallthru
    _
  // Predicated region
  $region10: #{fwd.18} parent=0 // pred_check
    _
  $region11: #{fwd.18} parent=0 // pred_check_branch
    %28 = sbr.rel (0) target = $region13
  $region12: #{fwd.18} parent=0 // pred_region
    _
  $region13: #{fwd.18} parent=0 // pred_fallthru
    _
  // Predicated region
  $region14: #{fwd.18} parent=0 // pred_check
    _
  $region15: #{fwd.18} parent=0 // pred_check_branch
    %30 = sbr.rel (0) target = $region17
  $region16: #{fwd.18} parent=0 // pred_region
    _
  $region17: #{fwd.18} parent=0 // pred_fallthru
    _
  // Predicated region
  $region18: #{fwd.18} parent=0 // pred_check
    _
  $region19: #{fwd.18} parent=0 // pred_check_branch
    %32 = sbr.rel (0) target = $region21
  $region20: #{fwd.18} parent=0 // pred_region
    _
  $region21: #{fwd.18} parent=0 // pred_fallthru
    _
  // Predicated region
  $region22: #{fwd.18} parent=0 // pred_check
    _
  $region23: #{fwd.18} parent=0 // pred_check_branch
    %34 = sbr.rel (0) target = $region25
  $region24: #{fwd.18} parent=0 // pred_region
    _
  $region25: #{fwd.18} parent=0 // pred_fallthru
    _
  // Predicated region
  $region26: #{fwd.18} parent=0 // pred_check
    _
  $region27: #{fwd.18} parent=0 // pred_check_branch
    %36 = sbr.rel (0) target = $region29
  $region28: #{fwd.18} parent=0 // pred_region
    _
  $region29: #{fwd.18} parent=0 // pred_fallthru
    _
  // Predicated region
  $region30: #{fwd.18} parent=0 // pred_check
    _
  $region31: #{fwd.18} parent=0 // pred_check_branch
    %38 = sbr.rel (0) target = $region33
  $region32: #{fwd.18} parent=0 // pred_region
    _
  $region33: #{fwd.18} parent=0 // pred_fallthru
    _
  // Predicated region
  $region34: #{fwd.18} parent=0 // pred_check
    _
  $region35: #{fwd.18} parent=0 // pred_check_branch
    %40 = sbr.rel (0) target = $region37
  $region36: #{fwd.18} parent=0 // pred_region
    _
  $region37: #{fwd.18} parent=0 // pred_fallthru
    _
  // Predicated region
  $region38: #{fwd.18} parent=0 // pred_check
    _
  $region39: #{fwd.18} parent=0 // pred_check_branch
    %42 = sbr.rel (0) target = $region41
  $region40: #{fwd.18} parent=0 // pred_region
    _
  $region41: #{fwd.18} parent=0 // pred_fallthru
    _
  // Predicated region
  $region42: #{fwd.18} parent=0 // pred_check
    _
  $region43: #{fwd.18} parent=0 // pred_check_branch
    %44 = sbr.rel (0) target = $region45
  $region44: #{fwd.18} parent=0 // pred_region
    _
  $region45: #{fwd.18} parent=0 // pred_fallthru
    _
  // Predicated region
  $region46: #{fwd.18} parent=0 // pred_check
    _
  $region47: #{fwd.18} parent=0 // pred_check_branch
    %46 = sbr.rel (0) target = $region49
  $region48: #{fwd.18} parent=0 // pred_region
    _
  $region49: #{fwd.18} parent=0 // pred_fallthru
    _
  // Predicated region
  $region50: #{fwd.18} parent=0 // pred_check
    _
  $region51: #{fwd.18} parent=0 // pred_check_branch
    %48 = sbr.rel (0) target = $region53
  $region52: #{fwd.18} parent=0 // pred_region
    _
  $region53: #{fwd.18} parent=0 // pred_fallthru
    _
  %v50 = vld [vmem:[%s12] sm:$0xff]
  %v51 = vld [vmem:[%s12 + $0x8] sm:$0xf]
  %v52 = vld [vmem:[%s0] sm:$0xf]
  %v53 = vld [vmem:[%s1] sm:$0x1]
  %v54 = vsub.f32 %v53, 1.0
  %v55 = vmul.f32 %v54, 1e+30
  %v57 = vlaneseq
  %v58 = vshrl.u32 %v57, 7
  %v59 = vsub.s32 0, %v58
  %v60 = vrot.slane %v55, %v59
  %v62 = vadd.f32 %v52, %v60
  %s63 = scalar_lea.vmem %s0, 4
  %v64 = vld [vmem:[%s63] sm:$0xf]
  %s65 = scalar_lea.vmem %s1, 1
  %v66 = vld [vmem:[%s65] sm:$0x1]
  %v67 = vsub.f32 %v66, 1.0
  %v68 = vmul.f32 %v67, 1e+30
  %v70 = vlaneseq
  %v71 = vshrl.u32 %v70, 7
  %v72 = vsub.s32 0, %v71
  %v73 = vrot.slane %v68, %v72
  %v75 = vadd.f32 %v64, %v73
  %v76 = vmax.f32 %v62, %v75
  %v77 = vadd.f32 %v52, %v64
  %v78 = vadd.f32 %v53, %v66
  %s79 = scalar_lea.vmem %s0, 8
  %v80 = vld [vmem:[%s79] sm:$0xf]
  %s81 = scalar_lea.vmem %s1, 2
  %v82 = vld [vmem:[%s81] sm:$0x1]
  %v83 = vsub.f32 %v82, 1.0
  %v84 = vmul.f32 %v83, 1e+30
  %v86 = vlaneseq
  %v87 = vshrl.u32 %v86, 7
  %v88 = vsub.s32 0, %v87
  %v89 = vrot.slane %v84, %v88
  %v91 = vadd.f32 %v80, %v89
  %v92 = vmax.f32 %v76, %v91
  %v93 = vadd.f32 %v77, %v80
  %v94 = vadd.f32 %v78, %v82
  %s95 = scalar_lea.vmem %s0, 12
  %v96 = vld [vmem:[%s95] sm:$0xf]
  %s97 = scalar_lea.vmem %s1, 3
  %v98 = vld [vmem:[%s97] sm:$0x1]
  %v99 = vsub.f32 %v98, 1.0
  %v100 = vmul.f32 %v99, 1e+30
  %v102 = vlaneseq
  %v103 = vshrl.u32 %v102, 7
  %v104 = vsub.s32 0, %v103
  %v105 = vrot.slane %v100, %v104
  %v107 = vadd.f32 %v96, %v105
  %v108 = vmax.f32 %v92, %v107
  %v109 = vadd.f32 %v93, %v96
  %v110 = vadd.f32 %v94, %v98
  %s111 = scalar_lea.vmem %s0, 16
  %v112 = vld [vmem:[%s111] sm:$0xf]
  %s113 = scalar_lea.vmem %s1, 4
  %v114 = vld [vmem:[%s113] sm:$0x1]
  %v115 = vsub.f32 %v114, 1.0
  %v116 = vmul.f32 %v115, 1e+30
  %v118 = vlaneseq
  %v119 = vshrl.u32 %v118, 7
  %v120 = vsub.s32 0, %v119
  %v121 = vrot.slane %v116, %v120
  %v123 = vadd.f32 %v112, %v121
  %v124 = vmax.f32 %v108, %v123
  %v125 = vadd.f32 %v109, %v112
  %v126 = vadd.f32 %v110, %v114
  %s127 = scalar_lea.vmem %s0, 20
  %v128 = vld [vmem:[%s127] sm:$0xf]
  %s129 = scalar_lea.vmem %s1, 5
  %v130 = vld [vmem:[%s129] sm:$0x1]
  %v131 = vsub.f32 %v130, 1.0
  %v132 = vmul.f32 %v131, 1e+30
  %v134 = vlaneseq
  %v135 = vshrl.u32 %v134, 7
  %v136 = vsub.s32 0, %v135
  %v137 = vrot.slane %v132, %v136
  %v139 = vadd.f32 %v128, %v137
  %v140 = vmax.f32 %v124, %v139
  %v141 = vadd.f32 %v125, %v128
  %v142 = vadd.f32 %v126, %v130
  %s143 = scalar_lea.vmem %s0, 24
  %v144 = vld [vmem:[%s143] sm:$0xf]
  %s145 = scalar_lea.vmem %s1, 6
  %v146 = vld [vmem:[%s145] sm:$0x1]
  %v147 = vsub.f32 %v146, 1.0
  %v148 = vmul.f32 %v147, 1e+30
  %v150 = vlaneseq
  %v151 = vshrl.u32 %v150, 7
  %v152 = vsub.s32 0, %v151
  %v153 = vrot.slane %v148, %v152
  %v155 = vadd.f32 %v144, %v153
  %v156 = vmax.f32 %v140, %v155
  %v157 = vadd.f32 %v141, %v144
  %v158 = vadd.f32 %v142, %v146
  %s159 = scalar_lea.vmem %s0, 28
  %v160 = vld [vmem:[%s159] sm:$0xf]
  %s161 = scalar_lea.vmem %s1, 7
  %v162 = vld [vmem:[%s161] sm:$0x1]
  %v163 = vsub.f32 %v162, 1.0
  %v164 = vmul.f32 %v163, 1e+30
  %v166 = vlaneseq
  %v167 = vshrl.u32 %v166, 7
  %v168 = vsub.s32 0, %v167
  %v169 = vrot.slane %v164, %v168
  %v171 = vadd.f32 %v160, %v169
  %v172 = vmax.f32 %v156, %v171
  %v173 = vadd.f32 %v157, %v160
  %v174 = vadd.f32 %v158, %v162
  %s175 = scalar_lea.vmem %s0, 32
  %v176 = vld [vmem:[%s175] sm:$0xf]
  %s177 = scalar_lea.vmem %s1, 8
  %v178 = vld [vmem:[%s177] sm:$0x1]
  %v179 = vsub.f32 %v178, 1.0
  %v180 = vmul.f32 %v179, 1e+30
  %v182 = vlaneseq
  %v183 = vshrl.u32 %v182, 7
  %v184 = vsub.s32 0, %v183
  %v185 = vrot.slane %v180, %v184
  %v187 = vadd.f32 %v176, %v185
  %v188 = vmax.f32 %v172, %v187
  %v189 = vadd.f32 %v173, %v176
  %v190 = vadd.f32 %v174, %v178
  %vm191 = vcmask 1043456
  %v192 = vsel %vm191, %v188, 0.0
  %193 = vadd.xlane.f32.xlu0 %v192
  %v194 = vpop.xlane.xlu0 %193
  %v195 = vrcp.pop 128.0
  %v196 = vmul.f32 %v194, %v195
  %v197 = vsub.f32 %v188, %v196
  %v198 = vmul.f32 %v197, %v197
  %v199 = vsel %vm191, %v198, 0.0
  %200 = vadd.xlane.f32.xlu0 %v199
  %v201 = vpop.xlane.xlu0 %200
  %v202 = vmul.f32 %v201, %v195
  %v203 = vadd.f32 %v202, 1e-05
  %v204 = vrsqrt.pop %v203
  %v205 = vmul.f32 %v197, %v204
  %206 = vst [vmem:[%s14] sm:$0xf] %v205
  %v208 = vlaneseq
  %v209 = vshrl.u32 %v208, 7
  %v210 = vsub.s32 0, %v209
  %v211 = vrot.slane %v190, %v210
  %v213 = vrcp.pop %v211
  %v214 = vmul.f32 %v189, %v213
  %v215 = vsel %vm191, %v214, 0.0
  %216 = vadd.xlane.f32.xlu0 %v215
  %v217 = vpop.xlane.xlu0 %216
  %v218 = vmul.f32 %v217, %v195
  %v219 = vsub.f32 %v214, %v218
  %v220 = vmul.f32 %v219, %v219
  %v221 = vsel %vm191, %v220, 0.0
  %222 = vadd.xlane.f32.xlu0 %v221
  %v223 = vpop.xlane.xlu0 %222
  %v224 = vmul.f32 %v223, %v195
  %v225 = vadd.f32 %v224, 1e-05
  %v226 = vrsqrt.pop %v225
  %v227 = vmul.f32 %v219, %v226
  %228 = vst [vmem:[%s15] sm:$0xf] %v227
  %v229 = vld [vmem:[%s6] sm:$0xf]
  %v230 = vld [vmem:[%s6 + $0x4] sm:$0x3]
  %v231 = vld [vmem:[%s2] sm:$0xf]
  %v232 = vld [vmem:[%s2 + $0x4] sm:$0xf]
  %v233 = vld [vmem:[%s2 + $0x8] sm:$0xf]
  %v234 = vld [vmem:[%s2 + $0xc] sm:$0xf]
  %v235 = vld [vmem:[%s2 + $0x10] sm:$0x3]
  %v238 = vunpack.c.l.b16 %v229
  %v239 = vunpack.c.l.b16 %v230
  %v240 = vpack.c.b16 %v239, %v238
  %v246 = vunpack.c.l.b16 %v231
  %v247 = vunpack.c.l.b16 %v232
  %v248 = vunpack.c.l.b16 %v233
  %v249 = vunpack.c.l.b16 %v234
  %v250 = vunpack.c.l.b16 %v235
  %v251 = vpack.c.b16 %v247, %v246
  %v252 = vpack.c.b16 %v249, %v248
  %v253 = vpack.c.b16 %v250, %v250
  %vm256 = vcmask 293888
  %v258 = vsel %vm256, %v240, 0
  %vm260 = vcmask 1041408
  %v262 = vsel %vm260, %v253, 0
  %264 = vmatprep.subr.bf16.mxu0 0
  %265 = vmatpush1.bf16.msra.mxu0 %v251
  %266 = vmatprep.subr.bf16.mxu0 0
  %267 = vmatpush1.bf16.msra.mxu0 %v252
  %268 = vmatprep.subr.bf16.mxu0 0
  %269 = vmatpush1.bf16.msra.mxu0 %v262
  %270 = vmatprep.subr.bf16.mxu0 0
  %271 = vmatpush1.bf16.msra.mxu0 0
  %272 = vmatprep.subr.bf16.mxu0 0
  %273 = vmatpush1.bf16.msra.mxu0 0
  %274 = vmatprep.subr.bf16.mxu0 0
  %275 = vmatpush1.bf16.msra.mxu0 0
  %276 = vmatprep.subr.bf16.mxu0 0
  %277 = vmatpush1.bf16.msra.mxu0 0
  %278 = vmatprep.subr.bf16.mxu0 0
  %279 = vmatpush1.bf16.msra.mxu0 0
  %280 = vmatprep.subr.bf16.mxu0 0
  %281 = vmatpush1.bf16.msra.mxu0 0
  %282 = vmatprep.subr.bf16.mxu0 0
  %283 = vmatpush1.bf16.msra.mxu0 0
  %284 = vmatprep.subr.bf16.mxu0 0
  %285 = vmatpush1.bf16.msra.mxu0 0
  %286 = vmatprep.subr.bf16.mxu0 0
  %287 = vmatpush1.bf16.msra.mxu0 0
  %288 = vmatprep.subr.bf16.mxu0 0
  %289 = vmatpush1.bf16.msra.mxu0 0
  %290 = vmatprep.subr.bf16.mxu0 0
  %291 = vmatpush1.bf16.msra.mxu0 0
  %292 = vmatprep.subr.bf16.mxu0 0
  %293 = vmatpush1.bf16.msra.mxu0 0
  %294 = vmatprep.subr.bf16.mxu0 0
  %295 = vmatpush1.bf16.msra.mxu0 0
  %296 = vmatprep.mubr.bf16.mxu0 0
  %297 = vmatmul.mubr.bf16.gmra.mrb[0].mxu0 %v258
  %v298 = vpop.f32.mrb[0].mxu0
  %v299 = vadd.f32 0.0, %v298
  %v300 = vpop.f32.mrb[0].mxu0
  %v301 = vpop.f32.mrb[0].mxu0
  %v302 = vadd.f32 0.0, %v301
  %v303 = vpop.f32.mrb[0].mxu0
  %304 = vdwg.mxu0
  %305 = vadd.xlane.f32.xlu0 %v299
  %v306 = vpop.xlane.xlu0 %305
  %v307 = vsel %vm191, %v302, 0.0
  %308 = vadd.xlane.f32.xlu0 %v307
  %v309 = vpop.xlane.xlu0 %308
  %v310 = vmul.f32 %v306, %v195
  %v311 = vmul.f32 %v309, %v195
  %v312 = vsub.f32 %v299, %v310
  %v313 = vsub.f32 %v302, %v311
  %v314 = vmul.f32 %v312, %v312
  %v315 = vmul.f32 %v313, %v313
  %316 = vadd.xlane.f32.xlu0 %v314
  %v317 = vpop.xlane.xlu0 %316
  %v318 = vsel %vm191, %v315, 0.0
  %319 = vadd.xlane.f32.xlu0 %v318
  %v320 = vpop.xlane.xlu0 %319
  %v321 = vmul.f32 %v317, %v195
  %v322 = vmul.f32 %v320, %v195
  %v323 = vadd.f32 %v321, 1e-05
  %v324 = vadd.f32 %v322, 1e-05
  %v325 = vrsqrt.pop %v323
  %v326 = vrsqrt.pop %v324
  %v327 = vmul.f32 %v312, %v325
  %v328 = vmul.f32 %v313, %v326
  %v329 = vmax.f32 %v327, 0.0
  %v330 = vmax.f32 %v328, 0.0
  %v331 = vpack.c.bf16 %v330, %v329
  %v333 = vunpack.c.l.b16 %v331
  %v334 = vunpack.c.h.b16 %v331
  %v335 = vpack.c.b16 %v333, %v333
  %v336 = vpack.c.b16 %v334, %v334
  %339 = vst [vmem:[%s16] sm:$0xf] %v335
  %340 = vst [vmem:[%s16 + $0x4] sm:$0x3] %v336
  %v341 = vld [vmem:[%s7] sm:$0xf]
  %v342 = vld [vmem:[%s7 + $0x4] sm:$0x3]
  %v343 = vld [vmem:[%s3] sm:$0xf]
  %v344 = vld [vmem:[%s3 + $0x4] sm:$0xf]
  %v345 = vld [vmem:[%s3 + $0x8] sm:$0xf]
  %v346 = vld [vmem:[%s3 + $0xc] sm:$0xf]
  %v347 = vld [vmem:[%s3 + $0x10] sm:$0xf]
  %v348 = vld [vmem:[%s3 + $0x14] sm:$0xf]
  %v349 = vld [vmem:[%s3 + $0x18] sm:$0xf]
  %v350 = vld [vmem:[%s3 + $0x1c] sm:$0xf]
  %v351 = vld [vmem:[%s3 + $0x20] sm:$0xf]
  %v352 = vld [vmem:[%s3 + $0x24] sm:$0xf]
  %v353 = vld [vmem:[%s3 + $0x28] sm:$0xf]
  %v354 = vld [vmem:[%s3 + $0x2c] sm:$0xf]
  %v355 = vld [vmem:[%s3 + $0x30] sm:$0x3]
  %v358 = vunpack.c.l.b16 %v341
  %v359 = vunpack.c.l.b16 %v342
  %v360 = vpack.c.b16 %v359, %v358
  %v374 = vunpack.c.l.b16 %v343
  %v375 = vunpack.c.l.b16 %v344
  %v376 = vunpack.c.l.b16 %v345
  %v377 = vunpack.c.l.b16 %v346
  %v378 = vunpack.c.l.b16 %v347
  %v379 = vunpack.c.l.b16 %v348
  %v380 = vunpack.c.l.b16 %v349
  %v381 = vunpack.c.l.b16 %v350
  %v382 = vunpack.c.l.b16 %v351
  %v383 = vunpack.c.l.b16 %v352
  %v384 = vunpack.c.l.b16 %v353
  %v385 = vunpack.c.l.b16 %v354
  %v386 = vunpack.c.l.b16 %v355
  %v387 = vpack.c.b16 %v375, %v374
  %v388 = vpack.c.b16 %v377, %v376
  %v389 = vpack.c.b16 %v379, %v378
  %v390 = vpack.c.b16 %v381, %v380
  %v391 = vpack.c.b16 %v383, %v382
  %v392 = vpack.c.b16 %v385, %v384
  %v393 = vpack.c.b16 %v386, %v386
  %vm400 = vcmask 818176
  %v402 = vsel %vm400, %v360, 0
  %v405 = vsel %vm260, %v393, 0
  %407 = vmatprep.subr.bf16.mxu0 0
  %408 = vmatpush1.bf16.msra.mxu0 %v387
  %409 = vmatprep.subr.bf16.mxu0 0
  %410 = vmatpush1.bf16.msra.mxu0 %v388
  %411 = vmatprep.subr.bf16.mxu0 0
  %412 = vmatpush1.bf16.msra.mxu0 %v389
  %413 = vmatprep.subr.bf16.mxu0 0
  %414 = vmatpush1.bf16.msra.mxu0 %v390
  %415 = vmatprep.subr.bf16.mxu0 0
  %416 = vmatpush1.bf16.msra.mxu0 %v391
  %417 = vmatprep.subr.bf16.mxu0 0
  %418 = vmatpush1.bf16.msra.mxu0 %v392
  %419 = vmatprep.subr.bf16.mxu0 0
  %420 = vmatpush1.bf16.msra.mxu0 %v405
  %421 = vmatprep.subr.bf16.mxu0 0
  %422 = vmatpush1.bf16.msra.mxu0 0
  %423 = vmatprep.subr.bf16.mxu0 0
  %424 = vmatpush1.bf16.msra.mxu0 0
  %425 = vmatprep.subr.bf16.mxu0 0
  %426 = vmatpush1.bf16.msra.mxu0 0
  %427 = vmatprep.subr.bf16.mxu0 0
  %428 = vmatpush1.bf16.msra.mxu0 0
  %429 = vmatprep.subr.bf16.mxu0 0
  %430 = vmatpush1.bf16.msra.mxu0 0
  %431 = vmatprep.subr.bf16.mxu0 0
  %432 = vmatpush1.bf16.msra.mxu0 0
  %433 = vmatprep.subr.bf16.mxu0 0
  %434 = vmatpush1.bf16.msra.mxu0 0
  %435 = vmatprep.subr.bf16.mxu0 0
  %436 = vmatpush1.bf16.msra.mxu0 0
  %437 = vmatprep.subr.bf16.mxu0 0
  %438 = vmatpush1.bf16.msra.mxu0 0
  %439 = vmatprep.mubr.bf16.mxu0 0
  %440 = vmatmul.mubr.bf16.gmra.mrb[0].mxu0 %v402
  %v441 = vpop.f32.mrb[0].mxu0
  %v442 = vadd.f32 0.0, %v441
  %v443 = vpop.f32.mrb[0].mxu0
  %v444 = vpop.f32.mrb[0].mxu0
  %v445 = vadd.f32 0.0, %v444
  %v446 = vpop.f32.mrb[0].mxu0
  %447 = vdwg.mxu0
  %448 = vadd.xlane.f32.xlu0 %v442
  %v449 = vpop.xlane.xlu0 %448
  %v450 = vsel %vm191, %v445, 0.0
  %451 = vadd.xlane.f32.xlu0 %v450
  %v452 = vpop.xlane.xlu0 %451
  %v453 = vmul.f32 %v449, %v195
  %v454 = vmul.f32 %v452, %v195
  %v455 = vsub.f32 %v442, %v453
  %v456 = vsub.f32 %v445, %v454
  %v457 = vmul.f32 %v455, %v455
  %v458 = vmul.f32 %v456, %v456
  %459 = vadd.xlane.f32.xlu0 %v457
  %v460 = vpop.xlane.xlu0 %459
  %v461 = vsel %vm191, %v458, 0.0
  %462 = vadd.xlane.f32.xlu0 %v461
  %v463 = vpop.xlane.xlu0 %462
  %v464 = vmul.f32 %v460, %v195
  %v465 = vmul.f32 %v463, %v195
  %v466 = vadd.f32 %v464, 1e-05
  %v467 = vadd.f32 %v465, 1e-05
  %v468 = vrsqrt.pop %v466
  %v469 = vrsqrt.pop %v467
  %v470 = vmul.f32 %v455, %v468
  %v471 = vmul.f32 %v456, %v469
  %v472 = vmax.f32 %v470, 0.0
  %v473 = vmax.f32 %v471, 0.0
  %v474 = vpack.c.bf16 %v473, %v472
  %v476 = vunpack.c.l.b16 %v474
  %v477 = vunpack.c.h.b16 %v474
  %v478 = vpack.c.b16 %v476, %v476
  %v479 = vpack.c.b16 %v477, %v477
  %482 = vst [vmem:[%s17] sm:$0xf] %v478
  %483 = vst [vmem:[%s17 + $0x4] sm:$0x3] %v479
  %v484 = vld [vmem:[%s8] sm:$0xf]
  %v485 = vld [vmem:[%s8 + $0x4] sm:$0x3]
  %v486 = vld [vmem:[%s4] sm:$0xf]
  %v487 = vld [vmem:[%s4 + $0x4] sm:$0xf]
  %v488 = vld [vmem:[%s4 + $0x8] sm:$0xf]
  %v489 = vld [vmem:[%s4 + $0xc] sm:$0xf]
  %v490 = vld [vmem:[%s4 + $0x10] sm:$0x3]
  %v493 = vunpack.c.l.b16 %v484
  %v494 = vunpack.c.l.b16 %v485
  %v495 = vpack.c.b16 %v494, %v493
  %v501 = vunpack.c.l.b16 %v486
  %v502 = vunpack.c.l.b16 %v487
  %v503 = vunpack.c.l.b16 %v488
  %v504 = vunpack.c.l.b16 %v489
  %v505 = vunpack.c.l.b16 %v490
  %v506 = vpack.c.b16 %v502, %v501
  %v507 = vpack.c.b16 %v504, %v503
  %v508 = vpack.c.b16 %v505, %v505
  %v512 = vsel %vm256, %v495, 0
  %v515 = vsel %vm260, %v508, 0
  %517 = vmatprep.subr.bf16.mxu0 0
  %518 = vmatpush1.bf16.msra.mxu0 %v506
  %519 = vmatprep.subr.bf16.mxu0 0
  %520 = vmatpush1.bf16.msra.mxu0 %v507
  %521 = vmatprep.subr.bf16.mxu0 0
  %522 = vmatpush1.bf16.msra.mxu0 %v515
  %523 = vmatprep.subr.bf16.mxu0 0
  %524 = vmatpush1.bf16.msra.mxu0 0
  %525 = vmatprep.subr.bf16.mxu0 0
  %526 = vmatpush1.bf16.msra.mxu0 0
  %527 = vmatprep.subr.bf16.mxu0 0
  %528 = vmatpush1.bf16.msra.mxu0 0
  %529 = vmatprep.subr.bf16.mxu0 0
  %530 = vmatpush1.bf16.msra.mxu0 0
  %531 = vmatprep.subr.bf16.mxu0 0
  %532 = vmatpush1.bf16.msra.mxu0 0
  %533 = vmatprep.subr.bf16.mxu0 0
  %534 = vmatpush1.bf16.msra.mxu0 0
  %535 = vmatprep.subr.bf16.mxu0 0
  %536 = vmatpush1.bf16.msra.mxu0 0
  %537 = vmatprep.subr.bf16.mxu0 0
  %538 = vmatpush1.bf16.msra.mxu0 0
  %539 = vmatprep.subr.bf16.mxu0 0
  %540 = vmatpush1.bf16.msra.mxu0 0
  %541 = vmatprep.subr.bf16.mxu0 0
  %542 = vmatpush1.bf16.msra.mxu0 0
  %543 = vmatprep.subr.bf16.mxu0 0
  %544 = vmatpush1.bf16.msra.mxu0 0
  %545 = vmatprep.subr.bf16.mxu0 0
  %546 = vmatpush1.bf16.msra.mxu0 0
  %547 = vmatprep.subr.bf16.mxu0 0
  %548 = vmatpush1.bf16.msra.mxu0 0
  %549 = vmatprep.mubr.bf16.mxu0 0
  %550 = vmatmul.mubr.bf16.gmra.mrb[0].mxu0 %v512
  %v551 = vpop.f32.mrb[0].mxu0
  %v552 = vadd.f32 0.0, %v551
  %v553 = vpop.f32.mrb[0].mxu0
  %v554 = vpop.f32.mrb[0].mxu0
  %v555 = vadd.f32 0.0, %v554
  %v556 = vpop.f32.mrb[0].mxu0
  %557 = vdwg.mxu0
  %v558 = vld [vmem:[%s9] sm:$0xf]
  %v559 = vld [vmem:[%s9 + $0x4] sm:$0x3]
  %v560 = vld [vmem:[%s5] sm:$0xf]
  %v561 = vld [vmem:[%s5 + $0x4] sm:$0xf]
  %v562 = vld [vmem:[%s5 + $0x8] sm:$0xf]
  %v563 = vld [vmem:[%s5 + $0xc] sm:$0xf]
  %v564 = vld [vmem:[%s5 + $0x10] sm:$0xf]
  %v565 = vld [vmem:[%s5 + $0x14] sm:$0xf]
  %v566 = vld [vmem:[%s5 + $0x18] sm:$0xf]
  %v567 = vld [vmem:[%s5 + $0x1c] sm:$0xf]
  %v568 = vld [vmem:[%s5 + $0x20] sm:$0xf]
  %v569 = vld [vmem:[%s5 + $0x24] sm:$0xf]
  %v570 = vld [vmem:[%s5 + $0x28] sm:$0xf]
  %v571 = vld [vmem:[%s5 + $0x2c] sm:$0xf]
  %v572 = vld [vmem:[%s5 + $0x30] sm:$0x3]
  %v575 = vunpack.c.l.b16 %v558
  %v576 = vunpack.c.l.b16 %v559
  %v577 = vpack.c.b16 %v576, %v575
  %v591 = vunpack.c.l.b16 %v560
  %v592 = vunpack.c.l.b16 %v561
  %v593 = vunpack.c.l.b16 %v562
  %v594 = vunpack.c.l.b16 %v563
  %v595 = vunpack.c.l.b16 %v564
  %v596 = vunpack.c.l.b16 %v565
  %v597 = vunpack.c.l.b16 %v566
  %v598 = vunpack.c.l.b16 %v567
  %v599 = vunpack.c.l.b16 %v568
  %v600 = vunpack.c.l.b16 %v569
  %v601 = vunpack.c.l.b16 %v570
  %v602 = vunpack.c.l.b16 %v571
  %v603 = vunpack.c.l.b16 %v572
  %v604 = vpack.c.b16 %v592, %v591
  %v605 = vpack.c.b16 %v594, %v593
  %v606 = vpack.c.b16 %v596, %v595
  %v607 = vpack.c.b16 %v598, %v597
  %v608 = vpack.c.b16 %v600, %v599
  %v609 = vpack.c.b16 %v602, %v601
  %v610 = vpack.c.b16 %v603, %v603
  %v618 = vsel %vm400, %v577, 0
  %v621 = vsel %vm260, %v610, 0
  %623 = vmatprep.subr.bf16.mxu0 0
  %624 = vmatpush1.bf16.msra.mxu0 %v604
  %625 = vmatprep.subr.bf16.mxu0 0
  %626 = vmatpush1.bf16.msra.mxu0 %v605
  %627 = vmatprep.subr.bf16.mxu0 0
  %628 = vmatpush1.bf16.msra.mxu0 %v606
  %629 = vmatprep.subr.bf16.mxu0 0
  %630 = vmatpush1.bf16.msra.mxu0 %v607
  %631 = vmatprep.subr.bf16.mxu0 0
  %632 = vmatpush1.bf16.msra.mxu0 %v608
  %633 = vmatprep.subr.bf16.mxu0 0
  %634 = vmatpush1.bf16.msra.mxu0 %v609
  %635 = vmatprep.subr.bf16.mxu0 0
  %636 = vmatpush1.bf16.msra.mxu0 %v621
  %637 = vmatprep.subr.bf16.mxu0 0
  %638 = vmatpush1.bf16.msra.mxu0 0
  %639 = vmatprep.subr.bf16.mxu0 0
  %640 = vmatpush1.bf16.msra.mxu0 0
  %641 = vmatprep.subr.bf16.mxu0 0
  %642 = vmatpush1.bf16.msra.mxu0 0
  %643 = vmatprep.subr.bf16.mxu0 0
  %644 = vmatpush1.bf16.msra.mxu0 0
  %645 = vmatprep.subr.bf16.mxu0 0
  %646 = vmatpush1.bf16.msra.mxu0 0
  %647 = vmatprep.subr.bf16.mxu0 0
  %648 = vmatpush1.bf16.msra.mxu0 0
  %649 = vmatprep.subr.bf16.mxu0 0
  %650 = vmatpush1.bf16.msra.mxu0 0
  %651 = vmatprep.subr.bf16.mxu0 0
  %652 = vmatpush1.bf16.msra.mxu0 0
  %653 = vmatprep.subr.bf16.mxu0 0
  %654 = vmatpush1.bf16.msra.mxu0 0
  %655 = vmatprep.mubr.bf16.mxu0 0
  %656 = vmatmul.mubr.bf16.gmra.mrb[0].mxu0 %v618
  %v657 = vpop.f32.mrb[0].mxu0
  %v658 = vadd.f32 0.0, %v657
  %v659 = vpop.f32.mrb[0].mxu0
  %v660 = vpop.f32.mrb[0].mxu0
  %v661 = vadd.f32 0.0, %v660
  %v662 = vpop.f32.mrb[0].mxu0
  %663 = vdwg.mxu0
  %664 = vadd.xlane.f32.xlu0 %v552
  %v665 = vpop.xlane.xlu0 %664
  %v666 = vsel %vm191, %v555, 0.0
  %667 = vadd.xlane.f32.xlu0 %v666
  %v668 = vpop.xlane.xlu0 %667
  %v669 = vmul.f32 %v665, %v195
  %v670 = vmul.f32 %v668, %v195
  %v671 = vsub.f32 %v552, %v669
  %v672 = vsub.f32 %v555, %v670
  %v673 = vmul.f32 %v671, %v671
  %v674 = vmul.f32 %v672, %v672
  %675 = vadd.xlane.f32.xlu0 %v673
  %v676 = vpop.xlane.xlu0 %675
  %v677 = vsel %vm191, %v674, 0.0
  %678 = vadd.xlane.f32.xlu0 %v677
  %v679 = vpop.xlane.xlu0 %678
  %v680 = vmul.f32 %v676, %v195
  %v681 = vmul.f32 %v679, %v195
  %v682 = vadd.f32 %v680, 1e-05
  %v683 = vadd.f32 %v681, 1e-05
  %v684 = vrsqrt.pop %v682
  %v685 = vrsqrt.pop %v683
  %v686 = vmul.f32 %v671, %v684
  %v687 = vmul.f32 %v672, %v685
  %689 = vset.pattern.permute.xlu0 6
  %690 = vperm.xlu0 %689, %v50
  %v691 = vpop.permute.xlu0 %690
  %694 = vset.pattern.permute.xlu0 6
  %695 = vperm.xlu0 %694, %v51
  %v696 = vpop.permute.xlu0 %695
  %v698 = vmul.f32 %v691, %v686
  %v699 = vmul.f32 %v696, %v687
  %700 = vadd.xlane.f32.xlu0 %v658
  %v701 = vpop.xlane.xlu0 %700
  %v702 = vsel %vm191, %v661, 0.0
  %703 = vadd.xlane.f32.xlu0 %v702
  %v704 = vpop.xlane.xlu0 %703
  %v705 = vmul.f32 %v701, %v195
  %v706 = vmul.f32 %v704, %v195
  %v707 = vsub.f32 %v658, %v705
  %v708 = vsub.f32 %v661, %v706
  %v709 = vmul.f32 %v707, %v707
  %v710 = vmul.f32 %v708, %v708
  %711 = vadd.xlane.f32.xlu0 %v709
  %v712 = vpop.xlane.xlu0 %711
  %v713 = vsel %vm191, %v710, 0.0
  %714 = vadd.xlane.f32.xlu0 %v713
  %v715 = vpop.xlane.xlu0 %714
  %v716 = vmul.f32 %v712, %v195
  %v717 = vmul.f32 %v715, %v195
  %v718 = vadd.f32 %v716, 1e-05
  %v719 = vadd.f32 %v717, 1e-05
  %v720 = vrsqrt.pop %v718
  %v721 = vrsqrt.pop %v719
  %v722 = vmul.f32 %v707, %v720
  %v723 = vmul.f32 %v708, %v721
  %724 = vset.pattern.permute.xlu0 7
  %725 = vperm.xlu0 %724, %v50
  %v726 = vpop.permute.xlu0 %725
  %728 = vset.pattern.permute.xlu0 7
  %729 = vperm.xlu0 %728, %v51
  %v730 = vpop.permute.xlu0 %729
  %v732 = vmul.f32 %v726, %v722
  %v733 = vmul.f32 %v730, %v723
  %v734 = vadd.f32 %v698, %v732
  %v735 = vadd.f32 %v699, %v733
  %736 = vst [vmem:[%s13] sm:$0xff] %v734
  %737 = vst [vmem:[%s13 + $0x8] sm:$0xf] %v735
  // Predicated region
  $region54: #{fwd.18} parent=0 // pred_check
    _
  $region55: #{fwd.18} parent=0 // pred_check_branch
    %739 = sbr.rel (0) target = $region57
  $region56: #{fwd.18} parent=0 // pred_region
    _
  $region57: #{fwd.18} parent=0 // pred_fallthru
    _
  // Predicated region
  $region58: #{fwd.18} parent=0 // pred_check
    _
  $region59: #{fwd.18} parent=0 // pred_check_branch
    %741 = sbr.rel (0) target = $region61
  $region60: #{fwd.18} parent=0 // pred_region
    _
  $region61: #{fwd.18} parent=0 // pred_fallthru
    _
  // Predicated region
  $region62: #{fwd.18} parent=0 // pred_check
    _
  $region63: #{fwd.18} parent=0 // pred_check_branch
    %743 = sbr.rel (0) target = $region65
  $region64: #{fwd.18} parent=0 // pred_region
    _
  $region65: #{fwd.18} parent=0 // pred_fallthru
    _
  // Predicated region
  $region66: #{fwd.18} parent=0 // pred_check
    _
  $region67: #{fwd.18} parent=0 // pred_check_branch
    %745 = sbr.rel (0) target = $region69
  $region68: #{fwd.18} parent=0 // pred_region
    _
  $region69: #{fwd.18} parent=0 // pred_fallthru
    _
  // Predicated region
  $region70: #{fwd.18} parent=0 // pred_check
    _
  $region71: #{fwd.18} parent=0 // pred_check_branch
    %747 = sbr.rel (0) target = $region73
  $region72: #{fwd.18} parent=0 // pred_region
    _
  $region73: #{fwd.18} parent=0 // pred_fallthru
    _
  // Predicated region
  $region74: #{fwd.18} parent=0 // pred_check
    _
  $region75: #{fwd.18} parent=0 // pred_check_branch
    %749 = sbr.rel (0) target = $region77
  $region76: #{fwd.18} parent=0 // pred_region
    _
  $region77: #{fwd.18} parent=0 // pred_fallthru
    _
  // Predicated region
  $region78: #{fwd.18} parent=0 // pred_check
    _
  $region79: #{fwd.18} parent=0 // pred_check_branch
    %751 = sbr.rel (0) target = $region81
  $region80: #{fwd.18} parent=0 // pred_region
    _
  $region81: #{fwd.18} parent=0 // pred_fallthru
    _
  // Predicated region
  $region82: #{fwd.18} parent=0 // pred_check
    _
  $region83: #{fwd.18} parent=0 // pred_check_branch
    %753 = sbr.rel (0) target = $region85
  $region84: #{fwd.18} parent=0 // pred_region
    _
  $region85: #{fwd.18} parent=0 // pred_fallthru
    _
  // Predicated region
  $region86: #{fwd.18} parent=0 // pred_check
    _
  $region87: #{fwd.18} parent=0 // pred_check_branch
    %755 = sbr.rel (0) target = $region89
  $region88: #{fwd.18} parent=0 // pred_region
    _
  $region89: #{fwd.18} parent=0 // pred_fallthru
    _
  // Predicated region
  $region90: #{fwd.18} parent=0 // pred_check
    _
  $region91: #{fwd.18} parent=0 // pred_check_branch
    %757 = sbr.rel (0) target = $region93
  $region92: #{fwd.18} parent=0 // pred_region
    _
  $region93: #{fwd.18} parent=0 // pred_fallthru
    _

// kernel: fwd.19
$region0: #{fwd.19}
  #allocation0 [shape = 'u32[]', space=smem, size = 0x4, offset = 0x4, fixed_abs, tag = 'smem constant byte address 0x4 - core index']
  #allocation1 [shape = 'u32[144,128]{1,0:T(1,128)}', space=vmem, size = 0x12000, scoped, tag = 'internal scratch']
  %s0 = inlined_call_operand.vmem [shape: f32[12,128], index: 0, kind: input, shape index: {}, may-alias: {0,6}]
  %s1 = inlined_call_operand.vmem [shape: bf16[108,128], index: 1, kind: input, shape index: {}]
  %s2 = inlined_call_operand.vmem [shape: bf16[300,128], index: 2, kind: input, shape index: {}]
  %s3 = inlined_call_operand.vmem [shape: bf16[12,108], index: 3, kind: input, shape index: {}]
  %s4 = inlined_call_operand.vmem [shape: bf16[12,300], index: 4, kind: input, shape index: {}]
  %s5 = inlined_call_operand.vmem [shape: f32[12,8], index: 5, kind: input, shape index: {}]
  %s6 = inlined_call_operand.vmem [shape: f32[12,128], index: 6, kind: output, shape index: {}, may-alias: {0,6}]
  %s7 = sld [smem:[#allocation0]]
  $region34: #{fwd.19} parent=0
    _
  %s9 = ssub.s32 1, %s7
  %s10 = scalar_select 0, %s9, %s7
  // Predicated region
  $region2: #{fwd.19} parent=0 // pred_check
    _
  $region3: #{fwd.19} parent=0 // pred_check_branch
    %12 = sbr.rel (0) target = $region5
  $region4: #{fwd.19} parent=0 // pred_region
    _
  $region5: #{fwd.19} parent=0 // pred_fallthru
    _
  // Predicated region
  $region6: #{fwd.19} parent=0 // pred_check
    _
  $region7: #{fwd.19} parent=0 // pred_check_branch
    %14 = sbr.rel (0) target = $region9
  $region8: #{fwd.19} parent=0 // pred_region
    _
  $region9: #{fwd.19} parent=0 // pred_fallthru
    _
  // Predicated region
  $region10: #{fwd.19} parent=0 // pred_check
    _
  $region11: #{fwd.19} parent=0 // pred_check_branch
    %16 = sbr.rel (0) target = $region13
  $region12: #{fwd.19} parent=0 // pred_region
    _
  $region13: #{fwd.19} parent=0 // pred_fallthru
    _
  // Predicated region
  $region14: #{fwd.19} parent=0 // pred_check
    _
  $region15: #{fwd.19} parent=0 // pred_check_branch
    %18 = sbr.rel (0) target = $region17
  $region16: #{fwd.19} parent=0 // pred_region
    _
  $region17: #{fwd.19} parent=0 // pred_fallthru
    _
  // Predicated region
  $region18: #{fwd.19} parent=0 // pred_check
    _
  $region19: #{fwd.19} parent=0 // pred_check_branch
    %20 = sbr.rel (0) target = $region21
  $region20: #{fwd.19} parent=0 // pred_region
    _
  $region21: #{fwd.19} parent=0 // pred_fallthru
    _
  // Predicated region
  $region22: #{fwd.19} parent=0 // pred_check
    _
  $region23: #{fwd.19} parent=0 // pred_check_branch
    %22 = sbr.rel (0) target = $region25
  $region24: #{fwd.19} parent=0 // pred_region
    _
  $region25: #{fwd.19} parent=0 // pred_fallthru
    _
  %v24 = vld [vmem:[%s5] sm:$0xff]
  %v25 = vld [vmem:[%s5 + $0x8] sm:$0xf]
  %v26 = vld [vmem:[%s3] sm:$0xf]
  %v27 = vld [vmem:[%s3 + $0x4] sm:$0x3]
  %v28 = vld [vmem:[%s1] sm:$0xf]
  %v29 = vld [vmem:[%s1 + $0x4] sm:$0xf]
  %v30 = vld [vmem:[%s1 + $0x8] sm:$0xf]
  %v31 = vld [vmem:[%s1 + $0xc] sm:$0xf]
  %v32 = vld [vmem:[%s1 + $0x10] sm:$0xf]
  %v33 = vld [vmem:[%s1 + $0x14] sm:$0xf]
  %v34 = vld [vmem:[%s1 + $0x18] sm:$0xf]
  %v35 = vld [vmem:[%s1 + $0x1c] sm:$0xf]
  %v36 = vld [vmem:[%s1 + $0x20] sm:$0xf]
  %v37 = vld [vmem:[%s1 + $0x24] sm:$0xf]
  %v38 = vld [vmem:[%s1 + $0x28] sm:$0xf]
  %v39 = vld [vmem:[%s1 + $0x2c] sm:$0xf]
  %v40 = vld [vmem:[%s1 + $0x30] sm:$0xf]
  %v41 = vld [vmem:[%s1 + $0x34] sm:$0x3]
  %v44 = vunpack.c.l.b16 %v26
  %v45 = vunpack.c.l.b16 %v27
  %v46 = vpack.c.b16 %v45, %v44
  %v61 = vunpack.c.l.b16 %v28
  %v62 = vunpack.c.l.b16 %v29
  %v63 = vunpack.c.l.b16 %v30
  %v64 = vunpack.c.l.b16 %v31
  %v65 = vunpack.c.l.b16 %v32
  %v66 = vunpack.c.l.b16 %v33
  %v67 = vunpack.c.l.b16 %v34
  %v68 = vunpack.c.l.b16 %v35
  %v69 = vunpack.c.l.b16 %v36
  %v70 = vunpack.c.l.b16 %v37
  %v71 = vunpack.c.l.b16 %v38
  %v72 = vunpack.c.l.b16 %v39
  %v73 = vunpack.c.l.b16 %v40
  %v74 = vunpack.c.l.b16 %v41
  %v75 = vpack.c.b16 %v62, %v61
  %v76 = vpack.c.b16 %v64, %v63
  %v77 = vpack.c.b16 %v66, %v65
  %v78 = vpack.c.b16 %v68, %v67
  %v79 = vpack.c.b16 %v70, %v69
  %v80 = vpack.c.b16 %v72, %v71
  %v81 = vpack.c.b16 %v74, %v73
  %vm88 = vcmask 883712
  %v90 = vsel %vm88, %v46, 0
  %vm92 = vcmask 1045504
  %v94 = vsel %vm92, %v81, 0
  %96 = vmatprep.subr.bf16.mxu0 0
  %97 = vmatpush1.bf16.msra.mxu0 %v75
  %98 = vmatprep.subr.bf16.mxu0 0
  %99 = vmatpush1.bf16.msra.mxu0 %v76
  %100 = vmatprep.subr.bf16.mxu0 0
  %101 = vmatpush1.bf16.msra.mxu0 %v77
  %102 = vmatprep.subr.bf16.mxu0 0
  %103 = vmatpush1.bf16.msra.mxu0 %v78
  %104 = vmatprep.subr.bf16.mxu0 0
  %105 = vmatpush1.bf16.msra.mxu0 %v79
  %106 = vmatprep.subr.bf16.mxu0 0
  %107 = vmatpush1.bf16.msra.mxu0 %v80
  %108 = vmatprep.subr.bf16.mxu0 0
  %109 = vmatpush1.bf16.msra.mxu0 %v94
  %110 = vmatprep.subr.bf16.mxu0 0
  %111 = vmatpush1.bf16.msra.mxu0 0
  %112 = vmatprep.subr.bf16.mxu0 0
  %113 = vmatpush1.bf16.msra.mxu0 0
  %114 = vmatprep.subr.bf16.mxu0 0
  %115 = vmatpush1.bf16.msra.mxu0 0
  %116 = vmatprep.subr.bf16.mxu0 0
  %117 = vmatpush1.bf16.msra.mxu0 0
  %118 = vmatprep.subr.bf16.mxu0 0
  %119 = vmatpush1.bf16.msra.mxu0 0
  %120 = vmatprep.subr.bf16.mxu0 0
  %121 = vmatpush1.bf16.msra.mxu0 0
  %122 = vmatprep.subr.bf16.mxu0 0
  %123 = vmatpush1.bf16.msra.mxu0 0
  %124 = vmatprep.subr.bf16.mxu0 0
  %125 = vmatpush1.bf16.msra.mxu0 0
  %126 = vmatprep.subr.bf16.mxu0 0
  %127 = vmatpush1.bf16.msra.mxu0 0
  %128 = vmatprep.mubr.bf16.mxu0 0
  %129 = vmatmul.mubr.bf16.gmra.mrb[0].mxu0 %v90
  %v130 = vpop.f32.mrb[0].mxu0
  %v131 = vadd.f32 0.0, %v130
  %v132 = vpop.f32.mrb[0].mxu0
  %v133 = vpop.f32.mrb[0].mxu0
  %v134 = vadd.f32 0.0, %v133
  %v135 = vpop.f32.mrb[0].mxu0
  %136 = vdwg.mxu0
  %v137 = vld [vmem:[%s4] sm:$0xff]
  %v138 = vld [vmem:[%s4 + $0x8] sm:$0xf]
  %v139 = vld [vmem:[%s4 + $0xc] sm:$0x33]
  %v140 = vld [vmem:[%s4 + $0x14] sm:$0x3]
  %v141 = vld [vmem:[%s2] sm:$0xf]
  %v142 = vld [vmem:[%s2 + $0x4] sm:$0xf]
  %v143 = vld [vmem:[%s2 + $0x8] sm:$0xf]
  %v144 = vld [vmem:[%s2 + $0xc] sm:$0xf]
  %v145 = vld [vmem:[%s2 + $0x10] sm:$0xf]
  %v146 = vld [vmem:[%s2 + $0x14] sm:$0xf]
  %v147 = vld [vmem:[%s2 + $0x18] sm:$0xf]
  %v148 = vld [vmem:[%s2 + $0x1c] sm:$0xf]
  %v149 = vld [vmem:[%s2 + $0x20] sm:$0xf]
  %v150 = vld [vmem:[%s2 + $0x24] sm:$0xf]
  %v151 = vld [vmem:[%s2 + $0x28] sm:$0xf]
  %v152 = vld [vmem:[%s2 + $0x2c] sm:$0xf]
  %v153 = vld [vmem:[%s2 + $0x30] sm:$0xf]
  %v154 = vld [vmem:[%s2 + $0x34] sm:$0xf]
  %v155 = vld [vmem:[%s2 + $0x38] sm:$0xf]
  %v156 = vld [vmem:[%s2 + $0x3c] sm:$0xf]
  %v157 = vld [vmem:[%s2 + $0x40] sm:$0xf]
  %v158 = vld [vmem:[%s2 + $0x44] sm:$0xf]
  %v159 = vld [vmem:[%s2 + $0x48] sm:$0xf]
  %v160 = vld [vmem:[%s2 + $0x4c] sm:$0xf]
  %v161 = vld [vmem:[%s2 + $0x50] sm:$0xf]
  %v162 = vld [vmem:[%s2 + $0x54] sm:$0xf]
  %v163 = vld [vmem:[%s2 + $0x58] sm:$0xf]
  %v164 = vld [vmem:[%s2 + $0x5c] sm:$0xf]
  %v165 = vld [vmem:[%s2 + $0x60] sm:$0xf]
  %v166 = vld [vmem:[%s2 + $0x64] sm:$0xf]
  %v167 = vld [vmem:[%s2 + $0x68] sm:$0xf]
  %v168 = vld [vmem:[%s2 + $0x6c] sm:$0xf]
  %v169 = vld [vmem:[%s2 + $0x70] sm:$0xf]
  %v170 = vld [vmem:[%s2 + $0x74] sm:$0xf]
  %v171 = vld [vmem:[%s2 + $0x78] sm:$0xf]
  %v172 = vld [vmem:[%s2 + $0x7c] sm:$0xf]
  %v173 = vld [vmem:[%s2 + $0x80] sm:$0xf]
  %v174 = vld [vmem:[%s2 + $0x84] sm:$0xf]
  %v175 = vld [vmem:[%s2 + $0x88] sm:$0xf]
  %v176 = vld [vmem:[%s2 + $0x8c] sm:$0xf]
  %v177 = vld [vmem:[%s2 + $0x90] sm:$0xf]
  %v178 = vld [vmem:[%s2 + $0x94] sm:$0x3]
  %v183 = vunpack.c.l.b16 %v137
  %v184 = vunpack.c.h.b16 %v137
  %v185 = vunpack.c.l.b16 %v138
  %v186 = vunpack.c.l.b16 %v139
  %v187 = vunpack.c.h.b16 %v139
  %v188 = vunpack.c.l.b16 %v140
  %v189 = vpack.c.b16 %v186, %v183
  %v190 = vpack.c.b16 %v187, %v184
  %v191 = vpack.c.b16 %v188, %v185
  %v232 = vunpack.c.l.b16 %v141
  %v233 = vunpack.c.l.b16 %v142
  %v234 = vunpack.c.l.b16 %v143
  %v235 = vunpack.c.l.b16 %v144
  %v236 = vunpack.c.l.b16 %v145
  %v237 = vunpack.c.l.b16 %v146
  %v238 = vunpack.c.l.b16 %v147
  %v239 = vunpack.c.l.b16 %v148
  %v240 = vunpack.c.l.b16 %v149
  %v241 = vunpack.c.l.b16 %v150
  %v242 = vunpack.c.l.b16 %v151
  %v243 = vunpack.c.l.b16 %v152
  %v244 = vunpack.c.l.b16 %v153
  %v245 = vunpack.c.l.b16 %v154
  %v246 = vunpack.c.l.b16 %v155
  %v247 = vunpack.c.l.b16 %v156
  %v248 = vunpack.c.l.b16 %v157
  %v249 = vunpack.c.l.b16 %v158
  %v250 = vunpack.c.l.b16 %v159
  %v251 = vunpack.c.l.b16 %v160
  %v252 = vunpack.c.l.b16 %v161
  %v253 = vunpack.c.l.b16 %v162
  %v254 = vunpack.c.l.b16 %v163
  %v255 = vunpack.c.l.b16 %v164
  %v256 = vunpack.c.l.b16 %v165
  %v257 = vunpack.c.l.b16 %v166
  %v258 = vunpack.c.l.b16 %v167
  %v259 = vunpack.c.l.b16 %v168
  %v260 = vunpack.c.l.b16 %v169
  %v261 = vunpack.c.l.b16 %v170
  %v262 = vunpack.c.l.b16 %v171
  %v263 = vunpack.c.l.b16 %v172
  %v264 = vunpack.c.l.b16 %v173
  %v265 = vunpack.c.l.b16 %v174
  %v266 = vunpack.c.l.b16 %v175
  %v267 = vunpack.c.l.b16 %v176
  %v268 = vunpack.c.l.b16 %v177
  %v269 = vunpack.c.l.b16 %v178
  %v270 = vpack.c.b16 %v233, %v232
  %v271 = vpack.c.b16 %v235, %v234
  %v272 = vpack.c.b16 %v237, %v236
  %v273 = vpack.c.b16 %v239, %v238
  %v274 = vpack.c.b16 %v241, %v240
  %v275 = vpack.c.b16 %v243, %v242
  %v276 = vpack.c.b16 %v245, %v244
  %v277 = vpack.c.b16 %v247, %v246
  %v278 = vpack.c.b16 %v249, %v248
  %v279 = vpack.c.b16 %v251, %v250
  %v280 = vpack.c.b16 %v253, %v252
  %v281 = vpack.c.b16 %v255, %v254
  %v282 = vpack.c.b16 %v257, %v256
  %v283 = vpack.c.b16 %v259, %v258
  %v284 = vpack.c.b16 %v261, %v260
  %v285 = vpack.c.b16 %v263, %v262
  %v286 = vpack.c.b16 %v265, %v264
  %v287 = vpack.c.b16 %v267, %v266
  %v288 = vpack.c.b16 %v269, %v268
  %vm307 = vcmask 359424
  %v309 = vsel %vm307, %v191, 0
  %v312 = vsel %vm92, %v288, 0
  %314 = vmatprep.subr.bf16.mxu0 0
  %315 = vmatpush1.bf16.msra.mxu0 %v270
  %316 = vmatprep.subr.bf16.mxu0 0
  %317 = vmatpush1.bf16.msra.mxu0 %v271
  %318 = vmatprep.subr.bf16.mxu0 0
  %319 = vmatpush1.bf16.msra.mxu0 %v272
  %320 = vmatprep.subr.bf16.mxu0 0
  %321 = vmatpush1.bf16.msra.mxu0 %v273
  %322 = vmatprep.subr.bf16.mxu0 0
  %323 = vmatpush1.bf16.msra.mxu0 %v274
  %324 = vmatprep.subr.bf16.mxu0 0
  %325 = vmatpush1.bf16.msra.mxu0 %v275
  %326 = vmatprep.subr.bf16.mxu0 0
  %327 = vmatpush1.bf16.msra.mxu0 %v276
  %328 = vmatprep.subr.bf16.mxu0 0
  %329 = vmatpush1.bf16.msra.mxu0 %v277
  %330 = vmatprep.subr.bf16.mxu0 0
  %331 = vmatpush1.bf16.msra.mxu0 %v278
  %332 = vmatprep.subr.bf16.mxu0 0
  %333 = vmatpush1.bf16.msra.mxu0 %v279
  %334 = vmatprep.subr.bf16.mxu0 0
  %335 = vmatpush1.bf16.msra.mxu0 %v280
  %336 = vmatprep.subr.bf16.mxu0 0
  %337 = vmatpush1.bf16.msra.mxu0 %v281
  %338 = vmatprep.subr.bf16.mxu0 0
  %339 = vmatpush1.bf16.msra.mxu0 %v282
  %340 = vmatprep.subr.bf16.mxu0 0
  %341 = vmatpush1.bf16.msra.mxu0 %v283
  %342 = vmatprep.subr.bf16.mxu0 0
  %343 = vmatpush1.bf16.msra.mxu0 %v284
  %344 = vmatprep.subr.bf16.mxu0 0
  %345 = vmatpush1.bf16.msra.mxu0 %v285
  %346 = vmatprep.mubr.bf16.mxu0 %v190
  %347 = vmatmul.mubr.bf16.gmra.mrb[0].mxu0 %v189
  %v348 = vpop.f32.mrb[0].mxu0
  %v349 = vadd.f32 0.0, %v348
  %v350 = vpop.f32.mrb[0].mxu0
  %v351 = vpop.f32.mrb[0].mxu0
  %v352 = vadd.f32 0.0, %v351
  %v353 = vpop.f32.mrb[0].mxu0
  %354 = vdwg.mxu0
  %355 = vmatprep.subr.bf16.mxu0 0
  %356 = vmatpush1.bf16.msra.mxu0 %v286
  %357 = vmatprep.subr.bf16.mxu0 0
  %358 = vmatpush1.bf16.msra.mxu0 %v287
  %359 = vmatprep.subr.bf16.mxu0 0
  %360 = vmatpush1.bf16.msra.mxu0 %v312
  %361 = vmatprep.subr.bf16.mxu0 0
  %362 = vmatpush1.bf16.msra.mxu0 0
  %363 = vmatprep.subr.bf16.mxu0 0
  %364 = vmatpush1.bf16.msra.mxu0 0
  %365 = vmatprep.subr.bf16.mxu0 0
  %366 = vmatpush1.bf16.msra.mxu0 0
  %367 = vmatprep.subr.bf16.mxu0 0
  %368 = vmatpush1.bf16.msra.mxu0 0
  %369 = vmatprep.subr.bf16.mxu0 0
  %370 = vmatpush1.bf16.msra.mxu0 0
  %371 = vmatprep.subr.bf16.mxu0 0
  %372 = vmatpush1.bf16.msra.mxu0 0
  %373 = vmatprep.subr.bf16.mxu0 0
  %374 = vmatpush1.bf16.msra.mxu0 0
  %375 = vmatprep.subr.bf16.mxu0 0
  %376 = vmatpush1.bf16.msra.mxu0 0
  %377 = vmatprep.subr.bf16.mxu0 0
  %378 = vmatpush1.bf16.msra.mxu0 0
  %379 = vmatprep.subr.bf16.mxu0 0
  %380 = vmatpush1.bf16.msra.mxu0 0
  %381 = vmatprep.subr.bf16.mxu0 0
  %382 = vmatpush1.bf16.msra.mxu0 0
  %383 = vmatprep.subr.bf16.mxu0 0
  %384 = vmatpush1.bf16.msra.mxu0 0
  %385 = vmatprep.subr.bf16.mxu0 0
  %386 = vmatpush1.bf16.msra.mxu0 0
  %387 = vmatprep.mubr.bf16.mxu0 0
  %388 = vmatmul.mubr.bf16.gmra.mrb[0].mxu0 %v309
  %v389 = vpop.f32.mrb[0].mxu0
  %v390 = vadd.f32 %v349, %v389
  %v391 = vpop.f32.mrb[0].mxu0
  %v392 = vpop.f32.mrb[0].mxu0
  %v393 = vadd.f32 %v352, %v392
  %v394 = vpop.f32.mrb[0].mxu0
  %395 = vdwg.mxu0
  %v396 = vld [vmem:[%s0] sm:$0xff]
  %v397 = vld [vmem:[%s0 + $0x8] sm:$0xf]
  %398 = vadd.xlane.f32.xlu0 %v131
  %v399 = vpop.xlane.xlu0 %398
  %vm400 = vcmask 1043456
  %v401 = vsel %vm400, %v134, 0.0
  %402 = vadd.xlane.f32.xlu0 %v401
  %v403 = vpop.xlane.xlu0 %402
  %v404 = vrcp.pop 128.0
  %v405 = vmul.f32 %v399, %v404
  %v406 = vmul.f32 %v403, %v404
  %v407 = vsub.f32 %v131, %v405
  %v408 = vsub.f32 %v134, %v406
  %v409 = vmul.f32 %v407, %v407
  %v410 = vmul.f32 %v408, %v408
  %411 = vadd.xlane.f32.xlu0 %v409
  %v412 = vpop.xlane.xlu0 %411
  %v413 = vsel %vm400, %v410, 0.0
  %414 = vadd.xlane.f32.xlu0 %v413
  %v415 = vpop.xlane.xlu0 %414
  %v416 = vmul.f32 %v412, %v404
  %v417 = vmul.f32 %v415, %v404
  %v418 = vadd.f32 %v416, 1e-05
  %v419 = vadd.f32 %v417, 1e-05
  %v420 = vrsqrt.pop %v418
  %v421 = vrsqrt.pop %v419
  %v422 = vmul.f32 %v407, %v420
  %v423 = vmul.f32 %v408, %v421
  %425 = vset.pattern.permute.xlu0 4
  %426 = vperm.xlu0 %425, %v24
  %v427 = vpop.permute.xlu0 %426
  %430 = vset.pattern.permute.xlu0 4
  %431 = vperm.xlu0 %430, %v25
  %v432 = vpop.permute.xlu0 %431
  %v434 = vmul.f32 %v427, %v422
  %v435 = vmul.f32 %v432, %v423
  %v436 = vadd.f32 %v396, %v434
  %v437 = vadd.f32 %v397, %v435
  %438 = vadd.xlane.f32.xlu0 %v390
  %v439 = vpop.xlane.xlu0 %438
  %v440 = vsel %vm400, %v393, 0.0
  %441 = vadd.xlane.f32.xlu0 %v440
  %v442 = vpop.xlane.xlu0 %441
  %v443 = vmul.f32 %v439, %v404
  %v444 = vmul.f32 %v442, %v404
  %v445 = vsub.f32 %v390, %v443
  %v446 = vsub.f32 %v393, %v444
  %v447 = vmul.f32 %v445, %v445
  %v448 = vmul.f32 %v446, %v446
  %449 = vadd.xlane.f32.xlu0 %v447
  %v450 = vpop.xlane.xlu0 %449
  %v451 = vsel %vm400, %v448, 0.0
  %452 = vadd.xlane.f32.xlu0 %v451
  %v453 = vpop.xlane.xlu0 %452
  %v454 = vmul.f32 %v450, %v404
  %v455 = vmul.f32 %v453, %v404
  %v456 = vadd.f32 %v454, 1e-05
  %v457 = vadd.f32 %v455, 1e-05
  %v458 = vrsqrt.pop %v456
  %v459 = vrsqrt.pop %v457
  %v460 = vmul.f32 %v445, %v458
  %v461 = vmul.f32 %v446, %v459
  %462 = vset.pattern.permute.xlu0 5
  %463 = vperm.xlu0 %462, %v24
  %v464 = vpop.permute.xlu0 %463
  %466 = vset.pattern.permute.xlu0 5
  %467 = vperm.xlu0 %466, %v25
  %v468 = vpop.permute.xlu0 %467
  %v470 = vmul.f32 %v464, %v460
  %v471 = vmul.f32 %v468, %v461
  %v472 = vadd.f32 %v436, %v470
  %v473 = vadd.f32 %v437, %v471
  %474 = vst [vmem:[%s6] sm:$0xff] %v472
  %475 = vst [vmem:[%s6 + $0x8] sm:$0xf] %v473
  // Predicated region
  $region26: #{fwd.19} parent=0 // pred_check
    _
  $region27: #{fwd.19} parent=0 // pred_check_branch
    %477 = sbr.rel (0) target = $region29
  $region28: #{fwd.19} parent=0 // pred_region
    _
  $region29: #{fwd.19} parent=0 // pred_fallthru
    _
  // Predicated region
  $region30: #{fwd.19} parent=0 // pred_check
    _
  $region31: #{fwd.19} parent=0 // pred_check_branch
    %479 = sbr.rel (0) target = $region33
  $region32: #{fwd.19} parent=0 // pred_region
    _
  $region33: #{fwd.19} parent=0 // pred_fallthru
    _

// kernel: fwd.20
$region0: #{fwd.20}
  #allocation0 [shape = 'u32[]', space=smem, size = 0x4, offset = 0x4, fixed_abs, tag = 'smem constant byte address 0x4 - core index']
  #allocation1 [shape = 'u32[144,128]{1,0:T(1,128)}', space=vmem, size = 0x12000, scoped, tag = 'internal scratch']
  %s0 = inlined_call_operand.vmem [shape: f32[9,4,128], index: 0, kind: input, shape index: {}]
  %s1 = inlined_call_operand.vmem [shape: f32[9,1,128], index: 1, kind: input, shape index: {}]
  %s2 = inlined_call_operand.vmem [shape: bf16[36,128], index: 2, kind: input, shape index: {}]
  %s3 = inlined_call_operand.vmem [shape: bf16[100,128], index: 3, kind: input, shape index: {}]
  %s4 = inlined_call_operand.vmem [shape: bf16[36,128], index: 4, kind: input, shape index: {}]
  %s5 = inlined_call_operand.vmem [shape: bf16[100,128], index: 5, kind: input, shape index: {}]
  %s6 = inlined_call_operand.vmem [shape: bf16[8,36], index: 6, kind: input, shape index: {}]
  %s7 = inlined_call_operand.vmem [shape: bf16[8,100], index: 7, kind: input, shape index: {}]
  %s8 = inlined_call_operand.vmem [shape: bf16[8,36], index: 8, kind: input, shape index: {}]
  %s9 = inlined_call_operand.vmem [shape: bf16[8,100], index: 9, kind: input, shape index: {}]
  %s10 = inlined_call_operand.vmem [shape: bf16[8,4], index: 10, kind: input, shape index: {}, may-alias: {10,11}]
  %s11 = inlined_call_operand.vmem [shape: bf16[8,4], index: 11, kind: input, shape index: {}, may-alias: {10,11}]
  %s12 = inlined_call_operand.vmem [shape: f32[8,8], index: 12, kind: input, shape index: {}]
  %s13 = inlined_call_operand.vmem [shape: f32[8,128], index: 13, kind: output, shape index: {0}]
  %s14 = inlined_call_operand.vmem [shape: f32[4,128], index: 14, kind: output, shape index: {1}]
  %s15 = inlined_call_operand.vmem [shape: f32[4,128], index: 15, kind: output, shape index: {2}]
  %s16 = inlined_call_operand.vmem [shape: bf16[8,128], index: 16, kind: output, shape index: {3}]
  %s17 = inlined_call_operand.vmem [shape: bf16[8,128], index: 17, kind: output, shape index: {4}]
  %18 = xla_tuple %s13, %s14, %s15, %s16, %s17
  %s19 = sld [smem:[#allocation0]]
  $region94: #{fwd.20} parent=0
    _
  %s21 = ssub.s32 1, %s19
  %s22 = scalar_select 0, %s21, %s19
  // Predicated region
  $region2: #{fwd.20} parent=0 // pred_check
    _
  $region3: #{fwd.20} parent=0 // pred_check_branch
    %24 = sbr.rel (0) target = $region5
  $region4: #{fwd.20} parent=0 // pred_region
    _
  $region5: #{fwd.20} parent=0 // pred_fallthru
    _
  // Predicated region
  $region6: #{fwd.20} parent=0 // pred_check
    _
  $region7: #{fwd.20} parent=0 // pred_check_branch
    %26 = sbr.rel (0) target = $region9
  $region8: #{fwd.20} parent=0 // pred_region
    _
  $region9: #{fwd.20} parent=0 // pred_fallthru
    _
  // Predicated region
  $region10: #{fwd.20} parent=0 // pred_check
    _
  $region11: #{fwd.20} parent=0 // pred_check_branch
    %28 = sbr.rel (0) target = $region13
  $region12: #{fwd.20} parent=0 // pred_region
    _
  $region13: #{fwd.20} parent=0 // pred_fallthru
    _
  // Predicated region
  $region14: #{fwd.20} parent=0 // pred_check
    _
  $region15: #{fwd.20} parent=0 // pred_check_branch
    %30 = sbr.rel (0) target = $region17
  $region16: #{fwd.20} parent=0 // pred_region
    _
  $region17: #{fwd.20} parent=0 // pred_fallthru
    _
  // Predicated region
  $region18: #{fwd.20} parent=0 // pred_check
    _
  $region19: #{fwd.20} parent=0 // pred_check_branch
    %32 = sbr.rel (0) target = $region21
  $region20: #{fwd.20} parent=0 // pred_region
    _
  $region21: #{fwd.20} parent=0 // pred_fallthru
    _
  // Predicated region
  $region22: #{fwd.20} parent=0 // pred_check
    _
  $region23: #{fwd.20} parent=0 // pred_check_branch
    %34 = sbr.rel (0) target = $region25
  $region24: #{fwd.20} parent=0 // pred_region
    _
  $region25: #{fwd.20} parent=0 // pred_fallthru
    _
  // Predicated region
  $region26: #{fwd.20} parent=0 // pred_check
    _
  $region27: #{fwd.20} parent=0 // pred_check_branch
    %36 = sbr.rel (0) target = $region29
  $region28: #{fwd.20} parent=0 // pred_region
    _
  $region29: #{fwd.20} parent=0 // pred_fallthru
    _
  // Predicated region
  $region30: #{fwd.20} parent=0 // pred_check
    _
  $region31: #{fwd.20} parent=0 // pred_check_branch
    %38 = sbr.rel (0) target = $region33
  $region32: #{fwd.20} parent=0 // pred_region
    _
  $region33: #{fwd.20} parent=0 // pred_fallthru
    _
  // Predicated region
  $region34: #{fwd.20} parent=0 // pred_check
    _
  $region35: #{fwd.20} parent=0 // pred_check_branch
    %40 = sbr.rel (0) target = $region37
  $region36: #{fwd.20} parent=0 // pred_region
    _
  $region37: #{fwd.20} parent=0 // pred_fallthru
    _
  // Predicated region
  $region38: #{fwd.20} parent=0 // pred_check
    _
  $region39: #{fwd.20} parent=0 // pred_check_branch
    %42 = sbr.rel (0) target = $region41
  $region40: #{fwd.20} parent=0 // pred_region
    _
  $region41: #{fwd.20} parent=0 // pred_fallthru
    _
  // Predicated region
  $region42: #{fwd.20} parent=0 // pred_check
    _
  $region43: #{fwd.20} parent=0 // pred_check_branch
    %44 = sbr.rel (0) target = $region45
  $region44: #{fwd.20} parent=0 // pred_region
    _
  $region45: #{fwd.20} parent=0 // pred_fallthru
    _
  // Predicated region
  $region46: #{fwd.20} parent=0 // pred_check
    _
  $region47: #{fwd.20} parent=0 // pred_check_branch
    %46 = sbr.rel (0) target = $region49
  $region48: #{fwd.20} parent=0 // pred_region
    _
  $region49: #{fwd.20} parent=0 // pred_fallthru
    _
  // Predicated region
  $region50: #{fwd.20} parent=0 // pred_check
    _
  $region51: #{fwd.20} parent=0 // pred_check_branch
    %48 = sbr.rel (0) target = $region53
  $region52: #{fwd.20} parent=0 // pred_region
    _
  $region53: #{fwd.20} parent=0 // pred_fallthru
    _
  %v50 = vld [vmem:[%s12] sm:$0xff]
  %v51 = vld [vmem:[%s0] sm:$0xf]
  %v52 = vld [vmem:[%s1] sm:$0x1]
  %v53 = vsub.f32 %v52, 1.0
  %v54 = vmul.f32 %v53, 1e+30
  %v56 = vlaneseq
  %v57 = vshrl.u32 %v56, 7
  %v58 = vsub.s32 0, %v57
  %v59 = vrot.slane %v54, %v58
  %v61 = vadd.f32 %v51, %v59
  %s62 = scalar_lea.vmem %s0, 4
  %v63 = vld [vmem:[%s62] sm:$0xf]
  %s64 = scalar_lea.vmem %s1, 1
  %v65 = vld [vmem:[%s64] sm:$0x1]
  %v66 = vsub.f32 %v65, 1.0
  %v67 = vmul.f32 %v66, 1e+30
  %v69 = vlaneseq
  %v70 = vshrl.u32 %v69, 7
  %v71 = vsub.s32 0, %v70
  %v72 = vrot.slane %v67, %v71
  %v74 = vadd.f32 %v63, %v72
  %v75 = vmax.f32 %v61, %v74
  %v76 = vadd.f32 %v51, %v63
  %v77 = vadd.f32 %v52, %v65
  %s78 = scalar_lea.vmem %s0, 8
  %v79 = vld [vmem:[%s78] sm:$0xf]
  %s80 = scalar_lea.vmem %s1, 2
  %v81 = vld [vmem:[%s80] sm:$0x1]
  %v82 = vsub.f32 %v81, 1.0
  %v83 = vmul.f32 %v82, 1e+30
  %v85 = vlaneseq
  %v86 = vshrl.u32 %v85, 7
  %v87 = vsub.s32 0, %v86
  %v88 = vrot.slane %v83, %v87
  %v90 = vadd.f32 %v79, %v88
  %v91 = vmax.f32 %v75, %v90
  %v92 = vadd.f32 %v76, %v79
  %v93 = vadd.f32 %v77, %v81
  %s94 = scalar_lea.vmem %s0, 12
  %v95 = vld [vmem:[%s94] sm:$0xf]
  %s96 = scalar_lea.vmem %s1, 3
  %v97 = vld [vmem:[%s96] sm:$0x1]
  %v98 = vsub.f32 %v97, 1.0
  %v99 = vmul.f32 %v98, 1e+30
  %v101 = vlaneseq
  %v102 = vshrl.u32 %v101, 7
  %v103 = vsub.s32 0, %v102
  %v104 = vrot.slane %v99, %v103
  %v106 = vadd.f32 %v95, %v104
  %v107 = vmax.f32 %v91, %v106
  %v108 = vadd.f32 %v92, %v95
  %v109 = vadd.f32 %v93, %v97
  %s110 = scalar_lea.vmem %s0, 16
  %v111 = vld [vmem:[%s110] sm:$0xf]
  %s112 = scalar_lea.vmem %s1, 4
  %v113 = vld [vmem:[%s112] sm:$0x1]
  %v114 = vsub.f32 %v113, 1.0
  %v115 = vmul.f32 %v114, 1e+30
  %v117 = vlaneseq
  %v118 = vshrl.u32 %v117, 7
  %v119 = vsub.s32 0, %v118
  %v120 = vrot.slane %v115, %v119
  %v122 = vadd.f32 %v111, %v120
  %v123 = vmax.f32 %v107, %v122
  %v124 = vadd.f32 %v108, %v111
  %v125 = vadd.f32 %v109, %v113
  %s126 = scalar_lea.vmem %s0, 20
  %v127 = vld [vmem:[%s126] sm:$0xf]
  %s128 = scalar_lea.vmem %s1, 5
  %v129 = vld [vmem:[%s128] sm:$0x1]
  %v130 = vsub.f32 %v129, 1.0
  %v131 = vmul.f32 %v130, 1e+30
  %v133 = vlaneseq
  %v134 = vshrl.u32 %v133, 7
  %v135 = vsub.s32 0, %v134
  %v136 = vrot.slane %v131, %v135
  %v138 = vadd.f32 %v127, %v136
  %v139 = vmax.f32 %v123, %v138
  %v140 = vadd.f32 %v124, %v127
  %v141 = vadd.f32 %v125, %v129
  %s142 = scalar_lea.vmem %s0, 24
  %v143 = vld [vmem:[%s142] sm:$0xf]
  %s144 = scalar_lea.vmem %s1, 6
  %v145 = vld [vmem:[%s144] sm:$0x1]
  %v146 = vsub.f32 %v145, 1.0
  %v147 = vmul.f32 %v146, 1e+30
  %v149 = vlaneseq
  %v150 = vshrl.u32 %v149, 7
  %v151 = vsub.s32 0, %v150
  %v152 = vrot.slane %v147, %v151
  %v154 = vadd.f32 %v143, %v152
  %v155 = vmax.f32 %v139, %v154
  %v156 = vadd.f32 %v140, %v143
  %v157 = vadd.f32 %v141, %v145
  %s158 = scalar_lea.vmem %s0, 28
  %v159 = vld [vmem:[%s158] sm:$0xf]
  %s160 = scalar_lea.vmem %s1, 7
  %v161 = vld [vmem:[%s160] sm:$0x1]
  %v162 = vsub.f32 %v161, 1.0
  %v163 = vmul.f32 %v162, 1e+30
  %v165 = vlaneseq
  %v166 = vshrl.u32 %v165, 7
  %v167 = vsub.s32 0, %v166
  %v168 = vrot.slane %v163, %v167
  %v170 = vadd.f32 %v159, %v168
  %v171 = vmax.f32 %v155, %v170
  %v172 = vadd.f32 %v156, %v159
  %v173 = vadd.f32 %v157, %v161
  %s174 = scalar_lea.vmem %s0, 32
  %v175 = vld [vmem:[%s174] sm:$0xf]
  %s176 = scalar_lea.vmem %s1, 8
  %v177 = vld [vmem:[%s176] sm:$0x1]
  %v178 = vsub.f32 %v177, 1.0
  %v179 = vmul.f32 %v178, 1e+30
  %v181 = vlaneseq
  %v182 = vshrl.u32 %v181, 7
  %v183 = vsub.s32 0, %v182
  %v184 = vrot.slane %v179, %v183
  %v186 = vadd.f32 %v175, %v184
  %v187 = vmax.f32 %v171, %v186
  %v188 = vadd.f32 %v172, %v175
  %v189 = vadd.f32 %v173, %v177
  %vm190 = vcmask 1043456
  %v191 = vsel %vm190, %v187, 0.0
  %192 = vadd.xlane.f32.xlu0 %v191
  %v193 = vpop.xlane.xlu0 %192
  %v194 = vrcp.pop 128.0
  %v195 = vmul.f32 %v193, %v194
  %v196 = vsub.f32 %v187, %v195
  %v197 = vmul.f32 %v196, %v196
  %v198 = vsel %vm190, %v197, 0.0
  %199 = vadd.xlane.f32.xlu0 %v198
  %v200 = vpop.xlane.xlu0 %199
  %v201 = vmul.f32 %v200, %v194
  %v202 = vadd.f32 %v201, 1e-05
  %v203 = vrsqrt.pop %v202
  %v204 = vmul.f32 %v196, %v203
  %205 = vst [vmem:[%s14] sm:$0xf] %v204
  %v207 = vlaneseq
  %v208 = vshrl.u32 %v207, 7
  %v209 = vsub.s32 0, %v208
  %v210 = vrot.slane %v189, %v209
  %v212 = vrcp.pop %v210
  %v213 = vmul.f32 %v188, %v212
  %v214 = vsel %vm190, %v213, 0.0
  %215 = vadd.xlane.f32.xlu0 %v214
  %v216 = vpop.xlane.xlu0 %215
  %v217 = vmul.f32 %v216, %v194
  %v218 = vsub.f32 %v213, %v217
  %v219 = vmul.f32 %v218, %v218
  %v220 = vsel %vm190, %v219, 0.0
  %221 = vadd.xlane.f32.xlu0 %v220
  %v222 = vpop.xlane.xlu0 %221
  %v223 = vmul.f32 %v222, %v194
  %v224 = vadd.f32 %v223, 1e-05
  %v225 = vrsqrt.pop %v224
  %v226 = vmul.f32 %v218, %v225
  %227 = vst [vmem:[%s15] sm:$0xf] %v226
  %v228 = vld [vmem:[%s6] sm:$0xf]
  %v229 = vld [vmem:[%s2] sm:$0xf]
  %v230 = vld [vmem:[%s2 + $0x4] sm:$0xf]
  %v231 = vld [vmem:[%s2 + $0x8] sm:$0xf]
  %v232 = vld [vmem:[%s2 + $0xc] sm:$0xf]
  %v233 = vld [vmem:[%s2 + $0x10] sm:$0x3]
  %v239 = vunpack.c.l.b16 %v229
  %v240 = vunpack.c.l.b16 %v230
  %v241 = vunpack.c.l.b16 %v231
  %v242 = vunpack.c.l.b16 %v232
  %v243 = vunpack.c.l.b16 %v233
  %v244 = vpack.c.b16 %v240, %v239
  %v245 = vpack.c.b16 %v242, %v241
  %v246 = vpack.c.b16 %v243, %v243
  %vm249 = vcmask 293888
  %v251 = vsel %vm249, %v228, 0
  %vm253 = vcmask 1041408
  %v255 = vsel %vm253, %v246, 0
  %257 = vmatprep.subr.bf16.mxu0 0
  %258 = vmatpush1.bf16.msra.mxu0 %v244
  %259 = vmatprep.subr.bf16.mxu0 0
  %260 = vmatpush1.bf16.msra.mxu0 %v245
  %261 = vmatprep.subr.bf16.mxu0 0
  %262 = vmatpush1.bf16.msra.mxu0 %v255
  %263 = vmatprep.subr.bf16.mxu0 0
  %264 = vmatpush1.bf16.msra.mxu0 0
  %265 = vmatprep.subr.bf16.mxu0 0
  %266 = vmatpush1.bf16.msra.mxu0 0
  %267 = vmatprep.subr.bf16.mxu0 0
  %268 = vmatpush1.bf16.msra.mxu0 0
  %269 = vmatprep.subr.bf16.mxu0 0
  %270 = vmatpush1.bf16.msra.mxu0 0
  %271 = vmatprep.subr.bf16.mxu0 0
  %272 = vmatpush1.bf16.msra.mxu0 0
  %273 = vmatprep.subr.bf16.mxu0 0
  %274 = vmatpush1.bf16.msra.mxu0 0
  %275 = vmatprep.subr.bf16.mxu0 0
  %276 = vmatpush1.bf16.msra.mxu0 0
  %277 = vmatprep.subr.bf16.mxu0 0
  %278 = vmatpush1.bf16.msra.mxu0 0
  %279 = vmatprep.subr.bf16.mxu0 0
  %280 = vmatpush1.bf16.msra.mxu0 0
  %281 = vmatprep.subr.bf16.mxu0 0
  %282 = vmatpush1.bf16.msra.mxu0 0
  %283 = vmatprep.subr.bf16.mxu0 0
  %284 = vmatpush1.bf16.msra.mxu0 0
  %285 = vmatprep.subr.bf16.mxu0 0
  %286 = vmatpush1.bf16.msra.mxu0 0
  %287 = vmatprep.subr.bf16.mxu0 0
  %288 = vmatpush1.bf16.msra.mxu0 0
  %289 = vmatprep.mubr.bf16.mxu0 0
  %290 = vmatmul.mubr.bf16.gmra.mrb[0].mxu0 %v251
  %v291 = vpop.f32.mrb[0].mxu0
  %v292 = vadd.f32 0.0, %v291
  %v293 = vpop.f32.mrb[0].mxu0
  %v294 = vpop.f32.mrb[0].mxu0
  %v295 = vpop.f32.mrb[0].mxu0
  %296 = vdwg.mxu0
  %297 = vadd.xlane.f32.xlu0 %v292
  %v298 = vpop.xlane.xlu0 %297
  %v299 = vmul.f32 %v298, %v194
  %v300 = vsub.f32 %v292, %v299
  %v301 = vmul.f32 %v300, %v300
  %302 = vadd.xlane.f32.xlu0 %v301
  %v303 = vpop.xlane.xlu0 %302
  %v304 = vmul.f32 %v303, %v194
  %v305 = vadd.f32 %v304, 1e-05
  %v306 = vrsqrt.pop %v305
  %v307 = vmul.f32 %v300, %v306
  %v308 = vmax.f32 %v307, 0.0
  %v309 = vpack.c.bf16 %v308, %v308
  %310 = vst [vmem:[%s16] sm:$0xf] %v309
  %v311 = vld [vmem:[%s7] sm:$0xf]
  %v312 = vld [vmem:[%s3] sm:$0xf]
  %v313 = vld [vmem:[%s3 + $0x4] sm:$0xf]
  %v314 = vld [vmem:[%s3 + $0x8] sm:$0xf]
  %v315 = vld [vmem:[%s3 + $0xc] sm:$0xf]
  %v316 = vld [vmem:[%s3 + $0x10] sm:$0xf]
  %v317 = vld [vmem:[%s3 + $0x14] sm:$0xf]
  %v318 = vld [vmem:[%s3 + $0x18] sm:$0xf]
  %v319 = vld [vmem:[%s3 + $0x1c] sm:$0xf]
  %v320 = vld [vmem:[%s3 + $0x20] sm:$0xf]
  %v321 = vld [vmem:[%s3 + $0x24] sm:$0xf]
  %v322 = vld [vmem:[%s3 + $0x28] sm:$0xf]
  %v323 = vld [vmem:[%s3 + $0x2c] sm:$0xf]
  %v324 = vld [vmem:[%s3 + $0x30] sm:$0x3]
  %v338 = vunpack.c.l.b16 %v312
  %v339 = vunpack.c.l.b16 %v313
  %v340 = vunpack.c.l.b16 %v314
  %v341 = vunpack.c.l.b16 %v315
  %v342 = vunpack.c.l.b16 %v316
  %v343 = vunpack.c.l.b16 %v317
  %v344 = vunpack.c.l.b16 %v318
  %v345 = vunpack.c.l.b16 %v319
  %v346 = vunpack.c.l.b16 %v320
  %v347 = vunpack.c.l.b16 %v321
  %v348 = vunpack.c.l.b16 %v322
  %v349 = vunpack.c.l.b16 %v323
  %v350 = vunpack.c.l.b16 %v324
  %v351 = vpack.c.b16 %v339, %v338
  %v352 = vpack.c.b16 %v341, %v340
  %v353 = vpack.c.b16 %v343, %v342
  %v354 = vpack.c.b16 %v345, %v344
  %v355 = vpack.c.b16 %v347, %v346
  %v356 = vpack.c.b16 %v349, %v348
  %v357 = vpack.c.b16 %v350, %v350
  %vm364 = vcmask 818176
  %v366 = vsel %vm364, %v311, 0
  %v369 = vsel %vm253, %v357, 0
  %371 = vmatprep.subr.bf16.mxu0 0
  %372 = vmatpush1.bf16.msra.mxu0 %v351
  %373 = vmatprep.subr.bf16.mxu0 0
  %374 = vmatpush1.bf16.msra.mxu0 %v352
  %375 = vmatprep.subr.bf16.mxu0 0
  %376 = vmatpush1.bf16.msra.mxu0 %v353
  %377 = vmatprep.subr.bf16.mxu0 0
  %378 = vmatpush1.bf16.msra.mxu0 %v354
  %379 = vmatprep.subr.bf16.mxu0 0
  %380 = vmatpush1.bf16.msra.mxu0 %v355
  %381 = vmatprep.subr.bf16.mxu0 0
  %382 = vmatpush1.bf16.msra.mxu0 %v356
  %383 = vmatprep.subr.bf16.mxu0 0
  %384 = vmatpush1.bf16.msra.mxu0 %v369
  %385 = vmatprep.subr.bf16.mxu0 0
  %386 = vmatpush1.bf16.msra.mxu0 0
  %387 = vmatprep.subr.bf16.mxu0 0
  %388 = vmatpush1.bf16.msra.mxu0 0
  %389 = vmatprep.subr.bf16.mxu0 0
  %390 = vmatpush1.bf16.msra.mxu0 0
  %391 = vmatprep.subr.bf16.mxu0 0
  %392 = vmatpush1.bf16.msra.mxu0 0
  %393 = vmatprep.subr.bf16.mxu0 0
  %394 = vmatpush1.bf16.msra.mxu0 0
  %395 = vmatprep.subr.bf16.mxu0 0
  %396 = vmatpush1.bf16.msra.mxu0 0
  %397 = vmatprep.subr.bf16.mxu0 0
  %398 = vmatpush1.bf16.msra.mxu0 0
  %399 = vmatprep.subr.bf16.mxu0 0
  %400 = vmatpush1.bf16.msra.mxu0 0
  %401 = vmatprep.subr.bf16.mxu0 0
  %402 = vmatpush1.bf16.msra.mxu0 0
  %403 = vmatprep.mubr.bf16.mxu0 0
  %404 = vmatmul.mubr.bf16.gmra.mrb[0].mxu0 %v366
  %v405 = vpop.f32.mrb[0].mxu0
  %v406 = vadd.f32 0.0, %v405
  %v407 = vpop.f32.mrb[0].mxu0
  %v408 = vpop.f32.mrb[0].mxu0
  %v409 = vpop.f32.mrb[0].mxu0
  %410 = vdwg.mxu0
  %411 = vadd.xlane.f32.xlu0 %v406
  %v412 = vpop.xlane.xlu0 %411
  %v413 = vmul.f32 %v412, %v194
  %v414 = vsub.f32 %v406, %v413
  %v415 = vmul.f32 %v414, %v414
  %416 = vadd.xlane.f32.xlu0 %v415
  %v417 = vpop.xlane.xlu0 %416
  %v418 = vmul.f32 %v417, %v194
  %v419 = vadd.f32 %v418, 1e-05
  %v420 = vrsqrt.pop %v419
  %v421 = vmul.f32 %v414, %v420
  %v422 = vmax.f32 %v421, 0.0
  %v423 = vpack.c.bf16 %v422, %v422
  %424 = vst [vmem:[%s17] sm:$0xf] %v423
  %v425 = vld [vmem:[%s8] sm:$0xf]
  %v426 = vld [vmem:[%s4] sm:$0xf]
  %v427 = vld [vmem:[%s4 + $0x4] sm:$0xf]
  %v428 = vld [vmem:[%s4 + $0x8] sm:$0xf]
  %v429 = vld [vmem:[%s4 + $0xc] sm:$0xf]
  %v430 = vld [vmem:[%s4 + $0x10] sm:$0x3]
  %v436 = vunpack.c.l.b16 %v426
  %v437 = vunpack.c.l.b16 %v427
  %v438 = vunpack.c.l.b16 %v428
  %v439 = vunpack.c.l.b16 %v429
  %v440 = vunpack.c.l.b16 %v430
  %v441 = vpack.c.b16 %v437, %v436
  %v442 = vpack.c.b16 %v439, %v438
  %v443 = vpack.c.b16 %v440, %v440
  %v447 = vsel %vm249, %v425, 0
  %v450 = vsel %vm253, %v443, 0
  %452 = vmatprep.subr.bf16.mxu0 0
  %453 = vmatpush1.bf16.msra.mxu0 %v441
  %454 = vmatprep.subr.bf16.mxu0 0
  %455 = vmatpush1.bf16.msra.mxu0 %v442
  %456 = vmatprep.subr.bf16.mxu0 0
  %457 = vmatpush1.bf16.msra.mxu0 %v450
  %458 = vmatprep.subr.bf16.mxu0 0
  %459 = vmatpush1.bf16.msra.mxu0 0
  %460 = vmatprep.subr.bf16.mxu0 0
  %461 = vmatpush1.bf16.msra.mxu0 0
  %462 = vmatprep.subr.bf16.mxu0 0
  %463 = vmatpush1.bf16.msra.mxu0 0
  %464 = vmatprep.subr.bf16.mxu0 0
  %465 = vmatpush1.bf16.msra.mxu0 0
  %466 = vmatprep.subr.bf16.mxu0 0
  %467 = vmatpush1.bf16.msra.mxu0 0
  %468 = vmatprep.subr.bf16.mxu0 0
  %469 = vmatpush1.bf16.msra.mxu0 0
  %470 = vmatprep.subr.bf16.mxu0 0
  %471 = vmatpush1.bf16.msra.mxu0 0
  %472 = vmatprep.subr.bf16.mxu0 0
  %473 = vmatpush1.bf16.msra.mxu0 0
  %474 = vmatprep.subr.bf16.mxu0 0
  %475 = vmatpush1.bf16.msra.mxu0 0
  %476 = vmatprep.subr.bf16.mxu0 0
  %477 = vmatpush1.bf16.msra.mxu0 0
  %478 = vmatprep.subr.bf16.mxu0 0
  %479 = vmatpush1.bf16.msra.mxu0 0
  %480 = vmatprep.subr.bf16.mxu0 0
  %481 = vmatpush1.bf16.msra.mxu0 0
  %482 = vmatprep.subr.bf16.mxu0 0
  %483 = vmatpush1.bf16.msra.mxu0 0
  %484 = vmatprep.mubr.bf16.mxu0 0
  %485 = vmatmul.mubr.bf16.gmra.mrb[0].mxu0 %v447
  %v486 = vpop.f32.mrb[0].mxu0
  %v487 = vadd.f32 0.0, %v486
  %v488 = vpop.f32.mrb[0].mxu0
  %v489 = vpop.f32.mrb[0].mxu0
  %v490 = vpop.f32.mrb[0].mxu0
  %491 = vdwg.mxu0
  %v492 = vld [vmem:[%s9] sm:$0xf]
  %v493 = vld [vmem:[%s5] sm:$0xf]
  %v494 = vld [vmem:[%s5 + $0x4] sm:$0xf]
  %v495 = vld [vmem:[%s5 + $0x8] sm:$0xf]
  %v496 = vld [vmem:[%s5 + $0xc] sm:$0xf]
  %v497 = vld [vmem:[%s5 + $0x10] sm:$0xf]
  %v498 = vld [vmem:[%s5 + $0x14] sm:$0xf]
  %v499 = vld [vmem:[%s5 + $0x18] sm:$0xf]
  %v500 = vld [vmem:[%s5 + $0x1c] sm:$0xf]
  %v501 = vld [vmem:[%s5 + $0x20] sm:$0xf]
  %v502 = vld [vmem:[%s5 + $0x24] sm:$0xf]
  %v503 = vld [vmem:[%s5 + $0x28] sm:$0xf]
  %v504 = vld [vmem:[%s5 + $0x2c] sm:$0xf]
  %v505 = vld [vmem:[%s5 + $0x30] sm:$0x3]
  %v519 = vunpack.c.l.b16 %v493
  %v520 = vunpack.c.l.b16 %v494
  %v521 = vunpack.c.l.b16 %v495
  %v522 = vunpack.c.l.b16 %v496
  %v523 = vunpack.c.l.b16 %v497
  %v524 = vunpack.c.l.b16 %v498
  %v525 = vunpack.c.l.b16 %v499
  %v526 = vunpack.c.l.b16 %v500
  %v527 = vunpack.c.l.b16 %v501
  %v528 = vunpack.c.l.b16 %v502
  %v529 = vunpack.c.l.b16 %v503
  %v530 = vunpack.c.l.b16 %v504
  %v531 = vunpack.c.l.b16 %v505
  %v532 = vpack.c.b16 %v520, %v519
  %v533 = vpack.c.b16 %v522, %v521
  %v534 = vpack.c.b16 %v524, %v523
  %v535 = vpack.c.b16 %v526, %v525
  %v536 = vpack.c.b16 %v528, %v527
  %v537 = vpack.c.b16 %v530, %v529
  %v538 = vpack.c.b16 %v531, %v531
  %v546 = vsel %vm364, %v492, 0
  %v549 = vsel %vm253, %v538, 0
  %551 = vmatprep.subr.bf16.mxu0 0
  %552 = vmatpush1.bf16.msra.mxu0 %v532
  %553 = vmatprep.subr.bf16.mxu0 0
  %554 = vmatpush1.bf16.msra.mxu0 %v533
  %555 = vmatprep.subr.bf16.mxu0 0
  %556 = vmatpush1.bf16.msra.mxu0 %v534
  %557 = vmatprep.subr.bf16.mxu0 0
  %558 = vmatpush1.bf16.msra.mxu0 %v535
  %559 = vmatprep.subr.bf16.mxu0 0
  %560 = vmatpush1.bf16.msra.mxu0 %v536
  %561 = vmatprep.subr.bf16.mxu0 0
  %562 = vmatpush1.bf16.msra.mxu0 %v537
  %563 = vmatprep.subr.bf16.mxu0 0
  %564 = vmatpush1.bf16.msra.mxu0 %v549
  %565 = vmatprep.subr.bf16.mxu0 0
  %566 = vmatpush1.bf16.msra.mxu0 0
  %567 = vmatprep.subr.bf16.mxu0 0
  %568 = vmatpush1.bf16.msra.mxu0 0
  %569 = vmatprep.subr.bf16.mxu0 0
  %570 = vmatpush1.bf16.msra.mxu0 0
  %571 = vmatprep.subr.bf16.mxu0 0
  %572 = vmatpush1.bf16.msra.mxu0 0
  %573 = vmatprep.subr.bf16.mxu0 0
  %574 = vmatpush1.bf16.msra.mxu0 0
  %575 = vmatprep.subr.bf16.mxu0 0
  %576 = vmatpush1.bf16.msra.mxu0 0
  %577 = vmatprep.subr.bf16.mxu0 0
  %578 = vmatpush1.bf16.msra.mxu0 0
  %579 = vmatprep.subr.bf16.mxu0 0
  %580 = vmatpush1.bf16.msra.mxu0 0
  %581 = vmatprep.subr.bf16.mxu0 0
  %582 = vmatpush1.bf16.msra.mxu0 0
  %583 = vmatprep.mubr.bf16.mxu0 0
  %584 = vmatmul.mubr.bf16.gmra.mrb[0].mxu0 %v546
  %v585 = vpop.f32.mrb[0].mxu0
  %v586 = vadd.f32 0.0, %v585
  %v587 = vpop.f32.mrb[0].mxu0
  %v588 = vpop.f32.mrb[0].mxu0
  %v589 = vpop.f32.mrb[0].mxu0
  %590 = vdwg.mxu0
  %591 = vadd.xlane.f32.xlu0 %v487
  %v592 = vpop.xlane.xlu0 %591
  %v593 = vmul.f32 %v592, %v194
  %v594 = vsub.f32 %v487, %v593
  %v595 = vmul.f32 %v594, %v594
  %596 = vadd.xlane.f32.xlu0 %v595
  %v597 = vpop.xlane.xlu0 %596
  %v598 = vmul.f32 %v597, %v194
  %v599 = vadd.f32 %v598, 1e-05
  %v600 = vrsqrt.pop %v599
  %v601 = vmul.f32 %v594, %v600
  %603 = vset.pattern.permute.xlu0 6
  %604 = vperm.xlu0 %603, %v50
  %v605 = vpop.permute.xlu0 %604
  %v607 = vmul.f32 %v605, %v601
  %608 = vadd.xlane.f32.xlu0 %v586
  %v609 = vpop.xlane.xlu0 %608
  %v610 = vmul.f32 %v609, %v194
  %v611 = vsub.f32 %v586, %v610
  %v612 = vmul.f32 %v611, %v611
  %613 = vadd.xlane.f32.xlu0 %v612
  %v614 = vpop.xlane.xlu0 %613
  %v615 = vmul.f32 %v614, %v194
  %v616 = vadd.f32 %v615, 1e-05
  %v617 = vrsqrt.pop %v616
  %v618 = vmul.f32 %v611, %v617
  %619 = vset.pattern.permute.xlu0 7
  %620 = vperm.xlu0 %619, %v50
  %v621 = vpop.permute.xlu0 %620
  %v623 = vmul.f32 %v621, %v618
  %v624 = vadd.f32 %v607, %v623
  %625 = vst [vmem:[%s13] sm:$0xff] %v624
  // Predicated region
  $region54: #{fwd.20} parent=0 // pred_check
    _
  $region55: #{fwd.20} parent=0 // pred_check_branch
    %627 = sbr.rel (0) target = $region57
  $region56: #{fwd.20} parent=0 // pred_region
    _
  $region57: #{fwd.20} parent=0 // pred_fallthru
    _
  // Predicated region
  $region58: #{fwd.20} parent=0 // pred_check
    _
  $region59: #{fwd.20} parent=0 // pred_check_branch
    %629 = sbr.rel (0) target = $region61
  $region60: #{fwd.20} parent=0 // pred_region
    _
  $region61: #{fwd.20} parent=0 // pred_fallthru
    _
  // Predicated region
  $region62: #{fwd.20} parent=0 // pred_check
    _
  $region63: #{fwd.20} parent=0 // pred_check_branch
    %631 = sbr.rel (0) target = $region65
  $region64: #{fwd.20} parent=0 // pred_region
    _
  $region65: #{fwd.20} parent=0 // pred_fallthru
    _
  // Predicated region
  $region66: #{fwd.20} parent=0 // pred_check
    _
  $region67: #{fwd.20} parent=0 // pred_check_branch
    %633 = sbr.rel (0) target = $region69
  $region68: #{fwd.20} parent=0 // pred_region
    _
  $region69: #{fwd.20} parent=0 // pred_fallthru
    _
  // Predicated region
  $region70: #{fwd.20} parent=0 // pred_check
    _
  $region71: #{fwd.20} parent=0 // pred_check_branch
    %635 = sbr.rel (0) target = $region73
  $region72: #{fwd.20} parent=0 // pred_region
    _
  $region73: #{fwd.20} parent=0 // pred_fallthru
    _
  // Predicated region
  $region74: #{fwd.20} parent=0 // pred_check
    _
  $region75: #{fwd.20} parent=0 // pred_check_branch
    %637 = sbr.rel (0) target = $region77
  $region76: #{fwd.20} parent=0 // pred_region
    _
  $region77: #{fwd.20} parent=0 // pred_fallthru
    _
  // Predicated region
  $region78: #{fwd.20} parent=0 // pred_check
    _
  $region79: #{fwd.20} parent=0 // pred_check_branch
    %639 = sbr.rel (0) target = $region81
  $region80: #{fwd.20} parent=0 // pred_region
    _
  $region81: #{fwd.20} parent=0 // pred_fallthru
    _
  // Predicated region
  $region82: #{fwd.20} parent=0 // pred_check
    _
  $region83: #{fwd.20} parent=0 // pred_check_branch
    %641 = sbr.rel (0) target = $region85
  $region84: #{fwd.20} parent=0 // pred_region
    _
  $region85: #{fwd.20} parent=0 // pred_fallthru
    _
  // Predicated region
  $region86: #{fwd.20} parent=0 // pred_check
    _
  $region87: #{fwd.20} parent=0 // pred_check_branch
    %643 = sbr.rel (0) target = $region89
  $region88: #{fwd.20} parent=0 // pred_region
    _
  $region89: #{fwd.20} parent=0 // pred_fallthru
    _
  // Predicated region
  $region90: #{fwd.20} parent=0 // pred_check
    _
  $region91: #{fwd.20} parent=0 // pred_check_branch
    %645 = sbr.rel (0) target = $region93
  $region92: #{fwd.20} parent=0 // pred_region
    _
  $region93: #{fwd.20} parent=0 // pred_fallthru
    _

// kernel: fwd.21
$region0: #{fwd.21}
  #allocation0 [shape = 'u32[]', space=smem, size = 0x4, offset = 0x4, fixed_abs, tag = 'smem constant byte address 0x4 - core index']
  #allocation1 [shape = 'u32[144,128]{1,0:T(1,128)}', space=vmem, size = 0x12000, scoped, tag = 'internal scratch']
  %s0 = inlined_call_operand.vmem [shape: f32[8,128], index: 0, kind: input, shape index: {}, may-alias: {0,6}]
  %s1 = inlined_call_operand.vmem [shape: bf16[72,128], index: 1, kind: input, shape index: {}]
  %s2 = inlined_call_operand.vmem [shape: bf16[200,128], index: 2, kind: input, shape index: {}]
  %s3 = inlined_call_operand.vmem [shape: bf16[8,72], index: 3, kind: input, shape index: {}]
  %s4 = inlined_call_operand.vmem [shape: bf16[8,200], index: 4, kind: input, shape index: {}]
  %s5 = inlined_call_operand.vmem [shape: f32[8,8], index: 5, kind: input, shape index: {}]
  %s6 = inlined_call_operand.vmem [shape: f32[8,128], index: 6, kind: output, shape index: {}, may-alias: {0,6}]
  %s7 = sld [smem:[#allocation0]]
  $region34: #{fwd.21} parent=0
    _
  %s9 = ssub.s32 1, %s7
  %s10 = scalar_select 0, %s9, %s7
  // Predicated region
  $region2: #{fwd.21} parent=0 // pred_check
    _
  $region3: #{fwd.21} parent=0 // pred_check_branch
    %12 = sbr.rel (0) target = $region5
  $region4: #{fwd.21} parent=0 // pred_region
    _
  $region5: #{fwd.21} parent=0 // pred_fallthru
    _
  // Predicated region
  $region6: #{fwd.21} parent=0 // pred_check
    _
  $region7: #{fwd.21} parent=0 // pred_check_branch
    %14 = sbr.rel (0) target = $region9
  $region8: #{fwd.21} parent=0 // pred_region
    _
  $region9: #{fwd.21} parent=0 // pred_fallthru
    _
  // Predicated region
  $region10: #{fwd.21} parent=0 // pred_check
    _
  $region11: #{fwd.21} parent=0 // pred_check_branch
    %16 = sbr.rel (0) target = $region13
  $region12: #{fwd.21} parent=0 // pred_region
    _
  $region13: #{fwd.21} parent=0 // pred_fallthru
    _
  // Predicated region
  $region14: #{fwd.21} parent=0 // pred_check
    _
  $region15: #{fwd.21} parent=0 // pred_check_branch
    %18 = sbr.rel (0) target = $region17
  $region16: #{fwd.21} parent=0 // pred_region
    _
  $region17: #{fwd.21} parent=0 // pred_fallthru
    _
  // Predicated region
  $region18: #{fwd.21} parent=0 // pred_check
    _
  $region19: #{fwd.21} parent=0 // pred_check_branch
    %20 = sbr.rel (0) target = $region21
  $region20: #{fwd.21} parent=0 // pred_region
    _
  $region21: #{fwd.21} parent=0 // pred_fallthru
    _
  // Predicated region
  $region22: #{fwd.21} parent=0 // pred_check
    _
  $region23: #{fwd.21} parent=0 // pred_check_branch
    %22 = sbr.rel (0) target = $region25
  $region24: #{fwd.21} parent=0 // pred_region
    _
  $region25: #{fwd.21} parent=0 // pred_fallthru
    _
  %v24 = vld [vmem:[%s5] sm:$0xff]
  %v25 = vld [vmem:[%s3] sm:$0xf]
  %v26 = vld [vmem:[%s1] sm:$0xf]
  %v27 = vld [vmem:[%s1 + $0x4] sm:$0xf]
  %v28 = vld [vmem:[%s1 + $0x8] sm:$0xf]
  %v29 = vld [vmem:[%s1 + $0xc] sm:$0xf]
  %v30 = vld [vmem:[%s1 + $0x10] sm:$0xf]
  %v31 = vld [vmem:[%s1 + $0x14] sm:$0xf]
  %v32 = vld [vmem:[%s1 + $0x18] sm:$0xf]
  %v33 = vld [vmem:[%s1 + $0x1c] sm:$0xf]
  %v34 = vld [vmem:[%s1 + $0x20] sm:$0xf]
  %v44 = vunpack.c.l.b16 %v26
  %v45 = vunpack.c.l.b16 %v27
  %v46 = vunpack.c.l.b16 %v28
  %v47 = vunpack.c.l.b16 %v29
  %v48 = vunpack.c.l.b16 %v30
  %v49 = vunpack.c.l.b16 %v31
  %v50 = vunpack.c.l.b16 %v32
  %v51 = vunpack.c.l.b16 %v33
  %v52 = vunpack.c.l.b16 %v34
  %v53 = vpack.c.b16 %v45, %v44
  %v54 = vpack.c.b16 %v47, %v46
  %v55 = vpack.c.b16 %v49, %v48
  %v56 = vpack.c.b16 %v51, %v50
  %v57 = vpack.c.b16 %v52, %v52
  %vm62 = vcmask 588800
  %v64 = vsel %vm62, %v25, 0
  %vm66 = vcmask 1043456
  %v68 = vsel %vm66, %v57, 0
  %70 = vmatprep.subr.bf16.mxu0 0
  %71 = vmatpush1.bf16.msra.mxu0 %v53
  %72 = vmatprep.subr.bf16.mxu0 0
  %73 = vmatpush1.bf16.msra.mxu0 %v54
  %74 = vmatprep.subr.bf16.mxu0 0
  %75 = vmatpush1.bf16.msra.mxu0 %v55
  %76 = vmatprep.subr.bf16.mxu0 0
  %77 = vmatpush1.bf16.msra.mxu0 %v56
  %78 = vmatprep.subr.bf16.mxu0 0
  %79 = vmatpush1.bf16.msra.mxu0 %v68
  %80 = vmatprep.subr.bf16.mxu0 0
  %81 = vmatpush1.bf16.msra.mxu0 0
  %82 = vmatprep.subr.bf16.mxu0 0
  %83 = vmatpush1.bf16.msra.mxu0 0
  %84 = vmatprep.subr.bf16.mxu0 0
  %85 = vmatpush1.bf16.msra.mxu0 0
  %86 = vmatprep.subr.bf16.mxu0 0
  %87 = vmatpush1.bf16.msra.mxu0 0
  %88 = vmatprep.subr.bf16.mxu0 0
  %89 = vmatpush1.bf16.msra.mxu0 0
  %90 = vmatprep.subr.bf16.mxu0 0
  %91 = vmatpush1.bf16.msra.mxu0 0
  %92 = vmatprep.subr.bf16.mxu0 0
  %93 = vmatpush1.bf16.msra.mxu0 0
  %94 = vmatprep.subr.bf16.mxu0 0
  %95 = vmatpush1.bf16.msra.mxu0 0
  %96 = vmatprep.subr.bf16.mxu0 0
  %97 = vmatpush1.bf16.msra.mxu0 0
  %98 = vmatprep.subr.bf16.mxu0 0
  %99 = vmatpush1.bf16.msra.mxu0 0
  %100 = vmatprep.subr.bf16.mxu0 0
  %101 = vmatpush1.bf16.msra.mxu0 0
  %102 = vmatprep.mubr.bf16.mxu0 0
  %103 = vmatmul.mubr.bf16.gmra.mrb[0].mxu0 %v64
  %v104 = vpop.f32.mrb[0].mxu0
  %v105 = vadd.f32 0.0, %v104
  %v106 = vpop.f32.mrb[0].mxu0
  %v107 = vpop.f32.mrb[0].mxu0
  %v108 = vpop.f32.mrb[0].mxu0
  %109 = vdwg.mxu0
  %v110 = vld [vmem:[%s4] sm:$0xff]
  %v111 = vld [vmem:[%s2] sm:$0xf]
  %v112 = vld [vmem:[%s2 + $0x4] sm:$0xf]
  %v113 = vld [vmem:[%s2 + $0x8] sm:$0xf]
  %v114 = vld [vmem:[%s2 + $0xc] sm:$0xf]
  %v115 = vld [vmem:[%s2 + $0x10] sm:$0xf]
  %v116 = vld [vmem:[%s2 + $0x14] sm:$0xf]
  %v117 = vld [vmem:[%s2 + $0x18] sm:$0xf]
  %v118 = vld [vmem:[%s2 + $0x1c] sm:$0xf]
  %v119 = vld [vmem:[%s2 + $0x20] sm:$0xf]
  %v120 = vld [vmem:[%s2 + $0x24] sm:$0xf]
  %v121 = vld [vmem:[%s2 + $0x28] sm:$0xf]
  %v122 = vld [vmem:[%s2 + $0x2c] sm:$0xf]
  %v123 = vld [vmem:[%s2 + $0x30] sm:$0xf]
  %v124 = vld [vmem:[%s2 + $0x34] sm:$0xf]
  %v125 = vld [vmem:[%s2 + $0x38] sm:$0xf]
  %v126 = vld [vmem:[%s2 + $0x3c] sm:$0xf]
  %v127 = vld [vmem:[%s2 + $0x40] sm:$0xf]
  %v128 = vld [vmem:[%s2 + $0x44] sm:$0xf]
  %v129 = vld [vmem:[%s2 + $0x48] sm:$0xf]
  %v130 = vld [vmem:[%s2 + $0x4c] sm:$0xf]
  %v131 = vld [vmem:[%s2 + $0x50] sm:$0xf]
  %v132 = vld [vmem:[%s2 + $0x54] sm:$0xf]
  %v133 = vld [vmem:[%s2 + $0x58] sm:$0xf]
  %v134 = vld [vmem:[%s2 + $0x5c] sm:$0xf]
  %v135 = vld [vmem:[%s2 + $0x60] sm:$0xf]
  %v137 = vunpack.c.l.b16 %v110
  %v138 = vunpack.c.h.b16 %v110
  %v139 = vpack.c.b16 %v137, %v137
  %v140 = vpack.c.b16 %v138, %v138
  %v167 = vunpack.c.l.b16 %v111
  %v168 = vunpack.c.l.b16 %v112
  %v169 = vunpack.c.l.b16 %v113
  %v170 = vunpack.c.l.b16 %v114
  %v171 = vunpack.c.l.b16 %v115
  %v172 = vunpack.c.l.b16 %v116
  %v173 = vunpack.c.l.b16 %v117
  %v174 = vunpack.c.l.b16 %v118
  %v175 = vunpack.c.l.b16 %v119
  %v176 = vunpack.c.l.b16 %v120
  %v177 = vunpack.c.l.b16 %v121
  %v178 = vunpack.c.l.b16 %v122
  %v179 = vunpack.c.l.b16 %v123
  %v180 = vunpack.c.l.b16 %v124
  %v181 = vunpack.c.l.b16 %v125
  %v182 = vunpack.c.l.b16 %v126
  %v183 = vunpack.c.l.b16 %v127
  %v184 = vunpack.c.l.b16 %v128
  %v185 = vunpack.c.l.b16 %v129
  %v186 = vunpack.c.l.b16 %v130
  %v187 = vunpack.c.l.b16 %v131
  %v188 = vunpack.c.l.b16 %v132
  %v189 = vunpack.c.l.b16 %v133
  %v190 = vunpack.c.l.b16 %v134
  %v191 = vunpack.c.l.b16 %v135
  %v192 = vpack.c.b16 %v168, %v167
  %v193 = vpack.c.b16 %v170, %v169
  %v194 = vpack.c.b16 %v172, %v171
  %v195 = vpack.c.b16 %v174, %v173
  %v196 = vpack.c.b16 %v176, %v175
  %v197 = vpack.c.b16 %v178, %v177
  %v198 = vpack.c.b16 %v180, %v179
  %v199 = vpack.c.b16 %v182, %v181
  %v200 = vpack.c.b16 %v184, %v183
  %v201 = vpack.c.b16 %v186, %v185
  %v202 = vpack.c.b16 %v188, %v187
  %v203 = vpack.c.b16 %v190, %v189
  %v204 = vpack.c.b16 %v191, %v191
  %v218 = vsel %vm62, %v140, 0
  %v221 = vsel %vm66, %v204, 0
  %223 = vmatprep.subr.bf16.mxu0 0
  %224 = vmatpush1.bf16.msra.mxu0 %v192
  %225 = vmatprep.subr.bf16.mxu0 0
  %226 = vmatpush1.bf16.msra.mxu0 %v193
  %227 = vmatprep.subr.bf16.mxu0 0
  %228 = vmatpush1.bf16.msra.mxu0 %v194
  %229 = vmatprep.subr.bf16.mxu0 0
  %230 = vmatpush1.bf16.msra.mxu0 %v195
  %231 = vmatprep.subr.bf16.mxu0 0
  %232 = vmatpush1.bf16.msra.mxu0 %v196
  %233 = vmatprep.subr.bf16.mxu0 0
  %234 = vmatpush1.bf16.msra.mxu0 %v197
  %235 = vmatprep.subr.bf16.mxu0 0
  %236 = vmatpush1.bf16.msra.mxu0 %v198
  %237 = vmatprep.subr.bf16.mxu0 0
  %238 = vmatpush1.bf16.msra.mxu0 %v199
  %239 = vmatprep.subr.bf16.mxu0 0
  %240 = vmatpush1.bf16.msra.mxu0 %v200
  %241 = vmatprep.subr.bf16.mxu0 0
  %242 = vmatpush1.bf16.msra.mxu0 %v201
  %243 = vmatprep.subr.bf16.mxu0 0
  %244 = vmatpush1.bf16.msra.mxu0 %v202
  %245 = vmatprep.subr.bf16.mxu0 0
  %246 = vmatpush1.bf16.msra.mxu0 %v203
  %247 = vmatprep.subr.bf16.mxu0 0
  %248 = vmatpush1.bf16.msra.mxu0 %v221
  %249 = vmatprep.subr.bf16.mxu0 0
  %250 = vmatpush1.bf16.msra.mxu0 0
  %251 = vmatprep.subr.bf16.mxu0 0
  %252 = vmatpush1.bf16.msra.mxu0 0
  %253 = vmatprep.subr.bf16.mxu0 0
  %254 = vmatpush1.bf16.msra.mxu0 0
  %255 = vmatprep.mubr.bf16.mxu0 %v218
  %256 = vmatmul.mubr.bf16.gmra.mrb[0].mxu0 %v139
  %v257 = vpop.f32.mrb[0].mxu0
  %v258 = vadd.f32 0.0, %v257
  %v259 = vpop.f32.mrb[0].mxu0
  %v260 = vpop.f32.mrb[0].mxu0
  %v261 = vpop.f32.mrb[0].mxu0
  %262 = vdwg.mxu0
  %v263 = vld [vmem:[%s0] sm:$0xff]
  %264 = vadd.xlane.f32.xlu0 %v105
  %v265 = vpop.xlane.xlu0 %264
  %v266 = vrcp.pop 128.0
  %v267 = vmul.f32 %v265, %v266
  %v268 = vsub.f32 %v105, %v267
  %v269 = vmul.f32 %v268, %v268
  %270 = vadd.xlane.f32.xlu0 %v269
  %v271 = vpop.xlane.xlu0 %270
  %v272 = vmul.f32 %v271, %v266
  %v273 = vadd.f32 %v272, 1e-05
  %v274 = vrsqrt.pop %v273
  %v275 = vmul.f32 %v268, %v274
  %277 = vset.pattern.permute.xlu0 4
  %278 = vperm.xlu0 %277, %v24
  %v279 = vpop.permute.xlu0 %278
  %v281 = vmul.f32 %v279, %v275
  %v282 = vadd.f32 %v263, %v281
  %283 = vadd.xlane.f32.xlu0 %v258
  %v284 = vpop.xlane.xlu0 %283
  %v285 = vmul.f32 %v284, %v266
  %v286 = vsub.f32 %v258, %v285
  %v287 = vmul.f32 %v286, %v286
  %288 = vadd.xlane.f32.xlu0 %v287
  %v289 = vpop.xlane.xlu0 %288
  %v290 = vmul.f32 %v289, %v266
  %v291 = vadd.f32 %v290, 1e-05
  %v292 = vrsqrt.pop %v291
  %v293 = vmul.f32 %v286, %v292
  %294 = vset.pattern.permute.xlu0 5
  %295 = vperm.xlu0 %294, %v24
  %v296 = vpop.permute.xlu0 %295
  %v298 = vmul.f32 %v296, %v293
  %v299 = vadd.f32 %v282, %v298
  %300 = vst [vmem:[%s6] sm:$0xff] %v299
  // Predicated region
  $region26: #{fwd.21} parent=0 // pred_check
    _
  $region27: #{fwd.21} parent=0 // pred_check_branch
    %302 = sbr.rel (0) target = $region29
  $region28: #{fwd.21} parent=0 // pred_region
    _
  $region29: #{fwd.21} parent=0 // pred_fallthru
    _
  // Predicated region
  $region30: #{fwd.21} parent=0 // pred_check
    _
  $region31: #{fwd.21} parent=0 // pred_check_branch
    %304 = sbr.rel (0) target = $region33
  $region32: #{fwd.21} parent=0 // pred_region
    _
  $region33: #{fwd.21} parent=0 // pred_fallthru
    _

// kernel: fwd.22
$region0: #{fwd.22}
  #allocation0 [shape = 'u32[]', space=smem, size = 0x4, offset = 0x4, fixed_abs, tag = 'smem constant byte address 0x4 - core index']
  #allocation1 [shape = 'u32[144,128]{1,0:T(1,128)}', space=vmem, size = 0x12000, scoped, tag = 'internal scratch']
  %s0 = inlined_call_operand.vmem [shape: f32[9,4,128], index: 0, kind: input, shape index: {}]
  %s1 = inlined_call_operand.vmem [shape: f32[9,1,128], index: 1, kind: input, shape index: {}]
  %s2 = inlined_call_operand.vmem [shape: bf16[36,128], index: 2, kind: input, shape index: {}]
  %s3 = inlined_call_operand.vmem [shape: bf16[100,128], index: 3, kind: input, shape index: {}]
  %s4 = inlined_call_operand.vmem [shape: bf16[36,128], index: 4, kind: input, shape index: {}]
  %s5 = inlined_call_operand.vmem [shape: bf16[100,128], index: 5, kind: input, shape index: {}]
  %s6 = inlined_call_operand.vmem [shape: bf16[4,36], index: 6, kind: input, shape index: {}]
  %s7 = inlined_call_operand.vmem [shape: bf16[4,100], index: 7, kind: input, shape index: {}]
  %s8 = inlined_call_operand.vmem [shape: bf16[4,36], index: 8, kind: input, shape index: {}]
  %s9 = inlined_call_operand.vmem [shape: bf16[4,100], index: 9, kind: input, shape index: {}]
  %s10 = inlined_call_operand.vmem [shape: bf16[4,4], index: 10, kind: input, shape index: {}, may-alias: {10,11}]
  %s11 = inlined_call_operand.vmem [shape: bf16[4,4], index: 11, kind: input, shape index: {}, may-alias: {10,11}]
  %s12 = inlined_call_operand.vmem [shape: f32[4,8], index: 12, kind: input, shape index: {}]
  %s13 = inlined_call_operand.vmem [shape: f32[4,128], index: 13, kind: output, shape index: {0}]
  %s14 = inlined_call_operand.vmem [shape: f32[4,128], index: 14, kind: output, shape index: {1}]
  %s15 = inlined_call_operand.vmem [shape: f32[4,128], index: 15, kind: output, shape index: {2}]
  %s16 = inlined_call_operand.vmem [shape: bf16[4,128], index: 16, kind: output, shape index: {3}]
  %s17 = inlined_call_operand.vmem [shape: bf16[4,128], index: 17, kind: output, shape index: {4}]
  %18 = xla_tuple %s13, %s14, %s15, %s16, %s17
  %s19 = sld [smem:[#allocation0]]
  $region94: #{fwd.22} parent=0
    _
  %s21 = ssub.s32 1, %s19
  %s22 = scalar_select 0, %s21, %s19
  // Predicated region
  $region2: #{fwd.22} parent=0 // pred_check
    _
  $region3: #{fwd.22} parent=0 // pred_check_branch
    %24 = sbr.rel (0) target = $region5
  $region4: #{fwd.22} parent=0 // pred_region
    _
  $region5: #{fwd.22} parent=0 // pred_fallthru
    _
  // Predicated region
  $region6: #{fwd.22} parent=0 // pred_check
    _
  $region7: #{fwd.22} parent=0 // pred_check_branch
    %26 = sbr.rel (0) target = $region9
  $region8: #{fwd.22} parent=0 // pred_region
    _
  $region9: #{fwd.22} parent=0 // pred_fallthru
    _
  // Predicated region
  $region10: #{fwd.22} parent=0 // pred_check
    _
  $region11: #{fwd.22} parent=0 // pred_check_branch
    %28 = sbr.rel (0) target = $region13
  $region12: #{fwd.22} parent=0 // pred_region
    _
  $region13: #{fwd.22} parent=0 // pred_fallthru
    _
  // Predicated region
  $region14: #{fwd.22} parent=0 // pred_check
    _
  $region15: #{fwd.22} parent=0 // pred_check_branch
    %30 = sbr.rel (0) target = $region17
  $region16: #{fwd.22} parent=0 // pred_region
    _
  $region17: #{fwd.22} parent=0 // pred_fallthru
    _
  // Predicated region
  $region18: #{fwd.22} parent=0 // pred_check
    _
  $region19: #{fwd.22} parent=0 // pred_check_branch
    %32 = sbr.rel (0) target = $region21
  $region20: #{fwd.22} parent=0 // pred_region
    _
  $region21: #{fwd.22} parent=0 // pred_fallthru
    _
  // Predicated region
  $region22: #{fwd.22} parent=0 // pred_check
    _
  $region23: #{fwd.22} parent=0 // pred_check_branch
    %34 = sbr.rel (0) target = $region25
  $region24: #{fwd.22} parent=0 // pred_region
    _
  $region25: #{fwd.22} parent=0 // pred_fallthru
    _
  // Predicated region
  $region26: #{fwd.22} parent=0 // pred_check
    _
  $region27: #{fwd.22} parent=0 // pred_check_branch
    %36 = sbr.rel (0) target = $region29
  $region28: #{fwd.22} parent=0 // pred_region
    _
  $region29: #{fwd.22} parent=0 // pred_fallthru
    _
  // Predicated region
  $region30: #{fwd.22} parent=0 // pred_check
    _
  $region31: #{fwd.22} parent=0 // pred_check_branch
    %38 = sbr.rel (0) target = $region33
  $region32: #{fwd.22} parent=0 // pred_region
    _
  $region33: #{fwd.22} parent=0 // pred_fallthru
    _
  // Predicated region
  $region34: #{fwd.22} parent=0 // pred_check
    _
  $region35: #{fwd.22} parent=0 // pred_check_branch
    %40 = sbr.rel (0) target = $region37
  $region36: #{fwd.22} parent=0 // pred_region
    _
  $region37: #{fwd.22} parent=0 // pred_fallthru
    _
  // Predicated region
  $region38: #{fwd.22} parent=0 // pred_check
    _
  $region39: #{fwd.22} parent=0 // pred_check_branch
    %42 = sbr.rel (0) target = $region41
  $region40: #{fwd.22} parent=0 // pred_region
    _
  $region41: #{fwd.22} parent=0 // pred_fallthru
    _
  // Predicated region
  $region42: #{fwd.22} parent=0 // pred_check
    _
  $region43: #{fwd.22} parent=0 // pred_check_branch
    %44 = sbr.rel (0) target = $region45
  $region44: #{fwd.22} parent=0 // pred_region
    _
  $region45: #{fwd.22} parent=0 // pred_fallthru
    _
  // Predicated region
  $region46: #{fwd.22} parent=0 // pred_check
    _
  $region47: #{fwd.22} parent=0 // pred_check_branch
    %46 = sbr.rel (0) target = $region49
  $region48: #{fwd.22} parent=0 // pred_region
    _
  $region49: #{fwd.22} parent=0 // pred_fallthru
    _
  // Predicated region
  $region50: #{fwd.22} parent=0 // pred_check
    _
  $region51: #{fwd.22} parent=0 // pred_check_branch
    %48 = sbr.rel (0) target = $region53
  $region52: #{fwd.22} parent=0 // pred_region
    _
  $region53: #{fwd.22} parent=0 // pred_fallthru
    _
  %v50 = vld [vmem:[%s12] sm:$0xf]
  %v51 = vld [vmem:[%s0] sm:$0xf]
  %v52 = vld [vmem:[%s1] sm:$0x1]
  %v53 = vsub.f32 %v52, 1.0
  %v54 = vmul.f32 %v53, 1e+30
  %v56 = vlaneseq
  %v57 = vshrl.u32 %v56, 7
  %v58 = vsub.s32 0, %v57
  %v59 = vrot.slane %v54, %v58
  %v61 = vadd.f32 %v51, %v59
  %s62 = scalar_lea.vmem %s0, 4
  %v63 = vld [vmem:[%s62] sm:$0xf]
  %s64 = scalar_lea.vmem %s1, 1
  %v65 = vld [vmem:[%s64] sm:$0x1]
  %v66 = vsub.f32 %v65, 1.0
  %v67 = vmul.f32 %v66, 1e+30
  %v69 = vlaneseq
  %v70 = vshrl.u32 %v69, 7
  %v71 = vsub.s32 0, %v70
  %v72 = vrot.slane %v67, %v71
  %v74 = vadd.f32 %v63, %v72
  %v75 = vmax.f32 %v61, %v74
  %v76 = vadd.f32 %v51, %v63
  %v77 = vadd.f32 %v52, %v65
  %s78 = scalar_lea.vmem %s0, 8
  %v79 = vld [vmem:[%s78] sm:$0xf]
  %s80 = scalar_lea.vmem %s1, 2
  %v81 = vld [vmem:[%s80] sm:$0x1]
  %v82 = vsub.f32 %v81, 1.0
  %v83 = vmul.f32 %v82, 1e+30
  %v85 = vlaneseq
  %v86 = vshrl.u32 %v85, 7
  %v87 = vsub.s32 0, %v86
  %v88 = vrot.slane %v83, %v87
  %v90 = vadd.f32 %v79, %v88
  %v91 = vmax.f32 %v75, %v90
  %v92 = vadd.f32 %v76, %v79
  %v93 = vadd.f32 %v77, %v81
  %s94 = scalar_lea.vmem %s0, 12
  %v95 = vld [vmem:[%s94] sm:$0xf]
  %s96 = scalar_lea.vmem %s1, 3
  %v97 = vld [vmem:[%s96] sm:$0x1]
  %v98 = vsub.f32 %v97, 1.0
  %v99 = vmul.f32 %v98, 1e+30
  %v101 = vlaneseq
  %v102 = vshrl.u32 %v101, 7
  %v103 = vsub.s32 0, %v102
  %v104 = vrot.slane %v99, %v103
  %v106 = vadd.f32 %v95, %v104
  %v107 = vmax.f32 %v91, %v106
  %v108 = vadd.f32 %v92, %v95
  %v109 = vadd.f32 %v93, %v97
  %s110 = scalar_lea.vmem %s0, 16
  %v111 = vld [vmem:[%s110] sm:$0xf]
  %s112 = scalar_lea.vmem %s1, 4
  %v113 = vld [vmem:[%s112] sm:$0x1]
  %v114 = vsub.f32 %v113, 1.0
  %v115 = vmul.f32 %v114, 1e+30
  %v117 = vlaneseq
  %v118 = vshrl.u32 %v117, 7
  %v119 = vsub.s32 0, %v118
  %v120 = vrot.slane %v115, %v119
  %v122 = vadd.f32 %v111, %v120
  %v123 = vmax.f32 %v107, %v122
  %v124 = vadd.f32 %v108, %v111
  %v125 = vadd.f32 %v109, %v113
  %s126 = scalar_lea.vmem %s0, 20
  %v127 = vld [vmem:[%s126] sm:$0xf]
  %s128 = scalar_lea.vmem %s1, 5
  %v129 = vld [vmem:[%s128] sm:$0x1]
  %v130 = vsub.f32 %v129, 1.0
  %v131 = vmul.f32 %v130, 1e+30
  %v133 = vlaneseq
  %v134 = vshrl.u32 %v133, 7
  %v135 = vsub.s32 0, %v134
  %v136 = vrot.slane %v131, %v135
  %v138 = vadd.f32 %v127, %v136
  %v139 = vmax.f32 %v123, %v138
  %v140 = vadd.f32 %v124, %v127
  %v141 = vadd.f32 %v125, %v129
  %s142 = scalar_lea.vmem %s0, 24
  %v143 = vld [vmem:[%s142] sm:$0xf]
  %s144 = scalar_lea.vmem %s1, 6
  %v145 = vld [vmem:[%s144] sm:$0x1]
  %v146 = vsub.f32 %v145, 1.0
  %v147 = vmul.f32 %v146, 1e+30
  %v149 = vlaneseq
  %v150 = vshrl.u32 %v149, 7
  %v151 = vsub.s32 0, %v150
  %v152 = vrot.slane %v147, %v151
  %v154 = vadd.f32 %v143, %v152
  %v155 = vmax.f32 %v139, %v154
  %v156 = vadd.f32 %v140, %v143
  %v157 = vadd.f32 %v141, %v145
  %s158 = scalar_lea.vmem %s0, 28
  %v159 = vld [vmem:[%s158] sm:$0xf]
  %s160 = scalar_lea.vmem %s1, 7
  %v161 = vld [vmem:[%s160] sm:$0x1]
  %v162 = vsub.f32 %v161, 1.0
  %v163 = vmul.f32 %v162, 1e+30
  %v165 = vlaneseq
  %v166 = vshrl.u32 %v165, 7
  %v167 = vsub.s32 0, %v166
  %v168 = vrot.slane %v163, %v167
  %v170 = vadd.f32 %v159, %v168
  %v171 = vmax.f32 %v155, %v170
  %v172 = vadd.f32 %v156, %v159
  %v173 = vadd.f32 %v157, %v161
  %s174 = scalar_lea.vmem %s0, 32
  %v175 = vld [vmem:[%s174] sm:$0xf]
  %s176 = scalar_lea.vmem %s1, 8
  %v177 = vld [vmem:[%s176] sm:$0x1]
  %v178 = vsub.f32 %v177, 1.0
  %v179 = vmul.f32 %v178, 1e+30
  %v181 = vlaneseq
  %v182 = vshrl.u32 %v181, 7
  %v183 = vsub.s32 0, %v182
  %v184 = vrot.slane %v179, %v183
  %v186 = vadd.f32 %v175, %v184
  %v187 = vmax.f32 %v171, %v186
  %v188 = vadd.f32 %v172, %v175
  %v189 = vadd.f32 %v173, %v177
  %vm190 = vcmask 1043456
  %v191 = vsel %vm190, %v187, 0.0
  %192 = vadd.xlane.f32.xlu0 %v191
  %v193 = vpop.xlane.xlu0 %192
  %v194 = vrcp.pop 128.0
  %v195 = vmul.f32 %v193, %v194
  %v196 = vsub.f32 %v187, %v195
  %v197 = vmul.f32 %v196, %v196
  %v198 = vsel %vm190, %v197, 0.0
  %199 = vadd.xlane.f32.xlu0 %v198
  %v200 = vpop.xlane.xlu0 %199
  %v201 = vmul.f32 %v200, %v194
  %v202 = vadd.f32 %v201, 1e-05
  %v203 = vrsqrt.pop %v202
  %v204 = vmul.f32 %v196, %v203
  %205 = vst [vmem:[%s14] sm:$0xf] %v204
  %v207 = vlaneseq
  %v208 = vshrl.u32 %v207, 7
  %v209 = vsub.s32 0, %v208
  %v210 = vrot.slane %v189, %v209
  %v212 = vrcp.pop %v210
  %v213 = vmul.f32 %v188, %v212
  %v214 = vsel %vm190, %v213, 0.0
  %215 = vadd.xlane.f32.xlu0 %v214
  %v216 = vpop.xlane.xlu0 %215
  %v217 = vmul.f32 %v216, %v194
  %v218 = vsub.f32 %v213, %v217
  %v219 = vmul.f32 %v218, %v218
  %v220 = vsel %vm190, %v219, 0.0
  %221 = vadd.xlane.f32.xlu0 %v220
  %v222 = vpop.xlane.xlu0 %221
  %v223 = vmul.f32 %v222, %v194
  %v224 = vadd.f32 %v223, 1e-05
  %v225 = vrsqrt.pop %v224
  %v226 = vmul.f32 %v218, %v225
  %227 = vst [vmem:[%s15] sm:$0xf] %v226
  %v228 = vld [vmem:[%s6] sm:$0x3]
  %v229 = vld [vmem:[%s2] sm:$0xf]
  %v230 = vld [vmem:[%s2 + $0x4] sm:$0xf]
  %v231 = vld [vmem:[%s2 + $0x8] sm:$0xf]
  %v232 = vld [vmem:[%s2 + $0xc] sm:$0xf]
  %v233 = vld [vmem:[%s2 + $0x10] sm:$0x3]
  %v239 = vunpack.c.l.b16 %v229
  %v240 = vunpack.c.l.b16 %v230
  %v241 = vunpack.c.l.b16 %v231
  %v242 = vunpack.c.l.b16 %v232
  %v243 = vunpack.c.l.b16 %v233
  %v244 = vpack.c.b16 %v240, %v239
  %v245 = vpack.c.b16 %v242, %v241
  %v246 = vpack.c.b16 %v243, %v243
  %vm249 = vcmask 293888
  %v251 = vsel %vm249, %v228, 0
  %vm253 = vcmask 1041408
  %v255 = vsel %vm253, %v246, 0
  %257 = vmatprep.subr.bf16.mxu0 0
  %258 = vmatpush1.bf16.msra.mxu0 %v244
  %259 = vmatprep.subr.bf16.mxu0 0
  %260 = vmatpush1.bf16.msra.mxu0 %v245
  %261 = vmatprep.subr.bf16.mxu0 0
  %262 = vmatpush1.bf16.msra.mxu0 %v255
  %263 = vmatprep.subr.bf16.mxu0 0
  %264 = vmatpush1.bf16.msra.mxu0 0
  %265 = vmatprep.subr.bf16.mxu0 0
  %266 = vmatpush1.bf16.msra.mxu0 0
  %267 = vmatprep.subr.bf16.mxu0 0
  %268 = vmatpush1.bf16.msra.mxu0 0
  %269 = vmatprep.subr.bf16.mxu0 0
  %270 = vmatpush1.bf16.msra.mxu0 0
  %271 = vmatprep.subr.bf16.mxu0 0
  %272 = vmatpush1.bf16.msra.mxu0 0
  %273 = vmatprep.subr.bf16.mxu0 0
  %274 = vmatpush1.bf16.msra.mxu0 0
  %275 = vmatprep.subr.bf16.mxu0 0
  %276 = vmatpush1.bf16.msra.mxu0 0
  %277 = vmatprep.subr.bf16.mxu0 0
  %278 = vmatpush1.bf16.msra.mxu0 0
  %279 = vmatprep.subr.bf16.mxu0 0
  %280 = vmatpush1.bf16.msra.mxu0 0
  %281 = vmatprep.subr.bf16.mxu0 0
  %282 = vmatpush1.bf16.msra.mxu0 0
  %283 = vmatprep.subr.bf16.mxu0 0
  %284 = vmatpush1.bf16.msra.mxu0 0
  %285 = vmatprep.subr.bf16.mxu0 0
  %286 = vmatpush1.bf16.msra.mxu0 0
  %287 = vmatprep.subr.bf16.mxu0 0
  %288 = vmatpush1.bf16.msra.mxu0 0
  %289 = vmatprep.mubr.bf16.mxu0 0
  %290 = vmatmul.mubr.bf16.gmra.mrb[0].mxu0 %v251
  %v291 = vpop.f32.mrb[0].mxu0
  %v292 = vadd.f32 0.0, %v291
  %v293 = vpop.f32.mrb[0].mxu0
  %v294 = vpop.f32.mrb[0].mxu0
  %v295 = vpop.f32.mrb[0].mxu0
  %296 = vdwg.mxu0
  %v297 = vsel %vm190, %v292, 0.0
  %298 = vadd.xlane.f32.xlu0 %v297
  %v299 = vpop.xlane.xlu0 %298
  %v300 = vmul.f32 %v299, %v194
  %v301 = vsub.f32 %v292, %v300
  %v302 = vmul.f32 %v301, %v301
  %v303 = vsel %vm190, %v302, 0.0
  %304 = vadd.xlane.f32.xlu0 %v303
  %v305 = vpop.xlane.xlu0 %304
  %v306 = vmul.f32 %v305, %v194
  %v307 = vadd.f32 %v306, 1e-05
  %v308 = vrsqrt.pop %v307
  %v309 = vmul.f32 %v301, %v308
  %v310 = vmax.f32 %v309, 0.0
  %v311 = vpack.c.bf16 %v310, %v310
  %312 = vst [vmem:[%s16] sm:$0x3] %v311
  %v313 = vld [vmem:[%s7] sm:$0x3]
  %v314 = vld [vmem:[%s3] sm:$0xf]
  %v315 = vld [vmem:[%s3 + $0x4] sm:$0xf]
  %v316 = vld [vmem:[%s3 + $0x8] sm:$0xf]
  %v317 = vld [vmem:[%s3 + $0xc] sm:$0xf]
  %v318 = vld [vmem:[%s3 + $0x10] sm:$0xf]
  %v319 = vld [vmem:[%s3 + $0x14] sm:$0xf]
  %v320 = vld [vmem:[%s3 + $0x18] sm:$0xf]
  %v321 = vld [vmem:[%s3 + $0x1c] sm:$0xf]
  %v322 = vld [vmem:[%s3 + $0x20] sm:$0xf]
  %v323 = vld [vmem:[%s3 + $0x24] sm:$0xf]
  %v324 = vld [vmem:[%s3 + $0x28] sm:$0xf]
  %v325 = vld [vmem:[%s3 + $0x2c] sm:$0xf]
  %v326 = vld [vmem:[%s3 + $0x30] sm:$0x3]
  %v340 = vunpack.c.l.b16 %v314
  %v341 = vunpack.c.l.b16 %v315
  %v342 = vunpack.c.l.b16 %v316
  %v343 = vunpack.c.l.b16 %v317
  %v344 = vunpack.c.l.b16 %v318
  %v345 = vunpack.c.l.b16 %v319
  %v346 = vunpack.c.l.b16 %v320
  %v347 = vunpack.c.l.b16 %v321
  %v348 = vunpack.c.l.b16 %v322
  %v349 = vunpack.c.l.b16 %v323
  %v350 = vunpack.c.l.b16 %v324
  %v351 = vunpack.c.l.b16 %v325
  %v352 = vunpack.c.l.b16 %v326
  %v353 = vpack.c.b16 %v341, %v340
  %v354 = vpack.c.b16 %v343, %v342
  %v355 = vpack.c.b16 %v345, %v344
  %v356 = vpack.c.b16 %v347, %v346
  %v357 = vpack.c.b16 %v349, %v348
  %v358 = vpack.c.b16 %v351, %v350
  %v359 = vpack.c.b16 %v352, %v352
  %vm366 = vcmask 818176
  %v368 = vsel %vm366, %v313, 0
  %v371 = vsel %vm253, %v359, 0
  %373 = vmatprep.subr.bf16.mxu0 0
  %374 = vmatpush1.bf16.msra.mxu0 %v353
  %375 = vmatprep.subr.bf16.mxu0 0
  %376 = vmatpush1.bf16.msra.mxu0 %v354
  %377 = vmatprep.subr.bf16.mxu0 0
  %378 = vmatpush1.bf16.msra.mxu0 %v355
  %379 = vmatprep.subr.bf16.mxu0 0
  %380 = vmatpush1.bf16.msra.mxu0 %v356
  %381 = vmatprep.subr.bf16.mxu0 0
  %382 = vmatpush1.bf16.msra.mxu0 %v357
  %383 = vmatprep.subr.bf16.mxu0 0
  %384 = vmatpush1.bf16.msra.mxu0 %v358
  %385 = vmatprep.subr.bf16.mxu0 0
  %386 = vmatpush1.bf16.msra.mxu0 %v371
  %387 = vmatprep.subr.bf16.mxu0 0
  %388 = vmatpush1.bf16.msra.mxu0 0
  %389 = vmatprep.subr.bf16.mxu0 0
  %390 = vmatpush1.bf16.msra.mxu0 0
  %391 = vmatprep.subr.bf16.mxu0 0
  %392 = vmatpush1.bf16.msra.mxu0 0
  %393 = vmatprep.subr.bf16.mxu0 0
  %394 = vmatpush1.bf16.msra.mxu0 0
  %395 = vmatprep.subr.bf16.mxu0 0
  %396 = vmatpush1.bf16.msra.mxu0 0
  %397 = vmatprep.subr.bf16.mxu0 0
  %398 = vmatpush1.bf16.msra.mxu0 0
  %399 = vmatprep.subr.bf16.mxu0 0
  %400 = vmatpush1.bf16.msra.mxu0 0
  %401 = vmatprep.subr.bf16.mxu0 0
  %402 = vmatpush1.bf16.msra.mxu0 0
  %403 = vmatprep.subr.bf16.mxu0 0
  %404 = vmatpush1.bf16.msra.mxu0 0
  %405 = vmatprep.mubr.bf16.mxu0 0
  %406 = vmatmul.mubr.bf16.gmra.mrb[0].mxu0 %v368
  %v407 = vpop.f32.mrb[0].mxu0
  %v408 = vadd.f32 0.0, %v407
  %v409 = vpop.f32.mrb[0].mxu0
  %v410 = vpop.f32.mrb[0].mxu0
  %v411 = vpop.f32.mrb[0].mxu0
  %412 = vdwg.mxu0
  %v413 = vsel %vm190, %v408, 0.0
  %414 = vadd.xlane.f32.xlu0 %v413
  %v415 = vpop.xlane.xlu0 %414
  %v416 = vmul.f32 %v415, %v194
  %v417 = vsub.f32 %v408, %v416
  %v418 = vmul.f32 %v417, %v417
  %v419 = vsel %vm190, %v418, 0.0
  %420 = vadd.xlane.f32.xlu0 %v419
  %v421 = vpop.xlane.xlu0 %420
  %v422 = vmul.f32 %v421, %v194
  %v423 = vadd.f32 %v422, 1e-05
  %v424 = vrsqrt.pop %v423
  %v425 = vmul.f32 %v417, %v424
  %v426 = vmax.f32 %v425, 0.0
  %v427 = vpack.c.bf16 %v426, %v426
  %428 = vst [vmem:[%s17] sm:$0x3] %v427
  %v429 = vld [vmem:[%s8] sm:$0x3]
  %v430 = vld [vmem:[%s4] sm:$0xf]
  %v431 = vld [vmem:[%s4 + $0x4] sm:$0xf]
  %v432 = vld [vmem:[%s4 + $0x8] sm:$0xf]
  %v433 = vld [vmem:[%s4 + $0xc] sm:$0xf]
  %v434 = vld [vmem:[%s4 + $0x10] sm:$0x3]
  %v440 = vunpack.c.l.b16 %v430
  %v441 = vunpack.c.l.b16 %v431
  %v442 = vunpack.c.l.b16 %v432
  %v443 = vunpack.c.l.b16 %v433
  %v444 = vunpack.c.l.b16 %v434
  %v445 = vpack.c.b16 %v441, %v440
  %v446 = vpack.c.b16 %v443, %v442
  %v447 = vpack.c.b16 %v444, %v444
  %v451 = vsel %vm249, %v429, 0
  %v454 = vsel %vm253, %v447, 0
  %456 = vmatprep.subr.bf16.mxu0 0
  %457 = vmatpush1.bf16.msra.mxu0 %v445
  %458 = vmatprep.subr.bf16.mxu0 0
  %459 = vmatpush1.bf16.msra.mxu0 %v446
  %460 = vmatprep.subr.bf16.mxu0 0
  %461 = vmatpush1.bf16.msra.mxu0 %v454
  %462 = vmatprep.subr.bf16.mxu0 0
  %463 = vmatpush1.bf16.msra.mxu0 0
  %464 = vmatprep.subr.bf16.mxu0 0
  %465 = vmatpush1.bf16.msra.mxu0 0
  %466 = vmatprep.subr.bf16.mxu0 0
  %467 = vmatpush1.bf16.msra.mxu0 0
  %468 = vmatprep.subr.bf16.mxu0 0
  %469 = vmatpush1.bf16.msra.mxu0 0
  %470 = vmatprep.subr.bf16.mxu0 0
  %471 = vmatpush1.bf16.msra.mxu0 0
  %472 = vmatprep.subr.bf16.mxu0 0
  %473 = vmatpush1.bf16.msra.mxu0 0
  %474 = vmatprep.subr.bf16.mxu0 0
  %475 = vmatpush1.bf16.msra.mxu0 0
  %476 = vmatprep.subr.bf16.mxu0 0
  %477 = vmatpush1.bf16.msra.mxu0 0
  %478 = vmatprep.subr.bf16.mxu0 0
  %479 = vmatpush1.bf16.msra.mxu0 0
  %480 = vmatprep.subr.bf16.mxu0 0
  %481 = vmatpush1.bf16.msra.mxu0 0
  %482 = vmatprep.subr.bf16.mxu0 0
  %483 = vmatpush1.bf16.msra.mxu0 0
  %484 = vmatprep.subr.bf16.mxu0 0
  %485 = vmatpush1.bf16.msra.mxu0 0
  %486 = vmatprep.subr.bf16.mxu0 0
  %487 = vmatpush1.bf16.msra.mxu0 0
  %488 = vmatprep.mubr.bf16.mxu0 0
  %489 = vmatmul.mubr.bf16.gmra.mrb[0].mxu0 %v451
  %v490 = vpop.f32.mrb[0].mxu0
  %v491 = vadd.f32 0.0, %v490
  %v492 = vpop.f32.mrb[0].mxu0
  %v493 = vpop.f32.mrb[0].mxu0
  %v494 = vpop.f32.mrb[0].mxu0
  %495 = vdwg.mxu0
  %v496 = vld [vmem:[%s9] sm:$0x3]
  %v497 = vld [vmem:[%s5] sm:$0xf]
  %v498 = vld [vmem:[%s5 + $0x4] sm:$0xf]
  %v499 = vld [vmem:[%s5 + $0x8] sm:$0xf]
  %v500 = vld [vmem:[%s5 + $0xc] sm:$0xf]
  %v501 = vld [vmem:[%s5 + $0x10] sm:$0xf]
  %v502 = vld [vmem:[%s5 + $0x14] sm:$0xf]
  %v503 = vld [vmem:[%s5 + $0x18] sm:$0xf]
  %v504 = vld [vmem:[%s5 + $0x1c] sm:$0xf]
  %v505 = vld [vmem:[%s5 + $0x20] sm:$0xf]
  %v506 = vld [vmem:[%s5 + $0x24] sm:$0xf]
  %v507 = vld [vmem:[%s5 + $0x28] sm:$0xf]
  %v508 = vld [vmem:[%s5 + $0x2c] sm:$0xf]
  %v509 = vld [vmem:[%s5 + $0x30] sm:$0x3]
  %v523 = vunpack.c.l.b16 %v497
  %v524 = vunpack.c.l.b16 %v498
  %v525 = vunpack.c.l.b16 %v499
  %v526 = vunpack.c.l.b16 %v500
  %v527 = vunpack.c.l.b16 %v501
  %v528 = vunpack.c.l.b16 %v502
  %v529 = vunpack.c.l.b16 %v503
  %v530 = vunpack.c.l.b16 %v504
  %v531 = vunpack.c.l.b16 %v505
  %v532 = vunpack.c.l.b16 %v506
  %v533 = vunpack.c.l.b16 %v507
  %v534 = vunpack.c.l.b16 %v508
  %v535 = vunpack.c.l.b16 %v509
  %v536 = vpack.c.b16 %v524, %v523
  %v537 = vpack.c.b16 %v526, %v525
  %v538 = vpack.c.b16 %v528, %v527
  %v539 = vpack.c.b16 %v530, %v529
  %v540 = vpack.c.b16 %v532, %v531
  %v541 = vpack.c.b16 %v534, %v533
  %v542 = vpack.c.b16 %v535, %v535
  %v550 = vsel %vm366, %v496, 0
  %v553 = vsel %vm253, %v542, 0
  %555 = vmatprep.subr.bf16.mxu0 0
  %556 = vmatpush1.bf16.msra.mxu0 %v536
  %557 = vmatprep.subr.bf16.mxu0 0
  %558 = vmatpush1.bf16.msra.mxu0 %v537
  %559 = vmatprep.subr.bf16.mxu0 0
  %560 = vmatpush1.bf16.msra.mxu0 %v538
  %561 = vmatprep.subr.bf16.mxu0 0
  %562 = vmatpush1.bf16.msra.mxu0 %v539
  %563 = vmatprep.subr.bf16.mxu0 0
  %564 = vmatpush1.bf16.msra.mxu0 %v540
  %565 = vmatprep.subr.bf16.mxu0 0
  %566 = vmatpush1.bf16.msra.mxu0 %v541
  %567 = vmatprep.subr.bf16.mxu0 0
  %568 = vmatpush1.bf16.msra.mxu0 %v553
  %569 = vmatprep.subr.bf16.mxu0 0
  %570 = vmatpush1.bf16.msra.mxu0 0
  %571 = vmatprep.subr.bf16.mxu0 0
  %572 = vmatpush1.bf16.msra.mxu0 0
  %573 = vmatprep.subr.bf16.mxu0 0
  %574 = vmatpush1.bf16.msra.mxu0 0
  %575 = vmatprep.subr.bf16.mxu0 0
  %576 = vmatpush1.bf16.msra.mxu0 0
  %577 = vmatprep.subr.bf16.mxu0 0
  %578 = vmatpush1.bf16.msra.mxu0 0
  %579 = vmatprep.subr.bf16.mxu0 0
  %580 = vmatpush1.bf16.msra.mxu0 0
  %581 = vmatprep.subr.bf16.mxu0 0
  %582 = vmatpush1.bf16.msra.mxu0 0
  %583 = vmatprep.subr.bf16.mxu0 0
  %584 = vmatpush1.bf16.msra.mxu0 0
  %585 = vmatprep.subr.bf16.mxu0 0
  %586 = vmatpush1.bf16.msra.mxu0 0
  %587 = vmatprep.mubr.bf16.mxu0 0
  %588 = vmatmul.mubr.bf16.gmra.mrb[0].mxu0 %v550
  %v589 = vpop.f32.mrb[0].mxu0
  %v590 = vadd.f32 0.0, %v589
  %v591 = vpop.f32.mrb[0].mxu0
  %v592 = vpop.f32.mrb[0].mxu0
  %v593 = vpop.f32.mrb[0].mxu0
  %594 = vdwg.mxu0
  %v595 = vsel %vm190, %v491, 0.0
  %596 = vadd.xlane.f32.xlu0 %v595
  %v597 = vpop.xlane.xlu0 %596
  %v598 = vmul.f32 %v597, %v194
  %v599 = vsub.f32 %v491, %v598
  %v600 = vmul.f32 %v599, %v599
  %v601 = vsel %vm190, %v600, 0.0
  %602 = vadd.xlane.f32.xlu0 %v601
  %v603 = vpop.xlane.xlu0 %602
  %v604 = vmul.f32 %v603, %v194
  %v605 = vadd.f32 %v604, 1e-05
  %v606 = vrsqrt.pop %v605
  %v607 = vmul.f32 %v599, %v606
  %609 = vset.pattern.permute.xlu0 6
  %610 = vperm.xlu0 %609, %v50
  %v611 = vpop.permute.xlu0 %610
  %v613 = vmul.f32 %v611, %v607
  %v614 = vsel %vm190, %v590, 0.0
  %615 = vadd.xlane.f32.xlu0 %v614
  %v616 = vpop.xlane.xlu0 %615
  %v617 = vmul.f32 %v616, %v194
  %v618 = vsub.f32 %v590, %v617
  %v619 = vmul.f32 %v618, %v618
  %v620 = vsel %vm190, %v619, 0.0
  %621 = vadd.xlane.f32.xlu0 %v620
  %v622 = vpop.xlane.xlu0 %621
  %v623 = vmul.f32 %v622, %v194
  %v624 = vadd.f32 %v623, 1e-05
  %v625 = vrsqrt.pop %v624
  %v626 = vmul.f32 %v618, %v625
  %627 = vset.pattern.permute.xlu0 7
  %628 = vperm.xlu0 %627, %v50
  %v629 = vpop.permute.xlu0 %628
  %v631 = vmul.f32 %v629, %v626
  %v632 = vadd.f32 %v613, %v631
  %633 = vst [vmem:[%s13] sm:$0xf] %v632
  // Predicated region
  $region54: #{fwd.22} parent=0 // pred_check
    _
  $region55: #{fwd.22} parent=0 // pred_check_branch
    %635 = sbr.rel (0) target = $region57
  $region56: #{fwd.22} parent=0 // pred_region
    _
  $region57: #{fwd.22} parent=0 // pred_fallthru
    _
  // Predicated region
  $region58: #{fwd.22} parent=0 // pred_check
    _
  $region59: #{fwd.22} parent=0 // pred_check_branch
    %637 = sbr.rel (0) target = $region61
  $region60: #{fwd.22} parent=0 // pred_region
    _
  $region61: #{fwd.22} parent=0 // pred_fallthru
    _
  // Predicated region
  $region62: #{fwd.22} parent=0 // pred_check
    _
  $region63: #{fwd.22} parent=0 // pred_check_branch
    %639 = sbr.rel (0) target = $region65
  $region64: #{fwd.22} parent=0 // pred_region
    _
  $region65: #{fwd.22} parent=0 // pred_fallthru
    _
  // Predicated region
  $region66: #{fwd.22} parent=0 // pred_check
    _
  $region67: #{fwd.22} parent=0 // pred_check_branch
    %641 = sbr.rel (0) target = $region69
  $region68: #{fwd.22} parent=0 // pred_region
    _
  $region69: #{fwd.22} parent=0 // pred_fallthru
    _
  // Predicated region
  $region70: #{fwd.22} parent=0 // pred_check
    _
  $region71: #{fwd.22} parent=0 // pred_check_branch
    %643 = sbr.rel (0) target = $region73
  $region72: #{fwd.22} parent=0 // pred_region
    _
  $region73: #{fwd.22} parent=0 // pred_fallthru
    _
  // Predicated region
  $region74: #{fwd.22} parent=0 // pred_check
    _
  $region75: #{fwd.22} parent=0 // pred_check_branch
    %645 = sbr.rel (0) target = $region77
  $region76: #{fwd.22} parent=0 // pred_region
    _
  $region77: #{fwd.22} parent=0 // pred_fallthru
    _
  // Predicated region
  $region78: #{fwd.22} parent=0 // pred_check
    _
  $region79: #{fwd.22} parent=0 // pred_check_branch
    %647 = sbr.rel (0) target = $region81
  $region80: #{fwd.22} parent=0 // pred_region
    _
  $region81: #{fwd.22} parent=0 // pred_fallthru
    _
  // Predicated region
  $region82: #{fwd.22} parent=0 // pred_check
    _
  $region83: #{fwd.22} parent=0 // pred_check_branch
    %649 = sbr.rel (0) target = $region85
  $region84: #{fwd.22} parent=0 // pred_region
    _
  $region85: #{fwd.22} parent=0 // pred_fallthru
    _
  // Predicated region
  $region86: #{fwd.22} parent=0 // pred_check
    _
  $region87: #{fwd.22} parent=0 // pred_check_branch
    %651 = sbr.rel (0) target = $region89
  $region88: #{fwd.22} parent=0 // pred_region
    _
  $region89: #{fwd.22} parent=0 // pred_fallthru
    _
  // Predicated region
  $region90: #{fwd.22} parent=0 // pred_check
    _
  $region91: #{fwd.22} parent=0 // pred_check_branch
    %653 = sbr.rel (0) target = $region93
  $region92: #{fwd.22} parent=0 // pred_region
    _
  $region93: #{fwd.22} parent=0 // pred_fallthru
    _

// kernel: fwd.23
$region0: #{fwd.23}
  #allocation0 [shape = 'u32[]', space=smem, size = 0x4, offset = 0x4, fixed_abs, tag = 'smem constant byte address 0x4 - core index']
  #allocation1 [shape = 'u32[144,128]{1,0:T(1,128)}', space=vmem, size = 0x12000, scoped, tag = 'internal scratch']
  %s0 = inlined_call_operand.vmem [shape: f32[4,128], index: 0, kind: input, shape index: {}, may-alias: {0,6}]
  %s1 = inlined_call_operand.vmem [shape: bf16[36,128], index: 1, kind: input, shape index: {}]
  %s2 = inlined_call_operand.vmem [shape: bf16[100,128], index: 2, kind: input, shape index: {}]
  %s3 = inlined_call_operand.vmem [shape: bf16[4,36], index: 3, kind: input, shape index: {}]
  %s4 = inlined_call_operand.vmem [shape: bf16[4,100], index: 4, kind: input, shape index: {}]
  %s5 = inlined_call_operand.vmem [shape: f32[4,8], index: 5, kind: input, shape index: {}]
  %s6 = inlined_call_operand.vmem [shape: f32[4,128], index: 6, kind: output, shape index: {}, may-alias: {0,6}]
  %s7 = sld [smem:[#allocation0]]
  $region34: #{fwd.23} parent=0
    _
  %s9 = ssub.s32 1, %s7
  %s10 = scalar_select 0, %s9, %s7
  // Predicated region
  $region2: #{fwd.23} parent=0 // pred_check
    _
  $region3: #{fwd.23} parent=0 // pred_check_branch
    %12 = sbr.rel (0) target = $region5
  $region4: #{fwd.23} parent=0 // pred_region
    _
  $region5: #{fwd.23} parent=0 // pred_fallthru
    _
  // Predicated region
  $region6: #{fwd.23} parent=0 // pred_check
    _
  $region7: #{fwd.23} parent=0 // pred_check_branch
    %14 = sbr.rel (0) target = $region9
  $region8: #{fwd.23} parent=0 // pred_region
    _
  $region9: #{fwd.23} parent=0 // pred_fallthru
    _
  // Predicated region
  $region10: #{fwd.23} parent=0 // pred_check
    _
  $region11: #{fwd.23} parent=0 // pred_check_branch
    %16 = sbr.rel (0) target = $region13
  $region12: #{fwd.23} parent=0 // pred_region
    _
  $region13: #{fwd.23} parent=0 // pred_fallthru
    _
  // Predicated region
  $region14: #{fwd.23} parent=0 // pred_check
    _
  $region15: #{fwd.23} parent=0 // pred_check_branch
    %18 = sbr.rel (0) target = $region17
  $region16: #{fwd.23} parent=0 // pred_region
    _
  $region17: #{fwd.23} parent=0 // pred_fallthru
    _
  // Predicated region
  $region18: #{fwd.23} parent=0 // pred_check
    _
  $region19: #{fwd.23} parent=0 // pred_check_branch
    %20 = sbr.rel (0) target = $region21
  $region20: #{fwd.23} parent=0 // pred_region
    _
  $region21: #{fwd.23} parent=0 // pred_fallthru
    _
  // Predicated region
  $region22: #{fwd.23} parent=0 // pred_check
    _
  $region23: #{fwd.23} parent=0 // pred_check_branch
    %22 = sbr.rel (0) target = $region25
  $region24: #{fwd.23} parent=0 // pred_region
    _
  $region25: #{fwd.23} parent=0 // pred_fallthru
    _
  %v24 = vld [vmem:[%s5] sm:$0xf]
  %v25 = vld [vmem:[%s3] sm:$0x3]
  %v26 = vld [vmem:[%s1] sm:$0xf]
  %v27 = vld [vmem:[%s1 + $0x4] sm:$0xf]
  %v28 = vld [vmem:[%s1 + $0x8] sm:$0xf]
  %v29 = vld [vmem:[%s1 + $0xc] sm:$0xf]
  %v30 = vld [vmem:[%s1 + $0x10] sm:$0x3]
  %v36 = vunpack.c.l.b16 %v26
  %v37 = vunpack.c.l.b16 %v27
  %v38 = vunpack.c.l.b16 %v28
  %v39 = vunpack.c.l.b16 %v29
  %v40 = vunpack.c.l.b16 %v30
  %v41 = vpack.c.b16 %v37, %v36
  %v42 = vpack.c.b16 %v39, %v38
  %v43 = vpack.c.b16 %v40, %v40
  %vm46 = vcmask 293888
  %v48 = vsel %vm46, %v25, 0
  %vm50 = vcmask 1041408
  %v52 = vsel %vm50, %v43, 0
  %54 = vmatprep.subr.bf16.mxu0 0
  %55 = vmatpush1.bf16.msra.mxu0 %v41
  %56 = vmatprep.subr.bf16.mxu0 0
  %57 = vmatpush1.bf16.msra.mxu0 %v42
  %58 = vmatprep.subr.bf16.mxu0 0
  %59 = vmatpush1.bf16.msra.mxu0 %v52
  %60 = vmatprep.subr.bf16.mxu0 0
  %61 = vmatpush1.bf16.msra.mxu0 0
  %62 = vmatprep.subr.bf16.mxu0 0
  %63 = vmatpush1.bf16.msra.mxu0 0
  %64 = vmatprep.subr.bf16.mxu0 0
  %65 = vmatpush1.bf16.msra.mxu0 0
  %66 = vmatprep.subr.bf16.mxu0 0
  %67 = vmatpush1.bf16.msra.mxu0 0
  %68 = vmatprep.subr.bf16.mxu0 0
  %69 = vmatpush1.bf16.msra.mxu0 0
  %70 = vmatprep.subr.bf16.mxu0 0
  %71 = vmatpush1.bf16.msra.mxu0 0
  %72 = vmatprep.subr.bf16.mxu0 0
  %73 = vmatpush1.bf16.msra.mxu0 0
  %74 = vmatprep.subr.bf16.mxu0 0
  %75 = vmatpush1.bf16.msra.mxu0 0
  %76 = vmatprep.subr.bf16.mxu0 0
  %77 = vmatpush1.bf16.msra.mxu0 0
  %78 = vmatprep.subr.bf16.mxu0 0
  %79 = vmatpush1.bf16.msra.mxu0 0
  %80 = vmatprep.subr.bf16.mxu0 0
  %81 = vmatpush1.bf16.msra.mxu0 0
  %82 = vmatprep.subr.bf16.mxu0 0
  %83 = vmatpush1.bf16.msra.mxu0 0
  %84 = vmatprep.subr.bf16.mxu0 0
  %85 = vmatpush1.bf16.msra.mxu0 0
  %86 = vmatprep.mubr.bf16.mxu0 0
  %87 = vmatmul.mubr.bf16.gmra.mrb[0].mxu0 %v48
  %v88 = vpop.f32.mrb[0].mxu0
  %v89 = vadd.f32 0.0, %v88
  %v90 = vpop.f32.mrb[0].mxu0
  %v91 = vpop.f32.mrb[0].mxu0
  %v92 = vpop.f32.mrb[0].mxu0
  %93 = vdwg.mxu0
  %v94 = vld [vmem:[%s4] sm:$0x3]
  %v95 = vld [vmem:[%s2] sm:$0xf]
  %v96 = vld [vmem:[%s2 + $0x4] sm:$0xf]
  %v97 = vld [vmem:[%s2 + $0x8] sm:$0xf]
  %v98 = vld [vmem:[%s2 + $0xc] sm:$0xf]
  %v99 = vld [vmem:[%s2 + $0x10] sm:$0xf]
  %v100 = vld [vmem:[%s2 + $0x14] sm:$0xf]
  %v101 = vld [vmem:[%s2 + $0x18] sm:$0xf]
  %v102 = vld [vmem:[%s2 + $0x1c] sm:$0xf]
  %v103 = vld [vmem:[%s2 + $0x20] sm:$0xf]
  %v104 = vld [vmem:[%s2 + $0x24] sm:$0xf]
  %v105 = vld [vmem:[%s2 + $0x28] sm:$0xf]
  %v106 = vld [vmem:[%s2 + $0x2c] sm:$0xf]
  %v107 = vld [vmem:[%s2 + $0x30] sm:$0x3]
  %v121 = vunpack.c.l.b16 %v95
  %v122 = vunpack.c.l.b16 %v96
  %v123 = vunpack.c.l.b16 %v97
  %v124 = vunpack.c.l.b16 %v98
  %v125 = vunpack.c.l.b16 %v99
  %v126 = vunpack.c.l.b16 %v100
  %v127 = vunpack.c.l.b16 %v101
  %v128 = vunpack.c.l.b16 %v102
  %v129 = vunpack.c.l.b16 %v103
  %v130 = vunpack.c.l.b16 %v104
  %v131 = vunpack.c.l.b16 %v105
  %v132 = vunpack.c.l.b16 %v106
  %v133 = vunpack.c.l.b16 %v107
  %v134 = vpack.c.b16 %v122, %v121
  %v135 = vpack.c.b16 %v124, %v123
  %v136 = vpack.c.b16 %v126, %v125
  %v137 = vpack.c.b16 %v128, %v127
  %v138 = vpack.c.b16 %v130, %v129
  %v139 = vpack.c.b16 %v132, %v131
  %v140 = vpack.c.b16 %v133, %v133
  %vm147 = vcmask 818176
  %v149 = vsel %vm147, %v94, 0
  %v152 = vsel %vm50, %v140, 0
  %154 = vmatprep.subr.bf16.mxu0 0
  %155 = vmatpush1.bf16.msra.mxu0 %v134
  %156 = vmatprep.subr.bf16.mxu0 0
  %157 = vmatpush1.bf16.msra.mxu0 %v135
  %158 = vmatprep.subr.bf16.mxu0 0
  %159 = vmatpush1.bf16.msra.mxu0 %v136
  %160 = vmatprep.subr.bf16.mxu0 0
  %161 = vmatpush1.bf16.msra.mxu0 %v137
  %162 = vmatprep.subr.bf16.mxu0 0
  %163 = vmatpush1.bf16.msra.mxu0 %v138
  %164 = vmatprep.subr.bf16.mxu0 0
  %165 = vmatpush1.bf16.msra.mxu0 %v139
  %166 = vmatprep.subr.bf16.mxu0 0
  %167 = vmatpush1.bf16.msra.mxu0 %v152
  %168 = vmatprep.subr.bf16.mxu0 0
  %169 = vmatpush1.bf16.msra.mxu0 0
  %170 = vmatprep.subr.bf16.mxu0 0
  %171 = vmatpush1.bf16.msra.mxu0 0
  %172 = vmatprep.subr.bf16.mxu0 0
  %173 = vmatpush1.bf16.msra.mxu0 0
  %174 = vmatprep.subr.bf16.mxu0 0
  %175 = vmatpush1.bf16.msra.mxu0 0
  %176 = vmatprep.subr.bf16.mxu0 0
  %177 = vmatpush1.bf16.msra.mxu0 0
  %178 = vmatprep.subr.bf16.mxu0 0
  %179 = vmatpush1.bf16.msra.mxu0 0
  %180 = vmatprep.subr.bf16.mxu0 0
  %181 = vmatpush1.bf16.msra.mxu0 0
  %182 = vmatprep.subr.bf16.mxu0 0
  %183 = vmatpush1.bf16.msra.mxu0 0
  %184 = vmatprep.subr.bf16.mxu0 0
  %185 = vmatpush1.bf16.msra.mxu0 0
  %186 = vmatprep.mubr.bf16.mxu0 0
  %187 = vmatmul.mubr.bf16.gmra.mrb[0].mxu0 %v149
  %v188 = vpop.f32.mrb[0].mxu0
  %v189 = vadd.f32 0.0, %v188
  %v190 = vpop.f32.mrb[0].mxu0
  %v191 = vpop.f32.mrb[0].mxu0
  %v192 = vpop.f32.mrb[0].mxu0
  %193 = vdwg.mxu0
  %v194 = vld [vmem:[%s0] sm:$0xf]
  %vm195 = vcmask 1043456
  %v196 = vsel %vm195, %v89, 0.0
  %197 = vadd.xlane.f32.xlu0 %v196
  %v198 = vpop.xlane.xlu0 %197
  %v199 = vrcp.pop 128.0
  %v200 = vmul.f32 %v198, %v199
  %v201 = vsub.f32 %v89, %v200
  %v202 = vmul.f32 %v201, %v201
  %v203 = vsel %vm195, %v202, 0.0
  %204 = vadd.xlane.f32.xlu0 %v203
  %v205 = vpop.xlane.xlu0 %204
  %v206 = vmul.f32 %v205, %v199
  %v207 = vadd.f32 %v206, 1e-05
  %v208 = vrsqrt.pop %v207
  %v209 = vmul.f32 %v201, %v208
  %211 = vset.pattern.permute.xlu0 4
  %212 = vperm.xlu0 %211, %v24
  %v213 = vpop.permute.xlu0 %212
  %v215 = vmul.f32 %v213, %v209
  %v216 = vadd.f32 %v194, %v215
  %v217 = vsel %vm195, %v189, 0.0
  %218 = vadd.xlane.f32.xlu0 %v217
  %v219 = vpop.xlane.xlu0 %218
  %v220 = vmul.f32 %v219, %v199
  %v221 = vsub.f32 %v189, %v220
  %v222 = vmul.f32 %v221, %v221
  %v223 = vsel %vm195, %v222, 0.0
  %224 = vadd.xlane.f32.xlu0 %v223
  %v225 = vpop.xlane.xlu0 %224
  %v226 = vmul.f32 %v225, %v199
  %v227 = vadd.f32 %v226, 1e-05
  %v228 = vrsqrt.pop %v227
  %v229 = vmul.f32 %v221, %v228
  %230 = vset.pattern.permute.xlu0 5
  %231 = vperm.xlu0 %230, %v24
  %v232 = vpop.permute.xlu0 %231
  %v234 = vmul.f32 %v232, %v229
  %v235 = vadd.f32 %v216, %v234
  %236 = vst [vmem:[%s6] sm:$0xf] %v235
  // Predicated region
  $region26: #{fwd.23} parent=0 // pred_check
    _
  $region27: #{fwd.23} parent=0 // pred_check_branch
    %238 = sbr.rel (0) target = $region29
  $region28: #{fwd.23} parent=0 // pred_region
    _
  $region29: #{fwd.23} parent=0 // pred_fallthru
    _
  // Predicated region
  $region30: #{fwd.23} parent=0 // pred_check
    _
  $region31: #{fwd.23} parent=0 // pred_check_branch
    %240 = sbr.rel (0) target = $region33
  $region32: #{fwd.23} parent=0 // pred_region
    _
  $region33: #{fwd.23} parent=0 // pred_fallthru
    _

</llo_original>
